<compile_context>
chip_gen: v7x
topology: tpu7x:2x2x1
jax: 0.10.0
libtpu: 0.0.40
codegen_flags: <defaults>
</compile_context>

<pallas_src>
import numpy as np
import jax
import jax.numpy as jnp
from jax import lax
from jax.experimental import pallas as pl
from jax.experimental.pallas import tpu as pltpu

# ---- configuration (module defaults, small-but-consistent test shapes) ----
B, C, H, W = 2, 64, 8, 8
KERNELS = [1, 3, 5]
GROUP = 32
REDUCTION = 16
L = 32
D = max(L, C // REDUCTION)       # = 32
K = len(KERNELS)
KK = max(KERNELS)                # unified 5x5 tap window
PAD = KK // 2
HP, WP = H + 2 * PAD, W + 2 * PAD
CG = C // GROUP                  # channels per group = 2
BN_EPS = 1e-5

HW = H * W
M = B * HW                       # 128 rows: batch fused into one matmul
REF_PRECISION = lax.Precision.HIGHEST


# --------------------------- Pallas kernel ---------------------------------
def sk_attention_kernel(xp_ref, w1_ref, w3_ref, w5_ref, bias_ref, avg_ref,
                        wfc_ref, bfc_ref, wfcs_ref, bfcs_ref, out_ref):
    """Whole (batch-fused) forward pass in one grid step.

    xp_ref   : (B*HP, WP, C) f32   zero-padded NHWC input, rows = b*HP + h
    w1_ref   : (C, C)        bf16  k=1 branch weight (group-masked, BN folded)
    w3_ref   : (9, C, C)     bf16  k=3 branch, one (C,C) block per tap
    w5_ref   : (25, C, C)    bf16  k=5 branch, one (C,C) block per tap
    bias_ref : (K, 1, C)     f32   folded conv-bias + BN shift per branch
    avg_ref  : (B, M)        bf16  block spatial-averaging matrix (1/HW)
    wfc_ref  : (C, D)        bf16  fc weight (transposed)
    bfc_ref  : (1, D)        f32   fc bias
    wfcs_ref : (K, D, C)     bf16  per-branch fc weights (transposed)
    bfcs_ref : (K, 1, C)     f32   per-branch fc biases
    out_ref  : (M, C)        bf16  output rows = b*H*W + h*W + w
    """
    f32 = jnp.float32
    xp = xp_ref[...]                                        # (B*HP, WP, C) f32

    acc1 = jnp.zeros((M, C), f32)
    acc3 = jnp.zeros((M, C), f32)
    acc5 = jnp.zeros((M, C), f32)

    # All grouped convs: 35 accumulating (M,C)@(C,C) bf16 MXU matmuls on tap
    # blocks built in-kernel (no patch matrix ever touches HBM).  The f32
    # input keeps the sublane slice / reshape on the clean (8,128) layout; we
    # cast each tap block to bf16 right before the dot.
    for dw in range(KK):                                    # static unroll
        xw = xp[:, dw:dw + W, :]                            # (B*HP, W, C)
        for dh in range(KK):
            rows = [xw[b * HP + dh: b * HP + dh + H] for b in range(B)]
            x_tap = jnp.concatenate(rows, axis=0)           # (B*H, W, C)
            x_tap = x_tap.reshape(M, C).astype(jnp.bfloat16)
            acc5 = acc5 + jnp.dot(x_tap, w5_ref[dh * KK + dw],
                                  preferred_element_type=f32)
            if 1 <= dh <= 3 and 1 <= dw <= 3:
                acc3 = acc3 + jnp.dot(x_tap, w3_ref[(dh - 1) * 3 + (dw - 1)],
                                      preferred_element_type=f32)
            if dh == PAD and dw == PAD:
                acc1 = jnp.dot(x_tap, w1_ref[...], preferred_element_type=f32)

    # folded conv-bias + BN shift, ReLU (BN scale already inside the weights)
    f1 = jnp.maximum(acc1 + bias_ref[0], 0.0)
    f3 = jnp.maximum(acc3 + bias_ref[1], 0.0)
    f5 = jnp.maximum(acc5 + bias_ref[2], 0.0)

    # S = per-batch spatial mean of U = f1+f3+f5, done as an MXU matmul
    u_bf = (f1 + f3 + f5).astype(jnp.bfloat16)              # (M, C)
    s = jnp.dot(avg_ref[...], u_bf, preferred_element_type=f32)       # (B, C)

    # Z = fc(S), then the K per-branch fcs
    z = jnp.dot(s.astype(jnp.bfloat16), wfc_ref[...],
                preferred_element_type=f32) + bfc_ref[...]            # (B, D)
    zb = z.astype(jnp.bfloat16)
    l1 = jnp.dot(zb, wfcs_ref[0], preferred_element_type=f32) + bfcs_ref[0]
    l3 = jnp.dot(zb, wfcs_ref[1], preferred_element_type=f32) + bfcs_ref[1]
    l5 = jnp.dot(zb, wfcs_ref[2], preferred_element_type=f32) + bfcs_ref[2]

    # softmax over the 3 branches, on separate lane-0-aligned (B, C) tensors
    mx = jnp.maximum(jnp.maximum(l1, l3), l5)
    e1 = jnp.exp(l1 - mx)
    e3 = jnp.exp(l3 - mx)
    e5 = jnp.exp(l5 - mx)
    inv = pl.reciprocal(e1 + e3 + e5, approx=True)          # EUP slot
    a1, a3, a5 = e1 * inv, e3 * inv, e5 * inv               # (B, C) each

    # V = sum_i attn_i * feats_i (attention broadcast over the HW rows)
    def bweight(f, a):
        return (f.reshape(B, HW, C) * a[:, None, :]).reshape(M, C)

    v = bweight(f1, a1) + bweight(f3, a3) + bweight(f5, a5)
    out_ref[...] = v.astype(out_ref.dtype)


# --------------------------- wrapper ----------------------------------------
@jax.jit
def sk_attention_pallas(x_nhwc, packed):
    # zero-pad to the unified 5x5 window; (B,HP,WP,C) -> (B*HP, WP, C) so the
    # kernel can take every tap block with leading-dim + sublane slices.
    xp = jnp.pad(x_nhwc, ((0, 0), (PAD, PAD), (PAD, PAD), (0, 0)))
    xp = xp.reshape(B * HP, WP, C)

    args = (xp, packed["w1"], packed["w3"], packed["w5"], packed["bias"],
            packed["avg"], packed["wfc_t"], packed["bfc"],
            packed["wfcs_t"], packed["bfcs"])

    def full(a):
        return pl.BlockSpec(a.shape, lambda i, _nd=a.ndim: (0,) * _nd)

    out = pl.pallas_call(
        sk_attention_kernel,
        out_shape=jax.ShapeDtypeStruct((M, C), jnp.bfloat16),
        grid=(1,),
        in_specs=[full(a) for a in args],
        out_specs=pl.BlockSpec((M, C), lambda i: (0, 0)),
        compiler_params=pltpu.CompilerParams(
            dimension_semantics=("arbitrary",)),
        # NOTE(v7x): use grid=(B,), dimension_semantics=("parallel",), xp/out
        # indexed by batch block and constant index_maps for the weights to
        # split the work across both TensorCores.
    )(*args)

    # rows are b*H*W + h*W + w -> back to NHWC, upcast at the boundary
    return out.reshape(B, H, W, C).astype(jnp.float32)


# ----------------- deterministic parameter construction ---------------------
def init_params(key):
    keys = iter(jax.random.split(key, 32))
    raw = {"conv_w": [], "conv_b": [], "gamma": [], "beta": [],
           "mean": [], "var": [], "wfcs": [], "bfcs": []}
    for k in KERNELS:
        fan_in = CG * k * k
        raw["conv_w"].append(
            jax.random.normal(next(keys), (C, CG, k, k), jnp.float32) / np.sqrt(fan_in))
        raw["conv_b"].append(0.1 * jax.random.normal(next(keys), (C,), jnp.float32))
        raw["gamma"].append(1.0 + 0.1 * jax.random.normal(next(keys), (C,), jnp.float32))
        raw["beta"].append(0.1 * jax.random.normal(next(keys), (C,), jnp.float32))
        raw["mean"].append(0.1 * jax.random.normal(next(keys), (C,), jnp.float32))
        raw["var"].append(0.5 + jax.random.uniform(next(keys), (C,), jnp.float32))
    raw["wfc"] = jax.random.normal(next(keys), (D, C), jnp.float32) / np.sqrt(C)
    raw["bfc"] = 0.1 * jax.random.normal(next(keys), (D,), jnp.float32)
    for _ in KERNELS:
        raw["wfcs"].append(jax.random.normal(next(keys), (C, D), jnp.float32) / np.sqrt(D))
        raw["bfcs"].append(0.1 * jax.random.normal(next(keys), (C,), jnp.float32))

    # --- pack per-tap, group-masked, BN-scale-folded conv weights -----------
    def pack_branch(wt, sc, k):
        out = np.zeros((k * k, C, C), np.float32)
        for kh in range(k):
            for kw in range(k):
                for cout in range(C):
                    g = cout // CG
                    out[kh * k + kw, g * CG:(g + 1) * CG, cout] = \
                        wt[cout, :, kh, kw] * sc[cout]
        return out

    bias = np.zeros((K, 1, C), np.float32)
    branch_w = []
    for i, k in enumerate(KERNELS):
        wt = np.asarray(raw["conv_w"][i])                       # (C, CG, k, k)
        sc = np.asarray(raw["gamma"][i]) / np.sqrt(np.asarray(raw["var"][i]) + BN_EPS)
        bias[i, 0, :] = (sc * (np.asarray(raw["conv_b"][i]) - np.asarray(raw["mean"][i]))
                         + np.asarray(raw["beta"][i]))
        branch_w.append(pack_branch(wt, sc, k))
    w1 = branch_w[0][0]                                         # (C, C)
    w3 = branch_w[1]                                             # (9, C, C)
    w5 = branch_w[2]                                             # (25, C, C)

    # block spatial-averaging matrix: S[b] = mean over the 64 rows of batch b
    avg = np.zeros((B, M), np.float32)
    for b in range(B):
        avg[b, b * HW:(b + 1) * HW] = 1.0 / HW

    wfc_t = np.asarray(raw["wfc"]).T                                     # (C, D)
    wfcs_t = np.stack([np.asarray(w).T for w in raw["wfcs"]], 0)         # (K, D, C)
    bfcs = np.stack([np.asarray(b) for b in raw["bfcs"]], 0)[:, None, :]  # (K,1,C)

    packed = {
        "w1": jnp.asarray(w1, jnp.bfloat16),
        "w3": jnp.asarray(w3, jnp.bfloat16),
        "w5": jnp.asarray(w5, jnp.bfloat16),
        "bias": jnp.asarray(bias),                       # f32
        "avg": jnp.asarray(avg, jnp.bfloat16),
        "wfc_t": jnp.asarray(wfc_t, jnp.bfloat16),
        "bfc": jnp.asarray(raw["bfc"]).reshape(1, D),    # f32
        "wfcs_t": jnp.asarray(wfcs_t, jnp.bfloat16),
        "bfcs": jnp.asarray(bfcs),                       # f32
    }
    return raw, packed


# ------------------------ pure-JAX reference (NCHW) --------------------------
def ref_forward(x_nchw, raw):
    conv_outs = []
    for i, k in enumerate(KERNELS):
        y = lax.conv_general_dilated(
            x_nchw, raw["conv_w"][i], (1, 1), [(k // 2, k // 2)] * 2,
            dimension_numbers=("NCHW", "OIHW", "NCHW"),
            feature_group_count=GROUP, precision=REF_PRECISION)
        y = y + raw["conv_b"][i][None, :, None, None]
        sc = raw["gamma"][i] / jnp.sqrt(raw["var"][i] + BN_EPS)
        y = y * sc[None, :, None, None] + \
            (raw["beta"][i] - raw["mean"][i] * sc)[None, :, None, None]
        conv_outs.append(jnp.maximum(y, 0.0))
    feats = jnp.stack(conv_outs, 0)                    # (K, B, C, H, W)
    U = conv_outs[0] + conv_outs[1] + conv_outs[2]
    S = U.mean(axis=(2, 3))                            # (B, C)
    Z = jnp.dot(S, raw["wfc"].T, precision=REF_PRECISION) + raw["bfc"]
    ws = [(jnp.dot(Z, raw["wfcs"][i].T, precision=REF_PRECISION)
           + raw["bfcs"][i]).reshape(B, C, 1, 1) for i in range(K)]
    aw = jax.nn.softmax(jnp.stack(ws, 0), axis=0)      # (K, B, C, 1, 1)
    return (aw * feats).sum(0)                         # (B, C, H, W)


# ------------------------------- main ----------------------------------------
if __name__ == "__main__":
    key = jax.random.PRNGKey(0)
    raw, packed = init_params(key)

    x_nchw = jax.random.normal(jax.random.fold_in(key, 999), (B, C, H, W), jnp.float32)
    x_nhwc = jnp.transpose(x_nchw, (0, 2, 3, 1))

    out_nhwc = jax.block_until_ready(sk_attention_pallas(x_nhwc, packed))

    ref = np.asarray(ref_forward(x_nchw, raw))
    got = np.transpose(np.asarray(out_nhwc), (0, 3, 1, 2))
    # bf16 MXU path (f32 accumulate) + bf16 output vs f32 HIGHEST reference
    np.testing.assert_allclose(got, ref, rtol=5e-2, atol=5e-2)

    print("KERNEL_OK")
</pallas_src>

<mosaic_0001>
module attributes {stable_mosaic.version = 11 : i64} {
  func.func @sk_attention_kernel(%arg0: i32, %arg1: memref<24x12x64xf32, #tpu.memory_space<vmem>>, %arg2: memref<64x64xbf16, #tpu.memory_space<vmem>>, %arg3: memref<9x64x64xbf16, #tpu.memory_space<vmem>>, %arg4: memref<25x64x64xbf16, #tpu.memory_space<vmem>>, %arg5: memref<3x1x64xf32, #tpu.memory_space<vmem>>, %arg6: memref<2x128xbf16, #tpu.memory_space<vmem>>, %arg7: memref<64x32xbf16, #tpu.memory_space<vmem>>, %arg8: memref<1x32xf32, #tpu.memory_space<vmem>>, %arg9: memref<3x32x64xbf16, #tpu.memory_space<vmem>>, %arg10: memref<3x1x64xf32, #tpu.memory_space<vmem>>, %arg11: memref<128x64xbf16, #tpu.memory_space<vmem>>) attributes {dimension_semantics = [#tpu.dimension_semantics<arbitrary>], iteration_bounds = array<i64: 1>, scalar_prefetch = 0 : i64, scratch_operands = 0 : i64, tpu.core_type = #tpu.core_type<tc>, window_params = [{pipeline_mode = #tpu.pipeline_mode<synchronous>, transform_indices = @transform_0, window_bounds = array<i64: 24, 12, 64>}, {pipeline_mode = #tpu.pipeline_mode<synchronous>, transform_indices = @transform_1, window_bounds = array<i64: 64, 64>}, {pipeline_mode = #tpu.pipeline_mode<synchronous>, transform_indices = @transform_2, window_bounds = array<i64: 9, 64, 64>}, {pipeline_mode = #tpu.pipeline_mode<synchronous>, transform_indices = @transform_3, window_bounds = array<i64: 25, 64, 64>}, {pipeline_mode = #tpu.pipeline_mode<synchronous>, transform_indices = @transform_4, window_bounds = array<i64: 3, 1, 64>}, {pipeline_mode = #tpu.pipeline_mode<synchronous>, transform_indices = @transform_5, window_bounds = array<i64: 2, 128>}, {pipeline_mode = #tpu.pipeline_mode<synchronous>, transform_indices = @transform_6, window_bounds = array<i64: 64, 32>}, {pipeline_mode = #tpu.pipeline_mode<synchronous>, transform_indices = @transform_7, window_bounds = array<i64: 1, 32>}, {pipeline_mode = #tpu.pipeline_mode<synchronous>, transform_indices = @transform_8, window_bounds = array<i64: 3, 32, 64>}, {pipeline_mode = #tpu.pipeline_mode<synchronous>, transform_indices = @transform_9, window_bounds = array<i64: 3, 1, 64>}, {pipeline_mode = #tpu.pipeline_mode<synchronous>, transform_indices = @transform_10, window_bounds = array<i64: 128, 64>}]} {
    %c0 = arith.constant 0 : index
    %c0_0 = arith.constant 0 : index
    %c0_1 = arith.constant 0 : index
    %0 = vector.load %arg1[%c0, %c0_0, %c0_1] : memref<24x12x64xf32, #tpu.memory_space<vmem>>, vector<24x12x64xf32>
    %cst = arith.constant 0.000000e+00 : f32
    %1 = vector.broadcast %cst : f32 to vector<128x64xf32>
    %cst_2 = arith.constant 0.000000e+00 : f32
    %2 = vector.broadcast %cst_2 : f32 to vector<128x64xf32>
    %3 = vector.extract_strided_slice %0 {offsets = [0, 0, 0], sizes = [24, 8, 64], strides = [1, 1, 1]} : vector<24x12x64xf32> to vector<24x8x64xf32>
    %4 = vector.extract_strided_slice %3 {offsets = [0, 0, 0], sizes = [8, 8, 64], strides = [1, 1, 1]} : vector<24x8x64xf32> to vector<8x8x64xf32>
    %5 = vector.extract_strided_slice %3 {offsets = [12, 0, 0], sizes = [8, 8, 64], strides = [1, 1, 1]} : vector<24x8x64xf32> to vector<8x8x64xf32>
    %6 = tpu.concatenate %4, %5 in 0 : vector<8x8x64xf32>, vector<8x8x64xf32> -> vector<16x8x64xf32>
    %7 = vector.shape_cast %6 : vector<16x8x64xf32> to vector<128x64xf32>
    %8 = arith.truncf %7 : vector<128x64xf32> to vector<128x64xbf16>
    %c0_3 = arith.constant 0 : index
    %c0_4 = arith.constant 0 : index
    %c0_5 = arith.constant 0 : index
    %9 = vector.load %arg4[%c0_3, %c0_4, %c0_5] : memref<25x64x64xbf16, #tpu.memory_space<vmem>>, vector<1x64x64xbf16>
    %10 = vector.shape_cast %9 : vector<1x64x64xbf16> to vector<64x64xbf16>
    %cst_6 = arith.constant dense<0.000000e+00> : vector<128x64xf32>
    %11 = tpu.matmul %8, %10, %cst_6 {dimension_numbers = #tpu.dot_dimension_numbers<[1], [0], [0], [1], [0, 0, 1, 1], [], []>} : vector<128x64xbf16>, vector<64x64xbf16>, vector<128x64xf32> -> vector<128x64xf32>
    %12 = arith.addf %2, %11 : vector<128x64xf32>
    %13 = vector.extract_strided_slice %3 {offsets = [1, 0, 0], sizes = [8, 8, 64], strides = [1, 1, 1]} : vector<24x8x64xf32> to vector<8x8x64xf32>
    %14 = vector.extract_strided_slice %3 {offsets = [13, 0, 0], sizes = [8, 8, 64], strides = [1, 1, 1]} : vector<24x8x64xf32> to vector<8x8x64xf32>
    %15 = tpu.concatenate %13, %14 in 0 : vector<8x8x64xf32>, vector<8x8x64xf32> -> vector<16x8x64xf32>
    %16 = vector.shape_cast %15 : vector<16x8x64xf32> to vector<128x64xf32>
    %17 = arith.truncf %16 : vector<128x64xf32> to vector<128x64xbf16>
    %c5 = arith.constant 5 : index
    %c0_7 = arith.constant 0 : index
    %c0_8 = arith.constant 0 : index
    %18 = vector.load %arg4[%c5, %c0_7, %c0_8] : memref<25x64x64xbf16, #tpu.memory_space<vmem>>, vector<1x64x64xbf16>
    %19 = vector.shape_cast %18 : vector<1x64x64xbf16> to vector<64x64xbf16>
    %cst_9 = arith.constant dense<0.000000e+00> : vector<128x64xf32>
    %20 = tpu.matmul %17, %19, %cst_9 {dimension_numbers = #tpu.dot_dimension_numbers<[1], [0], [0], [1], [0, 0, 1, 1], [], []>} : vector<128x64xbf16>, vector<64x64xbf16>, vector<128x64xf32> -> vector<128x64xf32>
    %21 = arith.addf %12, %20 : vector<128x64xf32>
    %22 = vector.extract_strided_slice %3 {offsets = [2, 0, 0], sizes = [8, 8, 64], strides = [1, 1, 1]} : vector<24x8x64xf32> to vector<8x8x64xf32>
    %23 = vector.extract_strided_slice %3 {offsets = [14, 0, 0], sizes = [8, 8, 64], strides = [1, 1, 1]} : vector<24x8x64xf32> to vector<8x8x64xf32>
    %24 = tpu.concatenate %22, %23 in 0 : vector<8x8x64xf32>, vector<8x8x64xf32> -> vector<16x8x64xf32>
    %25 = vector.shape_cast %24 : vector<16x8x64xf32> to vector<128x64xf32>
    %26 = arith.truncf %25 : vector<128x64xf32> to vector<128x64xbf16>
    %c10 = arith.constant 10 : index
    %c0_10 = arith.constant 0 : index
    %c0_11 = arith.constant 0 : index
    %27 = vector.load %arg4[%c10, %c0_10, %c0_11] : memref<25x64x64xbf16, #tpu.memory_space<vmem>>, vector<1x64x64xbf16>
    %28 = vector.shape_cast %27 : vector<1x64x64xbf16> to vector<64x64xbf16>
    %cst_12 = arith.constant dense<0.000000e+00> : vector<128x64xf32>
    %29 = tpu.matmul %26, %28, %cst_12 {dimension_numbers = #tpu.dot_dimension_numbers<[1], [0], [0], [1], [0, 0, 1, 1], [], []>} : vector<128x64xbf16>, vector<64x64xbf16>, vector<128x64xf32> -> vector<128x64xf32>
    %30 = arith.addf %21, %29 : vector<128x64xf32>
    %31 = vector.extract_strided_slice %3 {offsets = [3, 0, 0], sizes = [8, 8, 64], strides = [1, 1, 1]} : vector<24x8x64xf32> to vector<8x8x64xf32>
    %32 = vector.extract_strided_slice %3 {offsets = [15, 0, 0], sizes = [8, 8, 64], strides = [1, 1, 1]} : vector<24x8x64xf32> to vector<8x8x64xf32>
    %33 = tpu.concatenate %31, %32 in 0 : vector<8x8x64xf32>, vector<8x8x64xf32> -> vector<16x8x64xf32>
    %34 = vector.shape_cast %33 : vector<16x8x64xf32> to vector<128x64xf32>
    %35 = arith.truncf %34 : vector<128x64xf32> to vector<128x64xbf16>
    %c15 = arith.constant 15 : index
    %c0_13 = arith.constant 0 : index
    %c0_14 = arith.constant 0 : index
    %36 = vector.load %arg4[%c15, %c0_13, %c0_14] : memref<25x64x64xbf16, #tpu.memory_space<vmem>>, vector<1x64x64xbf16>
    %37 = vector.shape_cast %36 : vector<1x64x64xbf16> to vector<64x64xbf16>
    %cst_15 = arith.constant dense<0.000000e+00> : vector<128x64xf32>
    %38 = tpu.matmul %35, %37, %cst_15 {dimension_numbers = #tpu.dot_dimension_numbers<[1], [0], [0], [1], [0, 0, 1, 1], [], []>} : vector<128x64xbf16>, vector<64x64xbf16>, vector<128x64xf32> -> vector<128x64xf32>
    %39 = arith.addf %30, %38 : vector<128x64xf32>
    %40 = vector.extract_strided_slice %3 {offsets = [4, 0, 0], sizes = [8, 8, 64], strides = [1, 1, 1]} : vector<24x8x64xf32> to vector<8x8x64xf32>
    %41 = vector.extract_strided_slice %3 {offsets = [16, 0, 0], sizes = [8, 8, 64], strides = [1, 1, 1]} : vector<24x8x64xf32> to vector<8x8x64xf32>
    %42 = tpu.concatenate %40, %41 in 0 : vector<8x8x64xf32>, vector<8x8x64xf32> -> vector<16x8x64xf32>
    %43 = vector.shape_cast %42 : vector<16x8x64xf32> to vector<128x64xf32>
    %44 = arith.truncf %43 : vector<128x64xf32> to vector<128x64xbf16>
    %c20 = arith.constant 20 : index
    %c0_16 = arith.constant 0 : index
    %c0_17 = arith.constant 0 : index
    %45 = vector.load %arg4[%c20, %c0_16, %c0_17] : memref<25x64x64xbf16, #tpu.memory_space<vmem>>, vector<1x64x64xbf16>
    %46 = vector.shape_cast %45 : vector<1x64x64xbf16> to vector<64x64xbf16>
    %cst_18 = arith.constant dense<0.000000e+00> : vector<128x64xf32>
    %47 = tpu.matmul %44, %46, %cst_18 {dimension_numbers = #tpu.dot_dimension_numbers<[1], [0], [0], [1], [0, 0, 1, 1], [], []>} : vector<128x64xbf16>, vector<64x64xbf16>, vector<128x64xf32> -> vector<128x64xf32>
    %48 = arith.addf %39, %47 : vector<128x64xf32>
    %49 = vector.extract_strided_slice %0 {offsets = [0, 1, 0], sizes = [24, 8, 64], strides = [1, 1, 1]} : vector<24x12x64xf32> to vector<24x8x64xf32>
    %50 = vector.extract_strided_slice %49 {offsets = [0, 0, 0], sizes = [8, 8, 64], strides = [1, 1, 1]} : vector<24x8x64xf32> to vector<8x8x64xf32>
    %51 = vector.extract_strided_slice %49 {offsets = [12, 0, 0], sizes = [8, 8, 64], strides = [1, 1, 1]} : vector<24x8x64xf32> to vector<8x8x64xf32>
    %52 = tpu.concatenate %50, %51 in 0 : vector<8x8x64xf32>, vector<8x8x64xf32> -> vector<16x8x64xf32>
    %53 = vector.shape_cast %52 : vector<16x8x64xf32> to vector<128x64xf32>
    %54 = arith.truncf %53 : vector<128x64xf32> to vector<128x64xbf16>
    %c1 = arith.constant 1 : index
    %c0_19 = arith.constant 0 : index
    %c0_20 = arith.constant 0 : index
    %55 = vector.load %arg4[%c1, %c0_19, %c0_20] : memref<25x64x64xbf16, #tpu.memory_space<vmem>>, vector<1x64x64xbf16>
    %56 = vector.shape_cast %55 : vector<1x64x64xbf16> to vector<64x64xbf16>
    %cst_21 = arith.constant dense<0.000000e+00> : vector<128x64xf32>
    %57 = tpu.matmul %54, %56, %cst_21 {dimension_numbers = #tpu.dot_dimension_numbers<[1], [0], [0], [1], [0, 0, 1, 1], [], []>} : vector<128x64xbf16>, vector<64x64xbf16>, vector<128x64xf32> -> vector<128x64xf32>
    %58 = arith.addf %48, %57 : vector<128x64xf32>
    %59 = vector.extract_strided_slice %49 {offsets = [1, 0, 0], sizes = [8, 8, 64], strides = [1, 1, 1]} : vector<24x8x64xf32> to vector<8x8x64xf32>
    %60 = vector.extract_strided_slice %49 {offsets = [13, 0, 0], sizes = [8, 8, 64], strides = [1, 1, 1]} : vector<24x8x64xf32> to vector<8x8x64xf32>
    %61 = tpu.concatenate %59, %60 in 0 : vector<8x8x64xf32>, vector<8x8x64xf32> -> vector<16x8x64xf32>
    %62 = vector.shape_cast %61 : vector<16x8x64xf32> to vector<128x64xf32>
    %63 = arith.truncf %62 : vector<128x64xf32> to vector<128x64xbf16>
    %c6 = arith.constant 6 : index
    %c0_22 = arith.constant 0 : index
    %c0_23 = arith.constant 0 : index
    %64 = vector.load %arg4[%c6, %c0_22, %c0_23] : memref<25x64x64xbf16, #tpu.memory_space<vmem>>, vector<1x64x64xbf16>
    %65 = vector.shape_cast %64 : vector<1x64x64xbf16> to vector<64x64xbf16>
    %cst_24 = arith.constant dense<0.000000e+00> : vector<128x64xf32>
    %66 = tpu.matmul %63, %65, %cst_24 {dimension_numbers = #tpu.dot_dimension_numbers<[1], [0], [0], [1], [0, 0, 1, 1], [], []>} : vector<128x64xbf16>, vector<64x64xbf16>, vector<128x64xf32> -> vector<128x64xf32>
    %67 = arith.addf %58, %66 : vector<128x64xf32>
    %c0_25 = arith.constant 0 : index
    %c0_26 = arith.constant 0 : index
    %c0_27 = arith.constant 0 : index
    %68 = vector.load %arg3[%c0_25, %c0_26, %c0_27] : memref<9x64x64xbf16, #tpu.memory_space<vmem>>, vector<1x64x64xbf16>
    %69 = vector.shape_cast %68 : vector<1x64x64xbf16> to vector<64x64xbf16>
    %cst_28 = arith.constant dense<0.000000e+00> : vector<128x64xf32>
    %70 = tpu.matmul %63, %69, %cst_28 {dimension_numbers = #tpu.dot_dimension_numbers<[1], [0], [0], [1], [0, 0, 1, 1], [], []>} : vector<128x64xbf16>, vector<64x64xbf16>, vector<128x64xf32> -> vector<128x64xf32>
    %71 = arith.addf %1, %70 : vector<128x64xf32>
    %72 = vector.extract_strided_slice %49 {offsets = [2, 0, 0], sizes = [8, 8, 64], strides = [1, 1, 1]} : vector<24x8x64xf32> to vector<8x8x64xf32>
    %73 = vector.extract_strided_slice %49 {offsets = [14, 0, 0], sizes = [8, 8, 64], strides = [1, 1, 1]} : vector<24x8x64xf32> to vector<8x8x64xf32>
    %74 = tpu.concatenate %72, %73 in 0 : vector<8x8x64xf32>, vector<8x8x64xf32> -> vector<16x8x64xf32>
    %75 = vector.shape_cast %74 : vector<16x8x64xf32> to vector<128x64xf32>
    %76 = arith.truncf %75 : vector<128x64xf32> to vector<128x64xbf16>
    %c11 = arith.constant 11 : index
    %c0_29 = arith.constant 0 : index
    %c0_30 = arith.constant 0 : index
    %77 = vector.load %arg4[%c11, %c0_29, %c0_30] : memref<25x64x64xbf16, #tpu.memory_space<vmem>>, vector<1x64x64xbf16>
    %78 = vector.shape_cast %77 : vector<1x64x64xbf16> to vector<64x64xbf16>
    %cst_31 = arith.constant dense<0.000000e+00> : vector<128x64xf32>
    %79 = tpu.matmul %76, %78, %cst_31 {dimension_numbers = #tpu.dot_dimension_numbers<[1], [0], [0], [1], [0, 0, 1, 1], [], []>} : vector<128x64xbf16>, vector<64x64xbf16>, vector<128x64xf32> -> vector<128x64xf32>
    %80 = arith.addf %67, %79 : vector<128x64xf32>
    %c3 = arith.constant 3 : index
    %c0_32 = arith.constant 0 : index
    %c0_33 = arith.constant 0 : index
    %81 = vector.load %arg3[%c3, %c0_32, %c0_33] : memref<9x64x64xbf16, #tpu.memory_space<vmem>>, vector<1x64x64xbf16>
    %82 = vector.shape_cast %81 : vector<1x64x64xbf16> to vector<64x64xbf16>
    %cst_34 = arith.constant dense<0.000000e+00> : vector<128x64xf32>
    %83 = tpu.matmul %76, %82, %cst_34 {dimension_numbers = #tpu.dot_dimension_numbers<[1], [0], [0], [1], [0, 0, 1, 1], [], []>} : vector<128x64xbf16>, vector<64x64xbf16>, vector<128x64xf32> -> vector<128x64xf32>
    %84 = arith.addf %71, %83 : vector<128x64xf32>
    %85 = vector.extract_strided_slice %49 {offsets = [3, 0, 0], sizes = [8, 8, 64], strides = [1, 1, 1]} : vector<24x8x64xf32> to vector<8x8x64xf32>
    %86 = vector.extract_strided_slice %49 {offsets = [15, 0, 0], sizes = [8, 8, 64], strides = [1, 1, 1]} : vector<24x8x64xf32> to vector<8x8x64xf32>
    %87 = tpu.concatenate %85, %86 in 0 : vector<8x8x64xf32>, vector<8x8x64xf32> -> vector<16x8x64xf32>
    %88 = vector.shape_cast %87 : vector<16x8x64xf32> to vector<128x64xf32>
    %89 = arith.truncf %88 : vector<128x64xf32> to vector<128x64xbf16>
    %c16 = arith.constant 16 : index
    %c0_35 = arith.constant 0 : index
    %c0_36 = arith.constant 0 : index
    %90 = vector.load %arg4[%c16, %c0_35, %c0_36] : memref<25x64x64xbf16, #tpu.memory_space<vmem>>, vector<1x64x64xbf16>
    %91 = vector.shape_cast %90 : vector<1x64x64xbf16> to vector<64x64xbf16>
    %cst_37 = arith.constant dense<0.000000e+00> : vector<128x64xf32>
    %92 = tpu.matmul %89, %91, %cst_37 {dimension_numbers = #tpu.dot_dimension_numbers<[1], [0], [0], [1], [0, 0, 1, 1], [], []>} : vector<128x64xbf16>, vector<64x64xbf16>, vector<128x64xf32> -> vector<128x64xf32>
    %93 = arith.addf %80, %92 : vector<128x64xf32>
    %c6_38 = arith.constant 6 : index
    %c0_39 = arith.constant 0 : index
    %c0_40 = arith.constant 0 : index
    %94 = vector.load %arg3[%c6_38, %c0_39, %c0_40] : memref<9x64x64xbf16, #tpu.memory_space<vmem>>, vector<1x64x64xbf16>
    %95 = vector.shape_cast %94 : vector<1x64x64xbf16> to vector<64x64xbf16>
    %cst_41 = arith.constant dense<0.000000e+00> : vector<128x64xf32>
    %96 = tpu.matmul %89, %95, %cst_41 {dimension_numbers = #tpu.dot_dimension_numbers<[1], [0], [0], [1], [0, 0, 1, 1], [], []>} : vector<128x64xbf16>, vector<64x64xbf16>, vector<128x64xf32> -> vector<128x64xf32>
    %97 = arith.addf %84, %96 : vector<128x64xf32>
    %98 = vector.extract_strided_slice %49 {offsets = [4, 0, 0], sizes = [8, 8, 64], strides = [1, 1, 1]} : vector<24x8x64xf32> to vector<8x8x64xf32>
    %99 = vector.extract_strided_slice %49 {offsets = [16, 0, 0], sizes = [8, 8, 64], strides = [1, 1, 1]} : vector<24x8x64xf32> to vector<8x8x64xf32>
    %100 = tpu.concatenate %98, %99 in 0 : vector<8x8x64xf32>, vector<8x8x64xf32> -> vector<16x8x64xf32>
    %101 = vector.shape_cast %100 : vector<16x8x64xf32> to vector<128x64xf32>
    %102 = arith.truncf %101 : vector<128x64xf32> to vector<128x64xbf16>
    %c21 = arith.constant 21 : index
    %c0_42 = arith.constant 0 : index
    %c0_43 = arith.constant 0 : index
    %103 = vector.load %arg4[%c21, %c0_42, %c0_43] : memref<25x64x64xbf16, #tpu.memory_space<vmem>>, vector<1x64x64xbf16>
    %104 = vector.shape_cast %103 : vector<1x64x64xbf16> to vector<64x64xbf16>
    %cst_44 = arith.constant dense<0.000000e+00> : vector<128x64xf32>
    %105 = tpu.matmul %102, %104, %cst_44 {dimension_numbers = #tpu.dot_dimension_numbers<[1], [0], [0], [1], [0, 0, 1, 1], [], []>} : vector<128x64xbf16>, vector<64x64xbf16>, vector<128x64xf32> -> vector<128x64xf32>
    %106 = arith.addf %93, %105 : vector<128x64xf32>
    %107 = vector.extract_strided_slice %0 {offsets = [0, 2, 0], sizes = [24, 8, 64], strides = [1, 1, 1]} : vector<24x12x64xf32> to vector<24x8x64xf32>
    %108 = vector.extract_strided_slice %107 {offsets = [0, 0, 0], sizes = [8, 8, 64], strides = [1, 1, 1]} : vector<24x8x64xf32> to vector<8x8x64xf32>
    %109 = vector.extract_strided_slice %107 {offsets = [12, 0, 0], sizes = [8, 8, 64], strides = [1, 1, 1]} : vector<24x8x64xf32> to vector<8x8x64xf32>
    %110 = tpu.concatenate %108, %109 in 0 : vector<8x8x64xf32>, vector<8x8x64xf32> -> vector<16x8x64xf32>
    %111 = vector.shape_cast %110 : vector<16x8x64xf32> to vector<128x64xf32>
    %112 = arith.truncf %111 : vector<128x64xf32> to vector<128x64xbf16>
    %c2 = arith.constant 2 : index
    %c0_45 = arith.constant 0 : index
    %c0_46 = arith.constant 0 : index
    %113 = vector.load %arg4[%c2, %c0_45, %c0_46] : memref<25x64x64xbf16, #tpu.memory_space<vmem>>, vector<1x64x64xbf16>
    %114 = vector.shape_cast %113 : vector<1x64x64xbf16> to vector<64x64xbf16>
    %cst_47 = arith.constant dense<0.000000e+00> : vector<128x64xf32>
    %115 = tpu.matmul %112, %114, %cst_47 {dimension_numbers = #tpu.dot_dimension_numbers<[1], [0], [0], [1], [0, 0, 1, 1], [], []>} : vector<128x64xbf16>, vector<64x64xbf16>, vector<128x64xf32> -> vector<128x64xf32>
    %116 = arith.addf %106, %115 : vector<128x64xf32>
    %117 = vector.extract_strided_slice %107 {offsets = [1, 0, 0], sizes = [8, 8, 64], strides = [1, 1, 1]} : vector<24x8x64xf32> to vector<8x8x64xf32>
    %118 = vector.extract_strided_slice %107 {offsets = [13, 0, 0], sizes = [8, 8, 64], strides = [1, 1, 1]} : vector<24x8x64xf32> to vector<8x8x64xf32>
    %119 = tpu.concatenate %117, %118 in 0 : vector<8x8x64xf32>, vector<8x8x64xf32> -> vector<16x8x64xf32>
    %120 = vector.shape_cast %119 : vector<16x8x64xf32> to vector<128x64xf32>
    %121 = arith.truncf %120 : vector<128x64xf32> to vector<128x64xbf16>
    %c7 = arith.constant 7 : index
    %c0_48 = arith.constant 0 : index
    %c0_49 = arith.constant 0 : index
    %122 = vector.load %arg4[%c7, %c0_48, %c0_49] : memref<25x64x64xbf16, #tpu.memory_space<vmem>>, vector<1x64x64xbf16>
    %123 = vector.shape_cast %122 : vector<1x64x64xbf16> to vector<64x64xbf16>
    %cst_50 = arith.constant dense<0.000000e+00> : vector<128x64xf32>
    %124 = tpu.matmul %121, %123, %cst_50 {dimension_numbers = #tpu.dot_dimension_numbers<[1], [0], [0], [1], [0, 0, 1, 1], [], []>} : vector<128x64xbf16>, vector<64x64xbf16>, vector<128x64xf32> -> vector<128x64xf32>
    %125 = arith.addf %116, %124 : vector<128x64xf32>
    %c1_51 = arith.constant 1 : index
    %c0_52 = arith.constant 0 : index
    %c0_53 = arith.constant 0 : index
    %126 = vector.load %arg3[%c1_51, %c0_52, %c0_53] : memref<9x64x64xbf16, #tpu.memory_space<vmem>>, vector<1x64x64xbf16>
    %127 = vector.shape_cast %126 : vector<1x64x64xbf16> to vector<64x64xbf16>
    %cst_54 = arith.constant dense<0.000000e+00> : vector<128x64xf32>
    %128 = tpu.matmul %121, %127, %cst_54 {dimension_numbers = #tpu.dot_dimension_numbers<[1], [0], [0], [1], [0, 0, 1, 1], [], []>} : vector<128x64xbf16>, vector<64x64xbf16>, vector<128x64xf32> -> vector<128x64xf32>
    %129 = arith.addf %97, %128 : vector<128x64xf32>
    %130 = vector.extract_strided_slice %107 {offsets = [2, 0, 0], sizes = [8, 8, 64], strides = [1, 1, 1]} : vector<24x8x64xf32> to vector<8x8x64xf32>
    %131 = vector.extract_strided_slice %107 {offsets = [14, 0, 0], sizes = [8, 8, 64], strides = [1, 1, 1]} : vector<24x8x64xf32> to vector<8x8x64xf32>
    %132 = tpu.concatenate %130, %131 in 0 : vector<8x8x64xf32>, vector<8x8x64xf32> -> vector<16x8x64xf32>
    %133 = vector.shape_cast %132 : vector<16x8x64xf32> to vector<128x64xf32>
    %134 = arith.truncf %133 : vector<128x64xf32> to vector<128x64xbf16>
    %c12 = arith.constant 12 : index
    %c0_55 = arith.constant 0 : index
    %c0_56 = arith.constant 0 : index
    %135 = vector.load %arg4[%c12, %c0_55, %c0_56] : memref<25x64x64xbf16, #tpu.memory_space<vmem>>, vector<1x64x64xbf16>
    %136 = vector.shape_cast %135 : vector<1x64x64xbf16> to vector<64x64xbf16>
    %cst_57 = arith.constant dense<0.000000e+00> : vector<128x64xf32>
    %137 = tpu.matmul %134, %136, %cst_57 {dimension_numbers = #tpu.dot_dimension_numbers<[1], [0], [0], [1], [0, 0, 1, 1], [], []>} : vector<128x64xbf16>, vector<64x64xbf16>, vector<128x64xf32> -> vector<128x64xf32>
    %138 = arith.addf %125, %137 : vector<128x64xf32>
    %c4 = arith.constant 4 : index
    %c0_58 = arith.constant 0 : index
    %c0_59 = arith.constant 0 : index
    %139 = vector.load %arg3[%c4, %c0_58, %c0_59] : memref<9x64x64xbf16, #tpu.memory_space<vmem>>, vector<1x64x64xbf16>
    %140 = vector.shape_cast %139 : vector<1x64x64xbf16> to vector<64x64xbf16>
    %cst_60 = arith.constant dense<0.000000e+00> : vector<128x64xf32>
    %141 = tpu.matmul %134, %140, %cst_60 {dimension_numbers = #tpu.dot_dimension_numbers<[1], [0], [0], [1], [0, 0, 1, 1], [], []>} : vector<128x64xbf16>, vector<64x64xbf16>, vector<128x64xf32> -> vector<128x64xf32>
    %142 = arith.addf %129, %141 : vector<128x64xf32>
    %c0_61 = arith.constant 0 : index
    %c0_62 = arith.constant 0 : index
    %143 = vector.load %arg2[%c0_61, %c0_62] : memref<64x64xbf16, #tpu.memory_space<vmem>>, vector<64x64xbf16>
    %cst_63 = arith.constant dense<0.000000e+00> : vector<128x64xf32>
    %144 = tpu.matmul %134, %143, %cst_63 {dimension_numbers = #tpu.dot_dimension_numbers<[1], [0], [0], [1], [0, 0, 1, 1], [], []>} : vector<128x64xbf16>, vector<64x64xbf16>, vector<128x64xf32> -> vector<128x64xf32>
    %145 = vector.extract_strided_slice %107 {offsets = [3, 0, 0], sizes = [8, 8, 64], strides = [1, 1, 1]} : vector<24x8x64xf32> to vector<8x8x64xf32>
    %146 = vector.extract_strided_slice %107 {offsets = [15, 0, 0], sizes = [8, 8, 64], strides = [1, 1, 1]} : vector<24x8x64xf32> to vector<8x8x64xf32>
    %147 = tpu.concatenate %145, %146 in 0 : vector<8x8x64xf32>, vector<8x8x64xf32> -> vector<16x8x64xf32>
    %148 = vector.shape_cast %147 : vector<16x8x64xf32> to vector<128x64xf32>
    %149 = arith.truncf %148 : vector<128x64xf32> to vector<128x64xbf16>
    %c17 = arith.constant 17 : index
    %c0_64 = arith.constant 0 : index
    %c0_65 = arith.constant 0 : index
    %150 = vector.load %arg4[%c17, %c0_64, %c0_65] : memref<25x64x64xbf16, #tpu.memory_space<vmem>>, vector<1x64x64xbf16>
    %151 = vector.shape_cast %150 : vector<1x64x64xbf16> to vector<64x64xbf16>
    %cst_66 = arith.constant dense<0.000000e+00> : vector<128x64xf32>
    %152 = tpu.matmul %149, %151, %cst_66 {dimension_numbers = #tpu.dot_dimension_numbers<[1], [0], [0], [1], [0, 0, 1, 1], [], []>} : vector<128x64xbf16>, vector<64x64xbf16>, vector<128x64xf32> -> vector<128x64xf32>
    %153 = arith.addf %138, %152 : vector<128x64xf32>
    %c7_67 = arith.constant 7 : index
    %c0_68 = arith.constant 0 : index
    %c0_69 = arith.constant 0 : index
    %154 = vector.load %arg3[%c7_67, %c0_68, %c0_69] : memref<9x64x64xbf16, #tpu.memory_space<vmem>>, vector<1x64x64xbf16>
    %155 = vector.shape_cast %154 : vector<1x64x64xbf16> to vector<64x64xbf16>
    %cst_70 = arith.constant dense<0.000000e+00> : vector<128x64xf32>
    %156 = tpu.matmul %149, %155, %cst_70 {dimension_numbers = #tpu.dot_dimension_numbers<[1], [0], [0], [1], [0, 0, 1, 1], [], []>} : vector<128x64xbf16>, vector<64x64xbf16>, vector<128x64xf32> -> vector<128x64xf32>
    %157 = arith.addf %142, %156 : vector<128x64xf32>
    %158 = vector.extract_strided_slice %107 {offsets = [4, 0, 0], sizes = [8, 8, 64], strides = [1, 1, 1]} : vector<24x8x64xf32> to vector<8x8x64xf32>
    %159 = vector.extract_strided_slice %107 {offsets = [16, 0, 0], sizes = [8, 8, 64], strides = [1, 1, 1]} : vector<24x8x64xf32> to vector<8x8x64xf32>
    %160 = tpu.concatenate %158, %159 in 0 : vector<8x8x64xf32>, vector<8x8x64xf32> -> vector<16x8x64xf32>
    %161 = vector.shape_cast %160 : vector<16x8x64xf32> to vector<128x64xf32>
    %162 = arith.truncf %161 : vector<128x64xf32> to vector<128x64xbf16>
    %c22 = arith.constant 22 : index
    %c0_71 = arith.constant 0 : index
    %c0_72 = arith.constant 0 : index
    %163 = vector.load %arg4[%c22, %c0_71, %c0_72] : memref<25x64x64xbf16, #tpu.memory_space<vmem>>, vector<1x64x64xbf16>
    %164 = vector.shape_cast %163 : vector<1x64x64xbf16> to vector<64x64xbf16>
    %cst_73 = arith.constant dense<0.000000e+00> : vector<128x64xf32>
    %165 = tpu.matmul %162, %164, %cst_73 {dimension_numbers = #tpu.dot_dimension_numbers<[1], [0], [0], [1], [0, 0, 1, 1], [], []>} : vector<128x64xbf16>, vector<64x64xbf16>, vector<128x64xf32> -> vector<128x64xf32>
    %166 = arith.addf %153, %165 : vector<128x64xf32>
    %167 = vector.extract_strided_slice %0 {offsets = [0, 3, 0], sizes = [24, 8, 64], strides = [1, 1, 1]} : vector<24x12x64xf32> to vector<24x8x64xf32>
    %168 = vector.extract_strided_slice %167 {offsets = [0, 0, 0], sizes = [8, 8, 64], strides = [1, 1, 1]} : vector<24x8x64xf32> to vector<8x8x64xf32>
    %169 = vector.extract_strided_slice %167 {offsets = [12, 0, 0], sizes = [8, 8, 64], strides = [1, 1, 1]} : vector<24x8x64xf32> to vector<8x8x64xf32>
    %170 = tpu.concatenate %168, %169 in 0 : vector<8x8x64xf32>, vector<8x8x64xf32> -> vector<16x8x64xf32>
    %171 = vector.shape_cast %170 : vector<16x8x64xf32> to vector<128x64xf32>
    %172 = arith.truncf %171 : vector<128x64xf32> to vector<128x64xbf16>
    %c3_74 = arith.constant 3 : index
    %c0_75 = arith.constant 0 : index
    %c0_76 = arith.constant 0 : index
    %173 = vector.load %arg4[%c3_74, %c0_75, %c0_76] : memref<25x64x64xbf16, #tpu.memory_space<vmem>>, vector<1x64x64xbf16>
    %174 = vector.shape_cast %173 : vector<1x64x64xbf16> to vector<64x64xbf16>
    %cst_77 = arith.constant dense<0.000000e+00> : vector<128x64xf32>
    %175 = tpu.matmul %172, %174, %cst_77 {dimension_numbers = #tpu.dot_dimension_numbers<[1], [0], [0], [1], [0, 0, 1, 1], [], []>} : vector<128x64xbf16>, vector<64x64xbf16>, vector<128x64xf32> -> vector<128x64xf32>
    %176 = arith.addf %166, %175 : vector<128x64xf32>
    %177 = vector.extract_strided_slice %167 {offsets = [1, 0, 0], sizes = [8, 8, 64], strides = [1, 1, 1]} : vector<24x8x64xf32> to vector<8x8x64xf32>
    %178 = vector.extract_strided_slice %167 {offsets = [13, 0, 0], sizes = [8, 8, 64], strides = [1, 1, 1]} : vector<24x8x64xf32> to vector<8x8x64xf32>
    %179 = tpu.concatenate %177, %178 in 0 : vector<8x8x64xf32>, vector<8x8x64xf32> -> vector<16x8x64xf32>
    %180 = vector.shape_cast %179 : vector<16x8x64xf32> to vector<128x64xf32>
    %181 = arith.truncf %180 : vector<128x64xf32> to vector<128x64xbf16>
    %c8 = arith.constant 8 : index
    %c0_78 = arith.constant 0 : index
    %c0_79 = arith.constant 0 : index
    %182 = vector.load %arg4[%c8, %c0_78, %c0_79] : memref<25x64x64xbf16, #tpu.memory_space<vmem>>, vector<1x64x64xbf16>
    %183 = vector.shape_cast %182 : vector<1x64x64xbf16> to vector<64x64xbf16>
    %cst_80 = arith.constant dense<0.000000e+00> : vector<128x64xf32>
    %184 = tpu.matmul %181, %183, %cst_80 {dimension_numbers = #tpu.dot_dimension_numbers<[1], [0], [0], [1], [0, 0, 1, 1], [], []>} : vector<128x64xbf16>, vector<64x64xbf16>, vector<128x64xf32> -> vector<128x64xf32>
    %185 = arith.addf %176, %184 : vector<128x64xf32>
    %c2_81 = arith.constant 2 : index
    %c0_82 = arith.constant 0 : index
    %c0_83 = arith.constant 0 : index
    %186 = vector.load %arg3[%c2_81, %c0_82, %c0_83] : memref<9x64x64xbf16, #tpu.memory_space<vmem>>, vector<1x64x64xbf16>
    %187 = vector.shape_cast %186 : vector<1x64x64xbf16> to vector<64x64xbf16>
    %cst_84 = arith.constant dense<0.000000e+00> : vector<128x64xf32>
    %188 = tpu.matmul %181, %187, %cst_84 {dimension_numbers = #tpu.dot_dimension_numbers<[1], [0], [0], [1], [0, 0, 1, 1], [], []>} : vector<128x64xbf16>, vector<64x64xbf16>, vector<128x64xf32> -> vector<128x64xf32>
    %189 = arith.addf %157, %188 : vector<128x64xf32>
    %190 = vector.extract_strided_slice %167 {offsets = [2, 0, 0], sizes = [8, 8, 64], strides = [1, 1, 1]} : vector<24x8x64xf32> to vector<8x8x64xf32>
    %191 = vector.extract_strided_slice %167 {offsets = [14, 0, 0], sizes = [8, 8, 64], strides = [1, 1, 1]} : vector<24x8x64xf32> to vector<8x8x64xf32>
    %192 = tpu.concatenate %190, %191 in 0 : vector<8x8x64xf32>, vector<8x8x64xf32> -> vector<16x8x64xf32>
    %193 = vector.shape_cast %192 : vector<16x8x64xf32> to vector<128x64xf32>
    %194 = arith.truncf %193 : vector<128x64xf32> to vector<128x64xbf16>
    %c13 = arith.constant 13 : index
    %c0_85 = arith.constant 0 : index
    %c0_86 = arith.constant 0 : index
    %195 = vector.load %arg4[%c13, %c0_85, %c0_86] : memref<25x64x64xbf16, #tpu.memory_space<vmem>>, vector<1x64x64xbf16>
    %196 = vector.shape_cast %195 : vector<1x64x64xbf16> to vector<64x64xbf16>
    %cst_87 = arith.constant dense<0.000000e+00> : vector<128x64xf32>
    %197 = tpu.matmul %194, %196, %cst_87 {dimension_numbers = #tpu.dot_dimension_numbers<[1], [0], [0], [1], [0, 0, 1, 1], [], []>} : vector<128x64xbf16>, vector<64x64xbf16>, vector<128x64xf32> -> vector<128x64xf32>
    %198 = arith.addf %185, %197 : vector<128x64xf32>
    %c5_88 = arith.constant 5 : index
    %c0_89 = arith.constant 0 : index
    %c0_90 = arith.constant 0 : index
    %199 = vector.load %arg3[%c5_88, %c0_89, %c0_90] : memref<9x64x64xbf16, #tpu.memory_space<vmem>>, vector<1x64x64xbf16>
    %200 = vector.shape_cast %199 : vector<1x64x64xbf16> to vector<64x64xbf16>
    %cst_91 = arith.constant dense<0.000000e+00> : vector<128x64xf32>
    %201 = tpu.matmul %194, %200, %cst_91 {dimension_numbers = #tpu.dot_dimension_numbers<[1], [0], [0], [1], [0, 0, 1, 1], [], []>} : vector<128x64xbf16>, vector<64x64xbf16>, vector<128x64xf32> -> vector<128x64xf32>
    %202 = arith.addf %189, %201 : vector<128x64xf32>
    %203 = vector.extract_strided_slice %167 {offsets = [3, 0, 0], sizes = [8, 8, 64], strides = [1, 1, 1]} : vector<24x8x64xf32> to vector<8x8x64xf32>
    %204 = vector.extract_strided_slice %167 {offsets = [15, 0, 0], sizes = [8, 8, 64], strides = [1, 1, 1]} : vector<24x8x64xf32> to vector<8x8x64xf32>
    %205 = tpu.concatenate %203, %204 in 0 : vector<8x8x64xf32>, vector<8x8x64xf32> -> vector<16x8x64xf32>
    %206 = vector.shape_cast %205 : vector<16x8x64xf32> to vector<128x64xf32>
    %207 = arith.truncf %206 : vector<128x64xf32> to vector<128x64xbf16>
    %c18 = arith.constant 18 : index
    %c0_92 = arith.constant 0 : index
    %c0_93 = arith.constant 0 : index
    %208 = vector.load %arg4[%c18, %c0_92, %c0_93] : memref<25x64x64xbf16, #tpu.memory_space<vmem>>, vector<1x64x64xbf16>
    %209 = vector.shape_cast %208 : vector<1x64x64xbf16> to vector<64x64xbf16>
    %cst_94 = arith.constant dense<0.000000e+00> : vector<128x64xf32>
    %210 = tpu.matmul %207, %209, %cst_94 {dimension_numbers = #tpu.dot_dimension_numbers<[1], [0], [0], [1], [0, 0, 1, 1], [], []>} : vector<128x64xbf16>, vector<64x64xbf16>, vector<128x64xf32> -> vector<128x64xf32>
    %211 = arith.addf %198, %210 : vector<128x64xf32>
    %c8_95 = arith.constant 8 : index
    %c0_96 = arith.constant 0 : index
    %c0_97 = arith.constant 0 : index
    %212 = vector.load %arg3[%c8_95, %c0_96, %c0_97] : memref<9x64x64xbf16, #tpu.memory_space<vmem>>, vector<1x64x64xbf16>
    %213 = vector.shape_cast %212 : vector<1x64x64xbf16> to vector<64x64xbf16>
    %cst_98 = arith.constant dense<0.000000e+00> : vector<128x64xf32>
    %214 = tpu.matmul %207, %213, %cst_98 {dimension_numbers = #tpu.dot_dimension_numbers<[1], [0], [0], [1], [0, 0, 1, 1], [], []>} : vector<128x64xbf16>, vector<64x64xbf16>, vector<128x64xf32> -> vector<128x64xf32>
    %215 = arith.addf %202, %214 : vector<128x64xf32>
    %216 = vector.extract_strided_slice %167 {offsets = [4, 0, 0], sizes = [8, 8, 64], strides = [1, 1, 1]} : vector<24x8x64xf32> to vector<8x8x64xf32>
    %217 = vector.extract_strided_slice %167 {offsets = [16, 0, 0], sizes = [8, 8, 64], strides = [1, 1, 1]} : vector<24x8x64xf32> to vector<8x8x64xf32>
    %218 = tpu.concatenate %216, %217 in 0 : vector<8x8x64xf32>, vector<8x8x64xf32> -> vector<16x8x64xf32>
    %219 = vector.shape_cast %218 : vector<16x8x64xf32> to vector<128x64xf32>
    %220 = arith.truncf %219 : vector<128x64xf32> to vector<128x64xbf16>
    %c23 = arith.constant 23 : index
    %c0_99 = arith.constant 0 : index
    %c0_100 = arith.constant 0 : index
    %221 = vector.load %arg4[%c23, %c0_99, %c0_100] : memref<25x64x64xbf16, #tpu.memory_space<vmem>>, vector<1x64x64xbf16>
    %222 = vector.shape_cast %221 : vector<1x64x64xbf16> to vector<64x64xbf16>
    %cst_101 = arith.constant dense<0.000000e+00> : vector<128x64xf32>
    %223 = tpu.matmul %220, %222, %cst_101 {dimension_numbers = #tpu.dot_dimension_numbers<[1], [0], [0], [1], [0, 0, 1, 1], [], []>} : vector<128x64xbf16>, vector<64x64xbf16>, vector<128x64xf32> -> vector<128x64xf32>
    %224 = arith.addf %211, %223 : vector<128x64xf32>
    %225 = vector.extract_strided_slice %0 {offsets = [0, 4, 0], sizes = [24, 8, 64], strides = [1, 1, 1]} : vector<24x12x64xf32> to vector<24x8x64xf32>
    %226 = vector.extract_strided_slice %225 {offsets = [0, 0, 0], sizes = [8, 8, 64], strides = [1, 1, 1]} : vector<24x8x64xf32> to vector<8x8x64xf32>
    %227 = vector.extract_strided_slice %225 {offsets = [12, 0, 0], sizes = [8, 8, 64], strides = [1, 1, 1]} : vector<24x8x64xf32> to vector<8x8x64xf32>
    %228 = tpu.concatenate %226, %227 in 0 : vector<8x8x64xf32>, vector<8x8x64xf32> -> vector<16x8x64xf32>
    %229 = vector.shape_cast %228 : vector<16x8x64xf32> to vector<128x64xf32>
    %230 = arith.truncf %229 : vector<128x64xf32> to vector<128x64xbf16>
    %c4_102 = arith.constant 4 : index
    %c0_103 = arith.constant 0 : index
    %c0_104 = arith.constant 0 : index
    %231 = vector.load %arg4[%c4_102, %c0_103, %c0_104] : memref<25x64x64xbf16, #tpu.memory_space<vmem>>, vector<1x64x64xbf16>
    %232 = vector.shape_cast %231 : vector<1x64x64xbf16> to vector<64x64xbf16>
    %cst_105 = arith.constant dense<0.000000e+00> : vector<128x64xf32>
    %233 = tpu.matmul %230, %232, %cst_105 {dimension_numbers = #tpu.dot_dimension_numbers<[1], [0], [0], [1], [0, 0, 1, 1], [], []>} : vector<128x64xbf16>, vector<64x64xbf16>, vector<128x64xf32> -> vector<128x64xf32>
    %234 = arith.addf %224, %233 : vector<128x64xf32>
    %235 = vector.extract_strided_slice %225 {offsets = [1, 0, 0], sizes = [8, 8, 64], strides = [1, 1, 1]} : vector<24x8x64xf32> to vector<8x8x64xf32>
    %236 = vector.extract_strided_slice %225 {offsets = [13, 0, 0], sizes = [8, 8, 64], strides = [1, 1, 1]} : vector<24x8x64xf32> to vector<8x8x64xf32>
    %237 = tpu.concatenate %235, %236 in 0 : vector<8x8x64xf32>, vector<8x8x64xf32> -> vector<16x8x64xf32>
    %238 = vector.shape_cast %237 : vector<16x8x64xf32> to vector<128x64xf32>
    %239 = arith.truncf %238 : vector<128x64xf32> to vector<128x64xbf16>
    %c9 = arith.constant 9 : index
    %c0_106 = arith.constant 0 : index
    %c0_107 = arith.constant 0 : index
    %240 = vector.load %arg4[%c9, %c0_106, %c0_107] : memref<25x64x64xbf16, #tpu.memory_space<vmem>>, vector<1x64x64xbf16>
    %241 = vector.shape_cast %240 : vector<1x64x64xbf16> to vector<64x64xbf16>
    %cst_108 = arith.constant dense<0.000000e+00> : vector<128x64xf32>
    %242 = tpu.matmul %239, %241, %cst_108 {dimension_numbers = #tpu.dot_dimension_numbers<[1], [0], [0], [1], [0, 0, 1, 1], [], []>} : vector<128x64xbf16>, vector<64x64xbf16>, vector<128x64xf32> -> vector<128x64xf32>
    %243 = arith.addf %234, %242 : vector<128x64xf32>
    %244 = vector.extract_strided_slice %225 {offsets = [2, 0, 0], sizes = [8, 8, 64], strides = [1, 1, 1]} : vector<24x8x64xf32> to vector<8x8x64xf32>
    %245 = vector.extract_strided_slice %225 {offsets = [14, 0, 0], sizes = [8, 8, 64], strides = [1, 1, 1]} : vector<24x8x64xf32> to vector<8x8x64xf32>
    %246 = tpu.concatenate %244, %245 in 0 : vector<8x8x64xf32>, vector<8x8x64xf32> -> vector<16x8x64xf32>
    %247 = vector.shape_cast %246 : vector<16x8x64xf32> to vector<128x64xf32>
    %248 = arith.truncf %247 : vector<128x64xf32> to vector<128x64xbf16>
    %c14 = arith.constant 14 : index
    %c0_109 = arith.constant 0 : index
    %c0_110 = arith.constant 0 : index
    %249 = vector.load %arg4[%c14, %c0_109, %c0_110] : memref<25x64x64xbf16, #tpu.memory_space<vmem>>, vector<1x64x64xbf16>
    %250 = vector.shape_cast %249 : vector<1x64x64xbf16> to vector<64x64xbf16>
    %cst_111 = arith.constant dense<0.000000e+00> : vector<128x64xf32>
    %251 = tpu.matmul %248, %250, %cst_111 {dimension_numbers = #tpu.dot_dimension_numbers<[1], [0], [0], [1], [0, 0, 1, 1], [], []>} : vector<128x64xbf16>, vector<64x64xbf16>, vector<128x64xf32> -> vector<128x64xf32>
    %252 = arith.addf %243, %251 : vector<128x64xf32>
    %253 = vector.extract_strided_slice %225 {offsets = [3, 0, 0], sizes = [8, 8, 64], strides = [1, 1, 1]} : vector<24x8x64xf32> to vector<8x8x64xf32>
    %254 = vector.extract_strided_slice %225 {offsets = [15, 0, 0], sizes = [8, 8, 64], strides = [1, 1, 1]} : vector<24x8x64xf32> to vector<8x8x64xf32>
    %255 = tpu.concatenate %253, %254 in 0 : vector<8x8x64xf32>, vector<8x8x64xf32> -> vector<16x8x64xf32>
    %256 = vector.shape_cast %255 : vector<16x8x64xf32> to vector<128x64xf32>
    %257 = arith.truncf %256 : vector<128x64xf32> to vector<128x64xbf16>
    %c19 = arith.constant 19 : index
    %c0_112 = arith.constant 0 : index
    %c0_113 = arith.constant 0 : index
    %258 = vector.load %arg4[%c19, %c0_112, %c0_113] : memref<25x64x64xbf16, #tpu.memory_space<vmem>>, vector<1x64x64xbf16>
    %259 = vector.shape_cast %258 : vector<1x64x64xbf16> to vector<64x64xbf16>
    %cst_114 = arith.constant dense<0.000000e+00> : vector<128x64xf32>
    %260 = tpu.matmul %257, %259, %cst_114 {dimension_numbers = #tpu.dot_dimension_numbers<[1], [0], [0], [1], [0, 0, 1, 1], [], []>} : vector<128x64xbf16>, vector<64x64xbf16>, vector<128x64xf32> -> vector<128x64xf32>
    %261 = arith.addf %252, %260 : vector<128x64xf32>
    %262 = vector.extract_strided_slice %225 {offsets = [4, 0, 0], sizes = [8, 8, 64], strides = [1, 1, 1]} : vector<24x8x64xf32> to vector<8x8x64xf32>
    %263 = vector.extract_strided_slice %225 {offsets = [16, 0, 0], sizes = [8, 8, 64], strides = [1, 1, 1]} : vector<24x8x64xf32> to vector<8x8x64xf32>
    %264 = tpu.concatenate %262, %263 in 0 : vector<8x8x64xf32>, vector<8x8x64xf32> -> vector<16x8x64xf32>
    %265 = vector.shape_cast %264 : vector<16x8x64xf32> to vector<128x64xf32>
    %266 = arith.truncf %265 : vector<128x64xf32> to vector<128x64xbf16>
    %c24 = arith.constant 24 : index
    %c0_115 = arith.constant 0 : index
    %c0_116 = arith.constant 0 : index
    %267 = vector.load %arg4[%c24, %c0_115, %c0_116] : memref<25x64x64xbf16, #tpu.memory_space<vmem>>, vector<1x64x64xbf16>
    %268 = vector.shape_cast %267 : vector<1x64x64xbf16> to vector<64x64xbf16>
    %cst_117 = arith.constant dense<0.000000e+00> : vector<128x64xf32>
    %269 = tpu.matmul %266, %268, %cst_117 {dimension_numbers = #tpu.dot_dimension_numbers<[1], [0], [0], [1], [0, 0, 1, 1], [], []>} : vector<128x64xbf16>, vector<64x64xbf16>, vector<128x64xf32> -> vector<128x64xf32>
    %270 = arith.addf %261, %269 : vector<128x64xf32>
    %c0_118 = arith.constant 0 : index
    %c0_119 = arith.constant 0 : index
    %c0_120 = arith.constant 0 : index
    %271 = vector.load %arg5[%c0_118, %c0_119, %c0_120] : memref<3x1x64xf32, #tpu.memory_space<vmem>>, vector<1x1x64xf32>
    %272 = vector.shape_cast %271 : vector<1x1x64xf32> to vector<1x64xf32>
    %273 = vector.broadcast %272 : vector<1x64xf32> to vector<128x64xf32>
    %274 = arith.addf %144, %273 : vector<128x64xf32>
    %cst_121 = arith.constant 0.000000e+00 : f32
    %275 = vector.broadcast %cst_121 : f32 to vector<128x64xf32>
    %276 = arith.maximumf %274, %275 : vector<128x64xf32>
    %c1_122 = arith.constant 1 : index
    %c0_123 = arith.constant 0 : index
    %c0_124 = arith.constant 0 : index
    %277 = vector.load %arg5[%c1_122, %c0_123, %c0_124] : memref<3x1x64xf32, #tpu.memory_space<vmem>>, vector<1x1x64xf32>
    %278 = vector.shape_cast %277 : vector<1x1x64xf32> to vector<1x64xf32>
    %279 = vector.broadcast %278 : vector<1x64xf32> to vector<128x64xf32>
    %280 = arith.addf %215, %279 : vector<128x64xf32>
    %cst_125 = arith.constant 0.000000e+00 : f32
    %281 = vector.broadcast %cst_125 : f32 to vector<128x64xf32>
    %282 = arith.maximumf %280, %281 : vector<128x64xf32>
    %c2_126 = arith.constant 2 : index
    %c0_127 = arith.constant 0 : index
    %c0_128 = arith.constant 0 : index
    %283 = vector.load %arg5[%c2_126, %c0_127, %c0_128] : memref<3x1x64xf32, #tpu.memory_space<vmem>>, vector<1x1x64xf32>
    %284 = vector.shape_cast %283 : vector<1x1x64xf32> to vector<1x64xf32>
    %285 = vector.broadcast %284 : vector<1x64xf32> to vector<128x64xf32>
    %286 = arith.addf %270, %285 : vector<128x64xf32>
    %cst_129 = arith.constant 0.000000e+00 : f32
    %287 = vector.broadcast %cst_129 : f32 to vector<128x64xf32>
    %288 = arith.maximumf %286, %287 : vector<128x64xf32>
    %289 = arith.addf %276, %282 : vector<128x64xf32>
    %290 = arith.addf %289, %288 : vector<128x64xf32>
    %291 = arith.truncf %290 : vector<128x64xf32> to vector<128x64xbf16>
    %c0_130 = arith.constant 0 : index
    %c0_131 = arith.constant 0 : index
    %292 = vector.load %arg6[%c0_130, %c0_131] : memref<2x128xbf16, #tpu.memory_space<vmem>>, vector<2x128xbf16>
    %cst_132 = arith.constant dense<0.000000e+00> : vector<2x64xf32>
    %293 = tpu.matmul %292, %291, %cst_132 {dimension_numbers = #tpu.dot_dimension_numbers<[1], [0], [0], [1], [0, 0, 1, 1], [], []>} : vector<2x128xbf16>, vector<128x64xbf16>, vector<2x64xf32> -> vector<2x64xf32>
    %294 = arith.truncf %293 : vector<2x64xf32> to vector<2x64xbf16>
    %c0_133 = arith.constant 0 : index
    %c0_134 = arith.constant 0 : index
    %295 = vector.load %arg7[%c0_133, %c0_134] : memref<64x32xbf16, #tpu.memory_space<vmem>>, vector<64x32xbf16>
    %cst_135 = arith.constant dense<0.000000e+00> : vector<2x32xf32>
    %296 = tpu.matmul %294, %295, %cst_135 {dimension_numbers = #tpu.dot_dimension_numbers<[1], [0], [0], [1], [0, 0, 1, 1], [], []>} : vector<2x64xbf16>, vector<64x32xbf16>, vector<2x32xf32> -> vector<2x32xf32>
    %c0_136 = arith.constant 0 : index
    %c0_137 = arith.constant 0 : index
    %297 = vector.load %arg8[%c0_136, %c0_137] : memref<1x32xf32, #tpu.memory_space<vmem>>, vector<1x32xf32>
    %298 = vector.broadcast %297 : vector<1x32xf32> to vector<2x32xf32>
    %299 = arith.addf %296, %298 : vector<2x32xf32>
    %300 = arith.truncf %299 : vector<2x32xf32> to vector<2x32xbf16>
    %c0_138 = arith.constant 0 : index
    %c0_139 = arith.constant 0 : index
    %c0_140 = arith.constant 0 : index
    %301 = vector.load %arg9[%c0_138, %c0_139, %c0_140] : memref<3x32x64xbf16, #tpu.memory_space<vmem>>, vector<1x32x64xbf16>
    %302 = vector.shape_cast %301 : vector<1x32x64xbf16> to vector<32x64xbf16>
    %cst_141 = arith.constant dense<0.000000e+00> : vector<2x64xf32>
    %303 = tpu.matmul %300, %302, %cst_141 {dimension_numbers = #tpu.dot_dimension_numbers<[1], [0], [0], [1], [0, 0, 1, 1], [], []>} : vector<2x32xbf16>, vector<32x64xbf16>, vector<2x64xf32> -> vector<2x64xf32>
    %c0_142 = arith.constant 0 : index
    %c0_143 = arith.constant 0 : index
    %c0_144 = arith.constant 0 : index
    %304 = vector.load %arg10[%c0_142, %c0_143, %c0_144] : memref<3x1x64xf32, #tpu.memory_space<vmem>>, vector<1x1x64xf32>
    %305 = vector.shape_cast %304 : vector<1x1x64xf32> to vector<1x64xf32>
    %306 = vector.broadcast %305 : vector<1x64xf32> to vector<2x64xf32>
    %307 = arith.addf %303, %306 : vector<2x64xf32>
    %c1_145 = arith.constant 1 : index
    %c0_146 = arith.constant 0 : index
    %c0_147 = arith.constant 0 : index
    %308 = vector.load %arg9[%c1_145, %c0_146, %c0_147] : memref<3x32x64xbf16, #tpu.memory_space<vmem>>, vector<1x32x64xbf16>
    %309 = vector.shape_cast %308 : vector<1x32x64xbf16> to vector<32x64xbf16>
    %cst_148 = arith.constant dense<0.000000e+00> : vector<2x64xf32>
    %310 = tpu.matmul %300, %309, %cst_148 {dimension_numbers = #tpu.dot_dimension_numbers<[1], [0], [0], [1], [0, 0, 1, 1], [], []>} : vector<2x32xbf16>, vector<32x64xbf16>, vector<2x64xf32> -> vector<2x64xf32>
    %c1_149 = arith.constant 1 : index
    %c0_150 = arith.constant 0 : index
    %c0_151 = arith.constant 0 : index
    %311 = vector.load %arg10[%c1_149, %c0_150, %c0_151] : memref<3x1x64xf32, #tpu.memory_space<vmem>>, vector<1x1x64xf32>
    %312 = vector.shape_cast %311 : vector<1x1x64xf32> to vector<1x64xf32>
    %313 = vector.broadcast %312 : vector<1x64xf32> to vector<2x64xf32>
    %314 = arith.addf %310, %313 : vector<2x64xf32>
    %c2_152 = arith.constant 2 : index
    %c0_153 = arith.constant 0 : index
    %c0_154 = arith.constant 0 : index
    %315 = vector.load %arg9[%c2_152, %c0_153, %c0_154] : memref<3x32x64xbf16, #tpu.memory_space<vmem>>, vector<1x32x64xbf16>
    %316 = vector.shape_cast %315 : vector<1x32x64xbf16> to vector<32x64xbf16>
    %cst_155 = arith.constant dense<0.000000e+00> : vector<2x64xf32>
    %317 = tpu.matmul %300, %316, %cst_155 {dimension_numbers = #tpu.dot_dimension_numbers<[1], [0], [0], [1], [0, 0, 1, 1], [], []>} : vector<2x32xbf16>, vector<32x64xbf16>, vector<2x64xf32> -> vector<2x64xf32>
    %c2_156 = arith.constant 2 : index
    %c0_157 = arith.constant 0 : index
    %c0_158 = arith.constant 0 : index
    %318 = vector.load %arg10[%c2_156, %c0_157, %c0_158] : memref<3x1x64xf32, #tpu.memory_space<vmem>>, vector<1x1x64xf32>
    %319 = vector.shape_cast %318 : vector<1x1x64xf32> to vector<1x64xf32>
    %320 = vector.broadcast %319 : vector<1x64xf32> to vector<2x64xf32>
    %321 = arith.addf %317, %320 : vector<2x64xf32>
    %322 = arith.maximumf %307, %314 : vector<2x64xf32>
    %323 = arith.maximumf %322, %321 : vector<2x64xf32>
    %324 = arith.subf %307, %323 : vector<2x64xf32>
    %325 = math.exp %324 : vector<2x64xf32>
    %326 = arith.subf %314, %323 : vector<2x64xf32>
    %327 = math.exp %326 : vector<2x64xf32>
    %328 = arith.subf %321, %323 : vector<2x64xf32>
    %329 = math.exp %328 : vector<2x64xf32>
    %330 = arith.addf %325, %327 : vector<2x64xf32>
    %331 = arith.addf %330, %329 : vector<2x64xf32>
    %332 = tpu.reciprocal %331 {approx = true} : vector<2x64xf32> -> vector<2x64xf32>
    %333 = arith.mulf %325, %332 : vector<2x64xf32>
    %334 = arith.mulf %327, %332 : vector<2x64xf32>
    %335 = arith.mulf %329, %332 : vector<2x64xf32>
    %336 = vector.shape_cast %276 : vector<128x64xf32> to vector<2x64x64xf32>
    %337 = vector.shape_cast %333 : vector<2x64xf32> to vector<2x1x64xf32>
    %338 = vector.broadcast %337 : vector<2x1x64xf32> to vector<2x64x64xf32>
    %339 = arith.mulf %336, %338 : vector<2x64x64xf32>
    %340 = vector.shape_cast %339 : vector<2x64x64xf32> to vector<128x64xf32>
    %341 = vector.shape_cast %282 : vector<128x64xf32> to vector<2x64x64xf32>
    %342 = vector.shape_cast %334 : vector<2x64xf32> to vector<2x1x64xf32>
    %343 = vector.broadcast %342 : vector<2x1x64xf32> to vector<2x64x64xf32>
    %344 = arith.mulf %341, %343 : vector<2x64x64xf32>
    %345 = vector.shape_cast %344 : vector<2x64x64xf32> to vector<128x64xf32>
    %346 = arith.addf %340, %345 : vector<128x64xf32>
    %347 = vector.shape_cast %288 : vector<128x64xf32> to vector<2x64x64xf32>
    %348 = vector.shape_cast %335 : vector<2x64xf32> to vector<2x1x64xf32>
    %349 = vector.broadcast %348 : vector<2x1x64xf32> to vector<2x64x64xf32>
    %350 = arith.mulf %347, %349 : vector<2x64x64xf32>
    %351 = vector.shape_cast %350 : vector<2x64x64xf32> to vector<128x64xf32>
    %352 = arith.addf %346, %351 : vector<128x64xf32>
    %353 = arith.truncf %352 : vector<128x64xf32> to vector<128x64xbf16>
    %c0_159 = arith.constant 0 : index
    %c0_160 = arith.constant 0 : index
    %354 = vector.load %arg11[%c0_159, %c0_160] : memref<128x64xbf16, #tpu.memory_space<vmem>>, vector<128x64xbf16>
    tpu.vector_store %arg11[%c0_159, %c0_160], %353 {strides = array<i32>} : memref<128x64xbf16, #tpu.memory_space<vmem>>, vector<128x64xbf16>,
    return
  }
  func.func @transform_0(%arg0: i32) -> (i32, i32, i32) {
    %c0_i32 = arith.constant 0 : i32
    %c0_i32_0 = arith.constant 0 : i32
    %c0_i32_1 = arith.constant 0 : i32
    %c0_i32_2 = arith.constant 0 : i32
    return %c0_i32, %c0_i32_0, %c0_i32_1 : i32, i32, i32
  }
  func.func @transform_1(%arg0: i32) -> (i32, i32) {
    %c0_i32 = arith.constant 0 : i32
    %c0_i32_0 = arith.constant 0 : i32
    %c0_i32_1 = arith.constant 0 : i32
    return %c0_i32, %c0_i32_0 : i32, i32
  }
  func.func @transform_2(%arg0: i32) -> (i32, i32, i32) {
    %c0_i32 = arith.constant 0 : i32
    %c0_i32_0 = arith.constant 0 : i32
    %c0_i32_1 = arith.constant 0 : i32
    %c0_i32_2 = arith.constant 0 : i32
    return %c0_i32, %c0_i32_0, %c0_i32_1 : i32, i32, i32
  }
  func.func @transform_3(%arg0: i32) -> (i32, i32, i32) {
    %c0_i32 = arith.constant 0 : i32
    %c0_i32_0 = arith.constant 0 : i32
    %c0_i32_1 = arith.constant 0 : i32
    %c0_i32_2 = arith.constant 0 : i32
    return %c0_i32, %c0_i32_0, %c0_i32_1 : i32, i32, i32
  }
  func.func @transform_4(%arg0: i32) -> (i32, i32, i32) {
    %c0_i32 = arith.constant 0 : i32
    %c0_i32_0 = arith.constant 0 : i32
    %c0_i32_1 = arith.constant 0 : i32
    %c0_i32_2 = arith.constant 0 : i32
    return %c0_i32, %c0_i32_0, %c0_i32_1 : i32, i32, i32
  }
  func.func @transform_5(%arg0: i32) -> (i32, i32) {
    %c0_i32 = arith.constant 0 : i32
    %c0_i32_0 = arith.constant 0 : i32
    %c0_i32_1 = arith.constant 0 : i32
    return %c0_i32, %c0_i32_0 : i32, i32
  }
  func.func @transform_6(%arg0: i32) -> (i32, i32) {
    %c0_i32 = arith.constant 0 : i32
    %c0_i32_0 = arith.constant 0 : i32
    %c0_i32_1 = arith.constant 0 : i32
    return %c0_i32, %c0_i32_0 : i32, i32
  }
  func.func @transform_7(%arg0: i32) -> (i32, i32) {
    %c0_i32 = arith.constant 0 : i32
    %c0_i32_0 = arith.constant 0 : i32
    %c0_i32_1 = arith.constant 0 : i32
    return %c0_i32, %c0_i32_0 : i32, i32
  }
  func.func @transform_8(%arg0: i32) -> (i32, i32, i32) {
    %c0_i32 = arith.constant 0 : i32
    %c0_i32_0 = arith.constant 0 : i32
    %c0_i32_1 = arith.constant 0 : i32
    %c0_i32_2 = arith.constant 0 : i32
    return %c0_i32, %c0_i32_0, %c0_i32_1 : i32, i32, i32
  }
  func.func @transform_9(%arg0: i32) -> (i32, i32, i32) {
    %c0_i32 = arith.constant 0 : i32
    %c0_i32_0 = arith.constant 0 : i32
    %c0_i32_1 = arith.constant 0 : i32
    %c0_i32_2 = arith.constant 0 : i32
    return %c0_i32, %c0_i32_0, %c0_i32_1 : i32, i32, i32
  }
  func.func @transform_10(%arg0: i32) -> (i32, i32) {
    %c0_i32 = arith.constant 0 : i32
    %c0_i32_0 = arith.constant 0 : i32
    %c0_i32_1 = arith.constant 0 : i32
    return %c0_i32, %c0_i32_0 : i32, i32
  }
}

</mosaic_0001>

<llo_original>
// kernel: sk_attention_pallas.1
$region0: #{sk_attention_pallas.1}
  #allocation0 [shape = 'u32[]', space=smem, size = 0x4, offset = 0x4, fixed_abs, tag = 'smem constant byte address 0x4 - core index']
  #allocation1 [shape = 'u32[144,128]{1,0:T(1,128)}', space=vmem, size = 0x12000, scoped, tag = 'internal scratch']
  %s0 = inlined_call_operand.vmem [shape: f32[24,12,64], index: 0, kind: input, shape index: {}]
  %s1 = inlined_call_operand.vmem [shape: bf16[64,64], index: 1, kind: input, shape index: {}]
  %s2 = inlined_call_operand.vmem [shape: bf16[9,64,64], index: 2, kind: input, shape index: {}]
  %s3 = inlined_call_operand.hbm [shape: bf16[25,64,64], index: 3, kind: input, shape index: {}]
  %s4 = inlined_call_operand.vmem [shape: f32[3,1,64], index: 4, kind: input, shape index: {}]
  %s5 = inlined_call_operand.vmem [shape: bf16[2,128], index: 5, kind: input, shape index: {}]
  %s6 = inlined_call_operand.vmem [shape: bf16[64,32], index: 6, kind: input, shape index: {}]
  %s7 = inlined_call_operand.vmem [shape: f32[1,32], index: 7, kind: input, shape index: {}]
  %s8 = inlined_call_operand.vmem [shape: bf16[3,32,64], index: 8, kind: input, shape index: {}]
  %s9 = inlined_call_operand.vmem [shape: f32[3,1,64], index: 9, kind: input, shape index: {}]
  %s10 = inlined_call_operand.vmem [shape: bf16[128,64], index: 10, kind: output, shape index: {}]
  %s11 = sld [smem:[#allocation0]]
  $region54: #{sk_attention_pallas.1} parent=0
    _
  %s13 = ssub.s32 1, %s11
  %s14 = scalar_select 0, %s13, %s11
  $region1: #{sk_attention_pallas.1} parent=0
    #allocation2 [shape = 'u8[409600]{0}', space=vmem, size = 0x64000, scoped, tag = 'input window, operand 3, single buffered']
    #allocation3 [shape = 's32[1]{0}', space=sflag, size = 0x4, scoped, tag = 'scoped memory for sk_attention_pallas.1']
    %15 = vsyncpa [#allocation3], 0
    // Predicated region
    $region2: #{sk_attention_pallas.1} parent=1 // pred_check
      _
    $region3: #{sk_attention_pallas.1} parent=1 // pred_check_branch
      %17 = sbr.rel (0) target = $region5
    $region4: #{sk_attention_pallas.1} parent=1 // pred_region
      _
    $region5: #{sk_attention_pallas.1} parent=1 // pred_fallthru
      _
    // Predicated region
    $region6: #{sk_attention_pallas.1} parent=1 // pred_check
      _
    $region7: #{sk_attention_pallas.1} parent=1 // pred_check_branch
      %19 = sbr.rel (0) target = $region9
    $region8: #{sk_attention_pallas.1} parent=1 // pred_region
      _
    $region9: #{sk_attention_pallas.1} parent=1 // pred_fallthru
      _
    // Predicated region
    $region10: #{sk_attention_pallas.1} parent=1 // pred_check
      _
    $region11: #{sk_attention_pallas.1} parent=1 // pred_check_branch
      %21 = sbr.rel (0) target = $region13
    $region12: #{sk_attention_pallas.1} parent=1 // pred_region
      _
    $region13: #{sk_attention_pallas.1} parent=1 // pred_fallthru
      _
    // Predicated region
    $region14: #{sk_attention_pallas.1} parent=1 // pred_check
      _
    $region15: #{sk_attention_pallas.1} parent=1 // pred_check_branch
      %23 = sbr.rel (0) target = $region17
    $region16: #{sk_attention_pallas.1} parent=1 // pred_region
      %s25 = ssub.s32 12800, 12800
      %26 = vsyncadd [#allocation3], %s25
      %s27 = sshll.u32 [#allocation2], 4
      %s28 = int_to_ptr.vmem [resolvable:$true] %s27
      %33 = dma.hbm_to_vmem [thread:$0]  %s3, 12800, %s28, [#allocation3], 64, 64, 4
    $region17: #{sk_attention_pallas.1} parent=1 // pred_fallthru
      _
    // Predicated region
    $region18: #{sk_attention_pallas.1} parent=1 // pred_check
      _
    $region19: #{sk_attention_pallas.1} parent=1 // pred_check_branch
      %35 = sbr.rel (0) target = $region21
    $region20: #{sk_attention_pallas.1} parent=1 // pred_region
      _
    $region21: #{sk_attention_pallas.1} parent=1 // pred_fallthru
      _
    // Predicated region
    $region22: #{sk_attention_pallas.1} parent=1 // pred_check
      _
    $region23: #{sk_attention_pallas.1} parent=1 // pred_check_branch
      %37 = sbr.rel (0) target = $region25
    $region24: #{sk_attention_pallas.1} parent=1 // pred_region
      _
    $region25: #{sk_attention_pallas.1} parent=1 // pred_fallthru
      _
    // Predicated region
    $region26: #{sk_attention_pallas.1} parent=1 // pred_check
      _
    $region27: #{sk_attention_pallas.1} parent=1 // pred_check_branch
      %39 = sbr.rel (0) target = $region29
    $region28: #{sk_attention_pallas.1} parent=1 // pred_region
      _
    $region29: #{sk_attention_pallas.1} parent=1 // pred_fallthru
      _
    // Predicated region
    $region30: #{sk_attention_pallas.1} parent=1 // pred_check
      _
    $region31: #{sk_attention_pallas.1} parent=1 // pred_check_branch
      %41 = sbr.rel (0) target = $region33
    $region32: #{sk_attention_pallas.1} parent=1 // pred_region
      _
    $region33: #{sk_attention_pallas.1} parent=1 // pred_fallthru
      _
    // Predicated region
    $region34: #{sk_attention_pallas.1} parent=1 // pred_check
      _
    $region35: #{sk_attention_pallas.1} parent=1 // pred_check_branch
      %43 = sbr.rel (0) target = $region37
    $region36: #{sk_attention_pallas.1} parent=1 // pred_region
      _
    $region37: #{sk_attention_pallas.1} parent=1 // pred_fallthru
      _
    // Predicated region
    $region38: #{sk_attention_pallas.1} parent=1 // pred_check
      _
    $region39: #{sk_attention_pallas.1} parent=1 // pred_check_branch
      %45 = sbr.rel (0) target = $region41
    $region40: #{sk_attention_pallas.1} parent=1 // pred_region
      _
    $region41: #{sk_attention_pallas.1} parent=1 // pred_fallthru
      _
    // Predicated region
    $region42: #{sk_attention_pallas.1} parent=1 // pred_check
      _
    $region43: #{sk_attention_pallas.1} parent=1 // pred_check_branch
      %47 = sbr.rel (0) target = $region45
    $region44: #{sk_attention_pallas.1} parent=1 // pred_region
      %48 = dma.done [#allocation3], 12800
    $region45: #{sk_attention_pallas.1} parent=1 // pred_fallthru
      _
    %v50 = vld [vmem:[%s0] sm:$0xff]
    %v51 = vld [vmem:[%s0 + $0x8] sm:$0xf]
    %v52 = vld [vmem:[%s0 + $0x10] sm:$0xff]
    %v53 = vld [vmem:[%s0 + $0x18] sm:$0xf]
    %v54 = vld [vmem:[%s0 + $0x20] sm:$0xff]
    %v55 = vld [vmem:[%s0 + $0x28] sm:$0xf]
    %v56 = vld [vmem:[%s0 + $0x30] sm:$0xff]
    %v57 = vld [vmem:[%s0 + $0x38] sm:$0xf]
    %v58 = vld [vmem:[%s0 + $0x40] sm:$0xff]
    %v59 = vld [vmem:[%s0 + $0x48] sm:$0xf]
    %v60 = vld [vmem:[%s0 + $0x50] sm:$0xff]
    %v61 = vld [vmem:[%s0 + $0x58] sm:$0xf]
    %v62 = vld [vmem:[%s0 + $0x60] sm:$0xff]
    %v63 = vld [vmem:[%s0 + $0x68] sm:$0xf]
    %v64 = vld [vmem:[%s0 + $0x70] sm:$0xff]
    %v65 = vld [vmem:[%s0 + $0x78] sm:$0xf]
    %v66 = vld [vmem:[%s0 + $0x80] sm:$0xff]
    %v67 = vld [vmem:[%s0 + $0x88] sm:$0xf]
    %v68 = vld [vmem:[%s0 + $0x90] sm:$0xff]
    %v69 = vld [vmem:[%s0 + $0x98] sm:$0xf]
    %v70 = vld [vmem:[%s0 + $0xa0] sm:$0xff]
    %v71 = vld [vmem:[%s0 + $0xa8] sm:$0xf]
    %v72 = vld [vmem:[%s0 + $0xb0] sm:$0xff]
    %v73 = vld [vmem:[%s0 + $0xb8] sm:$0xf]
    %v74 = vld [vmem:[%s0 + $0xc0] sm:$0xff]
    %v75 = vld [vmem:[%s0 + $0xc8] sm:$0xf]
    %v76 = vld [vmem:[%s0 + $0xd0] sm:$0xff]
    %v77 = vld [vmem:[%s0 + $0xd8] sm:$0xf]
    %v78 = vld [vmem:[%s0 + $0xe0] sm:$0xff]
    %v79 = vld [vmem:[%s0 + $0xe8] sm:$0xf]
    %v80 = vld [vmem:[%s0 + $0xf0] sm:$0xff]
    %v81 = vld [vmem:[%s0 + $0xf8] sm:$0xf]
    %v82 = vld [vmem:[%s0 + $0x100] sm:$0xff]
    %v83 = vld [vmem:[%s0 + $0x108] sm:$0xf]
    %v84 = vld [vmem:[%s0 + $0x110] sm:$0xff]
    %v85 = vld [vmem:[%s0 + $0x118] sm:$0xf]
    %v86 = vld [vmem:[%s0 + $0x120] sm:$0xff]
    %v87 = vld [vmem:[%s0 + $0x128] sm:$0xf]
    %v88 = vld [vmem:[%s0 + $0x130] sm:$0xff]
    %v89 = vld [vmem:[%s0 + $0x138] sm:$0xf]
    %v90 = vld [vmem:[%s0 + $0x140] sm:$0xff]
    %v91 = vld [vmem:[%s0 + $0x148] sm:$0xf]
    %v92 = vld [vmem:[%s0 + $0x150] sm:$0xff]
    %v93 = vld [vmem:[%s0 + $0x158] sm:$0xf]
    %v94 = vld [vmem:[%s0 + $0x160] sm:$0xff]
    %v95 = vld [vmem:[%s0 + $0x168] sm:$0xf]
    %v96 = vld [vmem:[%s0 + $0x170] sm:$0xff]
    %v97 = vld [vmem:[%s0 + $0x178] sm:$0xf]
    %v98 = vpack.c.bf16 %v52, %v50
    %v99 = vpack.c.bf16 %v56, %v54
    %v100 = vpack.c.bf16 %v60, %v58
    %v101 = vpack.c.bf16 %v64, %v62
    %v102 = vpack.c.bf16 %v76, %v74
    %v103 = vpack.c.bf16 %v80, %v78
    %v104 = vpack.c.bf16 %v84, %v82
    %v105 = vpack.c.bf16 %v88, %v86
    %v106 = vld [vmem:[#allocation2] sm:$0xf]
    %v107 = vld [vmem:[#allocation2 + $0x4] sm:$0xf]
    %v108 = vld [vmem:[#allocation2 + $0x8] sm:$0xf]
    %v109 = vld [vmem:[#allocation2 + $0xc] sm:$0xf]
    %v110 = vld [vmem:[#allocation2 + $0x10] sm:$0xf]
    %v111 = vld [vmem:[#allocation2 + $0x14] sm:$0xf]
    %v112 = vld [vmem:[#allocation2 + $0x18] sm:$0xf]
    %v113 = vld [vmem:[#allocation2 + $0x1c] sm:$0xf]
    %v114 = vpack.c.bf16 %v54, %v52
    %v115 = vpack.c.bf16 %v58, %v56
    %v116 = vpack.c.bf16 %v62, %v60
    %v117 = vpack.c.bf16 %v66, %v64
    %v118 = vpack.c.bf16 %v78, %v76
    %v119 = vpack.c.bf16 %v82, %v80
    %v120 = vpack.c.bf16 %v86, %v84
    %v121 = vpack.c.bf16 %v90, %v88
    %s122 = scalar_lea.vmem [#allocation2], 160
    %v123 = vld [vmem:[%s122] sm:$0xf]
    %v124 = vld [vmem:[%s122 + $0x4] sm:$0xf]
    %v125 = vld [vmem:[%s122 + $0x8] sm:$0xf]
    %v126 = vld [vmem:[%s122 + $0xc] sm:$0xf]
    %v127 = vld [vmem:[%s122 + $0x10] sm:$0xf]
    %v128 = vld [vmem:[%s122 + $0x14] sm:$0xf]
    %v129 = vld [vmem:[%s122 + $0x18] sm:$0xf]
    %v130 = vld [vmem:[%s122 + $0x1c] sm:$0xf]
    %v139 = vunpack.c.l.b16 %v123
    %v140 = vunpack.c.l.b16 %v124
    %v141 = vunpack.c.l.b16 %v125
    %v142 = vunpack.c.l.b16 %v126
    %v143 = vunpack.c.l.b16 %v127
    %v144 = vunpack.c.l.b16 %v128
    %v145 = vunpack.c.l.b16 %v129
    %v146 = vunpack.c.l.b16 %v130
    %v147 = vpack.c.b16 %v140, %v139
    %v148 = vpack.c.b16 %v142, %v141
    %v149 = vpack.c.b16 %v144, %v143
    %v150 = vpack.c.b16 %v146, %v145
    %vm155 = vcmask 523264
    %v157 = vsel %vm155, %v114, 0
    %v160 = vsel %vm155, %v115, 0
    %v163 = vsel %vm155, %v116, 0
    %v166 = vsel %vm155, %v117, 0
    %v169 = vsel %vm155, %v118, 0
    %v172 = vsel %vm155, %v119, 0
    %v175 = vsel %vm155, %v120, 0
    %v178 = vsel %vm155, %v121, 0
    %180 = vmatprep.subr.bf16.mxu0 0
    %181 = vmatpush1.bf16.msra.mxu0 %v147
    %182 = vmatprep.subr.bf16.mxu0 0
    %183 = vmatpush1.bf16.msra.mxu0 %v148
    %184 = vmatprep.subr.bf16.mxu0 0
    %185 = vmatpush1.bf16.msra.mxu0 %v149
    %186 = vmatprep.subr.bf16.mxu0 0
    %187 = vmatpush1.bf16.msra.mxu0 %v150
    %188 = vmatprep.subr.bf16.mxu0 0
    %189 = vmatpush1.bf16.msra.mxu0 0
    %190 = vmatprep.subr.bf16.mxu0 0
    %191 = vmatpush1.bf16.msra.mxu0 0
    %192 = vmatprep.subr.bf16.mxu0 0
    %193 = vmatpush1.bf16.msra.mxu0 0
    %194 = vmatprep.subr.bf16.mxu0 0
    %195 = vmatpush1.bf16.msra.mxu0 0
    %196 = vmatprep.subr.bf16.mxu0 0
    %197 = vmatpush1.bf16.msra.mxu0 0
    %198 = vmatprep.subr.bf16.mxu0 0
    %199 = vmatpush1.bf16.msra.mxu0 0
    %200 = vmatprep.subr.bf16.mxu0 0
    %201 = vmatpush1.bf16.msra.mxu0 0
    %202 = vmatprep.subr.bf16.mxu0 0
    %203 = vmatpush1.bf16.msra.mxu0 0
    %204 = vmatprep.subr.bf16.mxu0 0
    %205 = vmatpush1.bf16.msra.mxu0 0
    %206 = vmatprep.subr.bf16.mxu0 0
    %207 = vmatpush1.bf16.msra.mxu0 0
    %208 = vmatprep.subr.bf16.mxu0 0
    %209 = vmatpush1.bf16.msra.mxu0 0
    %210 = vmatprep.subr.bf16.mxu0 0
    %211 = vmatpush1.bf16.msra.mxu0 0
    %212 = vmatprep.mubr.bf16.mxu0 0
    %213 = vmatmul.mubr.bf16.gmra.mrb[0].mxu0 %v157
    %v214 = vpop.f32.mrb[0].mxu0
    %v215 = vadd.f32 0.0, %v214
    %v216 = vpop.f32.mrb[0].mxu0
    %v217 = vpop.f32.mrb[0].mxu0
    %v218 = vadd.f32 0.0, %v217
    %v219 = vpop.f32.mrb[0].mxu0
    %220 = vmatprep.mubr.bf16.mxu0 0
    %221 = vmatmul.mubr.bf16.gmra.mrb[0].mxu0 %v160
    %v222 = vpop.f32.mrb[0].mxu0
    %v223 = vadd.f32 0.0, %v222
    %v224 = vpop.f32.mrb[0].mxu0
    %v225 = vpop.f32.mrb[0].mxu0
    %v226 = vadd.f32 0.0, %v225
    %v227 = vpop.f32.mrb[0].mxu0
    %228 = vmatprep.mubr.bf16.mxu0 0
    %229 = vmatmul.mubr.bf16.gmra.mrb[0].mxu0 %v163
    %v230 = vpop.f32.mrb[0].mxu0
    %v231 = vadd.f32 0.0, %v230
    %v232 = vpop.f32.mrb[0].mxu0
    %v233 = vpop.f32.mrb[0].mxu0
    %v234 = vadd.f32 0.0, %v233
    %v235 = vpop.f32.mrb[0].mxu0
    %236 = vmatprep.mubr.bf16.mxu0 0
    %237 = vmatmul.mubr.bf16.gmra.mrb[0].mxu0 %v166
    %v238 = vpop.f32.mrb[0].mxu0
    %v239 = vadd.f32 0.0, %v238
    %v240 = vpop.f32.mrb[0].mxu0
    %v241 = vpop.f32.mrb[0].mxu0
    %v242 = vadd.f32 0.0, %v241
    %v243 = vpop.f32.mrb[0].mxu0
    %244 = vmatprep.mubr.bf16.mxu0 0
    %245 = vmatmul.mubr.bf16.gmra.mrb[0].mxu0 %v169
    %v246 = vpop.f32.mrb[0].mxu0
    %v247 = vadd.f32 0.0, %v246
    %v248 = vpop.f32.mrb[0].mxu0
    %v249 = vpop.f32.mrb[0].mxu0
    %v250 = vadd.f32 0.0, %v249
    %v251 = vpop.f32.mrb[0].mxu0
    %252 = vmatprep.mubr.bf16.mxu0 0
    %253 = vmatmul.mubr.bf16.gmra.mrb[0].mxu0 %v172
    %v254 = vpop.f32.mrb[0].mxu0
    %v255 = vadd.f32 0.0, %v254
    %v256 = vpop.f32.mrb[0].mxu0
    %v257 = vpop.f32.mrb[0].mxu0
    %v258 = vadd.f32 0.0, %v257
    %v259 = vpop.f32.mrb[0].mxu0
    %260 = vmatprep.mubr.bf16.mxu0 0
    %261 = vmatmul.mubr.bf16.gmra.mrb[0].mxu0 %v175
    %v262 = vpop.f32.mrb[0].mxu0
    %v263 = vadd.f32 0.0, %v262
    %v264 = vpop.f32.mrb[0].mxu0
    %v265 = vpop.f32.mrb[0].mxu0
    %v266 = vadd.f32 0.0, %v265
    %v267 = vpop.f32.mrb[0].mxu0
    %268 = vmatprep.mubr.bf16.mxu0 0
    %269 = vmatmul.mubr.bf16.gmra.mrb[0].mxu0 %v178
    %v270 = vpop.f32.mrb[0].mxu0
    %v271 = vadd.f32 0.0, %v270
    %v272 = vpop.f32.mrb[0].mxu0
    %v273 = vpop.f32.mrb[0].mxu0
    %v274 = vadd.f32 0.0, %v273
    %v275 = vpop.f32.mrb[0].mxu0
    %276 = vdwg.mxu0
    %v285 = vunpack.c.l.b16 %v106
    %v286 = vunpack.c.l.b16 %v107
    %v287 = vunpack.c.l.b16 %v108
    %v288 = vunpack.c.l.b16 %v109
    %v289 = vunpack.c.l.b16 %v110
    %v290 = vunpack.c.l.b16 %v111
    %v291 = vunpack.c.l.b16 %v112
    %v292 = vunpack.c.l.b16 %v113
    %v293 = vpack.c.b16 %v286, %v285
    %v294 = vpack.c.b16 %v288, %v287
    %v295 = vpack.c.b16 %v290, %v289
    %v296 = vpack.c.b16 %v292, %v291
    %v302 = vsel %vm155, %v98, 0
    %v305 = vsel %vm155, %v99, 0
    %v308 = vsel %vm155, %v100, 0
    %v311 = vsel %vm155, %v101, 0
    %v314 = vsel %vm155, %v102, 0
    %v317 = vsel %vm155, %v103, 0
    %v320 = vsel %vm155, %v104, 0
    %v323 = vsel %vm155, %v105, 0
    %325 = vmatprep.subr.bf16.mxu0 0
    %326 = vmatpush1.bf16.msra.mxu0 %v293
    %327 = vmatprep.subr.bf16.mxu0 0
    %328 = vmatpush1.bf16.msra.mxu0 %v294
    %329 = vmatprep.subr.bf16.mxu0 0
    %330 = vmatpush1.bf16.msra.mxu0 %v295
    %331 = vmatprep.subr.bf16.mxu0 0
    %332 = vmatpush1.bf16.msra.mxu0 %v296
    %333 = vmatprep.subr.bf16.mxu0 0
    %334 = vmatpush1.bf16.msra.mxu0 0
    %335 = vmatprep.subr.bf16.mxu0 0
    %336 = vmatpush1.bf16.msra.mxu0 0
    %337 = vmatprep.subr.bf16.mxu0 0
    %338 = vmatpush1.bf16.msra.mxu0 0
    %339 = vmatprep.subr.bf16.mxu0 0
    %340 = vmatpush1.bf16.msra.mxu0 0
    %341 = vmatprep.subr.bf16.mxu0 0
    %342 = vmatpush1.bf16.msra.mxu0 0
    %343 = vmatprep.subr.bf16.mxu0 0
    %344 = vmatpush1.bf16.msra.mxu0 0
    %345 = vmatprep.subr.bf16.mxu0 0
    %346 = vmatpush1.bf16.msra.mxu0 0
    %347 = vmatprep.subr.bf16.mxu0 0
    %348 = vmatpush1.bf16.msra.mxu0 0
    %349 = vmatprep.subr.bf16.mxu0 0
    %350 = vmatpush1.bf16.msra.mxu0 0
    %351 = vmatprep.subr.bf16.mxu0 0
    %352 = vmatpush1.bf16.msra.mxu0 0
    %353 = vmatprep.subr.bf16.mxu0 0
    %354 = vmatpush1.bf16.msra.mxu0 0
    %355 = vmatprep.subr.bf16.mxu0 0
    %356 = vmatpush1.bf16.msra.mxu0 0
    %357 = vmatprep.mubr.bf16.mxu0 0
    %358 = vmatmul.mubr.bf16.gmra.mrb[0].mxu0 %v302
    %v359 = vpop.f32.mrb[0].mxu0
    %v360 = vadd.f32 %v215, %v359
    %v361 = vpop.f32.mrb[0].mxu0
    %v362 = vpop.f32.mrb[0].mxu0
    %v363 = vadd.f32 %v218, %v362
    %v364 = vpop.f32.mrb[0].mxu0
    %365 = vmatprep.mubr.bf16.mxu0 0
    %366 = vmatmul.mubr.bf16.gmra.mrb[0].mxu0 %v305
    %v367 = vpop.f32.mrb[0].mxu0
    %v368 = vadd.f32 %v223, %v367
    %v369 = vpop.f32.mrb[0].mxu0
    %v370 = vpop.f32.mrb[0].mxu0
    %v371 = vadd.f32 %v226, %v370
    %v372 = vpop.f32.mrb[0].mxu0
    %373 = vmatprep.mubr.bf16.mxu0 0
    %374 = vmatmul.mubr.bf16.gmra.mrb[0].mxu0 %v308
    %v375 = vpop.f32.mrb[0].mxu0
    %v376 = vadd.f32 %v231, %v375
    %v377 = vpop.f32.mrb[0].mxu0
    %v378 = vpop.f32.mrb[0].mxu0
    %v379 = vadd.f32 %v234, %v378
    %v380 = vpop.f32.mrb[0].mxu0
    %381 = vmatprep.mubr.bf16.mxu0 0
    %382 = vmatmul.mubr.bf16.gmra.mrb[0].mxu0 %v311
    %v383 = vpop.f32.mrb[0].mxu0
    %v384 = vadd.f32 %v239, %v383
    %v385 = vpop.f32.mrb[0].mxu0
    %v386 = vpop.f32.mrb[0].mxu0
    %v387 = vadd.f32 %v242, %v386
    %v388 = vpop.f32.mrb[0].mxu0
    %389 = vmatprep.mubr.bf16.mxu0 0
    %390 = vmatmul.mubr.bf16.gmra.mrb[0].mxu0 %v314
    %v391 = vpop.f32.mrb[0].mxu0
    %v392 = vadd.f32 %v247, %v391
    %v393 = vpop.f32.mrb[0].mxu0
    %v394 = vpop.f32.mrb[0].mxu0
    %v395 = vadd.f32 %v250, %v394
    %v396 = vpop.f32.mrb[0].mxu0
    %397 = vmatprep.mubr.bf16.mxu0 0
    %398 = vmatmul.mubr.bf16.gmra.mrb[0].mxu0 %v317
    %v399 = vpop.f32.mrb[0].mxu0
    %v400 = vadd.f32 %v255, %v399
    %v401 = vpop.f32.mrb[0].mxu0
    %v402 = vpop.f32.mrb[0].mxu0
    %v403 = vadd.f32 %v258, %v402
    %v404 = vpop.f32.mrb[0].mxu0
    %405 = vmatprep.mubr.bf16.mxu0 0
    %406 = vmatmul.mubr.bf16.gmra.mrb[0].mxu0 %v320
    %v407 = vpop.f32.mrb[0].mxu0
    %v408 = vadd.f32 %v263, %v407
    %v409 = vpop.f32.mrb[0].mxu0
    %v410 = vpop.f32.mrb[0].mxu0
    %v411 = vadd.f32 %v266, %v410
    %v412 = vpop.f32.mrb[0].mxu0
    %413 = vmatprep.mubr.bf16.mxu0 0
    %414 = vmatmul.mubr.bf16.gmra.mrb[0].mxu0 %v323
    %v415 = vpop.f32.mrb[0].mxu0
    %v416 = vadd.f32 %v271, %v415
    %v417 = vpop.f32.mrb[0].mxu0
    %v418 = vpop.f32.mrb[0].mxu0
    %v419 = vadd.f32 %v274, %v418
    %v420 = vpop.f32.mrb[0].mxu0
    %421 = vdwg.mxu0
    %v422 = vpack.c.bf16 %v68, %v66
    %v423 = vpack.c.bf16 %v92, %v90
    %s424 = scalar_lea.vmem [#allocation2], 320
    %v425 = vld [vmem:[%s424] sm:$0xf]
    %v426 = vld [vmem:[%s424 + $0x4] sm:$0xf]
    %v427 = vld [vmem:[%s424 + $0x8] sm:$0xf]
    %v428 = vld [vmem:[%s424 + $0xc] sm:$0xf]
    %v429 = vld [vmem:[%s424 + $0x10] sm:$0xf]
    %v430 = vld [vmem:[%s424 + $0x14] sm:$0xf]
    %v431 = vld [vmem:[%s424 + $0x18] sm:$0xf]
    %v432 = vld [vmem:[%s424 + $0x1c] sm:$0xf]
    %v441 = vunpack.c.l.b16 %v425
    %v442 = vunpack.c.l.b16 %v426
    %v443 = vunpack.c.l.b16 %v427
    %v444 = vunpack.c.l.b16 %v428
    %v445 = vunpack.c.l.b16 %v429
    %v446 = vunpack.c.l.b16 %v430
    %v447 = vunpack.c.l.b16 %v431
    %v448 = vunpack.c.l.b16 %v432
    %v449 = vpack.c.b16 %v442, %v441
    %v450 = vpack.c.b16 %v444, %v443
    %v451 = vpack.c.b16 %v446, %v445
    %v452 = vpack.c.b16 %v448, %v447
    %v458 = vsel %vm155, %v422, 0
    %v461 = vsel %vm155, %v423, 0
    %463 = vmatprep.subr.bf16.mxu0 0
    %464 = vmatpush1.bf16.msra.mxu0 %v449
    %465 = vmatprep.subr.bf16.mxu0 0
    %466 = vmatpush1.bf16.msra.mxu0 %v450
    %467 = vmatprep.subr.bf16.mxu0 0
    %468 = vmatpush1.bf16.msra.mxu0 %v451
    %469 = vmatprep.subr.bf16.mxu0 0
    %470 = vmatpush1.bf16.msra.mxu0 %v452
    %471 = vmatprep.subr.bf16.mxu0 0
    %472 = vmatpush1.bf16.msra.mxu0 0
    %473 = vmatprep.subr.bf16.mxu0 0
    %474 = vmatpush1.bf16.msra.mxu0 0
    %475 = vmatprep.subr.bf16.mxu0 0
    %476 = vmatpush1.bf16.msra.mxu0 0
    %477 = vmatprep.subr.bf16.mxu0 0
    %478 = vmatpush1.bf16.msra.mxu0 0
    %479 = vmatprep.subr.bf16.mxu0 0
    %480 = vmatpush1.bf16.msra.mxu0 0
    %481 = vmatprep.subr.bf16.mxu0 0
    %482 = vmatpush1.bf16.msra.mxu0 0
    %483 = vmatprep.subr.bf16.mxu0 0
    %484 = vmatpush1.bf16.msra.mxu0 0
    %485 = vmatprep.subr.bf16.mxu0 0
    %486 = vmatpush1.bf16.msra.mxu0 0
    %487 = vmatprep.subr.bf16.mxu0 0
    %488 = vmatpush1.bf16.msra.mxu0 0
    %489 = vmatprep.subr.bf16.mxu0 0
    %490 = vmatpush1.bf16.msra.mxu0 0
    %491 = vmatprep.subr.bf16.mxu0 0
    %492 = vmatpush1.bf16.msra.mxu0 0
    %493 = vmatprep.subr.bf16.mxu0 0
    %494 = vmatpush1.bf16.msra.mxu0 0
    %495 = vmatprep.mubr.bf16.mxu0 0
    %496 = vmatmul.mubr.bf16.gmra.mrb[0].mxu0 %v305
    %v497 = vpop.f32.mrb[0].mxu0
    %v498 = vadd.f32 0.0, %v497
    %v499 = vpop.f32.mrb[0].mxu0
    %v500 = vpop.f32.mrb[0].mxu0
    %v501 = vadd.f32 0.0, %v500
    %v502 = vpop.f32.mrb[0].mxu0
    %503 = vmatprep.mubr.bf16.mxu0 0
    %504 = vmatmul.mubr.bf16.gmra.mrb[0].mxu0 %v308
    %v505 = vpop.f32.mrb[0].mxu0
    %v506 = vadd.f32 0.0, %v505
    %v507 = vpop.f32.mrb[0].mxu0
    %v508 = vpop.f32.mrb[0].mxu0
    %v509 = vadd.f32 0.0, %v508
    %v510 = vpop.f32.mrb[0].mxu0
    %511 = vmatprep.mubr.bf16.mxu0 0
    %512 = vmatmul.mubr.bf16.gmra.mrb[0].mxu0 %v311
    %v513 = vpop.f32.mrb[0].mxu0
    %v514 = vadd.f32 0.0, %v513
    %v515 = vpop.f32.mrb[0].mxu0
    %v516 = vpop.f32.mrb[0].mxu0
    %v517 = vadd.f32 0.0, %v516
    %v518 = vpop.f32.mrb[0].mxu0
    %519 = vmatprep.mubr.bf16.mxu0 0
    %520 = vmatmul.mubr.bf16.gmra.mrb[0].mxu0 %v458
    %v521 = vpop.f32.mrb[0].mxu0
    %v522 = vadd.f32 0.0, %v521
    %v523 = vpop.f32.mrb[0].mxu0
    %v524 = vpop.f32.mrb[0].mxu0
    %v525 = vadd.f32 0.0, %v524
    %v526 = vpop.f32.mrb[0].mxu0
    %527 = vmatprep.mubr.bf16.mxu0 0
    %528 = vmatmul.mubr.bf16.gmra.mrb[0].mxu0 %v317
    %v529 = vpop.f32.mrb[0].mxu0
    %v530 = vadd.f32 0.0, %v529
    %v531 = vpop.f32.mrb[0].mxu0
    %v532 = vpop.f32.mrb[0].mxu0
    %v533 = vadd.f32 0.0, %v532
    %v534 = vpop.f32.mrb[0].mxu0
    %535 = vmatprep.mubr.bf16.mxu0 0
    %536 = vmatmul.mubr.bf16.gmra.mrb[0].mxu0 %v320
    %v537 = vpop.f32.mrb[0].mxu0
    %v538 = vadd.f32 0.0, %v537
    %v539 = vpop.f32.mrb[0].mxu0
    %v540 = vpop.f32.mrb[0].mxu0
    %v541 = vadd.f32 0.0, %v540
    %v542 = vpop.f32.mrb[0].mxu0
    %543 = vmatprep.mubr.bf16.mxu0 0
    %544 = vmatmul.mubr.bf16.gmra.mrb[0].mxu0 %v323
    %v545 = vpop.f32.mrb[0].mxu0
    %v546 = vadd.f32 0.0, %v545
    %v547 = vpop.f32.mrb[0].mxu0
    %v548 = vpop.f32.mrb[0].mxu0
    %v549 = vadd.f32 0.0, %v548
    %v550 = vpop.f32.mrb[0].mxu0
    %551 = vmatprep.mubr.bf16.mxu0 0
    %552 = vmatmul.mubr.bf16.gmra.mrb[0].mxu0 %v461
    %v553 = vpop.f32.mrb[0].mxu0
    %v554 = vadd.f32 0.0, %v553
    %v555 = vpop.f32.mrb[0].mxu0
    %v556 = vpop.f32.mrb[0].mxu0
    %v557 = vadd.f32 0.0, %v556
    %v558 = vpop.f32.mrb[0].mxu0
    %559 = vdwg.mxu0
    %v560 = vadd.f32 %v360, %v498
    %v561 = vadd.f32 %v363, %v501
    %v562 = vadd.f32 %v368, %v506
    %v563 = vadd.f32 %v371, %v509
    %v564 = vadd.f32 %v376, %v514
    %v565 = vadd.f32 %v379, %v517
    %v566 = vadd.f32 %v384, %v522
    %v567 = vadd.f32 %v387, %v525
    %v568 = vadd.f32 %v392, %v530
    %v569 = vadd.f32 %v395, %v533
    %v570 = vadd.f32 %v400, %v538
    %v571 = vadd.f32 %v403, %v541
    %v572 = vadd.f32 %v408, %v546
    %v573 = vadd.f32 %v411, %v549
    %v574 = vadd.f32 %v416, %v554
    %v575 = vadd.f32 %v419, %v557
    %v576 = vpack.c.bf16 %v70, %v68
    %v577 = vpack.c.bf16 %v94, %v92
    %s578 = scalar_lea.vmem [#allocation2], 480
    %v579 = vld [vmem:[%s578] sm:$0xf]
    %v580 = vld [vmem:[%s578 + $0x4] sm:$0xf]
    %v581 = vld [vmem:[%s578 + $0x8] sm:$0xf]
    %v582 = vld [vmem:[%s578 + $0xc] sm:$0xf]
    %v583 = vld [vmem:[%s578 + $0x10] sm:$0xf]
    %v584 = vld [vmem:[%s578 + $0x14] sm:$0xf]
    %v585 = vld [vmem:[%s578 + $0x18] sm:$0xf]
    %v586 = vld [vmem:[%s578 + $0x1c] sm:$0xf]
    %v595 = vunpack.c.l.b16 %v579
    %v596 = vunpack.c.l.b16 %v580
    %v597 = vunpack.c.l.b16 %v581
    %v598 = vunpack.c.l.b16 %v582
    %v599 = vunpack.c.l.b16 %v583
    %v600 = vunpack.c.l.b16 %v584
    %v601 = vunpack.c.l.b16 %v585
    %v602 = vunpack.c.l.b16 %v586
    %v603 = vpack.c.b16 %v596, %v595
    %v604 = vpack.c.b16 %v598, %v597
    %v605 = vpack.c.b16 %v600, %v599
    %v606 = vpack.c.b16 %v602, %v601
    %v612 = vsel %vm155, %v576, 0
    %v615 = vsel %vm155, %v577, 0
    %617 = vmatprep.subr.bf16.mxu0 0
    %618 = vmatpush1.bf16.msra.mxu0 %v603
    %619 = vmatprep.subr.bf16.mxu0 0
    %620 = vmatpush1.bf16.msra.mxu0 %v604
    %621 = vmatprep.subr.bf16.mxu0 0
    %622 = vmatpush1.bf16.msra.mxu0 %v605
    %623 = vmatprep.subr.bf16.mxu0 0
    %624 = vmatpush1.bf16.msra.mxu0 %v606
    %625 = vmatprep.subr.bf16.mxu0 0
    %626 = vmatpush1.bf16.msra.mxu0 0
    %627 = vmatprep.subr.bf16.mxu0 0
    %628 = vmatpush1.bf16.msra.mxu0 0
    %629 = vmatprep.subr.bf16.mxu0 0
    %630 = vmatpush1.bf16.msra.mxu0 0
    %631 = vmatprep.subr.bf16.mxu0 0
    %632 = vmatpush1.bf16.msra.mxu0 0
    %633 = vmatprep.subr.bf16.mxu0 0
    %634 = vmatpush1.bf16.msra.mxu0 0
    %635 = vmatprep.subr.bf16.mxu0 0
    %636 = vmatpush1.bf16.msra.mxu0 0
    %637 = vmatprep.subr.bf16.mxu0 0
    %638 = vmatpush1.bf16.msra.mxu0 0
    %639 = vmatprep.subr.bf16.mxu0 0
    %640 = vmatpush1.bf16.msra.mxu0 0
    %641 = vmatprep.subr.bf16.mxu0 0
    %642 = vmatpush1.bf16.msra.mxu0 0
    %643 = vmatprep.subr.bf16.mxu0 0
    %644 = vmatpush1.bf16.msra.mxu0 0
    %645 = vmatprep.subr.bf16.mxu0 0
    %646 = vmatpush1.bf16.msra.mxu0 0
    %647 = vmatprep.subr.bf16.mxu0 0
    %648 = vmatpush1.bf16.msra.mxu0 0
    %649 = vmatprep.mubr.bf16.mxu0 0
    %650 = vmatmul.mubr.bf16.gmra.mrb[0].mxu0 %v160
    %v651 = vpop.f32.mrb[0].mxu0
    %v652 = vadd.f32 0.0, %v651
    %v653 = vpop.f32.mrb[0].mxu0
    %v654 = vpop.f32.mrb[0].mxu0
    %v655 = vadd.f32 0.0, %v654
    %v656 = vpop.f32.mrb[0].mxu0
    %657 = vmatprep.mubr.bf16.mxu0 0
    %658 = vmatmul.mubr.bf16.gmra.mrb[0].mxu0 %v163
    %v659 = vpop.f32.mrb[0].mxu0
    %v660 = vadd.f32 0.0, %v659
    %v661 = vpop.f32.mrb[0].mxu0
    %v662 = vpop.f32.mrb[0].mxu0
    %v663 = vadd.f32 0.0, %v662
    %v664 = vpop.f32.mrb[0].mxu0
    %665 = vmatprep.mubr.bf16.mxu0 0
    %666 = vmatmul.mubr.bf16.gmra.mrb[0].mxu0 %v166
    %v667 = vpop.f32.mrb[0].mxu0
    %v668 = vadd.f32 0.0, %v667
    %v669 = vpop.f32.mrb[0].mxu0
    %v670 = vpop.f32.mrb[0].mxu0
    %v671 = vadd.f32 0.0, %v670
    %v672 = vpop.f32.mrb[0].mxu0
    %673 = vmatprep.mubr.bf16.mxu0 0
    %674 = vmatmul.mubr.bf16.gmra.mrb[0].mxu0 %v612
    %v675 = vpop.f32.mrb[0].mxu0
    %v676 = vadd.f32 0.0, %v675
    %v677 = vpop.f32.mrb[0].mxu0
    %v678 = vpop.f32.mrb[0].mxu0
    %v679 = vadd.f32 0.0, %v678
    %v680 = vpop.f32.mrb[0].mxu0
    %681 = vmatprep.mubr.bf16.mxu0 0
    %682 = vmatmul.mubr.bf16.gmra.mrb[0].mxu0 %v172
    %v683 = vpop.f32.mrb[0].mxu0
    %v684 = vadd.f32 0.0, %v683
    %v685 = vpop.f32.mrb[0].mxu0
    %v686 = vpop.f32.mrb[0].mxu0
    %v687 = vadd.f32 0.0, %v686
    %v688 = vpop.f32.mrb[0].mxu0
    %689 = vmatprep.mubr.bf16.mxu0 0
    %690 = vmatmul.mubr.bf16.gmra.mrb[0].mxu0 %v175
    %v691 = vpop.f32.mrb[0].mxu0
    %v692 = vadd.f32 0.0, %v691
    %v693 = vpop.f32.mrb[0].mxu0
    %v694 = vpop.f32.mrb[0].mxu0
    %v695 = vadd.f32 0.0, %v694
    %v696 = vpop.f32.mrb[0].mxu0
    %697 = vmatprep.mubr.bf16.mxu0 0
    %698 = vmatmul.mubr.bf16.gmra.mrb[0].mxu0 %v178
    %v699 = vpop.f32.mrb[0].mxu0
    %v700 = vadd.f32 0.0, %v699
    %v701 = vpop.f32.mrb[0].mxu0
    %v702 = vpop.f32.mrb[0].mxu0
    %v703 = vadd.f32 0.0, %v702
    %v704 = vpop.f32.mrb[0].mxu0
    %705 = vmatprep.mubr.bf16.mxu0 0
    %706 = vmatmul.mubr.bf16.gmra.mrb[0].mxu0 %v615
    %v707 = vpop.f32.mrb[0].mxu0
    %v708 = vadd.f32 0.0, %v707
    %v709 = vpop.f32.mrb[0].mxu0
    %v710 = vpop.f32.mrb[0].mxu0
    %v711 = vadd.f32 0.0, %v710
    %v712 = vpop.f32.mrb[0].mxu0
    %713 = vdwg.mxu0
    %v714 = vadd.f32 %v560, %v652
    %v715 = vadd.f32 %v561, %v655
    %v716 = vadd.f32 %v562, %v660
    %v717 = vadd.f32 %v563, %v663
    %v718 = vadd.f32 %v564, %v668
    %v719 = vadd.f32 %v565, %v671
    %v720 = vadd.f32 %v566, %v676
    %v721 = vadd.f32 %v567, %v679
    %v722 = vadd.f32 %v568, %v684
    %v723 = vadd.f32 %v569, %v687
    %v724 = vadd.f32 %v570, %v692
    %v725 = vadd.f32 %v571, %v695
    %v726 = vadd.f32 %v572, %v700
    %v727 = vadd.f32 %v573, %v703
    %v728 = vadd.f32 %v574, %v708
    %v729 = vadd.f32 %v575, %v711
    %v730 = vpack.c.bf16 %v72, %v70
    %v731 = vpack.c.bf16 %v96, %v94
    %s732 = scalar_lea.vmem [#allocation2], 640
    %v733 = vld [vmem:[%s732] sm:$0xf]
    %v734 = vld [vmem:[%s732 + $0x4] sm:$0xf]
    %v735 = vld [vmem:[%s732 + $0x8] sm:$0xf]
    %v736 = vld [vmem:[%s732 + $0xc] sm:$0xf]
    %v737 = vld [vmem:[%s732 + $0x10] sm:$0xf]
    %v738 = vld [vmem:[%s732 + $0x14] sm:$0xf]
    %v739 = vld [vmem:[%s732 + $0x18] sm:$0xf]
    %v740 = vld [vmem:[%s732 + $0x1c] sm:$0xf]
    %v749 = vunpack.c.l.b16 %v733
    %v750 = vunpack.c.l.b16 %v734
    %v751 = vunpack.c.l.b16 %v735
    %v752 = vunpack.c.l.b16 %v736
    %v753 = vunpack.c.l.b16 %v737
    %v754 = vunpack.c.l.b16 %v738
    %v755 = vunpack.c.l.b16 %v739
    %v756 = vunpack.c.l.b16 %v740
    %v757 = vpack.c.b16 %v750, %v749
    %v758 = vpack.c.b16 %v752, %v751
    %v759 = vpack.c.b16 %v754, %v753
    %v760 = vpack.c.b16 %v756, %v755
    %v766 = vsel %vm155, %v730, 0
    %v769 = vsel %vm155, %v731, 0
    %771 = vmatprep.subr.bf16.mxu0 0
    %772 = vmatpush1.bf16.msra.mxu0 %v757
    %773 = vmatprep.subr.bf16.mxu0 0
    %774 = vmatpush1.bf16.msra.mxu0 %v758
    %775 = vmatprep.subr.bf16.mxu0 0
    %776 = vmatpush1.bf16.msra.mxu0 %v759
    %777 = vmatprep.subr.bf16.mxu0 0
    %778 = vmatpush1.bf16.msra.mxu0 %v760
    %779 = vmatprep.subr.bf16.mxu0 0
    %780 = vmatpush1.bf16.msra.mxu0 0
    %781 = vmatprep.subr.bf16.mxu0 0
    %782 = vmatpush1.bf16.msra.mxu0 0
    %783 = vmatprep.subr.bf16.mxu0 0
    %784 = vmatpush1.bf16.msra.mxu0 0
    %785 = vmatprep.subr.bf16.mxu0 0
    %786 = vmatpush1.bf16.msra.mxu0 0
    %787 = vmatprep.subr.bf16.mxu0 0
    %788 = vmatpush1.bf16.msra.mxu0 0
    %789 = vmatprep.subr.bf16.mxu0 0
    %790 = vmatpush1.bf16.msra.mxu0 0
    %791 = vmatprep.subr.bf16.mxu0 0
    %792 = vmatpush1.bf16.msra.mxu0 0
    %793 = vmatprep.subr.bf16.mxu0 0
    %794 = vmatpush1.bf16.msra.mxu0 0
    %795 = vmatprep.subr.bf16.mxu0 0
    %796 = vmatpush1.bf16.msra.mxu0 0
    %797 = vmatprep.subr.bf16.mxu0 0
    %798 = vmatpush1.bf16.msra.mxu0 0
    %799 = vmatprep.subr.bf16.mxu0 0
    %800 = vmatpush1.bf16.msra.mxu0 0
    %801 = vmatprep.subr.bf16.mxu0 0
    %802 = vmatpush1.bf16.msra.mxu0 0
    %803 = vmatprep.mubr.bf16.mxu0 0
    %804 = vmatmul.mubr.bf16.gmra.mrb[0].mxu0 %v308
    %v805 = vpop.f32.mrb[0].mxu0
    %v806 = vadd.f32 0.0, %v805
    %v807 = vpop.f32.mrb[0].mxu0
    %v808 = vpop.f32.mrb[0].mxu0
    %v809 = vadd.f32 0.0, %v808
    %v810 = vpop.f32.mrb[0].mxu0
    %811 = vmatprep.mubr.bf16.mxu0 0
    %812 = vmatmul.mubr.bf16.gmra.mrb[0].mxu0 %v311
    %v813 = vpop.f32.mrb[0].mxu0
    %v814 = vadd.f32 0.0, %v813
    %v815 = vpop.f32.mrb[0].mxu0
    %v816 = vpop.f32.mrb[0].mxu0
    %v817 = vadd.f32 0.0, %v816
    %v818 = vpop.f32.mrb[0].mxu0
    %819 = vmatprep.mubr.bf16.mxu0 0
    %820 = vmatmul.mubr.bf16.gmra.mrb[0].mxu0 %v458
    %v821 = vpop.f32.mrb[0].mxu0
    %v822 = vadd.f32 0.0, %v821
    %v823 = vpop.f32.mrb[0].mxu0
    %v824 = vpop.f32.mrb[0].mxu0
    %v825 = vadd.f32 0.0, %v824
    %v826 = vpop.f32.mrb[0].mxu0
    %827 = vmatprep.mubr.bf16.mxu0 0
    %828 = vmatmul.mubr.bf16.gmra.mrb[0].mxu0 %v766
    %v829 = vpop.f32.mrb[0].mxu0
    %v830 = vadd.f32 0.0, %v829
    %v831 = vpop.f32.mrb[0].mxu0
    %v832 = vpop.f32.mrb[0].mxu0
    %v833 = vadd.f32 0.0, %v832
    %v834 = vpop.f32.mrb[0].mxu0
    %835 = vmatprep.mubr.bf16.mxu0 0
    %836 = vmatmul.mubr.bf16.gmra.mrb[0].mxu0 %v320
    %v837 = vpop.f32.mrb[0].mxu0
    %v838 = vadd.f32 0.0, %v837
    %v839 = vpop.f32.mrb[0].mxu0
    %v840 = vpop.f32.mrb[0].mxu0
    %v841 = vadd.f32 0.0, %v840
    %v842 = vpop.f32.mrb[0].mxu0
    %843 = vmatprep.mubr.bf16.mxu0 0
    %844 = vmatmul.mubr.bf16.gmra.mrb[0].mxu0 %v323
    %v845 = vpop.f32.mrb[0].mxu0
    %v846 = vadd.f32 0.0, %v845
    %v847 = vpop.f32.mrb[0].mxu0
    %v848 = vpop.f32.mrb[0].mxu0
    %v849 = vadd.f32 0.0, %v848
    %v850 = vpop.f32.mrb[0].mxu0
    %851 = vmatprep.mubr.bf16.mxu0 0
    %852 = vmatmul.mubr.bf16.gmra.mrb[0].mxu0 %v461
    %v853 = vpop.f32.mrb[0].mxu0
    %v854 = vadd.f32 0.0, %v853
    %v855 = vpop.f32.mrb[0].mxu0
    %v856 = vpop.f32.mrb[0].mxu0
    %v857 = vadd.f32 0.0, %v856
    %v858 = vpop.f32.mrb[0].mxu0
    %859 = vmatprep.mubr.bf16.mxu0 0
    %860 = vmatmul.mubr.bf16.gmra.mrb[0].mxu0 %v769
    %v861 = vpop.f32.mrb[0].mxu0
    %v862 = vadd.f32 0.0, %v861
    %v863 = vpop.f32.mrb[0].mxu0
    %v864 = vpop.f32.mrb[0].mxu0
    %v865 = vadd.f32 0.0, %v864
    %v866 = vpop.f32.mrb[0].mxu0
    %867 = vdwg.mxu0
    %v868 = vadd.f32 %v714, %v806
    %v869 = vadd.f32 %v715, %v809
    %v870 = vadd.f32 %v716, %v814
    %v871 = vadd.f32 %v717, %v817
    %v872 = vadd.f32 %v718, %v822
    %v873 = vadd.f32 %v719, %v825
    %v874 = vadd.f32 %v720, %v830
    %v875 = vadd.f32 %v721, %v833
    %v876 = vadd.f32 %v722, %v838
    %v877 = vadd.f32 %v723, %v841
    %v878 = vadd.f32 %v724, %v846
    %v879 = vadd.f32 %v725, %v849
    %v880 = vadd.f32 %v726, %v854
    %v881 = vadd.f32 %v727, %v857
    %v882 = vadd.f32 %v728, %v862
    %v883 = vadd.f32 %v729, %v865
    %vm916 = vcmask 1046528
    %v917 = vrot.slane %v50, 1
    %v918 = vrot.slane %v51, 1
    %v919 = vsel %vm916, %v917, %v918
    %v920 = vrot.slane %v52, 1
    %v921 = vrot.slane %v53, 1
    %v922 = vsel %vm916, %v920, %v921
    %v923 = vrot.slane %v54, 1
    %v924 = vrot.slane %v55, 1
    %v925 = vsel %vm916, %v923, %v924
    %v926 = vrot.slane %v56, 1
    %v927 = vrot.slane %v57, 1
    %v928 = vsel %vm916, %v926, %v927
    %v929 = vrot.slane %v58, 1
    %v930 = vrot.slane %v59, 1
    %v931 = vsel %vm916, %v929, %v930
    %v932 = vrot.slane %v60, 1
    %v933 = vrot.slane %v61, 1
    %v934 = vsel %vm916, %v932, %v933
    %v935 = vrot.slane %v62, 1
    %v936 = vrot.slane %v63, 1
    %v937 = vsel %vm916, %v935, %v936
    %v938 = vrot.slane %v64, 1
    %v939 = vrot.slane %v65, 1
    %v940 = vsel %vm916, %v938, %v939
    %v941 = vrot.slane %v74, 1
    %v942 = vrot.slane %v75, 1
    %v943 = vsel %vm916, %v941, %v942
    %v944 = vrot.slane %v76, 1
    %v945 = vrot.slane %v77, 1
    %v946 = vsel %vm916, %v944, %v945
    %v947 = vrot.slane %v78, 1
    %v948 = vrot.slane %v79, 1
    %v949 = vsel %vm916, %v947, %v948
    %v950 = vrot.slane %v80, 1
    %v951 = vrot.slane %v81, 1
    %v952 = vsel %vm916, %v950, %v951
    %v953 = vrot.slane %v82, 1
    %v954 = vrot.slane %v83, 1
    %v955 = vsel %vm916, %v953, %v954
    %v956 = vrot.slane %v84, 1
    %v957 = vrot.slane %v85, 1
    %v958 = vsel %vm916, %v956, %v957
    %v959 = vrot.slane %v86, 1
    %v960 = vrot.slane %v87, 1
    %v961 = vsel %vm916, %v959, %v960
    %v962 = vrot.slane %v88, 1
    %v963 = vrot.slane %v89, 1
    %v964 = vsel %vm916, %v962, %v963
    %v981 = vpack.c.bf16 %v922, %v919
    %v982 = vpack.c.bf16 %v928, %v925
    %v983 = vpack.c.bf16 %v934, %v931
    %v984 = vpack.c.bf16 %v940, %v937
    %v985 = vpack.c.bf16 %v946, %v943
    %v986 = vpack.c.bf16 %v952, %v949
    %v987 = vpack.c.bf16 %v958, %v955
    %v988 = vpack.c.bf16 %v964, %v961
    %s989 = scalar_lea.vmem [#allocation2], 32
    %v990 = vld [vmem:[%s989] sm:$0xf]
    %v991 = vld [vmem:[%s989 + $0x4] sm:$0xf]
    %v992 = vld [vmem:[%s989 + $0x8] sm:$0xf]
    %v993 = vld [vmem:[%s989 + $0xc] sm:$0xf]
    %v994 = vld [vmem:[%s989 + $0x10] sm:$0xf]
    %v995 = vld [vmem:[%s989 + $0x14] sm:$0xf]
    %v996 = vld [vmem:[%s989 + $0x18] sm:$0xf]
    %v997 = vld [vmem:[%s989 + $0x1c] sm:$0xf]
    %v1006 = vunpack.c.l.b16 %v990
    %v1007 = vunpack.c.l.b16 %v991
    %v1008 = vunpack.c.l.b16 %v992
    %v1009 = vunpack.c.l.b16 %v993
    %v1010 = vunpack.c.l.b16 %v994
    %v1011 = vunpack.c.l.b16 %v995
    %v1012 = vunpack.c.l.b16 %v996
    %v1013 = vunpack.c.l.b16 %v997
    %v1014 = vpack.c.b16 %v1007, %v1006
    %v1015 = vpack.c.b16 %v1009, %v1008
    %v1016 = vpack.c.b16 %v1011, %v1010
    %v1017 = vpack.c.b16 %v1013, %v1012
    %v1023 = vsel %vm155, %v981, 0
    %v1026 = vsel %vm155, %v982, 0
    %v1029 = vsel %vm155, %v983, 0
    %v1032 = vsel %vm155, %v984, 0
    %v1035 = vsel %vm155, %v985, 0
    %v1038 = vsel %vm155, %v986, 0
    %v1041 = vsel %vm155, %v987, 0
    %v1044 = vsel %vm155, %v988, 0
    %1046 = vmatprep.subr.bf16.mxu0 0
    %1047 = vmatpush1.bf16.msra.mxu0 %v1014
    %1048 = vmatprep.subr.bf16.mxu0 0
    %1049 = vmatpush1.bf16.msra.mxu0 %v1015
    %1050 = vmatprep.subr.bf16.mxu0 0
    %1051 = vmatpush1.bf16.msra.mxu0 %v1016
    %1052 = vmatprep.subr.bf16.mxu0 0
    %1053 = vmatpush1.bf16.msra.mxu0 %v1017
    %1054 = vmatprep.subr.bf16.mxu0 0
    %1055 = vmatpush1.bf16.msra.mxu0 0
    %1056 = vmatprep.subr.bf16.mxu0 0
    %1057 = vmatpush1.bf16.msra.mxu0 0
    %1058 = vmatprep.subr.bf16.mxu0 0
    %1059 = vmatpush1.bf16.msra.mxu0 0
    %1060 = vmatprep.subr.bf16.mxu0 0
    %1061 = vmatpush1.bf16.msra.mxu0 0
    %1062 = vmatprep.subr.bf16.mxu0 0
    %1063 = vmatpush1.bf16.msra.mxu0 0
    %1064 = vmatprep.subr.bf16.mxu0 0
    %1065 = vmatpush1.bf16.msra.mxu0 0
    %1066 = vmatprep.subr.bf16.mxu0 0
    %1067 = vmatpush1.bf16.msra.mxu0 0
    %1068 = vmatprep.subr.bf16.mxu0 0
    %1069 = vmatpush1.bf16.msra.mxu0 0
    %1070 = vmatprep.subr.bf16.mxu0 0
    %1071 = vmatpush1.bf16.msra.mxu0 0
    %1072 = vmatprep.subr.bf16.mxu0 0
    %1073 = vmatpush1.bf16.msra.mxu0 0
    %1074 = vmatprep.subr.bf16.mxu0 0
    %1075 = vmatpush1.bf16.msra.mxu0 0
    %1076 = vmatprep.subr.bf16.mxu0 0
    %1077 = vmatpush1.bf16.msra.mxu0 0
    %1078 = vmatprep.mubr.bf16.mxu0 0
    %1079 = vmatmul.mubr.bf16.gmra.mrb[0].mxu0 %v1023
    %v1080 = vpop.f32.mrb[0].mxu0
    %v1081 = vadd.f32 0.0, %v1080
    %v1082 = vpop.f32.mrb[0].mxu0
    %v1083 = vpop.f32.mrb[0].mxu0
    %v1084 = vadd.f32 0.0, %v1083
    %v1085 = vpop.f32.mrb[0].mxu0
    %1086 = vmatprep.mubr.bf16.mxu0 0
    %1087 = vmatmul.mubr.bf16.gmra.mrb[0].mxu0 %v1026
    %v1088 = vpop.f32.mrb[0].mxu0
    %v1089 = vadd.f32 0.0, %v1088
    %v1090 = vpop.f32.mrb[0].mxu0
    %v1091 = vpop.f32.mrb[0].mxu0
    %v1092 = vadd.f32 0.0, %v1091
    %v1093 = vpop.f32.mrb[0].mxu0
    %1094 = vmatprep.mubr.bf16.mxu0 0
    %1095 = vmatmul.mubr.bf16.gmra.mrb[0].mxu0 %v1029
    %v1096 = vpop.f32.mrb[0].mxu0
    %v1097 = vadd.f32 0.0, %v1096
    %v1098 = vpop.f32.mrb[0].mxu0
    %v1099 = vpop.f32.mrb[0].mxu0
    %v1100 = vadd.f32 0.0, %v1099
    %v1101 = vpop.f32.mrb[0].mxu0
    %1102 = vmatprep.mubr.bf16.mxu0 0
    %1103 = vmatmul.mubr.bf16.gmra.mrb[0].mxu0 %v1032
    %v1104 = vpop.f32.mrb[0].mxu0
    %v1105 = vadd.f32 0.0, %v1104
    %v1106 = vpop.f32.mrb[0].mxu0
    %v1107 = vpop.f32.mrb[0].mxu0
    %v1108 = vadd.f32 0.0, %v1107
    %v1109 = vpop.f32.mrb[0].mxu0
    %1110 = vmatprep.mubr.bf16.mxu0 0
    %1111 = vmatmul.mubr.bf16.gmra.mrb[0].mxu0 %v1035
    %v1112 = vpop.f32.mrb[0].mxu0
    %v1113 = vadd.f32 0.0, %v1112
    %v1114 = vpop.f32.mrb[0].mxu0
    %v1115 = vpop.f32.mrb[0].mxu0
    %v1116 = vadd.f32 0.0, %v1115
    %v1117 = vpop.f32.mrb[0].mxu0
    %1118 = vmatprep.mubr.bf16.mxu0 0
    %1119 = vmatmul.mubr.bf16.gmra.mrb[0].mxu0 %v1038
    %v1120 = vpop.f32.mrb[0].mxu0
    %v1121 = vadd.f32 0.0, %v1120
    %v1122 = vpop.f32.mrb[0].mxu0
    %v1123 = vpop.f32.mrb[0].mxu0
    %v1124 = vadd.f32 0.0, %v1123
    %v1125 = vpop.f32.mrb[0].mxu0
    %1126 = vmatprep.mubr.bf16.mxu0 0
    %1127 = vmatmul.mubr.bf16.gmra.mrb[0].mxu0 %v1041
    %v1128 = vpop.f32.mrb[0].mxu0
    %v1129 = vadd.f32 0.0, %v1128
    %v1130 = vpop.f32.mrb[0].mxu0
    %v1131 = vpop.f32.mrb[0].mxu0
    %v1132 = vadd.f32 0.0, %v1131
    %v1133 = vpop.f32.mrb[0].mxu0
    %1134 = vmatprep.mubr.bf16.mxu0 0
    %1135 = vmatmul.mubr.bf16.gmra.mrb[0].mxu0 %v1044
    %v1136 = vpop.f32.mrb[0].mxu0
    %v1137 = vadd.f32 0.0, %v1136
    %v1138 = vpop.f32.mrb[0].mxu0
    %v1139 = vpop.f32.mrb[0].mxu0
    %v1140 = vadd.f32 0.0, %v1139
    %v1141 = vpop.f32.mrb[0].mxu0
    %1142 = vdwg.mxu0
    %v1143 = vadd.f32 %v868, %v1081
    %v1144 = vadd.f32 %v869, %v1084
    %v1145 = vadd.f32 %v870, %v1089
    %v1146 = vadd.f32 %v871, %v1092
    %v1147 = vadd.f32 %v872, %v1097
    %v1148 = vadd.f32 %v873, %v1100
    %v1149 = vadd.f32 %v874, %v1105
    %v1150 = vadd.f32 %v875, %v1108
    %v1151 = vadd.f32 %v876, %v1113
    %v1152 = vadd.f32 %v877, %v1116
    %v1153 = vadd.f32 %v878, %v1121
    %v1154 = vadd.f32 %v879, %v1124
    %v1155 = vadd.f32 %v880, %v1129
    %v1156 = vadd.f32 %v881, %v1132
    %v1157 = vadd.f32 %v882, %v1137
    %v1158 = vadd.f32 %v883, %v1140
    %v1163 = vrot.slane %v66, 1
    %v1164 = vrot.slane %v67, 1
    %v1165 = vsel %vm916, %v1163, %v1164
    %v1166 = vrot.slane %v90, 1
    %v1167 = vrot.slane %v91, 1
    %v1168 = vsel %vm916, %v1166, %v1167
    %v1171 = vpack.c.bf16 %v925, %v922
    %v1172 = vpack.c.bf16 %v931, %v928
    %v1173 = vpack.c.bf16 %v937, %v934
    %v1174 = vpack.c.bf16 %v1165, %v940
    %v1175 = vpack.c.bf16 %v949, %v946
    %v1176 = vpack.c.bf16 %v955, %v952
    %v1177 = vpack.c.bf16 %v961, %v958
    %v1178 = vpack.c.bf16 %v1168, %v964
    %s1179 = scalar_lea.vmem [#allocation2], 192
    %v1180 = vld [vmem:[%s1179] sm:$0xf]
    %v1181 = vld [vmem:[%s1179 + $0x4] sm:$0xf]
    %v1182 = vld [vmem:[%s1179 + $0x8] sm:$0xf]
    %v1183 = vld [vmem:[%s1179 + $0xc] sm:$0xf]
    %v1184 = vld [vmem:[%s1179 + $0x10] sm:$0xf]
    %v1185 = vld [vmem:[%s1179 + $0x14] sm:$0xf]
    %v1186 = vld [vmem:[%s1179 + $0x18] sm:$0xf]
    %v1187 = vld [vmem:[%s1179 + $0x1c] sm:$0xf]
    %v1196 = vunpack.c.l.b16 %v1180
    %v1197 = vunpack.c.l.b16 %v1181
    %v1198 = vunpack.c.l.b16 %v1182
    %v1199 = vunpack.c.l.b16 %v1183
    %v1200 = vunpack.c.l.b16 %v1184
    %v1201 = vunpack.c.l.b16 %v1185
    %v1202 = vunpack.c.l.b16 %v1186
    %v1203 = vunpack.c.l.b16 %v1187
    %v1204 = vpack.c.b16 %v1197, %v1196
    %v1205 = vpack.c.b16 %v1199, %v1198
    %v1206 = vpack.c.b16 %v1201, %v1200
    %v1207 = vpack.c.b16 %v1203, %v1202
    %v1213 = vsel %vm155, %v1171, 0
    %v1216 = vsel %vm155, %v1172, 0
    %v1219 = vsel %vm155, %v1173, 0
    %v1222 = vsel %vm155, %v1174, 0
    %v1225 = vsel %vm155, %v1175, 0
    %v1228 = vsel %vm155, %v1176, 0
    %v1231 = vsel %vm155, %v1177, 0
    %v1234 = vsel %vm155, %v1178, 0
    %1236 = vmatprep.subr.bf16.mxu0 0
    %1237 = vmatpush1.bf16.msra.mxu0 %v1204
    %1238 = vmatprep.subr.bf16.mxu0 0
    %1239 = vmatpush1.bf16.msra.mxu0 %v1205
    %1240 = vmatprep.subr.bf16.mxu0 0
    %1241 = vmatpush1.bf16.msra.mxu0 %v1206
    %1242 = vmatprep.subr.bf16.mxu0 0
    %1243 = vmatpush1.bf16.msra.mxu0 %v1207
    %1244 = vmatprep.subr.bf16.mxu0 0
    %1245 = vmatpush1.bf16.msra.mxu0 0
    %1246 = vmatprep.subr.bf16.mxu0 0
    %1247 = vmatpush1.bf16.msra.mxu0 0
    %1248 = vmatprep.subr.bf16.mxu0 0
    %1249 = vmatpush1.bf16.msra.mxu0 0
    %1250 = vmatprep.subr.bf16.mxu0 0
    %1251 = vmatpush1.bf16.msra.mxu0 0
    %1252 = vmatprep.subr.bf16.mxu0 0
    %1253 = vmatpush1.bf16.msra.mxu0 0
    %1254 = vmatprep.subr.bf16.mxu0 0
    %1255 = vmatpush1.bf16.msra.mxu0 0
    %1256 = vmatprep.subr.bf16.mxu0 0
    %1257 = vmatpush1.bf16.msra.mxu0 0
    %1258 = vmatprep.subr.bf16.mxu0 0
    %1259 = vmatpush1.bf16.msra.mxu0 0
    %1260 = vmatprep.subr.bf16.mxu0 0
    %1261 = vmatpush1.bf16.msra.mxu0 0
    %1262 = vmatprep.subr.bf16.mxu0 0
    %1263 = vmatpush1.bf16.msra.mxu0 0
    %1264 = vmatprep.subr.bf16.mxu0 0
    %1265 = vmatpush1.bf16.msra.mxu0 0
    %1266 = vmatprep.subr.bf16.mxu0 0
    %1267 = vmatpush1.bf16.msra.mxu0 0
    %1268 = vmatprep.mubr.bf16.mxu0 0
    %1269 = vmatmul.mubr.bf16.gmra.mrb[0].mxu0 %v1213
    %v1270 = vpop.f32.mrb[0].mxu0
    %v1271 = vadd.f32 0.0, %v1270
    %v1272 = vpop.f32.mrb[0].mxu0
    %v1273 = vpop.f32.mrb[0].mxu0
    %v1274 = vadd.f32 0.0, %v1273
    %v1275 = vpop.f32.mrb[0].mxu0
    %1276 = vmatprep.mubr.bf16.mxu0 0
    %1277 = vmatmul.mubr.bf16.gmra.mrb[0].mxu0 %v1216
    %v1278 = vpop.f32.mrb[0].mxu0
    %v1279 = vadd.f32 0.0, %v1278
    %v1280 = vpop.f32.mrb[0].mxu0
    %v1281 = vpop.f32.mrb[0].mxu0
    %v1282 = vadd.f32 0.0, %v1281
    %v1283 = vpop.f32.mrb[0].mxu0
    %1284 = vmatprep.mubr.bf16.mxu0 0
    %1285 = vmatmul.mubr.bf16.gmra.mrb[0].mxu0 %v1219
    %v1286 = vpop.f32.mrb[0].mxu0
    %v1287 = vadd.f32 0.0, %v1286
    %v1288 = vpop.f32.mrb[0].mxu0
    %v1289 = vpop.f32.mrb[0].mxu0
    %v1290 = vadd.f32 0.0, %v1289
    %v1291 = vpop.f32.mrb[0].mxu0
    %1292 = vmatprep.mubr.bf16.mxu0 0
    %1293 = vmatmul.mubr.bf16.gmra.mrb[0].mxu0 %v1222
    %v1294 = vpop.f32.mrb[0].mxu0
    %v1295 = vadd.f32 0.0, %v1294
    %v1296 = vpop.f32.mrb[0].mxu0
    %v1297 = vpop.f32.mrb[0].mxu0
    %v1298 = vadd.f32 0.0, %v1297
    %v1299 = vpop.f32.mrb[0].mxu0
    %1300 = vmatprep.mubr.bf16.mxu0 0
    %1301 = vmatmul.mubr.bf16.gmra.mrb[0].mxu0 %v1225
    %v1302 = vpop.f32.mrb[0].mxu0
    %v1303 = vadd.f32 0.0, %v1302
    %v1304 = vpop.f32.mrb[0].mxu0
    %v1305 = vpop.f32.mrb[0].mxu0
    %v1306 = vadd.f32 0.0, %v1305
    %v1307 = vpop.f32.mrb[0].mxu0
    %1308 = vmatprep.mubr.bf16.mxu0 0
    %1309 = vmatmul.mubr.bf16.gmra.mrb[0].mxu0 %v1228
    %v1310 = vpop.f32.mrb[0].mxu0
    %v1311 = vadd.f32 0.0, %v1310
    %v1312 = vpop.f32.mrb[0].mxu0
    %v1313 = vpop.f32.mrb[0].mxu0
    %v1314 = vadd.f32 0.0, %v1313
    %v1315 = vpop.f32.mrb[0].mxu0
    %1316 = vmatprep.mubr.bf16.mxu0 0
    %1317 = vmatmul.mubr.bf16.gmra.mrb[0].mxu0 %v1231
    %v1318 = vpop.f32.mrb[0].mxu0
    %v1319 = vadd.f32 0.0, %v1318
    %v1320 = vpop.f32.mrb[0].mxu0
    %v1321 = vpop.f32.mrb[0].mxu0
    %v1322 = vadd.f32 0.0, %v1321
    %v1323 = vpop.f32.mrb[0].mxu0
    %1324 = vmatprep.mubr.bf16.mxu0 0
    %1325 = vmatmul.mubr.bf16.gmra.mrb[0].mxu0 %v1234
    %v1326 = vpop.f32.mrb[0].mxu0
    %v1327 = vadd.f32 0.0, %v1326
    %v1328 = vpop.f32.mrb[0].mxu0
    %v1329 = vpop.f32.mrb[0].mxu0
    %v1330 = vadd.f32 0.0, %v1329
    %v1331 = vpop.f32.mrb[0].mxu0
    %1332 = vdwg.mxu0
    %v1333 = vadd.f32 %v1143, %v1271
    %v1334 = vadd.f32 %v1144, %v1274
    %v1335 = vadd.f32 %v1145, %v1279
    %v1336 = vadd.f32 %v1146, %v1282
    %v1337 = vadd.f32 %v1147, %v1287
    %v1338 = vadd.f32 %v1148, %v1290
    %v1339 = vadd.f32 %v1149, %v1295
    %v1340 = vadd.f32 %v1150, %v1298
    %v1341 = vadd.f32 %v1151, %v1303
    %v1342 = vadd.f32 %v1152, %v1306
    %v1343 = vadd.f32 %v1153, %v1311
    %v1344 = vadd.f32 %v1154, %v1314
    %v1345 = vadd.f32 %v1155, %v1319
    %v1346 = vadd.f32 %v1156, %v1322
    %v1347 = vadd.f32 %v1157, %v1327
    %v1348 = vadd.f32 %v1158, %v1330
    %v1349 = vld [vmem:[%s2] sm:$0xf]
    %v1350 = vld [vmem:[%s2 + $0x4] sm:$0xf]
    %v1351 = vld [vmem:[%s2 + $0x8] sm:$0xf]
    %v1352 = vld [vmem:[%s2 + $0xc] sm:$0xf]
    %v1353 = vld [vmem:[%s2 + $0x10] sm:$0xf]
    %v1354 = vld [vmem:[%s2 + $0x14] sm:$0xf]
    %v1355 = vld [vmem:[%s2 + $0x18] sm:$0xf]
    %v1356 = vld [vmem:[%s2 + $0x1c] sm:$0xf]
    %v1361 = vrot.slane %v68, 1
    %v1362 = vrot.slane %v69, 1
    %v1363 = vsel %vm916, %v1361, %v1362
    %v1364 = vrot.slane %v92, 1
    %v1365 = vrot.slane %v93, 1
    %v1366 = vsel %vm916, %v1364, %v1365
    %v1369 = vpack.c.bf16 %v1363, %v1165
    %v1370 = vpack.c.bf16 %v1366, %v1168
    %s1371 = scalar_lea.vmem [#allocation2], 352
    %v1372 = vld [vmem:[%s1371] sm:$0xf]
    %v1373 = vld [vmem:[%s1371 + $0x4] sm:$0xf]
    %v1374 = vld [vmem:[%s1371 + $0x8] sm:$0xf]
    %v1375 = vld [vmem:[%s1371 + $0xc] sm:$0xf]
    %v1376 = vld [vmem:[%s1371 + $0x10] sm:$0xf]
    %v1377 = vld [vmem:[%s1371 + $0x14] sm:$0xf]
    %v1378 = vld [vmem:[%s1371 + $0x18] sm:$0xf]
    %v1379 = vld [vmem:[%s1371 + $0x1c] sm:$0xf]
    %v1388 = vunpack.c.l.b16 %v1372
    %v1389 = vunpack.c.l.b16 %v1373
    %v1390 = vunpack.c.l.b16 %v1374
    %v1391 = vunpack.c.l.b16 %v1375
    %v1392 = vunpack.c.l.b16 %v1376
    %v1393 = vunpack.c.l.b16 %v1377
    %v1394 = vunpack.c.l.b16 %v1378
    %v1395 = vunpack.c.l.b16 %v1379
    %v1396 = vpack.c.b16 %v1389, %v1388
    %v1397 = vpack.c.b16 %v1391, %v1390
    %v1398 = vpack.c.b16 %v1393, %v1392
    %v1399 = vpack.c.b16 %v1395, %v1394
    %v1405 = vsel %vm155, %v1369, 0
    %v1408 = vsel %vm155, %v1370, 0
    %1410 = vmatprep.subr.bf16.mxu0 0
    %1411 = vmatpush1.bf16.msra.mxu0 %v1396
    %1412 = vmatprep.subr.bf16.mxu0 0
    %1413 = vmatpush1.bf16.msra.mxu0 %v1397
    %1414 = vmatprep.subr.bf16.mxu0 0
    %1415 = vmatpush1.bf16.msra.mxu0 %v1398
    %1416 = vmatprep.subr.bf16.mxu0 0
    %1417 = vmatpush1.bf16.msra.mxu0 %v1399
    %1418 = vmatprep.subr.bf16.mxu0 0
    %1419 = vmatpush1.bf16.msra.mxu0 0
    %1420 = vmatprep.subr.bf16.mxu0 0
    %1421 = vmatpush1.bf16.msra.mxu0 0
    %1422 = vmatprep.subr.bf16.mxu0 0
    %1423 = vmatpush1.bf16.msra.mxu0 0
    %1424 = vmatprep.subr.bf16.mxu0 0
    %1425 = vmatpush1.bf16.msra.mxu0 0
    %1426 = vmatprep.subr.bf16.mxu0 0
    %1427 = vmatpush1.bf16.msra.mxu0 0
    %1428 = vmatprep.subr.bf16.mxu0 0
    %1429 = vmatpush1.bf16.msra.mxu0 0
    %1430 = vmatprep.subr.bf16.mxu0 0
    %1431 = vmatpush1.bf16.msra.mxu0 0
    %1432 = vmatprep.subr.bf16.mxu0 0
    %1433 = vmatpush1.bf16.msra.mxu0 0
    %1434 = vmatprep.subr.bf16.mxu0 0
    %1435 = vmatpush1.bf16.msra.mxu0 0
    %1436 = vmatprep.subr.bf16.mxu0 0
    %1437 = vmatpush1.bf16.msra.mxu0 0
    %1438 = vmatprep.subr.bf16.mxu0 0
    %1439 = vmatpush1.bf16.msra.mxu0 0
    %1440 = vmatprep.subr.bf16.mxu0 0
    %1441 = vmatpush1.bf16.msra.mxu0 0
    %1442 = vmatprep.mubr.bf16.mxu0 0
    %1443 = vmatmul.mubr.bf16.gmra.mrb[0].mxu0 %v1026
    %v1444 = vpop.f32.mrb[0].mxu0
    %v1445 = vadd.f32 0.0, %v1444
    %v1446 = vpop.f32.mrb[0].mxu0
    %v1447 = vpop.f32.mrb[0].mxu0
    %v1448 = vadd.f32 0.0, %v1447
    %v1449 = vpop.f32.mrb[0].mxu0
    %1450 = vmatprep.mubr.bf16.mxu0 0
    %1451 = vmatmul.mubr.bf16.gmra.mrb[0].mxu0 %v1029
    %v1452 = vpop.f32.mrb[0].mxu0
    %v1453 = vadd.f32 0.0, %v1452
    %v1454 = vpop.f32.mrb[0].mxu0
    %v1455 = vpop.f32.mrb[0].mxu0
    %v1456 = vadd.f32 0.0, %v1455
    %v1457 = vpop.f32.mrb[0].mxu0
    %1458 = vmatprep.mubr.bf16.mxu0 0
    %1459 = vmatmul.mubr.bf16.gmra.mrb[0].mxu0 %v1032
    %v1460 = vpop.f32.mrb[0].mxu0
    %v1461 = vadd.f32 0.0, %v1460
    %v1462 = vpop.f32.mrb[0].mxu0
    %v1463 = vpop.f32.mrb[0].mxu0
    %v1464 = vadd.f32 0.0, %v1463
    %v1465 = vpop.f32.mrb[0].mxu0
    %1466 = vmatprep.mubr.bf16.mxu0 0
    %1467 = vmatmul.mubr.bf16.gmra.mrb[0].mxu0 %v1405
    %v1468 = vpop.f32.mrb[0].mxu0
    %v1469 = vadd.f32 0.0, %v1468
    %v1470 = vpop.f32.mrb[0].mxu0
    %v1471 = vpop.f32.mrb[0].mxu0
    %v1472 = vadd.f32 0.0, %v1471
    %v1473 = vpop.f32.mrb[0].mxu0
    %1474 = vmatprep.mubr.bf16.mxu0 0
    %1475 = vmatmul.mubr.bf16.gmra.mrb[0].mxu0 %v1038
    %v1476 = vpop.f32.mrb[0].mxu0
    %v1477 = vadd.f32 0.0, %v1476
    %v1478 = vpop.f32.mrb[0].mxu0
    %v1479 = vpop.f32.mrb[0].mxu0
    %v1480 = vadd.f32 0.0, %v1479
    %v1481 = vpop.f32.mrb[0].mxu0
    %1482 = vmatprep.mubr.bf16.mxu0 0
    %1483 = vmatmul.mubr.bf16.gmra.mrb[0].mxu0 %v1041
    %v1484 = vpop.f32.mrb[0].mxu0
    %v1485 = vadd.f32 0.0, %v1484
    %v1486 = vpop.f32.mrb[0].mxu0
    %v1487 = vpop.f32.mrb[0].mxu0
    %v1488 = vadd.f32 0.0, %v1487
    %v1489 = vpop.f32.mrb[0].mxu0
    %1490 = vmatprep.mubr.bf16.mxu0 0
    %1491 = vmatmul.mubr.bf16.gmra.mrb[0].mxu0 %v1044
    %v1492 = vpop.f32.mrb[0].mxu0
    %v1493 = vadd.f32 0.0, %v1492
    %v1494 = vpop.f32.mrb[0].mxu0
    %v1495 = vpop.f32.mrb[0].mxu0
    %v1496 = vadd.f32 0.0, %v1495
    %v1497 = vpop.f32.mrb[0].mxu0
    %1498 = vmatprep.mubr.bf16.mxu0 0
    %1499 = vmatmul.mubr.bf16.gmra.mrb[0].mxu0 %v1408
    %v1500 = vpop.f32.mrb[0].mxu0
    %v1501 = vadd.f32 0.0, %v1500
    %v1502 = vpop.f32.mrb[0].mxu0
    %v1503 = vpop.f32.mrb[0].mxu0
    %v1504 = vadd.f32 0.0, %v1503
    %v1505 = vpop.f32.mrb[0].mxu0
    %1506 = vdwg.mxu0
    %v1507 = vadd.f32 %v1333, %v1445
    %v1508 = vadd.f32 %v1334, %v1448
    %v1509 = vadd.f32 %v1335, %v1453
    %v1510 = vadd.f32 %v1336, %v1456
    %v1511 = vadd.f32 %v1337, %v1461
    %v1512 = vadd.f32 %v1338, %v1464
    %v1513 = vadd.f32 %v1339, %v1469
    %v1514 = vadd.f32 %v1340, %v1472
    %v1515 = vadd.f32 %v1341, %v1477
    %v1516 = vadd.f32 %v1342, %v1480
    %v1517 = vadd.f32 %v1343, %v1485
    %v1518 = vadd.f32 %v1344, %v1488
    %v1519 = vadd.f32 %v1345, %v1493
    %v1520 = vadd.f32 %v1346, %v1496
    %v1521 = vadd.f32 %v1347, %v1501
    %v1522 = vadd.f32 %v1348, %v1504
    %s1523 = scalar_lea.vmem %s2, 96
    %v1524 = vld [vmem:[%s1523] sm:$0xf]
    %v1525 = vld [vmem:[%s1523 + $0x4] sm:$0xf]
    %v1526 = vld [vmem:[%s1523 + $0x8] sm:$0xf]
    %v1527 = vld [vmem:[%s1523 + $0xc] sm:$0xf]
    %v1528 = vld [vmem:[%s1523 + $0x10] sm:$0xf]
    %v1529 = vld [vmem:[%s1523 + $0x14] sm:$0xf]
    %v1530 = vld [vmem:[%s1523 + $0x18] sm:$0xf]
    %v1531 = vld [vmem:[%s1523 + $0x1c] sm:$0xf]
    %v1540 = vunpack.c.l.b16 %v1524
    %v1541 = vunpack.c.l.b16 %v1525
    %v1542 = vunpack.c.l.b16 %v1526
    %v1543 = vunpack.c.l.b16 %v1527
    %v1544 = vunpack.c.l.b16 %v1528
    %v1545 = vunpack.c.l.b16 %v1529
    %v1546 = vunpack.c.l.b16 %v1530
    %v1547 = vunpack.c.l.b16 %v1531
    %v1548 = vpack.c.b16 %v1541, %v1540
    %v1549 = vpack.c.b16 %v1543, %v1542
    %v1550 = vpack.c.b16 %v1545, %v1544
    %v1551 = vpack.c.b16 %v1547, %v1546
    %1556 = vmatprep.subr.bf16.mxu0 0
    %1557 = vmatpush1.bf16.msra.mxu0 %v1548
    %1558 = vmatprep.subr.bf16.mxu0 0
    %1559 = vmatpush1.bf16.msra.mxu0 %v1549
    %1560 = vmatprep.subr.bf16.mxu0 0
    %1561 = vmatpush1.bf16.msra.mxu0 %v1550
    %1562 = vmatprep.subr.bf16.mxu0 0
    %1563 = vmatpush1.bf16.msra.mxu0 %v1551
    %1564 = vmatprep.subr.bf16.mxu0 0
    %1565 = vmatpush1.bf16.msra.mxu0 0
    %1566 = vmatprep.subr.bf16.mxu0 0
    %1567 = vmatpush1.bf16.msra.mxu0 0
    %1568 = vmatprep.subr.bf16.mxu0 0
    %1569 = vmatpush1.bf16.msra.mxu0 0
    %1570 = vmatprep.subr.bf16.mxu0 0
    %1571 = vmatpush1.bf16.msra.mxu0 0
    %1572 = vmatprep.subr.bf16.mxu0 0
    %1573 = vmatpush1.bf16.msra.mxu0 0
    %1574 = vmatprep.subr.bf16.mxu0 0
    %1575 = vmatpush1.bf16.msra.mxu0 0
    %1576 = vmatprep.subr.bf16.mxu0 0
    %1577 = vmatpush1.bf16.msra.mxu0 0
    %1578 = vmatprep.subr.bf16.mxu0 0
    %1579 = vmatpush1.bf16.msra.mxu0 0
    %1580 = vmatprep.subr.bf16.mxu0 0
    %1581 = vmatpush1.bf16.msra.mxu0 0
    %1582 = vmatprep.subr.bf16.mxu0 0
    %1583 = vmatpush1.bf16.msra.mxu0 0
    %1584 = vmatprep.subr.bf16.mxu0 0
    %1585 = vmatpush1.bf16.msra.mxu0 0
    %1586 = vmatprep.subr.bf16.mxu0 0
    %1587 = vmatpush1.bf16.msra.mxu0 0
    %1588 = vmatprep.mubr.bf16.mxu0 0
    %1589 = vmatmul.mubr.bf16.gmra.mrb[0].mxu0 %v1026
    %v1590 = vpop.f32.mrb[0].mxu0
    %v1591 = vadd.f32 0.0, %v1590
    %v1592 = vpop.f32.mrb[0].mxu0
    %v1593 = vpop.f32.mrb[0].mxu0
    %v1594 = vadd.f32 0.0, %v1593
    %v1595 = vpop.f32.mrb[0].mxu0
    %1596 = vmatprep.mubr.bf16.mxu0 0
    %1597 = vmatmul.mubr.bf16.gmra.mrb[0].mxu0 %v1029
    %v1598 = vpop.f32.mrb[0].mxu0
    %v1599 = vadd.f32 0.0, %v1598
    %v1600 = vpop.f32.mrb[0].mxu0
    %v1601 = vpop.f32.mrb[0].mxu0
    %v1602 = vadd.f32 0.0, %v1601
    %v1603 = vpop.f32.mrb[0].mxu0
    %1604 = vmatprep.mubr.bf16.mxu0 0
    %1605 = vmatmul.mubr.bf16.gmra.mrb[0].mxu0 %v1032
    %v1606 = vpop.f32.mrb[0].mxu0
    %v1607 = vadd.f32 0.0, %v1606
    %v1608 = vpop.f32.mrb[0].mxu0
    %v1609 = vpop.f32.mrb[0].mxu0
    %v1610 = vadd.f32 0.0, %v1609
    %v1611 = vpop.f32.mrb[0].mxu0
    %1612 = vmatprep.mubr.bf16.mxu0 0
    %1613 = vmatmul.mubr.bf16.gmra.mrb[0].mxu0 %v1405
    %v1614 = vpop.f32.mrb[0].mxu0
    %v1615 = vadd.f32 0.0, %v1614
    %v1616 = vpop.f32.mrb[0].mxu0
    %v1617 = vpop.f32.mrb[0].mxu0
    %v1618 = vadd.f32 0.0, %v1617
    %v1619 = vpop.f32.mrb[0].mxu0
    %1620 = vmatprep.mubr.bf16.mxu0 0
    %1621 = vmatmul.mubr.bf16.gmra.mrb[0].mxu0 %v1038
    %v1622 = vpop.f32.mrb[0].mxu0
    %v1623 = vadd.f32 0.0, %v1622
    %v1624 = vpop.f32.mrb[0].mxu0
    %v1625 = vpop.f32.mrb[0].mxu0
    %v1626 = vadd.f32 0.0, %v1625
    %v1627 = vpop.f32.mrb[0].mxu0
    %1628 = vmatprep.mubr.bf16.mxu0 0
    %1629 = vmatmul.mubr.bf16.gmra.mrb[0].mxu0 %v1041
    %v1630 = vpop.f32.mrb[0].mxu0
    %v1631 = vadd.f32 0.0, %v1630
    %v1632 = vpop.f32.mrb[0].mxu0
    %v1633 = vpop.f32.mrb[0].mxu0
    %v1634 = vadd.f32 0.0, %v1633
    %v1635 = vpop.f32.mrb[0].mxu0
    %1636 = vmatprep.mubr.bf16.mxu0 0
    %1637 = vmatmul.mubr.bf16.gmra.mrb[0].mxu0 %v1044
    %v1638 = vpop.f32.mrb[0].mxu0
    %v1639 = vadd.f32 0.0, %v1638
    %v1640 = vpop.f32.mrb[0].mxu0
    %v1641 = vpop.f32.mrb[0].mxu0
    %v1642 = vadd.f32 0.0, %v1641
    %v1643 = vpop.f32.mrb[0].mxu0
    %1644 = vmatprep.mubr.bf16.mxu0 0
    %1645 = vmatmul.mubr.bf16.gmra.mrb[0].mxu0 %v1408
    %v1646 = vpop.f32.mrb[0].mxu0
    %v1647 = vadd.f32 0.0, %v1646
    %v1648 = vpop.f32.mrb[0].mxu0
    %v1649 = vpop.f32.mrb[0].mxu0
    %v1650 = vadd.f32 0.0, %v1649
    %v1651 = vpop.f32.mrb[0].mxu0
    %1652 = vdwg.mxu0
    %v1661 = vunpack.c.l.b16 %v1349
    %v1662 = vunpack.c.l.b16 %v1350
    %v1663 = vunpack.c.l.b16 %v1351
    %v1664 = vunpack.c.l.b16 %v1352
    %v1665 = vunpack.c.l.b16 %v1353
    %v1666 = vunpack.c.l.b16 %v1354
    %v1667 = vunpack.c.l.b16 %v1355
    %v1668 = vunpack.c.l.b16 %v1356
    %v1669 = vpack.c.b16 %v1662, %v1661
    %v1670 = vpack.c.b16 %v1664, %v1663
    %v1671 = vpack.c.b16 %v1666, %v1665
    %v1672 = vpack.c.b16 %v1668, %v1667
    %1677 = vmatprep.subr.bf16.mxu0 0
    %1678 = vmatpush1.bf16.msra.mxu0 %v1669
    %1679 = vmatprep.subr.bf16.mxu0 0
    %1680 = vmatpush1.bf16.msra.mxu0 %v1670
    %1681 = vmatprep.subr.bf16.mxu0 0
    %1682 = vmatpush1.bf16.msra.mxu0 %v1671
    %1683 = vmatprep.subr.bf16.mxu0 0
    %1684 = vmatpush1.bf16.msra.mxu0 %v1672
    %1685 = vmatprep.subr.bf16.mxu0 0
    %1686 = vmatpush1.bf16.msra.mxu0 0
    %1687 = vmatprep.subr.bf16.mxu0 0
    %1688 = vmatpush1.bf16.msra.mxu0 0
    %1689 = vmatprep.subr.bf16.mxu0 0
    %1690 = vmatpush1.bf16.msra.mxu0 0
    %1691 = vmatprep.subr.bf16.mxu0 0
    %1692 = vmatpush1.bf16.msra.mxu0 0
    %1693 = vmatprep.subr.bf16.mxu0 0
    %1694 = vmatpush1.bf16.msra.mxu0 0
    %1695 = vmatprep.subr.bf16.mxu0 0
    %1696 = vmatpush1.bf16.msra.mxu0 0
    %1697 = vmatprep.subr.bf16.mxu0 0
    %1698 = vmatpush1.bf16.msra.mxu0 0
    %1699 = vmatprep.subr.bf16.mxu0 0
    %1700 = vmatpush1.bf16.msra.mxu0 0
    %1701 = vmatprep.subr.bf16.mxu0 0
    %1702 = vmatpush1.bf16.msra.mxu0 0
    %1703 = vmatprep.subr.bf16.mxu0 0
    %1704 = vmatpush1.bf16.msra.mxu0 0
    %1705 = vmatprep.subr.bf16.mxu0 0
    %1706 = vmatpush1.bf16.msra.mxu0 0
    %1707 = vmatprep.subr.bf16.mxu0 0
    %1708 = vmatpush1.bf16.msra.mxu0 0
    %1709 = vmatprep.mubr.bf16.mxu0 0
    %1710 = vmatmul.mubr.bf16.gmra.mrb[0].mxu0 %v1213
    %v1711 = vpop.f32.mrb[0].mxu0
    %v1712 = vadd.f32 %v1591, %v1711
    %v1713 = vpop.f32.mrb[0].mxu0
    %v1714 = vpop.f32.mrb[0].mxu0
    %v1715 = vadd.f32 %v1594, %v1714
    %v1716 = vpop.f32.mrb[0].mxu0
    %1717 = vmatprep.mubr.bf16.mxu0 0
    %1718 = vmatmul.mubr.bf16.gmra.mrb[0].mxu0 %v1216
    %v1719 = vpop.f32.mrb[0].mxu0
    %v1720 = vadd.f32 %v1599, %v1719
    %v1721 = vpop.f32.mrb[0].mxu0
    %v1722 = vpop.f32.mrb[0].mxu0
    %v1723 = vadd.f32 %v1602, %v1722
    %v1724 = vpop.f32.mrb[0].mxu0
    %1725 = vmatprep.mubr.bf16.mxu0 0
    %1726 = vmatmul.mubr.bf16.gmra.mrb[0].mxu0 %v1219
    %v1727 = vpop.f32.mrb[0].mxu0
    %v1728 = vadd.f32 %v1607, %v1727
    %v1729 = vpop.f32.mrb[0].mxu0
    %v1730 = vpop.f32.mrb[0].mxu0
    %v1731 = vadd.f32 %v1610, %v1730
    %v1732 = vpop.f32.mrb[0].mxu0
    %1733 = vmatprep.mubr.bf16.mxu0 0
    %1734 = vmatmul.mubr.bf16.gmra.mrb[0].mxu0 %v1222
    %v1735 = vpop.f32.mrb[0].mxu0
    %v1736 = vadd.f32 %v1615, %v1735
    %v1737 = vpop.f32.mrb[0].mxu0
    %v1738 = vpop.f32.mrb[0].mxu0
    %v1739 = vadd.f32 %v1618, %v1738
    %v1740 = vpop.f32.mrb[0].mxu0
    %1741 = vmatprep.mubr.bf16.mxu0 0
    %1742 = vmatmul.mubr.bf16.gmra.mrb[0].mxu0 %v1225
    %v1743 = vpop.f32.mrb[0].mxu0
    %v1744 = vadd.f32 %v1623, %v1743
    %v1745 = vpop.f32.mrb[0].mxu0
    %v1746 = vpop.f32.mrb[0].mxu0
    %v1747 = vadd.f32 %v1626, %v1746
    %v1748 = vpop.f32.mrb[0].mxu0
    %1749 = vmatprep.mubr.bf16.mxu0 0
    %1750 = vmatmul.mubr.bf16.gmra.mrb[0].mxu0 %v1228
    %v1751 = vpop.f32.mrb[0].mxu0
    %v1752 = vadd.f32 %v1631, %v1751
    %v1753 = vpop.f32.mrb[0].mxu0
    %v1754 = vpop.f32.mrb[0].mxu0
    %v1755 = vadd.f32 %v1634, %v1754
    %v1756 = vpop.f32.mrb[0].mxu0
    %1757 = vmatprep.mubr.bf16.mxu0 0
    %1758 = vmatmul.mubr.bf16.gmra.mrb[0].mxu0 %v1231
    %v1759 = vpop.f32.mrb[0].mxu0
    %v1760 = vadd.f32 %v1639, %v1759
    %v1761 = vpop.f32.mrb[0].mxu0
    %v1762 = vpop.f32.mrb[0].mxu0
    %v1763 = vadd.f32 %v1642, %v1762
    %v1764 = vpop.f32.mrb[0].mxu0
    %1765 = vmatprep.mubr.bf16.mxu0 0
    %1766 = vmatmul.mubr.bf16.gmra.mrb[0].mxu0 %v1234
    %v1767 = vpop.f32.mrb[0].mxu0
    %v1768 = vadd.f32 %v1647, %v1767
    %v1769 = vpop.f32.mrb[0].mxu0
    %v1770 = vpop.f32.mrb[0].mxu0
    %v1771 = vadd.f32 %v1650, %v1770
    %v1772 = vpop.f32.mrb[0].mxu0
    %1773 = vdwg.mxu0
    %v1778 = vrot.slane %v70, 1
    %v1779 = vrot.slane %v71, 1
    %v1780 = vsel %vm916, %v1778, %v1779
    %v1781 = vrot.slane %v94, 1
    %v1782 = vrot.slane %v95, 1
    %v1783 = vsel %vm916, %v1781, %v1782
    %v1786 = vpack.c.bf16 %v1780, %v1363
    %v1787 = vpack.c.bf16 %v1783, %v1366
    %s1788 = scalar_lea.vmem [#allocation2], 512
    %v1789 = vld [vmem:[%s1788] sm:$0xf]
    %v1790 = vld [vmem:[%s1788 + $0x4] sm:$0xf]
    %v1791 = vld [vmem:[%s1788 + $0x8] sm:$0xf]
    %v1792 = vld [vmem:[%s1788 + $0xc] sm:$0xf]
    %v1793 = vld [vmem:[%s1788 + $0x10] sm:$0xf]
    %v1794 = vld [vmem:[%s1788 + $0x14] sm:$0xf]
    %v1795 = vld [vmem:[%s1788 + $0x18] sm:$0xf]
    %v1796 = vld [vmem:[%s1788 + $0x1c] sm:$0xf]
    %v1805 = vunpack.c.l.b16 %v1789
    %v1806 = vunpack.c.l.b16 %v1790
    %v1807 = vunpack.c.l.b16 %v1791
    %v1808 = vunpack.c.l.b16 %v1792
    %v1809 = vunpack.c.l.b16 %v1793
    %v1810 = vunpack.c.l.b16 %v1794
    %v1811 = vunpack.c.l.b16 %v1795
    %v1812 = vunpack.c.l.b16 %v1796
    %v1813 = vpack.c.b16 %v1806, %v1805
    %v1814 = vpack.c.b16 %v1808, %v1807
    %v1815 = vpack.c.b16 %v1810, %v1809
    %v1816 = vpack.c.b16 %v1812, %v1811
    %v1822 = vsel %vm155, %v1786, 0
    %v1825 = vsel %vm155, %v1787, 0
    %1827 = vmatprep.subr.bf16.mxu0 0
    %1828 = vmatpush1.bf16.msra.mxu0 %v1813
    %1829 = vmatprep.subr.bf16.mxu0 0
    %1830 = vmatpush1.bf16.msra.mxu0 %v1814
    %1831 = vmatprep.subr.bf16.mxu0 0
    %1832 = vmatpush1.bf16.msra.mxu0 %v1815
    %1833 = vmatprep.subr.bf16.mxu0 0
    %1834 = vmatpush1.bf16.msra.mxu0 %v1816
    %1835 = vmatprep.subr.bf16.mxu0 0
    %1836 = vmatpush1.bf16.msra.mxu0 0
    %1837 = vmatprep.subr.bf16.mxu0 0
    %1838 = vmatpush1.bf16.msra.mxu0 0
    %1839 = vmatprep.subr.bf16.mxu0 0
    %1840 = vmatpush1.bf16.msra.mxu0 0
    %1841 = vmatprep.subr.bf16.mxu0 0
    %1842 = vmatpush1.bf16.msra.mxu0 0
    %1843 = vmatprep.subr.bf16.mxu0 0
    %1844 = vmatpush1.bf16.msra.mxu0 0
    %1845 = vmatprep.subr.bf16.mxu0 0
    %1846 = vmatpush1.bf16.msra.mxu0 0
    %1847 = vmatprep.subr.bf16.mxu0 0
    %1848 = vmatpush1.bf16.msra.mxu0 0
    %1849 = vmatprep.subr.bf16.mxu0 0
    %1850 = vmatpush1.bf16.msra.mxu0 0
    %1851 = vmatprep.subr.bf16.mxu0 0
    %1852 = vmatpush1.bf16.msra.mxu0 0
    %1853 = vmatprep.subr.bf16.mxu0 0
    %1854 = vmatpush1.bf16.msra.mxu0 0
    %1855 = vmatprep.subr.bf16.mxu0 0
    %1856 = vmatpush1.bf16.msra.mxu0 0
    %1857 = vmatprep.subr.bf16.mxu0 0
    %1858 = vmatpush1.bf16.msra.mxu0 0
    %1859 = vmatprep.mubr.bf16.mxu0 0
    %1860 = vmatmul.mubr.bf16.gmra.mrb[0].mxu0 %v1216
    %v1861 = vpop.f32.mrb[0].mxu0
    %v1862 = vadd.f32 0.0, %v1861
    %v1863 = vpop.f32.mrb[0].mxu0
    %v1864 = vpop.f32.mrb[0].mxu0
    %v1865 = vadd.f32 0.0, %v1864
    %v1866 = vpop.f32.mrb[0].mxu0
    %1867 = vmatprep.mubr.bf16.mxu0 0
    %1868 = vmatmul.mubr.bf16.gmra.mrb[0].mxu0 %v1219
    %v1869 = vpop.f32.mrb[0].mxu0
    %v1870 = vadd.f32 0.0, %v1869
    %v1871 = vpop.f32.mrb[0].mxu0
    %v1872 = vpop.f32.mrb[0].mxu0
    %v1873 = vadd.f32 0.0, %v1872
    %v1874 = vpop.f32.mrb[0].mxu0
    %1875 = vmatprep.mubr.bf16.mxu0 0
    %1876 = vmatmul.mubr.bf16.gmra.mrb[0].mxu0 %v1222
    %v1877 = vpop.f32.mrb[0].mxu0
    %v1878 = vadd.f32 0.0, %v1877
    %v1879 = vpop.f32.mrb[0].mxu0
    %v1880 = vpop.f32.mrb[0].mxu0
    %v1881 = vadd.f32 0.0, %v1880
    %v1882 = vpop.f32.mrb[0].mxu0
    %1883 = vmatprep.mubr.bf16.mxu0 0
    %1884 = vmatmul.mubr.bf16.gmra.mrb[0].mxu0 %v1822
    %v1885 = vpop.f32.mrb[0].mxu0
    %v1886 = vadd.f32 0.0, %v1885
    %v1887 = vpop.f32.mrb[0].mxu0
    %v1888 = vpop.f32.mrb[0].mxu0
    %v1889 = vadd.f32 0.0, %v1888
    %v1890 = vpop.f32.mrb[0].mxu0
    %1891 = vmatprep.mubr.bf16.mxu0 0
    %1892 = vmatmul.mubr.bf16.gmra.mrb[0].mxu0 %v1228
    %v1893 = vpop.f32.mrb[0].mxu0
    %v1894 = vadd.f32 0.0, %v1893
    %v1895 = vpop.f32.mrb[0].mxu0
    %v1896 = vpop.f32.mrb[0].mxu0
    %v1897 = vadd.f32 0.0, %v1896
    %v1898 = vpop.f32.mrb[0].mxu0
    %1899 = vmatprep.mubr.bf16.mxu0 0
    %1900 = vmatmul.mubr.bf16.gmra.mrb[0].mxu0 %v1231
    %v1901 = vpop.f32.mrb[0].mxu0
    %v1902 = vadd.f32 0.0, %v1901
    %v1903 = vpop.f32.mrb[0].mxu0
    %v1904 = vpop.f32.mrb[0].mxu0
    %v1905 = vadd.f32 0.0, %v1904
    %v1906 = vpop.f32.mrb[0].mxu0
    %1907 = vmatprep.mubr.bf16.mxu0 0
    %1908 = vmatmul.mubr.bf16.gmra.mrb[0].mxu0 %v1234
    %v1909 = vpop.f32.mrb[0].mxu0
    %v1910 = vadd.f32 0.0, %v1909
    %v1911 = vpop.f32.mrb[0].mxu0
    %v1912 = vpop.f32.mrb[0].mxu0
    %v1913 = vadd.f32 0.0, %v1912
    %v1914 = vpop.f32.mrb[0].mxu0
    %1915 = vmatprep.mubr.bf16.mxu0 0
    %1916 = vmatmul.mubr.bf16.gmra.mrb[0].mxu0 %v1825
    %v1917 = vpop.f32.mrb[0].mxu0
    %v1918 = vadd.f32 0.0, %v1917
    %v1919 = vpop.f32.mrb[0].mxu0
    %v1920 = vpop.f32.mrb[0].mxu0
    %v1921 = vadd.f32 0.0, %v1920
    %v1922 = vpop.f32.mrb[0].mxu0
    %1923 = vdwg.mxu0
    %v1924 = vadd.f32 %v1507, %v1862
    %v1925 = vadd.f32 %v1508, %v1865
    %v1926 = vadd.f32 %v1509, %v1870
    %v1927 = vadd.f32 %v1510, %v1873
    %v1928 = vadd.f32 %v1511, %v1878
    %v1929 = vadd.f32 %v1512, %v1881
    %v1930 = vadd.f32 %v1513, %v1886
    %v1931 = vadd.f32 %v1514, %v1889
    %v1932 = vadd.f32 %v1515, %v1894
    %v1933 = vadd.f32 %v1516, %v1897
    %v1934 = vadd.f32 %v1517, %v1902
    %v1935 = vadd.f32 %v1518, %v1905
    %v1936 = vadd.f32 %v1519, %v1910
    %v1937 = vadd.f32 %v1520, %v1913
    %v1938 = vadd.f32 %v1521, %v1918
    %v1939 = vadd.f32 %v1522, %v1921
    %s1940 = scalar_lea.vmem %s2, 192
    %v1941 = vld [vmem:[%s1940] sm:$0xf]
    %v1942 = vld [vmem:[%s1940 + $0x4] sm:$0xf]
    %v1943 = vld [vmem:[%s1940 + $0x8] sm:$0xf]
    %v1944 = vld [vmem:[%s1940 + $0xc] sm:$0xf]
    %v1945 = vld [vmem:[%s1940 + $0x10] sm:$0xf]
    %v1946 = vld [vmem:[%s1940 + $0x14] sm:$0xf]
    %v1947 = vld [vmem:[%s1940 + $0x18] sm:$0xf]
    %v1948 = vld [vmem:[%s1940 + $0x1c] sm:$0xf]
    %v1957 = vunpack.c.l.b16 %v1941
    %v1958 = vunpack.c.l.b16 %v1942
    %v1959 = vunpack.c.l.b16 %v1943
    %v1960 = vunpack.c.l.b16 %v1944
    %v1961 = vunpack.c.l.b16 %v1945
    %v1962 = vunpack.c.l.b16 %v1946
    %v1963 = vunpack.c.l.b16 %v1947
    %v1964 = vunpack.c.l.b16 %v1948
    %v1965 = vpack.c.b16 %v1958, %v1957
    %v1966 = vpack.c.b16 %v1960, %v1959
    %v1967 = vpack.c.b16 %v1962, %v1961
    %v1968 = vpack.c.b16 %v1964, %v1963
    %1973 = vmatprep.subr.bf16.mxu0 0
    %1974 = vmatpush1.bf16.msra.mxu0 %v1965
    %1975 = vmatprep.subr.bf16.mxu0 0
    %1976 = vmatpush1.bf16.msra.mxu0 %v1966
    %1977 = vmatprep.subr.bf16.mxu0 0
    %1978 = vmatpush1.bf16.msra.mxu0 %v1967
    %1979 = vmatprep.subr.bf16.mxu0 0
    %1980 = vmatpush1.bf16.msra.mxu0 %v1968
    %1981 = vmatprep.subr.bf16.mxu0 0
    %1982 = vmatpush1.bf16.msra.mxu0 0
    %1983 = vmatprep.subr.bf16.mxu0 0
    %1984 = vmatpush1.bf16.msra.mxu0 0
    %1985 = vmatprep.subr.bf16.mxu0 0
    %1986 = vmatpush1.bf16.msra.mxu0 0
    %1987 = vmatprep.subr.bf16.mxu0 0
    %1988 = vmatpush1.bf16.msra.mxu0 0
    %1989 = vmatprep.subr.bf16.mxu0 0
    %1990 = vmatpush1.bf16.msra.mxu0 0
    %1991 = vmatprep.subr.bf16.mxu0 0
    %1992 = vmatpush1.bf16.msra.mxu0 0
    %1993 = vmatprep.subr.bf16.mxu0 0
    %1994 = vmatpush1.bf16.msra.mxu0 0
    %1995 = vmatprep.subr.bf16.mxu0 0
    %1996 = vmatpush1.bf16.msra.mxu0 0
    %1997 = vmatprep.subr.bf16.mxu0 0
    %1998 = vmatpush1.bf16.msra.mxu0 0
    %1999 = vmatprep.subr.bf16.mxu0 0
    %2000 = vmatpush1.bf16.msra.mxu0 0
    %2001 = vmatprep.subr.bf16.mxu0 0
    %2002 = vmatpush1.bf16.msra.mxu0 0
    %2003 = vmatprep.subr.bf16.mxu0 0
    %2004 = vmatpush1.bf16.msra.mxu0 0
    %2005 = vmatprep.mubr.bf16.mxu0 0
    %2006 = vmatmul.mubr.bf16.gmra.mrb[0].mxu0 %v1216
    %v2007 = vpop.f32.mrb[0].mxu0
    %v2008 = vadd.f32 0.0, %v2007
    %v2009 = vpop.f32.mrb[0].mxu0
    %v2010 = vpop.f32.mrb[0].mxu0
    %v2011 = vadd.f32 0.0, %v2010
    %v2012 = vpop.f32.mrb[0].mxu0
    %2013 = vmatprep.mubr.bf16.mxu0 0
    %2014 = vmatmul.mubr.bf16.gmra.mrb[0].mxu0 %v1219
    %v2015 = vpop.f32.mrb[0].mxu0
    %v2016 = vadd.f32 0.0, %v2015
    %v2017 = vpop.f32.mrb[0].mxu0
    %v2018 = vpop.f32.mrb[0].mxu0
    %v2019 = vadd.f32 0.0, %v2018
    %v2020 = vpop.f32.mrb[0].mxu0
    %2021 = vmatprep.mubr.bf16.mxu0 0
    %2022 = vmatmul.mubr.bf16.gmra.mrb[0].mxu0 %v1222
    %v2023 = vpop.f32.mrb[0].mxu0
    %v2024 = vadd.f32 0.0, %v2023
    %v2025 = vpop.f32.mrb[0].mxu0
    %v2026 = vpop.f32.mrb[0].mxu0
    %v2027 = vadd.f32 0.0, %v2026
    %v2028 = vpop.f32.mrb[0].mxu0
    %2029 = vmatprep.mubr.bf16.mxu0 0
    %2030 = vmatmul.mubr.bf16.gmra.mrb[0].mxu0 %v1822
    %v2031 = vpop.f32.mrb[0].mxu0
    %v2032 = vadd.f32 0.0, %v2031
    %v2033 = vpop.f32.mrb[0].mxu0
    %v2034 = vpop.f32.mrb[0].mxu0
    %v2035 = vadd.f32 0.0, %v2034
    %v2036 = vpop.f32.mrb[0].mxu0
    %2037 = vmatprep.mubr.bf16.mxu0 0
    %2038 = vmatmul.mubr.bf16.gmra.mrb[0].mxu0 %v1228
    %v2039 = vpop.f32.mrb[0].mxu0
    %v2040 = vadd.f32 0.0, %v2039
    %v2041 = vpop.f32.mrb[0].mxu0
    %v2042 = vpop.f32.mrb[0].mxu0
    %v2043 = vadd.f32 0.0, %v2042
    %v2044 = vpop.f32.mrb[0].mxu0
    %2045 = vmatprep.mubr.bf16.mxu0 0
    %2046 = vmatmul.mubr.bf16.gmra.mrb[0].mxu0 %v1231
    %v2047 = vpop.f32.mrb[0].mxu0
    %v2048 = vadd.f32 0.0, %v2047
    %v2049 = vpop.f32.mrb[0].mxu0
    %v2050 = vpop.f32.mrb[0].mxu0
    %v2051 = vadd.f32 0.0, %v2050
    %v2052 = vpop.f32.mrb[0].mxu0
    %2053 = vmatprep.mubr.bf16.mxu0 0
    %2054 = vmatmul.mubr.bf16.gmra.mrb[0].mxu0 %v1234
    %v2055 = vpop.f32.mrb[0].mxu0
    %v2056 = vadd.f32 0.0, %v2055
    %v2057 = vpop.f32.mrb[0].mxu0
    %v2058 = vpop.f32.mrb[0].mxu0
    %v2059 = vadd.f32 0.0, %v2058
    %v2060 = vpop.f32.mrb[0].mxu0
    %2061 = vmatprep.mubr.bf16.mxu0 0
    %2062 = vmatmul.mubr.bf16.gmra.mrb[0].mxu0 %v1825
    %v2063 = vpop.f32.mrb[0].mxu0
    %v2064 = vadd.f32 0.0, %v2063
    %v2065 = vpop.f32.mrb[0].mxu0
    %v2066 = vpop.f32.mrb[0].mxu0
    %v2067 = vadd.f32 0.0, %v2066
    %v2068 = vpop.f32.mrb[0].mxu0
    %2069 = vdwg.mxu0
    %v2070 = vadd.f32 %v1712, %v2008
    %v2071 = vadd.f32 %v1715, %v2011
    %v2072 = vadd.f32 %v1720, %v2016
    %v2073 = vadd.f32 %v1723, %v2019
    %v2074 = vadd.f32 %v1728, %v2024
    %v2075 = vadd.f32 %v1731, %v2027
    %v2076 = vadd.f32 %v1736, %v2032
    %v2077 = vadd.f32 %v1739, %v2035
    %v2078 = vadd.f32 %v1744, %v2040
    %v2079 = vadd.f32 %v1747, %v2043
    %v2080 = vadd.f32 %v1752, %v2048
    %v2081 = vadd.f32 %v1755, %v2051
    %v2082 = vadd.f32 %v1760, %v2056
    %v2083 = vadd.f32 %v1763, %v2059
    %v2084 = vadd.f32 %v1768, %v2064
    %v2085 = vadd.f32 %v1771, %v2067
    %v2090 = vrot.slane %v72, 1
    %v2091 = vrot.slane %v73, 1
    %v2092 = vsel %vm916, %v2090, %v2091
    %v2093 = vrot.slane %v96, 1
    %v2094 = vrot.slane %v97, 1
    %v2095 = vsel %vm916, %v2093, %v2094
    %v2098 = vpack.c.bf16 %v2092, %v1780
    %v2099 = vpack.c.bf16 %v2095, %v1783
    %s2100 = scalar_lea.vmem [#allocation2], 672
    %v2101 = vld [vmem:[%s2100] sm:$0xf]
    %v2102 = vld [vmem:[%s2100 + $0x4] sm:$0xf]
    %v2103 = vld [vmem:[%s2100 + $0x8] sm:$0xf]
    %v2104 = vld [vmem:[%s2100 + $0xc] sm:$0xf]
    %v2105 = vld [vmem:[%s2100 + $0x10] sm:$0xf]
    %v2106 = vld [vmem:[%s2100 + $0x14] sm:$0xf]
    %v2107 = vld [vmem:[%s2100 + $0x18] sm:$0xf]
    %v2108 = vld [vmem:[%s2100 + $0x1c] sm:$0xf]
    %v2117 = vunpack.c.l.b16 %v2101
    %v2118 = vunpack.c.l.b16 %v2102
    %v2119 = vunpack.c.l.b16 %v2103
    %v2120 = vunpack.c.l.b16 %v2104
    %v2121 = vunpack.c.l.b16 %v2105
    %v2122 = vunpack.c.l.b16 %v2106
    %v2123 = vunpack.c.l.b16 %v2107
    %v2124 = vunpack.c.l.b16 %v2108
    %v2125 = vpack.c.b16 %v2118, %v2117
    %v2126 = vpack.c.b16 %v2120, %v2119
    %v2127 = vpack.c.b16 %v2122, %v2121
    %v2128 = vpack.c.b16 %v2124, %v2123
    %v2134 = vsel %vm155, %v2098, 0
    %v2137 = vsel %vm155, %v2099, 0
    %2139 = vmatprep.subr.bf16.mxu0 0
    %2140 = vmatpush1.bf16.msra.mxu0 %v2125
    %2141 = vmatprep.subr.bf16.mxu0 0
    %2142 = vmatpush1.bf16.msra.mxu0 %v2126
    %2143 = vmatprep.subr.bf16.mxu0 0
    %2144 = vmatpush1.bf16.msra.mxu0 %v2127
    %2145 = vmatprep.subr.bf16.mxu0 0
    %2146 = vmatpush1.bf16.msra.mxu0 %v2128
    %2147 = vmatprep.subr.bf16.mxu0 0
    %2148 = vmatpush1.bf16.msra.mxu0 0
    %2149 = vmatprep.subr.bf16.mxu0 0
    %2150 = vmatpush1.bf16.msra.mxu0 0
    %2151 = vmatprep.subr.bf16.mxu0 0
    %2152 = vmatpush1.bf16.msra.mxu0 0
    %2153 = vmatprep.subr.bf16.mxu0 0
    %2154 = vmatpush1.bf16.msra.mxu0 0
    %2155 = vmatprep.subr.bf16.mxu0 0
    %2156 = vmatpush1.bf16.msra.mxu0 0
    %2157 = vmatprep.subr.bf16.mxu0 0
    %2158 = vmatpush1.bf16.msra.mxu0 0
    %2159 = vmatprep.subr.bf16.mxu0 0
    %2160 = vmatpush1.bf16.msra.mxu0 0
    %2161 = vmatprep.subr.bf16.mxu0 0
    %2162 = vmatpush1.bf16.msra.mxu0 0
    %2163 = vmatprep.subr.bf16.mxu0 0
    %2164 = vmatpush1.bf16.msra.mxu0 0
    %2165 = vmatprep.subr.bf16.mxu0 0
    %2166 = vmatpush1.bf16.msra.mxu0 0
    %2167 = vmatprep.subr.bf16.mxu0 0
    %2168 = vmatpush1.bf16.msra.mxu0 0
    %2169 = vmatprep.subr.bf16.mxu0 0
    %2170 = vmatpush1.bf16.msra.mxu0 0
    %2171 = vmatprep.mubr.bf16.mxu0 0
    %2172 = vmatmul.mubr.bf16.gmra.mrb[0].mxu0 %v1029
    %v2173 = vpop.f32.mrb[0].mxu0
    %v2174 = vadd.f32 0.0, %v2173
    %v2175 = vpop.f32.mrb[0].mxu0
    %v2176 = vpop.f32.mrb[0].mxu0
    %v2177 = vadd.f32 0.0, %v2176
    %v2178 = vpop.f32.mrb[0].mxu0
    %2179 = vmatprep.mubr.bf16.mxu0 0
    %2180 = vmatmul.mubr.bf16.gmra.mrb[0].mxu0 %v1032
    %v2181 = vpop.f32.mrb[0].mxu0
    %v2182 = vadd.f32 0.0, %v2181
    %v2183 = vpop.f32.mrb[0].mxu0
    %v2184 = vpop.f32.mrb[0].mxu0
    %v2185 = vadd.f32 0.0, %v2184
    %v2186 = vpop.f32.mrb[0].mxu0
    %2187 = vmatprep.mubr.bf16.mxu0 0
    %2188 = vmatmul.mubr.bf16.gmra.mrb[0].mxu0 %v1405
    %v2189 = vpop.f32.mrb[0].mxu0
    %v2190 = vadd.f32 0.0, %v2189
    %v2191 = vpop.f32.mrb[0].mxu0
    %v2192 = vpop.f32.mrb[0].mxu0
    %v2193 = vadd.f32 0.0, %v2192
    %v2194 = vpop.f32.mrb[0].mxu0
    %2195 = vmatprep.mubr.bf16.mxu0 0
    %2196 = vmatmul.mubr.bf16.gmra.mrb[0].mxu0 %v2134
    %v2197 = vpop.f32.mrb[0].mxu0
    %v2198 = vadd.f32 0.0, %v2197
    %v2199 = vpop.f32.mrb[0].mxu0
    %v2200 = vpop.f32.mrb[0].mxu0
    %v2201 = vadd.f32 0.0, %v2200
    %v2202 = vpop.f32.mrb[0].mxu0
    %2203 = vmatprep.mubr.bf16.mxu0 0
    %2204 = vmatmul.mubr.bf16.gmra.mrb[0].mxu0 %v1041
    %v2205 = vpop.f32.mrb[0].mxu0
    %v2206 = vadd.f32 0.0, %v2205
    %v2207 = vpop.f32.mrb[0].mxu0
    %v2208 = vpop.f32.mrb[0].mxu0
    %v2209 = vadd.f32 0.0, %v2208
    %v2210 = vpop.f32.mrb[0].mxu0
    %2211 = vmatprep.mubr.bf16.mxu0 0
    %2212 = vmatmul.mubr.bf16.gmra.mrb[0].mxu0 %v1044
    %v2213 = vpop.f32.mrb[0].mxu0
    %v2214 = vadd.f32 0.0, %v2213
    %v2215 = vpop.f32.mrb[0].mxu0
    %v2216 = vpop.f32.mrb[0].mxu0
    %v2217 = vadd.f32 0.0, %v2216
    %v2218 = vpop.f32.mrb[0].mxu0
    %2219 = vmatprep.mubr.bf16.mxu0 0
    %2220 = vmatmul.mubr.bf16.gmra.mrb[0].mxu0 %v1408
    %v2221 = vpop.f32.mrb[0].mxu0
    %v2222 = vadd.f32 0.0, %v2221
    %v2223 = vpop.f32.mrb[0].mxu0
    %v2224 = vpop.f32.mrb[0].mxu0
    %v2225 = vadd.f32 0.0, %v2224
    %v2226 = vpop.f32.mrb[0].mxu0
    %2227 = vmatprep.mubr.bf16.mxu0 0
    %2228 = vmatmul.mubr.bf16.gmra.mrb[0].mxu0 %v2137
    %v2229 = vpop.f32.mrb[0].mxu0
    %v2230 = vadd.f32 0.0, %v2229
    %v2231 = vpop.f32.mrb[0].mxu0
    %v2232 = vpop.f32.mrb[0].mxu0
    %v2233 = vadd.f32 0.0, %v2232
    %v2234 = vpop.f32.mrb[0].mxu0
    %2235 = vdwg.mxu0
    %v2236 = vadd.f32 %v1924, %v2174
    %v2237 = vadd.f32 %v1925, %v2177
    %v2238 = vadd.f32 %v1926, %v2182
    %v2239 = vadd.f32 %v1927, %v2185
    %v2240 = vadd.f32 %v1928, %v2190
    %v2241 = vadd.f32 %v1929, %v2193
    %v2242 = vadd.f32 %v1930, %v2198
    %v2243 = vadd.f32 %v1931, %v2201
    %v2244 = vadd.f32 %v1932, %v2206
    %v2245 = vadd.f32 %v1933, %v2209
    %v2246 = vadd.f32 %v1934, %v2214
    %v2247 = vadd.f32 %v1935, %v2217
    %v2248 = vadd.f32 %v1936, %v2222
    %v2249 = vadd.f32 %v1937, %v2225
    %v2250 = vadd.f32 %v1938, %v2230
    %v2251 = vadd.f32 %v1939, %v2233
    %vm2252 = vcmask 1045504
    %v2253 = vrot.slane %v50, 2
    %v2254 = vrot.slane %v51, 2
    %v2255 = vsel %vm2252, %v2253, %v2254
    %v2256 = vrot.slane %v52, 2
    %v2257 = vrot.slane %v53, 2
    %v2258 = vsel %vm2252, %v2256, %v2257
    %v2259 = vrot.slane %v54, 2
    %v2260 = vrot.slane %v55, 2
    %v2261 = vsel %vm2252, %v2259, %v2260
    %v2262 = vrot.slane %v56, 2
    %v2263 = vrot.slane %v57, 2
    %v2264 = vsel %vm2252, %v2262, %v2263
    %v2265 = vrot.slane %v58, 2
    %v2266 = vrot.slane %v59, 2
    %v2267 = vsel %vm2252, %v2265, %v2266
    %v2268 = vrot.slane %v60, 2
    %v2269 = vrot.slane %v61, 2
    %v2270 = vsel %vm2252, %v2268, %v2269
    %v2271 = vrot.slane %v62, 2
    %v2272 = vrot.slane %v63, 2
    %v2273 = vsel %vm2252, %v2271, %v2272
    %v2274 = vrot.slane %v64, 2
    %v2275 = vrot.slane %v65, 2
    %v2276 = vsel %vm2252, %v2274, %v2275
    %v2277 = vrot.slane %v74, 2
    %v2278 = vrot.slane %v75, 2
    %v2279 = vsel %vm2252, %v2277, %v2278
    %v2280 = vrot.slane %v76, 2
    %v2281 = vrot.slane %v77, 2
    %v2282 = vsel %vm2252, %v2280, %v2281
    %v2283 = vrot.slane %v78, 2
    %v2284 = vrot.slane %v79, 2
    %v2285 = vsel %vm2252, %v2283, %v2284
    %v2286 = vrot.slane %v80, 2
    %v2287 = vrot.slane %v81, 2
    %v2288 = vsel %vm2252, %v2286, %v2287
    %v2289 = vrot.slane %v82, 2
    %v2290 = vrot.slane %v83, 2
    %v2291 = vsel %vm2252, %v2289, %v2290
    %v2292 = vrot.slane %v84, 2
    %v2293 = vrot.slane %v85, 2
    %v2294 = vsel %vm2252, %v2292, %v2293
    %v2295 = vrot.slane %v86, 2
    %v2296 = vrot.slane %v87, 2
    %v2297 = vsel %vm2252, %v2295, %v2296
    %v2298 = vrot.slane %v88, 2
    %v2299 = vrot.slane %v89, 2
    %v2300 = vsel %vm2252, %v2298, %v2299
    %v2317 = vpack.c.bf16 %v2258, %v2255
    %v2318 = vpack.c.bf16 %v2264, %v2261
    %v2319 = vpack.c.bf16 %v2270, %v2267
    %v2320 = vpack.c.bf16 %v2276, %v2273
    %v2321 = vpack.c.bf16 %v2282, %v2279
    %v2322 = vpack.c.bf16 %v2288, %v2285
    %v2323 = vpack.c.bf16 %v2294, %v2291
    %v2324 = vpack.c.bf16 %v2300, %v2297
    %s2325 = scalar_lea.vmem [#allocation2], 64
    %v2326 = vld [vmem:[%s2325] sm:$0xf]
    %v2327 = vld [vmem:[%s2325 + $0x4] sm:$0xf]
    %v2328 = vld [vmem:[%s2325 + $0x8] sm:$0xf]
    %v2329 = vld [vmem:[%s2325 + $0xc] sm:$0xf]
    %v2330 = vld [vmem:[%s2325 + $0x10] sm:$0xf]
    %v2331 = vld [vmem:[%s2325 + $0x14] sm:$0xf]
    %v2332 = vld [vmem:[%s2325 + $0x18] sm:$0xf]
    %v2333 = vld [vmem:[%s2325 + $0x1c] sm:$0xf]
    %v2342 = vunpack.c.l.b16 %v2326
    %v2343 = vunpack.c.l.b16 %v2327
    %v2344 = vunpack.c.l.b16 %v2328
    %v2345 = vunpack.c.l.b16 %v2329
    %v2346 = vunpack.c.l.b16 %v2330
    %v2347 = vunpack.c.l.b16 %v2331
    %v2348 = vunpack.c.l.b16 %v2332
    %v2349 = vunpack.c.l.b16 %v2333
    %v2350 = vpack.c.b16 %v2343, %v2342
    %v2351 = vpack.c.b16 %v2345, %v2344
    %v2352 = vpack.c.b16 %v2347, %v2346
    %v2353 = vpack.c.b16 %v2349, %v2348
    %v2359 = vsel %vm155, %v2317, 0
    %v2362 = vsel %vm155, %v2318, 0
    %v2365 = vsel %vm155, %v2319, 0
    %v2368 = vsel %vm155, %v2320, 0
    %v2371 = vsel %vm155, %v2321, 0
    %v2374 = vsel %vm155, %v2322, 0
    %v2377 = vsel %vm155, %v2323, 0
    %v2380 = vsel %vm155, %v2324, 0
    %2382 = vmatprep.subr.bf16.mxu0 0
    %2383 = vmatpush1.bf16.msra.mxu0 %v2350
    %2384 = vmatprep.subr.bf16.mxu0 0
    %2385 = vmatpush1.bf16.msra.mxu0 %v2351
    %2386 = vmatprep.subr.bf16.mxu0 0
    %2387 = vmatpush1.bf16.msra.mxu0 %v2352
    %2388 = vmatprep.subr.bf16.mxu0 0
    %2389 = vmatpush1.bf16.msra.mxu0 %v2353
    %2390 = vmatprep.subr.bf16.mxu0 0
    %2391 = vmatpush1.bf16.msra.mxu0 0
    %2392 = vmatprep.subr.bf16.mxu0 0
    %2393 = vmatpush1.bf16.msra.mxu0 0
    %2394 = vmatprep.subr.bf16.mxu0 0
    %2395 = vmatpush1.bf16.msra.mxu0 0
    %2396 = vmatprep.subr.bf16.mxu0 0
    %2397 = vmatpush1.bf16.msra.mxu0 0
    %2398 = vmatprep.subr.bf16.mxu0 0
    %2399 = vmatpush1.bf16.msra.mxu0 0
    %2400 = vmatprep.subr.bf16.mxu0 0
    %2401 = vmatpush1.bf16.msra.mxu0 0
    %2402 = vmatprep.subr.bf16.mxu0 0
    %2403 = vmatpush1.bf16.msra.mxu0 0
    %2404 = vmatprep.subr.bf16.mxu0 0
    %2405 = vmatpush1.bf16.msra.mxu0 0
    %2406 = vmatprep.subr.bf16.mxu0 0
    %2407 = vmatpush1.bf16.msra.mxu0 0
    %2408 = vmatprep.subr.bf16.mxu0 0
    %2409 = vmatpush1.bf16.msra.mxu0 0
    %2410 = vmatprep.subr.bf16.mxu0 0
    %2411 = vmatpush1.bf16.msra.mxu0 0
    %2412 = vmatprep.subr.bf16.mxu0 0
    %2413 = vmatpush1.bf16.msra.mxu0 0
    %2414 = vmatprep.mubr.bf16.mxu0 0
    %2415 = vmatmul.mubr.bf16.gmra.mrb[0].mxu0 %v2359
    %v2416 = vpop.f32.mrb[0].mxu0
    %v2417 = vadd.f32 0.0, %v2416
    %v2418 = vpop.f32.mrb[0].mxu0
    %v2419 = vpop.f32.mrb[0].mxu0
    %v2420 = vadd.f32 0.0, %v2419
    %v2421 = vpop.f32.mrb[0].mxu0
    %2422 = vmatprep.mubr.bf16.mxu0 0
    %2423 = vmatmul.mubr.bf16.gmra.mrb[0].mxu0 %v2362
    %v2424 = vpop.f32.mrb[0].mxu0
    %v2425 = vadd.f32 0.0, %v2424
    %v2426 = vpop.f32.mrb[0].mxu0
    %v2427 = vpop.f32.mrb[0].mxu0
    %v2428 = vadd.f32 0.0, %v2427
    %v2429 = vpop.f32.mrb[0].mxu0
    %2430 = vmatprep.mubr.bf16.mxu0 0
    %2431 = vmatmul.mubr.bf16.gmra.mrb[0].mxu0 %v2365
    %v2432 = vpop.f32.mrb[0].mxu0
    %v2433 = vadd.f32 0.0, %v2432
    %v2434 = vpop.f32.mrb[0].mxu0
    %v2435 = vpop.f32.mrb[0].mxu0
    %v2436 = vadd.f32 0.0, %v2435
    %v2437 = vpop.f32.mrb[0].mxu0
    %2438 = vmatprep.mubr.bf16.mxu0 0
    %2439 = vmatmul.mubr.bf16.gmra.mrb[0].mxu0 %v2368
    %v2440 = vpop.f32.mrb[0].mxu0
    %v2441 = vadd.f32 0.0, %v2440
    %v2442 = vpop.f32.mrb[0].mxu0
    %v2443 = vpop.f32.mrb[0].mxu0
    %v2444 = vadd.f32 0.0, %v2443
    %v2445 = vpop.f32.mrb[0].mxu0
    %2446 = vmatprep.mubr.bf16.mxu0 0
    %2447 = vmatmul.mubr.bf16.gmra.mrb[0].mxu0 %v2371
    %v2448 = vpop.f32.mrb[0].mxu0
    %v2449 = vadd.f32 0.0, %v2448
    %v2450 = vpop.f32.mrb[0].mxu0
    %v2451 = vpop.f32.mrb[0].mxu0
    %v2452 = vadd.f32 0.0, %v2451
    %v2453 = vpop.f32.mrb[0].mxu0
    %2454 = vmatprep.mubr.bf16.mxu0 0
    %2455 = vmatmul.mubr.bf16.gmra.mrb[0].mxu0 %v2374
    %v2456 = vpop.f32.mrb[0].mxu0
    %v2457 = vadd.f32 0.0, %v2456
    %v2458 = vpop.f32.mrb[0].mxu0
    %v2459 = vpop.f32.mrb[0].mxu0
    %v2460 = vadd.f32 0.0, %v2459
    %v2461 = vpop.f32.mrb[0].mxu0
    %2462 = vmatprep.mubr.bf16.mxu0 0
    %2463 = vmatmul.mubr.bf16.gmra.mrb[0].mxu0 %v2377
    %v2464 = vpop.f32.mrb[0].mxu0
    %v2465 = vadd.f32 0.0, %v2464
    %v2466 = vpop.f32.mrb[0].mxu0
    %v2467 = vpop.f32.mrb[0].mxu0
    %v2468 = vadd.f32 0.0, %v2467
    %v2469 = vpop.f32.mrb[0].mxu0
    %2470 = vmatprep.mubr.bf16.mxu0 0
    %2471 = vmatmul.mubr.bf16.gmra.mrb[0].mxu0 %v2380
    %v2472 = vpop.f32.mrb[0].mxu0
    %v2473 = vadd.f32 0.0, %v2472
    %v2474 = vpop.f32.mrb[0].mxu0
    %v2475 = vpop.f32.mrb[0].mxu0
    %v2476 = vadd.f32 0.0, %v2475
    %v2477 = vpop.f32.mrb[0].mxu0
    %2478 = vdwg.mxu0
    %v2479 = vadd.f32 %v2236, %v2417
    %v2480 = vadd.f32 %v2237, %v2420
    %v2481 = vadd.f32 %v2238, %v2425
    %v2482 = vadd.f32 %v2239, %v2428
    %v2483 = vadd.f32 %v2240, %v2433
    %v2484 = vadd.f32 %v2241, %v2436
    %v2485 = vadd.f32 %v2242, %v2441
    %v2486 = vadd.f32 %v2243, %v2444
    %v2487 = vadd.f32 %v2244, %v2449
    %v2488 = vadd.f32 %v2245, %v2452
    %v2489 = vadd.f32 %v2246, %v2457
    %v2490 = vadd.f32 %v2247, %v2460
    %v2491 = vadd.f32 %v2248, %v2465
    %v2492 = vadd.f32 %v2249, %v2468
    %v2493 = vadd.f32 %v2250, %v2473
    %v2494 = vadd.f32 %v2251, %v2476
    %v2495 = vrot.slane %v66, 2
    %v2496 = vrot.slane %v67, 2
    %v2497 = vsel %vm2252, %v2495, %v2496
    %v2498 = vrot.slane %v90, 2
    %v2499 = vrot.slane %v91, 2
    %v2500 = vsel %vm2252, %v2498, %v2499
    %v2503 = vpack.c.bf16 %v2261, %v2258
    %v2504 = vpack.c.bf16 %v2267, %v2264
    %v2505 = vpack.c.bf16 %v2273, %v2270
    %v2506 = vpack.c.bf16 %v2497, %v2276
    %v2507 = vpack.c.bf16 %v2285, %v2282
    %v2508 = vpack.c.bf16 %v2291, %v2288
    %v2509 = vpack.c.bf16 %v2297, %v2294
    %v2510 = vpack.c.bf16 %v2500, %v2300
    %s2511 = scalar_lea.vmem [#allocation2], 224
    %v2512 = vld [vmem:[%s2511] sm:$0xf]
    %v2513 = vld [vmem:[%s2511 + $0x4] sm:$0xf]
    %v2514 = vld [vmem:[%s2511 + $0x8] sm:$0xf]
    %v2515 = vld [vmem:[%s2511 + $0xc] sm:$0xf]
    %v2516 = vld [vmem:[%s2511 + $0x10] sm:$0xf]
    %v2517 = vld [vmem:[%s2511 + $0x14] sm:$0xf]
    %v2518 = vld [vmem:[%s2511 + $0x18] sm:$0xf]
    %v2519 = vld [vmem:[%s2511 + $0x1c] sm:$0xf]
    %v2528 = vunpack.c.l.b16 %v2512
    %v2529 = vunpack.c.l.b16 %v2513
    %v2530 = vunpack.c.l.b16 %v2514
    %v2531 = vunpack.c.l.b16 %v2515
    %v2532 = vunpack.c.l.b16 %v2516
    %v2533 = vunpack.c.l.b16 %v2517
    %v2534 = vunpack.c.l.b16 %v2518
    %v2535 = vunpack.c.l.b16 %v2519
    %v2536 = vpack.c.b16 %v2529, %v2528
    %v2537 = vpack.c.b16 %v2531, %v2530
    %v2538 = vpack.c.b16 %v2533, %v2532
    %v2539 = vpack.c.b16 %v2535, %v2534
    %v2545 = vsel %vm155, %v2503, 0
    %v2548 = vsel %vm155, %v2504, 0
    %v2551 = vsel %vm155, %v2505, 0
    %v2554 = vsel %vm155, %v2506, 0
    %v2557 = vsel %vm155, %v2507, 0
    %v2560 = vsel %vm155, %v2508, 0
    %v2563 = vsel %vm155, %v2509, 0
    %v2566 = vsel %vm155, %v2510, 0
    %2568 = vmatprep.subr.bf16.mxu0 0
    %2569 = vmatpush1.bf16.msra.mxu0 %v2536
    %2570 = vmatprep.subr.bf16.mxu0 0
    %2571 = vmatpush1.bf16.msra.mxu0 %v2537
    %2572 = vmatprep.subr.bf16.mxu0 0
    %2573 = vmatpush1.bf16.msra.mxu0 %v2538
    %2574 = vmatprep.subr.bf16.mxu0 0
    %2575 = vmatpush1.bf16.msra.mxu0 %v2539
    %2576 = vmatprep.subr.bf16.mxu0 0
    %2577 = vmatpush1.bf16.msra.mxu0 0
    %2578 = vmatprep.subr.bf16.mxu0 0
    %2579 = vmatpush1.bf16.msra.mxu0 0
    %2580 = vmatprep.subr.bf16.mxu0 0
    %2581 = vmatpush1.bf16.msra.mxu0 0
    %2582 = vmatprep.subr.bf16.mxu0 0
    %2583 = vmatpush1.bf16.msra.mxu0 0
    %2584 = vmatprep.subr.bf16.mxu0 0
    %2585 = vmatpush1.bf16.msra.mxu0 0
    %2586 = vmatprep.subr.bf16.mxu0 0
    %2587 = vmatpush1.bf16.msra.mxu0 0
    %2588 = vmatprep.subr.bf16.mxu0 0
    %2589 = vmatpush1.bf16.msra.mxu0 0
    %2590 = vmatprep.subr.bf16.mxu0 0
    %2591 = vmatpush1.bf16.msra.mxu0 0
    %2592 = vmatprep.subr.bf16.mxu0 0
    %2593 = vmatpush1.bf16.msra.mxu0 0
    %2594 = vmatprep.subr.bf16.mxu0 0
    %2595 = vmatpush1.bf16.msra.mxu0 0
    %2596 = vmatprep.subr.bf16.mxu0 0
    %2597 = vmatpush1.bf16.msra.mxu0 0
    %2598 = vmatprep.subr.bf16.mxu0 0
    %2599 = vmatpush1.bf16.msra.mxu0 0
    %2600 = vmatprep.mubr.bf16.mxu0 0
    %2601 = vmatmul.mubr.bf16.gmra.mrb[0].mxu0 %v2545
    %v2602 = vpop.f32.mrb[0].mxu0
    %v2603 = vadd.f32 0.0, %v2602
    %v2604 = vpop.f32.mrb[0].mxu0
    %v2605 = vpop.f32.mrb[0].mxu0
    %v2606 = vadd.f32 0.0, %v2605
    %v2607 = vpop.f32.mrb[0].mxu0
    %2608 = vmatprep.mubr.bf16.mxu0 0
    %2609 = vmatmul.mubr.bf16.gmra.mrb[0].mxu0 %v2548
    %v2610 = vpop.f32.mrb[0].mxu0
    %v2611 = vadd.f32 0.0, %v2610
    %v2612 = vpop.f32.mrb[0].mxu0
    %v2613 = vpop.f32.mrb[0].mxu0
    %v2614 = vadd.f32 0.0, %v2613
    %v2615 = vpop.f32.mrb[0].mxu0
    %2616 = vmatprep.mubr.bf16.mxu0 0
    %2617 = vmatmul.mubr.bf16.gmra.mrb[0].mxu0 %v2551
    %v2618 = vpop.f32.mrb[0].mxu0
    %v2619 = vadd.f32 0.0, %v2618
    %v2620 = vpop.f32.mrb[0].mxu0
    %v2621 = vpop.f32.mrb[0].mxu0
    %v2622 = vadd.f32 0.0, %v2621
    %v2623 = vpop.f32.mrb[0].mxu0
    %2624 = vmatprep.mubr.bf16.mxu0 0
    %2625 = vmatmul.mubr.bf16.gmra.mrb[0].mxu0 %v2554
    %v2626 = vpop.f32.mrb[0].mxu0
    %v2627 = vadd.f32 0.0, %v2626
    %v2628 = vpop.f32.mrb[0].mxu0
    %v2629 = vpop.f32.mrb[0].mxu0
    %v2630 = vadd.f32 0.0, %v2629
    %v2631 = vpop.f32.mrb[0].mxu0
    %2632 = vmatprep.mubr.bf16.mxu0 0
    %2633 = vmatmul.mubr.bf16.gmra.mrb[0].mxu0 %v2557
    %v2634 = vpop.f32.mrb[0].mxu0
    %v2635 = vadd.f32 0.0, %v2634
    %v2636 = vpop.f32.mrb[0].mxu0
    %v2637 = vpop.f32.mrb[0].mxu0
    %v2638 = vadd.f32 0.0, %v2637
    %v2639 = vpop.f32.mrb[0].mxu0
    %2640 = vmatprep.mubr.bf16.mxu0 0
    %2641 = vmatmul.mubr.bf16.gmra.mrb[0].mxu0 %v2560
    %v2642 = vpop.f32.mrb[0].mxu0
    %v2643 = vadd.f32 0.0, %v2642
    %v2644 = vpop.f32.mrb[0].mxu0
    %v2645 = vpop.f32.mrb[0].mxu0
    %v2646 = vadd.f32 0.0, %v2645
    %v2647 = vpop.f32.mrb[0].mxu0
    %2648 = vmatprep.mubr.bf16.mxu0 0
    %2649 = vmatmul.mubr.bf16.gmra.mrb[0].mxu0 %v2563
    %v2650 = vpop.f32.mrb[0].mxu0
    %v2651 = vadd.f32 0.0, %v2650
    %v2652 = vpop.f32.mrb[0].mxu0
    %v2653 = vpop.f32.mrb[0].mxu0
    %v2654 = vadd.f32 0.0, %v2653
    %v2655 = vpop.f32.mrb[0].mxu0
    %2656 = vmatprep.mubr.bf16.mxu0 0
    %2657 = vmatmul.mubr.bf16.gmra.mrb[0].mxu0 %v2566
    %v2658 = vpop.f32.mrb[0].mxu0
    %v2659 = vadd.f32 0.0, %v2658
    %v2660 = vpop.f32.mrb[0].mxu0
    %v2661 = vpop.f32.mrb[0].mxu0
    %v2662 = vadd.f32 0.0, %v2661
    %v2663 = vpop.f32.mrb[0].mxu0
    %2664 = vdwg.mxu0
    %v2665 = vadd.f32 %v2479, %v2603
    %v2666 = vadd.f32 %v2480, %v2606
    %v2667 = vadd.f32 %v2481, %v2611
    %v2668 = vadd.f32 %v2482, %v2614
    %v2669 = vadd.f32 %v2483, %v2619
    %v2670 = vadd.f32 %v2484, %v2622
    %v2671 = vadd.f32 %v2485, %v2627
    %v2672 = vadd.f32 %v2486, %v2630
    %v2673 = vadd.f32 %v2487, %v2635
    %v2674 = vadd.f32 %v2488, %v2638
    %v2675 = vadd.f32 %v2489, %v2643
    %v2676 = vadd.f32 %v2490, %v2646
    %v2677 = vadd.f32 %v2491, %v2651
    %v2678 = vadd.f32 %v2492, %v2654
    %v2679 = vadd.f32 %v2493, %v2659
    %v2680 = vadd.f32 %v2494, %v2662
    %s2681 = scalar_lea.vmem %s2, 32
    %v2682 = vld [vmem:[%s2681] sm:$0xf]
    %v2683 = vld [vmem:[%s2681 + $0x4] sm:$0xf]
    %v2684 = vld [vmem:[%s2681 + $0x8] sm:$0xf]
    %v2685 = vld [vmem:[%s2681 + $0xc] sm:$0xf]
    %v2686 = vld [vmem:[%s2681 + $0x10] sm:$0xf]
    %v2687 = vld [vmem:[%s2681 + $0x14] sm:$0xf]
    %v2688 = vld [vmem:[%s2681 + $0x18] sm:$0xf]
    %v2689 = vld [vmem:[%s2681 + $0x1c] sm:$0xf]
    %v2698 = vunpack.c.l.b16 %v2682
    %v2699 = vunpack.c.l.b16 %v2683
    %v2700 = vunpack.c.l.b16 %v2684
    %v2701 = vunpack.c.l.b16 %v2685
    %v2702 = vunpack.c.l.b16 %v2686
    %v2703 = vunpack.c.l.b16 %v2687
    %v2704 = vunpack.c.l.b16 %v2688
    %v2705 = vunpack.c.l.b16 %v2689
    %v2706 = vpack.c.b16 %v2699, %v2698
    %v2707 = vpack.c.b16 %v2701, %v2700
    %v2708 = vpack.c.b16 %v2703, %v2702
    %v2709 = vpack.c.b16 %v2705, %v2704
    %2714 = vmatprep.subr.bf16.mxu0 0
    %2715 = vmatpush1.bf16.msra.mxu0 %v2706
    %2716 = vmatprep.subr.bf16.mxu0 0
    %2717 = vmatpush1.bf16.msra.mxu0 %v2707
    %2718 = vmatprep.subr.bf16.mxu0 0
    %2719 = vmatpush1.bf16.msra.mxu0 %v2708
    %2720 = vmatprep.subr.bf16.mxu0 0
    %2721 = vmatpush1.bf16.msra.mxu0 %v2709
    %2722 = vmatprep.subr.bf16.mxu0 0
    %2723 = vmatpush1.bf16.msra.mxu0 0
    %2724 = vmatprep.subr.bf16.mxu0 0
    %2725 = vmatpush1.bf16.msra.mxu0 0
    %2726 = vmatprep.subr.bf16.mxu0 0
    %2727 = vmatpush1.bf16.msra.mxu0 0
    %2728 = vmatprep.subr.bf16.mxu0 0
    %2729 = vmatpush1.bf16.msra.mxu0 0
    %2730 = vmatprep.subr.bf16.mxu0 0
    %2731 = vmatpush1.bf16.msra.mxu0 0
    %2732 = vmatprep.subr.bf16.mxu0 0
    %2733 = vmatpush1.bf16.msra.mxu0 0
    %2734 = vmatprep.subr.bf16.mxu0 0
    %2735 = vmatpush1.bf16.msra.mxu0 0
    %2736 = vmatprep.subr.bf16.mxu0 0
    %2737 = vmatpush1.bf16.msra.mxu0 0
    %2738 = vmatprep.subr.bf16.mxu0 0
    %2739 = vmatpush1.bf16.msra.mxu0 0
    %2740 = vmatprep.subr.bf16.mxu0 0
    %2741 = vmatpush1.bf16.msra.mxu0 0
    %2742 = vmatprep.subr.bf16.mxu0 0
    %2743 = vmatpush1.bf16.msra.mxu0 0
    %2744 = vmatprep.subr.bf16.mxu0 0
    %2745 = vmatpush1.bf16.msra.mxu0 0
    %2746 = vmatprep.mubr.bf16.mxu0 0
    %2747 = vmatmul.mubr.bf16.gmra.mrb[0].mxu0 %v2545
    %v2748 = vpop.f32.mrb[0].mxu0
    %v2749 = vadd.f32 0.0, %v2748
    %v2750 = vpop.f32.mrb[0].mxu0
    %v2751 = vpop.f32.mrb[0].mxu0
    %v2752 = vadd.f32 0.0, %v2751
    %v2753 = vpop.f32.mrb[0].mxu0
    %2754 = vmatprep.mubr.bf16.mxu0 0
    %2755 = vmatmul.mubr.bf16.gmra.mrb[0].mxu0 %v2548
    %v2756 = vpop.f32.mrb[0].mxu0
    %v2757 = vadd.f32 0.0, %v2756
    %v2758 = vpop.f32.mrb[0].mxu0
    %v2759 = vpop.f32.mrb[0].mxu0
    %v2760 = vadd.f32 0.0, %v2759
    %v2761 = vpop.f32.mrb[0].mxu0
    %2762 = vmatprep.mubr.bf16.mxu0 0
    %2763 = vmatmul.mubr.bf16.gmra.mrb[0].mxu0 %v2551
    %v2764 = vpop.f32.mrb[0].mxu0
    %v2765 = vadd.f32 0.0, %v2764
    %v2766 = vpop.f32.mrb[0].mxu0
    %v2767 = vpop.f32.mrb[0].mxu0
    %v2768 = vadd.f32 0.0, %v2767
    %v2769 = vpop.f32.mrb[0].mxu0
    %2770 = vmatprep.mubr.bf16.mxu0 0
    %2771 = vmatmul.mubr.bf16.gmra.mrb[0].mxu0 %v2554
    %v2772 = vpop.f32.mrb[0].mxu0
    %v2773 = vadd.f32 0.0, %v2772
    %v2774 = vpop.f32.mrb[0].mxu0
    %v2775 = vpop.f32.mrb[0].mxu0
    %v2776 = vadd.f32 0.0, %v2775
    %v2777 = vpop.f32.mrb[0].mxu0
    %2778 = vmatprep.mubr.bf16.mxu0 0
    %2779 = vmatmul.mubr.bf16.gmra.mrb[0].mxu0 %v2557
    %v2780 = vpop.f32.mrb[0].mxu0
    %v2781 = vadd.f32 0.0, %v2780
    %v2782 = vpop.f32.mrb[0].mxu0
    %v2783 = vpop.f32.mrb[0].mxu0
    %v2784 = vadd.f32 0.0, %v2783
    %v2785 = vpop.f32.mrb[0].mxu0
    %2786 = vmatprep.mubr.bf16.mxu0 0
    %2787 = vmatmul.mubr.bf16.gmra.mrb[0].mxu0 %v2560
    %v2788 = vpop.f32.mrb[0].mxu0
    %v2789 = vadd.f32 0.0, %v2788
    %v2790 = vpop.f32.mrb[0].mxu0
    %v2791 = vpop.f32.mrb[0].mxu0
    %v2792 = vadd.f32 0.0, %v2791
    %v2793 = vpop.f32.mrb[0].mxu0
    %2794 = vmatprep.mubr.bf16.mxu0 0
    %2795 = vmatmul.mubr.bf16.gmra.mrb[0].mxu0 %v2563
    %v2796 = vpop.f32.mrb[0].mxu0
    %v2797 = vadd.f32 0.0, %v2796
    %v2798 = vpop.f32.mrb[0].mxu0
    %v2799 = vpop.f32.mrb[0].mxu0
    %v2800 = vadd.f32 0.0, %v2799
    %v2801 = vpop.f32.mrb[0].mxu0
    %2802 = vmatprep.mubr.bf16.mxu0 0
    %2803 = vmatmul.mubr.bf16.gmra.mrb[0].mxu0 %v2566
    %v2804 = vpop.f32.mrb[0].mxu0
    %v2805 = vadd.f32 0.0, %v2804
    %v2806 = vpop.f32.mrb[0].mxu0
    %v2807 = vpop.f32.mrb[0].mxu0
    %v2808 = vadd.f32 0.0, %v2807
    %v2809 = vpop.f32.mrb[0].mxu0
    %2810 = vdwg.mxu0
    %v2811 = vadd.f32 %v2070, %v2749
    %v2812 = vadd.f32 %v2071, %v2752
    %v2813 = vadd.f32 %v2072, %v2757
    %v2814 = vadd.f32 %v2073, %v2760
    %v2815 = vadd.f32 %v2074, %v2765
    %v2816 = vadd.f32 %v2075, %v2768
    %v2817 = vadd.f32 %v2076, %v2773
    %v2818 = vadd.f32 %v2077, %v2776
    %v2819 = vadd.f32 %v2078, %v2781
    %v2820 = vadd.f32 %v2079, %v2784
    %v2821 = vadd.f32 %v2080, %v2789
    %v2822 = vadd.f32 %v2081, %v2792
    %v2823 = vadd.f32 %v2082, %v2797
    %v2824 = vadd.f32 %v2083, %v2800
    %v2825 = vadd.f32 %v2084, %v2805
    %v2826 = vadd.f32 %v2085, %v2808
    %v2827 = vrot.slane %v68, 2
    %v2828 = vrot.slane %v69, 2
    %v2829 = vsel %vm2252, %v2827, %v2828
    %v2830 = vrot.slane %v92, 2
    %v2831 = vrot.slane %v93, 2
    %v2832 = vsel %vm2252, %v2830, %v2831
    %v2835 = vpack.c.bf16 %v2829, %v2497
    %v2836 = vpack.c.bf16 %v2832, %v2500
    %s2837 = scalar_lea.vmem [#allocation2], 384
    %v2838 = vld [vmem:[%s2837] sm:$0xf]
    %v2839 = vld [vmem:[%s2837 + $0x4] sm:$0xf]
    %v2840 = vld [vmem:[%s2837 + $0x8] sm:$0xf]
    %v2841 = vld [vmem:[%s2837 + $0xc] sm:$0xf]
    %v2842 = vld [vmem:[%s2837 + $0x10] sm:$0xf]
    %v2843 = vld [vmem:[%s2837 + $0x14] sm:$0xf]
    %v2844 = vld [vmem:[%s2837 + $0x18] sm:$0xf]
    %v2845 = vld [vmem:[%s2837 + $0x1c] sm:$0xf]
    %v2854 = vunpack.c.l.b16 %v2838
    %v2855 = vunpack.c.l.b16 %v2839
    %v2856 = vunpack.c.l.b16 %v2840
    %v2857 = vunpack.c.l.b16 %v2841
    %v2858 = vunpack.c.l.b16 %v2842
    %v2859 = vunpack.c.l.b16 %v2843
    %v2860 = vunpack.c.l.b16 %v2844
    %v2861 = vunpack.c.l.b16 %v2845
    %v2862 = vpack.c.b16 %v2855, %v2854
    %v2863 = vpack.c.b16 %v2857, %v2856
    %v2864 = vpack.c.b16 %v2859, %v2858
    %v2865 = vpack.c.b16 %v2861, %v2860
    %v2871 = vsel %vm155, %v2835, 0
    %v2874 = vsel %vm155, %v2836, 0
    %2876 = vmatprep.subr.bf16.mxu0 0
    %2877 = vmatpush1.bf16.msra.mxu0 %v2862
    %2878 = vmatprep.subr.bf16.mxu0 0
    %2879 = vmatpush1.bf16.msra.mxu0 %v2863
    %2880 = vmatprep.subr.bf16.mxu0 0
    %2881 = vmatpush1.bf16.msra.mxu0 %v2864
    %2882 = vmatprep.subr.bf16.mxu0 0
    %2883 = vmatpush1.bf16.msra.mxu0 %v2865
    %2884 = vmatprep.subr.bf16.mxu0 0
    %2885 = vmatpush1.bf16.msra.mxu0 0
    %2886 = vmatprep.subr.bf16.mxu0 0
    %2887 = vmatpush1.bf16.msra.mxu0 0
    %2888 = vmatprep.subr.bf16.mxu0 0
    %2889 = vmatpush1.bf16.msra.mxu0 0
    %2890 = vmatprep.subr.bf16.mxu0 0
    %2891 = vmatpush1.bf16.msra.mxu0 0
    %2892 = vmatprep.subr.bf16.mxu0 0
    %2893 = vmatpush1.bf16.msra.mxu0 0
    %2894 = vmatprep.subr.bf16.mxu0 0
    %2895 = vmatpush1.bf16.msra.mxu0 0
    %2896 = vmatprep.subr.bf16.mxu0 0
    %2897 = vmatpush1.bf16.msra.mxu0 0
    %2898 = vmatprep.subr.bf16.mxu0 0
    %2899 = vmatpush1.bf16.msra.mxu0 0
    %2900 = vmatprep.subr.bf16.mxu0 0
    %2901 = vmatpush1.bf16.msra.mxu0 0
    %2902 = vmatprep.subr.bf16.mxu0 0
    %2903 = vmatpush1.bf16.msra.mxu0 0
    %2904 = vmatprep.subr.bf16.mxu0 0
    %2905 = vmatpush1.bf16.msra.mxu0 0
    %2906 = vmatprep.subr.bf16.mxu0 0
    %2907 = vmatpush1.bf16.msra.mxu0 0
    %2908 = vmatprep.mubr.bf16.mxu0 0
    %2909 = vmatmul.mubr.bf16.gmra.mrb[0].mxu0 %v2362
    %v2910 = vpop.f32.mrb[0].mxu0
    %v2911 = vadd.f32 0.0, %v2910
    %v2912 = vpop.f32.mrb[0].mxu0
    %v2913 = vpop.f32.mrb[0].mxu0
    %v2914 = vadd.f32 0.0, %v2913
    %v2915 = vpop.f32.mrb[0].mxu0
    %2916 = vmatprep.mubr.bf16.mxu0 0
    %2917 = vmatmul.mubr.bf16.gmra.mrb[0].mxu0 %v2365
    %v2918 = vpop.f32.mrb[0].mxu0
    %v2919 = vadd.f32 0.0, %v2918
    %v2920 = vpop.f32.mrb[0].mxu0
    %v2921 = vpop.f32.mrb[0].mxu0
    %v2922 = vadd.f32 0.0, %v2921
    %v2923 = vpop.f32.mrb[0].mxu0
    %2924 = vmatprep.mubr.bf16.mxu0 0
    %2925 = vmatmul.mubr.bf16.gmra.mrb[0].mxu0 %v2368
    %v2926 = vpop.f32.mrb[0].mxu0
    %v2927 = vadd.f32 0.0, %v2926
    %v2928 = vpop.f32.mrb[0].mxu0
    %v2929 = vpop.f32.mrb[0].mxu0
    %v2930 = vadd.f32 0.0, %v2929
    %v2931 = vpop.f32.mrb[0].mxu0
    %2932 = vmatprep.mubr.bf16.mxu0 0
    %2933 = vmatmul.mubr.bf16.gmra.mrb[0].mxu0 %v2871
    %v2934 = vpop.f32.mrb[0].mxu0
    %v2935 = vadd.f32 0.0, %v2934
    %v2936 = vpop.f32.mrb[0].mxu0
    %v2937 = vpop.f32.mrb[0].mxu0
    %v2938 = vadd.f32 0.0, %v2937
    %v2939 = vpop.f32.mrb[0].mxu0
    %2940 = vmatprep.mubr.bf16.mxu0 0
    %2941 = vmatmul.mubr.bf16.gmra.mrb[0].mxu0 %v2374
    %v2942 = vpop.f32.mrb[0].mxu0
    %v2943 = vadd.f32 0.0, %v2942
    %v2944 = vpop.f32.mrb[0].mxu0
    %v2945 = vpop.f32.mrb[0].mxu0
    %v2946 = vadd.f32 0.0, %v2945
    %v2947 = vpop.f32.mrb[0].mxu0
    %2948 = vmatprep.mubr.bf16.mxu0 0
    %2949 = vmatmul.mubr.bf16.gmra.mrb[0].mxu0 %v2377
    %v2950 = vpop.f32.mrb[0].mxu0
    %v2951 = vadd.f32 0.0, %v2950
    %v2952 = vpop.f32.mrb[0].mxu0
    %v2953 = vpop.f32.mrb[0].mxu0
    %v2954 = vadd.f32 0.0, %v2953
    %v2955 = vpop.f32.mrb[0].mxu0
    %2956 = vmatprep.mubr.bf16.mxu0 0
    %2957 = vmatmul.mubr.bf16.gmra.mrb[0].mxu0 %v2380
    %v2958 = vpop.f32.mrb[0].mxu0
    %v2959 = vadd.f32 0.0, %v2958
    %v2960 = vpop.f32.mrb[0].mxu0
    %v2961 = vpop.f32.mrb[0].mxu0
    %v2962 = vadd.f32 0.0, %v2961
    %v2963 = vpop.f32.mrb[0].mxu0
    %2964 = vmatprep.mubr.bf16.mxu0 0
    %2965 = vmatmul.mubr.bf16.gmra.mrb[0].mxu0 %v2874
    %v2966 = vpop.f32.mrb[0].mxu0
    %v2967 = vadd.f32 0.0, %v2966
    %v2968 = vpop.f32.mrb[0].mxu0
    %v2969 = vpop.f32.mrb[0].mxu0
    %v2970 = vadd.f32 0.0, %v2969
    %v2971 = vpop.f32.mrb[0].mxu0
    %2972 = vdwg.mxu0
    %v2973 = vadd.f32 %v2665, %v2911
    %v2974 = vadd.f32 %v2666, %v2914
    %v2975 = vadd.f32 %v2667, %v2919
    %v2976 = vadd.f32 %v2668, %v2922
    %v2977 = vadd.f32 %v2669, %v2927
    %v2978 = vadd.f32 %v2670, %v2930
    %v2979 = vadd.f32 %v2671, %v2935
    %v2980 = vadd.f32 %v2672, %v2938
    %v2981 = vadd.f32 %v2673, %v2943
    %v2982 = vadd.f32 %v2674, %v2946
    %v2983 = vadd.f32 %v2675, %v2951
    %v2984 = vadd.f32 %v2676, %v2954
    %v2985 = vadd.f32 %v2677, %v2959
    %v2986 = vadd.f32 %v2678, %v2962
    %v2987 = vadd.f32 %v2679, %v2967
    %v2988 = vadd.f32 %v2680, %v2970
    %s2989 = scalar_lea.vmem %s2, 128
    %v2990 = vld [vmem:[%s2989] sm:$0xf]
    %v2991 = vld [vmem:[%s2989 + $0x4] sm:$0xf]
    %v2992 = vld [vmem:[%s2989 + $0x8] sm:$0xf]
    %v2993 = vld [vmem:[%s2989 + $0xc] sm:$0xf]
    %v2994 = vld [vmem:[%s2989 + $0x10] sm:$0xf]
    %v2995 = vld [vmem:[%s2989 + $0x14] sm:$0xf]
    %v2996 = vld [vmem:[%s2989 + $0x18] sm:$0xf]
    %v2997 = vld [vmem:[%s2989 + $0x1c] sm:$0xf]
    %v3006 = vunpack.c.l.b16 %v2990
    %v3007 = vunpack.c.l.b16 %v2991
    %v3008 = vunpack.c.l.b16 %v2992
    %v3009 = vunpack.c.l.b16 %v2993
    %v3010 = vunpack.c.l.b16 %v2994
    %v3011 = vunpack.c.l.b16 %v2995
    %v3012 = vunpack.c.l.b16 %v2996
    %v3013 = vunpack.c.l.b16 %v2997
    %v3014 = vpack.c.b16 %v3007, %v3006
    %v3015 = vpack.c.b16 %v3009, %v3008
    %v3016 = vpack.c.b16 %v3011, %v3010
    %v3017 = vpack.c.b16 %v3013, %v3012
    %3022 = vmatprep.subr.bf16.mxu0 0
    %3023 = vmatpush1.bf16.msra.mxu0 %v3014
    %3024 = vmatprep.subr.bf16.mxu0 0
    %3025 = vmatpush1.bf16.msra.mxu0 %v3015
    %3026 = vmatprep.subr.bf16.mxu0 0
    %3027 = vmatpush1.bf16.msra.mxu0 %v3016
    %3028 = vmatprep.subr.bf16.mxu0 0
    %3029 = vmatpush1.bf16.msra.mxu0 %v3017
    %3030 = vmatprep.subr.bf16.mxu0 0
    %3031 = vmatpush1.bf16.msra.mxu0 0
    %3032 = vmatprep.subr.bf16.mxu0 0
    %3033 = vmatpush1.bf16.msra.mxu0 0
    %3034 = vmatprep.subr.bf16.mxu0 0
    %3035 = vmatpush1.bf16.msra.mxu0 0
    %3036 = vmatprep.subr.bf16.mxu0 0
    %3037 = vmatpush1.bf16.msra.mxu0 0
    %3038 = vmatprep.subr.bf16.mxu0 0
    %3039 = vmatpush1.bf16.msra.mxu0 0
    %3040 = vmatprep.subr.bf16.mxu0 0
    %3041 = vmatpush1.bf16.msra.mxu0 0
    %3042 = vmatprep.subr.bf16.mxu0 0
    %3043 = vmatpush1.bf16.msra.mxu0 0
    %3044 = vmatprep.subr.bf16.mxu0 0
    %3045 = vmatpush1.bf16.msra.mxu0 0
    %3046 = vmatprep.subr.bf16.mxu0 0
    %3047 = vmatpush1.bf16.msra.mxu0 0
    %3048 = vmatprep.subr.bf16.mxu0 0
    %3049 = vmatpush1.bf16.msra.mxu0 0
    %3050 = vmatprep.subr.bf16.mxu0 0
    %3051 = vmatpush1.bf16.msra.mxu0 0
    %3052 = vmatprep.subr.bf16.mxu0 0
    %3053 = vmatpush1.bf16.msra.mxu0 0
    %3054 = vmatprep.mubr.bf16.mxu0 0
    %3055 = vmatmul.mubr.bf16.gmra.mrb[0].mxu0 %v2362
    %v3056 = vpop.f32.mrb[0].mxu0
    %v3057 = vadd.f32 0.0, %v3056
    %v3058 = vpop.f32.mrb[0].mxu0
    %v3059 = vpop.f32.mrb[0].mxu0
    %v3060 = vadd.f32 0.0, %v3059
    %v3061 = vpop.f32.mrb[0].mxu0
    %3062 = vmatprep.mubr.bf16.mxu0 0
    %3063 = vmatmul.mubr.bf16.gmra.mrb[0].mxu0 %v2365
    %v3064 = vpop.f32.mrb[0].mxu0
    %v3065 = vadd.f32 0.0, %v3064
    %v3066 = vpop.f32.mrb[0].mxu0
    %v3067 = vpop.f32.mrb[0].mxu0
    %v3068 = vadd.f32 0.0, %v3067
    %v3069 = vpop.f32.mrb[0].mxu0
    %3070 = vmatprep.mubr.bf16.mxu0 0
    %3071 = vmatmul.mubr.bf16.gmra.mrb[0].mxu0 %v2368
    %v3072 = vpop.f32.mrb[0].mxu0
    %v3073 = vadd.f32 0.0, %v3072
    %v3074 = vpop.f32.mrb[0].mxu0
    %v3075 = vpop.f32.mrb[0].mxu0
    %v3076 = vadd.f32 0.0, %v3075
    %v3077 = vpop.f32.mrb[0].mxu0
    %3078 = vmatprep.mubr.bf16.mxu0 0
    %3079 = vmatmul.mubr.bf16.gmra.mrb[0].mxu0 %v2871
    %v3080 = vpop.f32.mrb[0].mxu0
    %v3081 = vadd.f32 0.0, %v3080
    %v3082 = vpop.f32.mrb[0].mxu0
    %v3083 = vpop.f32.mrb[0].mxu0
    %v3084 = vadd.f32 0.0, %v3083
    %v3085 = vpop.f32.mrb[0].mxu0
    %3086 = vmatprep.mubr.bf16.mxu0 0
    %3087 = vmatmul.mubr.bf16.gmra.mrb[0].mxu0 %v2374
    %v3088 = vpop.f32.mrb[0].mxu0
    %v3089 = vadd.f32 0.0, %v3088
    %v3090 = vpop.f32.mrb[0].mxu0
    %v3091 = vpop.f32.mrb[0].mxu0
    %v3092 = vadd.f32 0.0, %v3091
    %v3093 = vpop.f32.mrb[0].mxu0
    %3094 = vmatprep.mubr.bf16.mxu0 0
    %3095 = vmatmul.mubr.bf16.gmra.mrb[0].mxu0 %v2377
    %v3096 = vpop.f32.mrb[0].mxu0
    %v3097 = vadd.f32 0.0, %v3096
    %v3098 = vpop.f32.mrb[0].mxu0
    %v3099 = vpop.f32.mrb[0].mxu0
    %v3100 = vadd.f32 0.0, %v3099
    %v3101 = vpop.f32.mrb[0].mxu0
    %3102 = vmatprep.mubr.bf16.mxu0 0
    %3103 = vmatmul.mubr.bf16.gmra.mrb[0].mxu0 %v2380
    %v3104 = vpop.f32.mrb[0].mxu0
    %v3105 = vadd.f32 0.0, %v3104
    %v3106 = vpop.f32.mrb[0].mxu0
    %v3107 = vpop.f32.mrb[0].mxu0
    %v3108 = vadd.f32 0.0, %v3107
    %v3109 = vpop.f32.mrb[0].mxu0
    %3110 = vmatprep.mubr.bf16.mxu0 0
    %3111 = vmatmul.mubr.bf16.gmra.mrb[0].mxu0 %v2874
    %v3112 = vpop.f32.mrb[0].mxu0
    %v3113 = vadd.f32 0.0, %v3112
    %v3114 = vpop.f32.mrb[0].mxu0
    %v3115 = vpop.f32.mrb[0].mxu0
    %v3116 = vadd.f32 0.0, %v3115
    %v3117 = vpop.f32.mrb[0].mxu0
    %3118 = vdwg.mxu0
    %v3119 = vadd.f32 %v2811, %v3057
    %v3120 = vadd.f32 %v2812, %v3060
    %v3121 = vadd.f32 %v2813, %v3065
    %v3122 = vadd.f32 %v2814, %v3068
    %v3123 = vadd.f32 %v2815, %v3073
    %v3124 = vadd.f32 %v2816, %v3076
    %v3125 = vadd.f32 %v2817, %v3081
    %v3126 = vadd.f32 %v2818, %v3084
    %v3127 = vadd.f32 %v2819, %v3089
    %v3128 = vadd.f32 %v2820, %v3092
    %v3129 = vadd.f32 %v2821, %v3097
    %v3130 = vadd.f32 %v2822, %v3100
    %v3131 = vadd.f32 %v2823, %v3105
    %v3132 = vadd.f32 %v2824, %v3108
    %v3133 = vadd.f32 %v2825, %v3113
    %v3134 = vadd.f32 %v2826, %v3116
    %v3135 = vld [vmem:[%s1] sm:$0xf]
    %v3136 = vld [vmem:[%s1 + $0x4] sm:$0xf]
    %v3137 = vld [vmem:[%s1 + $0x8] sm:$0xf]
    %v3138 = vld [vmem:[%s1 + $0xc] sm:$0xf]
    %v3139 = vld [vmem:[%s1 + $0x10] sm:$0xf]
    %v3140 = vld [vmem:[%s1 + $0x14] sm:$0xf]
    %v3141 = vld [vmem:[%s1 + $0x18] sm:$0xf]
    %v3142 = vld [vmem:[%s1 + $0x1c] sm:$0xf]
    %v3143 = vrot.slane %v70, 2
    %v3144 = vrot.slane %v71, 2
    %v3145 = vsel %vm2252, %v3143, %v3144
    %v3146 = vrot.slane %v94, 2
    %v3147 = vrot.slane %v95, 2
    %v3148 = vsel %vm2252, %v3146, %v3147
    %v3151 = vpack.c.bf16 %v3145, %v2829
    %v3152 = vpack.c.bf16 %v3148, %v2832
    %s3153 = scalar_lea.vmem [#allocation2], 544
    %v3154 = vld [vmem:[%s3153] sm:$0xf]
    %v3155 = vld [vmem:[%s3153 + $0x4] sm:$0xf]
    %v3156 = vld [vmem:[%s3153 + $0x8] sm:$0xf]
    %v3157 = vld [vmem:[%s3153 + $0xc] sm:$0xf]
    %v3158 = vld [vmem:[%s3153 + $0x10] sm:$0xf]
    %v3159 = vld [vmem:[%s3153 + $0x14] sm:$0xf]
    %v3160 = vld [vmem:[%s3153 + $0x18] sm:$0xf]
    %v3161 = vld [vmem:[%s3153 + $0x1c] sm:$0xf]
    %v3170 = vunpack.c.l.b16 %v3154
    %v3171 = vunpack.c.l.b16 %v3155
    %v3172 = vunpack.c.l.b16 %v3156
    %v3173 = vunpack.c.l.b16 %v3157
    %v3174 = vunpack.c.l.b16 %v3158
    %v3175 = vunpack.c.l.b16 %v3159
    %v3176 = vunpack.c.l.b16 %v3160
    %v3177 = vunpack.c.l.b16 %v3161
    %v3178 = vpack.c.b16 %v3171, %v3170
    %v3179 = vpack.c.b16 %v3173, %v3172
    %v3180 = vpack.c.b16 %v3175, %v3174
    %v3181 = vpack.c.b16 %v3177, %v3176
    %v3187 = vsel %vm155, %v3151, 0
    %v3190 = vsel %vm155, %v3152, 0
    %3192 = vmatprep.subr.bf16.mxu0 0
    %3193 = vmatpush1.bf16.msra.mxu0 %v3178
    %3194 = vmatprep.subr.bf16.mxu0 0
    %3195 = vmatpush1.bf16.msra.mxu0 %v3179
    %3196 = vmatprep.subr.bf16.mxu0 0
    %3197 = vmatpush1.bf16.msra.mxu0 %v3180
    %3198 = vmatprep.subr.bf16.mxu0 0
    %3199 = vmatpush1.bf16.msra.mxu0 %v3181
    %3200 = vmatprep.subr.bf16.mxu0 0
    %3201 = vmatpush1.bf16.msra.mxu0 0
    %3202 = vmatprep.subr.bf16.mxu0 0
    %3203 = vmatpush1.bf16.msra.mxu0 0
    %3204 = vmatprep.subr.bf16.mxu0 0
    %3205 = vmatpush1.bf16.msra.mxu0 0
    %3206 = vmatprep.subr.bf16.mxu0 0
    %3207 = vmatpush1.bf16.msra.mxu0 0
    %3208 = vmatprep.subr.bf16.mxu0 0
    %3209 = vmatpush1.bf16.msra.mxu0 0
    %3210 = vmatprep.subr.bf16.mxu0 0
    %3211 = vmatpush1.bf16.msra.mxu0 0
    %3212 = vmatprep.subr.bf16.mxu0 0
    %3213 = vmatpush1.bf16.msra.mxu0 0
    %3214 = vmatprep.subr.bf16.mxu0 0
    %3215 = vmatpush1.bf16.msra.mxu0 0
    %3216 = vmatprep.subr.bf16.mxu0 0
    %3217 = vmatpush1.bf16.msra.mxu0 0
    %3218 = vmatprep.subr.bf16.mxu0 0
    %3219 = vmatpush1.bf16.msra.mxu0 0
    %3220 = vmatprep.subr.bf16.mxu0 0
    %3221 = vmatpush1.bf16.msra.mxu0 0
    %3222 = vmatprep.subr.bf16.mxu0 0
    %3223 = vmatpush1.bf16.msra.mxu0 0
    %3224 = vmatprep.mubr.bf16.mxu0 0
    %3225 = vmatmul.mubr.bf16.gmra.mrb[0].mxu0 %v2548
    %v3226 = vpop.f32.mrb[0].mxu0
    %v3227 = vadd.f32 0.0, %v3226
    %v3228 = vpop.f32.mrb[0].mxu0
    %v3229 = vpop.f32.mrb[0].mxu0
    %v3230 = vadd.f32 0.0, %v3229
    %v3231 = vpop.f32.mrb[0].mxu0
    %3232 = vmatprep.mubr.bf16.mxu0 0
    %3233 = vmatmul.mubr.bf16.gmra.mrb[0].mxu0 %v2551
    %v3234 = vpop.f32.mrb[0].mxu0
    %v3235 = vadd.f32 0.0, %v3234
    %v3236 = vpop.f32.mrb[0].mxu0
    %v3237 = vpop.f32.mrb[0].mxu0
    %v3238 = vadd.f32 0.0, %v3237
    %v3239 = vpop.f32.mrb[0].mxu0
    %3240 = vmatprep.mubr.bf16.mxu0 0
    %3241 = vmatmul.mubr.bf16.gmra.mrb[0].mxu0 %v2554
    %v3242 = vpop.f32.mrb[0].mxu0
    %v3243 = vadd.f32 0.0, %v3242
    %v3244 = vpop.f32.mrb[0].mxu0
    %v3245 = vpop.f32.mrb[0].mxu0
    %v3246 = vadd.f32 0.0, %v3245
    %v3247 = vpop.f32.mrb[0].mxu0
    %3248 = vmatprep.mubr.bf16.mxu0 0
    %3249 = vmatmul.mubr.bf16.gmra.mrb[0].mxu0 %v3187
    %v3250 = vpop.f32.mrb[0].mxu0
    %v3251 = vadd.f32 0.0, %v3250
    %v3252 = vpop.f32.mrb[0].mxu0
    %v3253 = vpop.f32.mrb[0].mxu0
    %v3254 = vadd.f32 0.0, %v3253
    %v3255 = vpop.f32.mrb[0].mxu0
    %3256 = vmatprep.mubr.bf16.mxu0 0
    %3257 = vmatmul.mubr.bf16.gmra.mrb[0].mxu0 %v2560
    %v3258 = vpop.f32.mrb[0].mxu0
    %v3259 = vadd.f32 0.0, %v3258
    %v3260 = vpop.f32.mrb[0].mxu0
    %v3261 = vpop.f32.mrb[0].mxu0
    %v3262 = vadd.f32 0.0, %v3261
    %v3263 = vpop.f32.mrb[0].mxu0
    %3264 = vmatprep.mubr.bf16.mxu0 0
    %3265 = vmatmul.mubr.bf16.gmra.mrb[0].mxu0 %v2563
    %v3266 = vpop.f32.mrb[0].mxu0
    %v3267 = vadd.f32 0.0, %v3266
    %v3268 = vpop.f32.mrb[0].mxu0
    %v3269 = vpop.f32.mrb[0].mxu0
    %v3270 = vadd.f32 0.0, %v3269
    %v3271 = vpop.f32.mrb[0].mxu0
    %3272 = vmatprep.mubr.bf16.mxu0 0
    %3273 = vmatmul.mubr.bf16.gmra.mrb[0].mxu0 %v2566
    %v3274 = vpop.f32.mrb[0].mxu0
    %v3275 = vadd.f32 0.0, %v3274
    %v3276 = vpop.f32.mrb[0].mxu0
    %v3277 = vpop.f32.mrb[0].mxu0
    %v3278 = vadd.f32 0.0, %v3277
    %v3279 = vpop.f32.mrb[0].mxu0
    %3280 = vmatprep.mubr.bf16.mxu0 0
    %3281 = vmatmul.mubr.bf16.gmra.mrb[0].mxu0 %v3190
    %v3282 = vpop.f32.mrb[0].mxu0
    %v3283 = vadd.f32 0.0, %v3282
    %v3284 = vpop.f32.mrb[0].mxu0
    %v3285 = vpop.f32.mrb[0].mxu0
    %v3286 = vadd.f32 0.0, %v3285
    %v3287 = vpop.f32.mrb[0].mxu0
    %3288 = vdwg.mxu0
    %v3289 = vadd.f32 %v2973, %v3227
    %v3290 = vadd.f32 %v2974, %v3230
    %v3291 = vadd.f32 %v2975, %v3235
    %v3292 = vadd.f32 %v2976, %v3238
    %v3293 = vadd.f32 %v2977, %v3243
    %v3294 = vadd.f32 %v2978, %v3246
    %v3295 = vadd.f32 %v2979, %v3251
    %v3296 = vadd.f32 %v2980, %v3254
    %v3297 = vadd.f32 %v2981, %v3259
    %v3298 = vadd.f32 %v2982, %v3262
    %v3299 = vadd.f32 %v2983, %v3267
    %v3300 = vadd.f32 %v2984, %v3270
    %v3301 = vadd.f32 %v2985, %v3275
    %v3302 = vadd.f32 %v2986, %v3278
    %v3303 = vadd.f32 %v2987, %v3283
    %v3304 = vadd.f32 %v2988, %v3286
    %s3305 = scalar_lea.vmem %s2, 224
    %v3306 = vld [vmem:[%s3305] sm:$0xf]
    %v3307 = vld [vmem:[%s3305 + $0x4] sm:$0xf]
    %v3308 = vld [vmem:[%s3305 + $0x8] sm:$0xf]
    %v3309 = vld [vmem:[%s3305 + $0xc] sm:$0xf]
    %v3310 = vld [vmem:[%s3305 + $0x10] sm:$0xf]
    %v3311 = vld [vmem:[%s3305 + $0x14] sm:$0xf]
    %v3312 = vld [vmem:[%s3305 + $0x18] sm:$0xf]
    %v3313 = vld [vmem:[%s3305 + $0x1c] sm:$0xf]
    %v3322 = vunpack.c.l.b16 %v3306
    %v3323 = vunpack.c.l.b16 %v3307
    %v3324 = vunpack.c.l.b16 %v3308
    %v3325 = vunpack.c.l.b16 %v3309
    %v3326 = vunpack.c.l.b16 %v3310
    %v3327 = vunpack.c.l.b16 %v3311
    %v3328 = vunpack.c.l.b16 %v3312
    %v3329 = vunpack.c.l.b16 %v3313
    %v3330 = vpack.c.b16 %v3323, %v3322
    %v3331 = vpack.c.b16 %v3325, %v3324
    %v3332 = vpack.c.b16 %v3327, %v3326
    %v3333 = vpack.c.b16 %v3329, %v3328
    %3338 = vmatprep.subr.bf16.mxu0 0
    %3339 = vmatpush1.bf16.msra.mxu0 %v3330
    %3340 = vmatprep.subr.bf16.mxu0 0
    %3341 = vmatpush1.bf16.msra.mxu0 %v3331
    %3342 = vmatprep.subr.bf16.mxu0 0
    %3343 = vmatpush1.bf16.msra.mxu0 %v3332
    %3344 = vmatprep.subr.bf16.mxu0 0
    %3345 = vmatpush1.bf16.msra.mxu0 %v3333
    %3346 = vmatprep.subr.bf16.mxu0 0
    %3347 = vmatpush1.bf16.msra.mxu0 0
    %3348 = vmatprep.subr.bf16.mxu0 0
    %3349 = vmatpush1.bf16.msra.mxu0 0
    %3350 = vmatprep.subr.bf16.mxu0 0
    %3351 = vmatpush1.bf16.msra.mxu0 0
    %3352 = vmatprep.subr.bf16.mxu0 0
    %3353 = vmatpush1.bf16.msra.mxu0 0
    %3354 = vmatprep.subr.bf16.mxu0 0
    %3355 = vmatpush1.bf16.msra.mxu0 0
    %3356 = vmatprep.subr.bf16.mxu0 0
    %3357 = vmatpush1.bf16.msra.mxu0 0
    %3358 = vmatprep.subr.bf16.mxu0 0
    %3359 = vmatpush1.bf16.msra.mxu0 0
    %3360 = vmatprep.subr.bf16.mxu0 0
    %3361 = vmatpush1.bf16.msra.mxu0 0
    %3362 = vmatprep.subr.bf16.mxu0 0
    %3363 = vmatpush1.bf16.msra.mxu0 0
    %3364 = vmatprep.subr.bf16.mxu0 0
    %3365 = vmatpush1.bf16.msra.mxu0 0
    %3366 = vmatprep.subr.bf16.mxu0 0
    %3367 = vmatpush1.bf16.msra.mxu0 0
    %3368 = vmatprep.subr.bf16.mxu0 0
    %3369 = vmatpush1.bf16.msra.mxu0 0
    %3370 = vmatprep.mubr.bf16.mxu0 0
    %3371 = vmatmul.mubr.bf16.gmra.mrb[0].mxu0 %v2548
    %v3372 = vpop.f32.mrb[0].mxu0
    %v3373 = vadd.f32 0.0, %v3372
    %v3374 = vpop.f32.mrb[0].mxu0
    %v3375 = vpop.f32.mrb[0].mxu0
    %v3376 = vadd.f32 0.0, %v3375
    %v3377 = vpop.f32.mrb[0].mxu0
    %3378 = vmatprep.mubr.bf16.mxu0 0
    %3379 = vmatmul.mubr.bf16.gmra.mrb[0].mxu0 %v2551
    %v3380 = vpop.f32.mrb[0].mxu0
    %v3381 = vadd.f32 0.0, %v3380
    %v3382 = vpop.f32.mrb[0].mxu0
    %v3383 = vpop.f32.mrb[0].mxu0
    %v3384 = vadd.f32 0.0, %v3383
    %v3385 = vpop.f32.mrb[0].mxu0
    %3386 = vmatprep.mubr.bf16.mxu0 0
    %3387 = vmatmul.mubr.bf16.gmra.mrb[0].mxu0 %v2554
    %v3388 = vpop.f32.mrb[0].mxu0
    %v3389 = vadd.f32 0.0, %v3388
    %v3390 = vpop.f32.mrb[0].mxu0
    %v3391 = vpop.f32.mrb[0].mxu0
    %v3392 = vadd.f32 0.0, %v3391
    %v3393 = vpop.f32.mrb[0].mxu0
    %3394 = vmatprep.mubr.bf16.mxu0 0
    %3395 = vmatmul.mubr.bf16.gmra.mrb[0].mxu0 %v3187
    %v3396 = vpop.f32.mrb[0].mxu0
    %v3397 = vadd.f32 0.0, %v3396
    %v3398 = vpop.f32.mrb[0].mxu0
    %v3399 = vpop.f32.mrb[0].mxu0
    %v3400 = vadd.f32 0.0, %v3399
    %v3401 = vpop.f32.mrb[0].mxu0
    %3402 = vmatprep.mubr.bf16.mxu0 0
    %3403 = vmatmul.mubr.bf16.gmra.mrb[0].mxu0 %v2560
    %v3404 = vpop.f32.mrb[0].mxu0
    %v3405 = vadd.f32 0.0, %v3404
    %v3406 = vpop.f32.mrb[0].mxu0
    %v3407 = vpop.f32.mrb[0].mxu0
    %v3408 = vadd.f32 0.0, %v3407
    %v3409 = vpop.f32.mrb[0].mxu0
    %3410 = vmatprep.mubr.bf16.mxu0 0
    %3411 = vmatmul.mubr.bf16.gmra.mrb[0].mxu0 %v2563
    %v3412 = vpop.f32.mrb[0].mxu0
    %v3413 = vadd.f32 0.0, %v3412
    %v3414 = vpop.f32.mrb[0].mxu0
    %v3415 = vpop.f32.mrb[0].mxu0
    %v3416 = vadd.f32 0.0, %v3415
    %v3417 = vpop.f32.mrb[0].mxu0
    %3418 = vmatprep.mubr.bf16.mxu0 0
    %3419 = vmatmul.mubr.bf16.gmra.mrb[0].mxu0 %v2566
    %v3420 = vpop.f32.mrb[0].mxu0
    %v3421 = vadd.f32 0.0, %v3420
    %v3422 = vpop.f32.mrb[0].mxu0
    %v3423 = vpop.f32.mrb[0].mxu0
    %v3424 = vadd.f32 0.0, %v3423
    %v3425 = vpop.f32.mrb[0].mxu0
    %3426 = vmatprep.mubr.bf16.mxu0 0
    %3427 = vmatmul.mubr.bf16.gmra.mrb[0].mxu0 %v3190
    %v3428 = vpop.f32.mrb[0].mxu0
    %v3429 = vadd.f32 0.0, %v3428
    %v3430 = vpop.f32.mrb[0].mxu0
    %v3431 = vpop.f32.mrb[0].mxu0
    %v3432 = vadd.f32 0.0, %v3431
    %v3433 = vpop.f32.mrb[0].mxu0
    %3434 = vdwg.mxu0
    %v3435 = vadd.f32 %v3119, %v3373
    %v3436 = vadd.f32 %v3120, %v3376
    %v3437 = vadd.f32 %v3121, %v3381
    %v3438 = vadd.f32 %v3122, %v3384
    %v3439 = vadd.f32 %v3123, %v3389
    %v3440 = vadd.f32 %v3124, %v3392
    %v3441 = vadd.f32 %v3125, %v3397
    %v3442 = vadd.f32 %v3126, %v3400
    %v3443 = vadd.f32 %v3127, %v3405
    %v3444 = vadd.f32 %v3128, %v3408
    %v3445 = vadd.f32 %v3129, %v3413
    %v3446 = vadd.f32 %v3130, %v3416
    %v3447 = vadd.f32 %v3131, %v3421
    %v3448 = vadd.f32 %v3132, %v3424
    %v3449 = vadd.f32 %v3133, %v3429
    %v3450 = vadd.f32 %v3134, %v3432
    %v3451 = vrot.slane %v72, 2
    %v3452 = vrot.slane %v73, 2
    %v3453 = vsel %vm2252, %v3451, %v3452
    %v3454 = vrot.slane %v96, 2
    %v3455 = vrot.slane %v97, 2
    %v3456 = vsel %vm2252, %v3454, %v3455
    %v3459 = vpack.c.bf16 %v3453, %v3145
    %v3460 = vpack.c.bf16 %v3456, %v3148
    %s3461 = scalar_lea.vmem [#allocation2], 704
    %v3462 = vld [vmem:[%s3461] sm:$0xf]
    %v3463 = vld [vmem:[%s3461 + $0x4] sm:$0xf]
    %v3464 = vld [vmem:[%s3461 + $0x8] sm:$0xf]
    %v3465 = vld [vmem:[%s3461 + $0xc] sm:$0xf]
    %v3466 = vld [vmem:[%s3461 + $0x10] sm:$0xf]
    %v3467 = vld [vmem:[%s3461 + $0x14] sm:$0xf]
    %v3468 = vld [vmem:[%s3461 + $0x18] sm:$0xf]
    %v3469 = vld [vmem:[%s3461 + $0x1c] sm:$0xf]
    %v3478 = vunpack.c.l.b16 %v3462
    %v3479 = vunpack.c.l.b16 %v3463
    %v3480 = vunpack.c.l.b16 %v3464
    %v3481 = vunpack.c.l.b16 %v3465
    %v3482 = vunpack.c.l.b16 %v3466
    %v3483 = vunpack.c.l.b16 %v3467
    %v3484 = vunpack.c.l.b16 %v3468
    %v3485 = vunpack.c.l.b16 %v3469
    %v3486 = vpack.c.b16 %v3479, %v3478
    %v3487 = vpack.c.b16 %v3481, %v3480
    %v3488 = vpack.c.b16 %v3483, %v3482
    %v3489 = vpack.c.b16 %v3485, %v3484
    %v3495 = vsel %vm155, %v3459, 0
    %v3498 = vsel %vm155, %v3460, 0
    %3500 = vmatprep.subr.bf16.mxu0 0
    %3501 = vmatpush1.bf16.msra.mxu0 %v3486
    %3502 = vmatprep.subr.bf16.mxu0 0
    %3503 = vmatpush1.bf16.msra.mxu0 %v3487
    %3504 = vmatprep.subr.bf16.mxu0 0
    %3505 = vmatpush1.bf16.msra.mxu0 %v3488
    %3506 = vmatprep.subr.bf16.mxu0 0
    %3507 = vmatpush1.bf16.msra.mxu0 %v3489
    %3508 = vmatprep.subr.bf16.mxu0 0
    %3509 = vmatpush1.bf16.msra.mxu0 0
    %3510 = vmatprep.subr.bf16.mxu0 0
    %3511 = vmatpush1.bf16.msra.mxu0 0
    %3512 = vmatprep.subr.bf16.mxu0 0
    %3513 = vmatpush1.bf16.msra.mxu0 0
    %3514 = vmatprep.subr.bf16.mxu0 0
    %3515 = vmatpush1.bf16.msra.mxu0 0
    %3516 = vmatprep.subr.bf16.mxu0 0
    %3517 = vmatpush1.bf16.msra.mxu0 0
    %3518 = vmatprep.subr.bf16.mxu0 0
    %3519 = vmatpush1.bf16.msra.mxu0 0
    %3520 = vmatprep.subr.bf16.mxu0 0
    %3521 = vmatpush1.bf16.msra.mxu0 0
    %3522 = vmatprep.subr.bf16.mxu0 0
    %3523 = vmatpush1.bf16.msra.mxu0 0
    %3524 = vmatprep.subr.bf16.mxu0 0
    %3525 = vmatpush1.bf16.msra.mxu0 0
    %3526 = vmatprep.subr.bf16.mxu0 0
    %3527 = vmatpush1.bf16.msra.mxu0 0
    %3528 = vmatprep.subr.bf16.mxu0 0
    %3529 = vmatpush1.bf16.msra.mxu0 0
    %3530 = vmatprep.subr.bf16.mxu0 0
    %3531 = vmatpush1.bf16.msra.mxu0 0
    %3532 = vmatprep.mubr.bf16.mxu0 0
    %3533 = vmatmul.mubr.bf16.gmra.mrb[0].mxu0 %v2365
    %v3534 = vpop.f32.mrb[0].mxu0
    %v3535 = vadd.f32 0.0, %v3534
    %v3536 = vpop.f32.mrb[0].mxu0
    %v3537 = vpop.f32.mrb[0].mxu0
    %v3538 = vadd.f32 0.0, %v3537
    %v3539 = vpop.f32.mrb[0].mxu0
    %3540 = vmatprep.mubr.bf16.mxu0 0
    %3541 = vmatmul.mubr.bf16.gmra.mrb[0].mxu0 %v2368
    %v3542 = vpop.f32.mrb[0].mxu0
    %v3543 = vadd.f32 0.0, %v3542
    %v3544 = vpop.f32.mrb[0].mxu0
    %v3545 = vpop.f32.mrb[0].mxu0
    %v3546 = vadd.f32 0.0, %v3545
    %v3547 = vpop.f32.mrb[0].mxu0
    %3548 = vmatprep.mubr.bf16.mxu0 0
    %3549 = vmatmul.mubr.bf16.gmra.mrb[0].mxu0 %v2871
    %v3550 = vpop.f32.mrb[0].mxu0
    %v3551 = vadd.f32 0.0, %v3550
    %v3552 = vpop.f32.mrb[0].mxu0
    %v3553 = vpop.f32.mrb[0].mxu0
    %v3554 = vadd.f32 0.0, %v3553
    %v3555 = vpop.f32.mrb[0].mxu0
    %3556 = vmatprep.mubr.bf16.mxu0 0
    %3557 = vmatmul.mubr.bf16.gmra.mrb[0].mxu0 %v3495
    %v3558 = vpop.f32.mrb[0].mxu0
    %v3559 = vadd.f32 0.0, %v3558
    %v3560 = vpop.f32.mrb[0].mxu0
    %v3561 = vpop.f32.mrb[0].mxu0
    %v3562 = vadd.f32 0.0, %v3561
    %v3563 = vpop.f32.mrb[0].mxu0
    %3564 = vmatprep.mubr.bf16.mxu0 0
    %3565 = vmatmul.mubr.bf16.gmra.mrb[0].mxu0 %v2377
    %v3566 = vpop.f32.mrb[0].mxu0
    %v3567 = vadd.f32 0.0, %v3566
    %v3568 = vpop.f32.mrb[0].mxu0
    %v3569 = vpop.f32.mrb[0].mxu0
    %v3570 = vadd.f32 0.0, %v3569
    %v3571 = vpop.f32.mrb[0].mxu0
    %3572 = vmatprep.mubr.bf16.mxu0 0
    %3573 = vmatmul.mubr.bf16.gmra.mrb[0].mxu0 %v2380
    %v3574 = vpop.f32.mrb[0].mxu0
    %v3575 = vadd.f32 0.0, %v3574
    %v3576 = vpop.f32.mrb[0].mxu0
    %v3577 = vpop.f32.mrb[0].mxu0
    %v3578 = vadd.f32 0.0, %v3577
    %v3579 = vpop.f32.mrb[0].mxu0
    %3580 = vmatprep.mubr.bf16.mxu0 0
    %3581 = vmatmul.mubr.bf16.gmra.mrb[0].mxu0 %v2874
    %v3582 = vpop.f32.mrb[0].mxu0
    %v3583 = vadd.f32 0.0, %v3582
    %v3584 = vpop.f32.mrb[0].mxu0
    %v3585 = vpop.f32.mrb[0].mxu0
    %v3586 = vadd.f32 0.0, %v3585
    %v3587 = vpop.f32.mrb[0].mxu0
    %3588 = vmatprep.mubr.bf16.mxu0 0
    %3589 = vmatmul.mubr.bf16.gmra.mrb[0].mxu0 %v3498
    %v3590 = vpop.f32.mrb[0].mxu0
    %v3591 = vadd.f32 0.0, %v3590
    %v3592 = vpop.f32.mrb[0].mxu0
    %v3593 = vpop.f32.mrb[0].mxu0
    %v3594 = vadd.f32 0.0, %v3593
    %v3595 = vpop.f32.mrb[0].mxu0
    %3596 = vdwg.mxu0
    %v3597 = vadd.f32 %v3289, %v3535
    %v3598 = vadd.f32 %v3290, %v3538
    %v3599 = vadd.f32 %v3291, %v3543
    %v3600 = vadd.f32 %v3292, %v3546
    %v3601 = vadd.f32 %v3293, %v3551
    %v3602 = vadd.f32 %v3294, %v3554
    %v3603 = vadd.f32 %v3295, %v3559
    %v3604 = vadd.f32 %v3296, %v3562
    %v3605 = vadd.f32 %v3297, %v3567
    %v3606 = vadd.f32 %v3298, %v3570
    %v3607 = vadd.f32 %v3299, %v3575
    %v3608 = vadd.f32 %v3300, %v3578
    %v3609 = vadd.f32 %v3301, %v3583
    %v3610 = vadd.f32 %v3302, %v3586
    %v3611 = vadd.f32 %v3303, %v3591
    %v3612 = vadd.f32 %v3304, %v3594
    %vm3613 = vcmask 1044480
    %v3614 = vrot.slane %v50, 3
    %v3615 = vrot.slane %v51, 3
    %v3616 = vsel %vm3613, %v3614, %v3615
    %v3617 = vrot.slane %v52, 3
    %v3618 = vrot.slane %v53, 3
    %v3619 = vsel %vm3613, %v3617, %v3618
    %v3620 = vrot.slane %v54, 3
    %v3621 = vrot.slane %v55, 3
    %v3622 = vsel %vm3613, %v3620, %v3621
    %v3623 = vrot.slane %v56, 3
    %v3624 = vrot.slane %v57, 3
    %v3625 = vsel %vm3613, %v3623, %v3624
    %v3626 = vrot.slane %v58, 3
    %v3627 = vrot.slane %v59, 3
    %v3628 = vsel %vm3613, %v3626, %v3627
    %v3629 = vrot.slane %v60, 3
    %v3630 = vrot.slane %v61, 3
    %v3631 = vsel %vm3613, %v3629, %v3630
    %v3632 = vrot.slane %v62, 3
    %v3633 = vrot.slane %v63, 3
    %v3634 = vsel %vm3613, %v3632, %v3633
    %v3635 = vrot.slane %v64, 3
    %v3636 = vrot.slane %v65, 3
    %v3637 = vsel %vm3613, %v3635, %v3636
    %v3638 = vrot.slane %v74, 3
    %v3639 = vrot.slane %v75, 3
    %v3640 = vsel %vm3613, %v3638, %v3639
    %v3641 = vrot.slane %v76, 3
    %v3642 = vrot.slane %v77, 3
    %v3643 = vsel %vm3613, %v3641, %v3642
    %v3644 = vrot.slane %v78, 3
    %v3645 = vrot.slane %v79, 3
    %v3646 = vsel %vm3613, %v3644, %v3645
    %v3647 = vrot.slane %v80, 3
    %v3648 = vrot.slane %v81, 3
    %v3649 = vsel %vm3613, %v3647, %v3648
    %v3650 = vrot.slane %v82, 3
    %v3651 = vrot.slane %v83, 3
    %v3652 = vsel %vm3613, %v3650, %v3651
    %v3653 = vrot.slane %v84, 3
    %v3654 = vrot.slane %v85, 3
    %v3655 = vsel %vm3613, %v3653, %v3654
    %v3656 = vrot.slane %v86, 3
    %v3657 = vrot.slane %v87, 3
    %v3658 = vsel %vm3613, %v3656, %v3657
    %v3659 = vrot.slane %v88, 3
    %v3660 = vrot.slane %v89, 3
    %v3661 = vsel %vm3613, %v3659, %v3660
    %v3678 = vpack.c.bf16 %v3619, %v3616
    %v3679 = vpack.c.bf16 %v3625, %v3622
    %v3680 = vpack.c.bf16 %v3631, %v3628
    %v3681 = vpack.c.bf16 %v3637, %v3634
    %v3682 = vpack.c.bf16 %v3643, %v3640
    %v3683 = vpack.c.bf16 %v3649, %v3646
    %v3684 = vpack.c.bf16 %v3655, %v3652
    %v3685 = vpack.c.bf16 %v3661, %v3658
    %s3686 = scalar_lea.vmem [#allocation2], 96
    %v3687 = vld [vmem:[%s3686] sm:$0xf]
    %v3688 = vld [vmem:[%s3686 + $0x4] sm:$0xf]
    %v3689 = vld [vmem:[%s3686 + $0x8] sm:$0xf]
    %v3690 = vld [vmem:[%s3686 + $0xc] sm:$0xf]
    %v3691 = vld [vmem:[%s3686 + $0x10] sm:$0xf]
    %v3692 = vld [vmem:[%s3686 + $0x14] sm:$0xf]
    %v3693 = vld [vmem:[%s3686 + $0x18] sm:$0xf]
    %v3694 = vld [vmem:[%s3686 + $0x1c] sm:$0xf]
    %v3703 = vunpack.c.l.b16 %v3687
    %v3704 = vunpack.c.l.b16 %v3688
    %v3705 = vunpack.c.l.b16 %v3689
    %v3706 = vunpack.c.l.b16 %v3690
    %v3707 = vunpack.c.l.b16 %v3691
    %v3708 = vunpack.c.l.b16 %v3692
    %v3709 = vunpack.c.l.b16 %v3693
    %v3710 = vunpack.c.l.b16 %v3694
    %v3711 = vpack.c.b16 %v3704, %v3703
    %v3712 = vpack.c.b16 %v3706, %v3705
    %v3713 = vpack.c.b16 %v3708, %v3707
    %v3714 = vpack.c.b16 %v3710, %v3709
    %v3720 = vsel %vm155, %v3678, 0
    %v3723 = vsel %vm155, %v3679, 0
    %v3726 = vsel %vm155, %v3680, 0
    %v3729 = vsel %vm155, %v3681, 0
    %v3732 = vsel %vm155, %v3682, 0
    %v3735 = vsel %vm155, %v3683, 0
    %v3738 = vsel %vm155, %v3684, 0
    %v3741 = vsel %vm155, %v3685, 0
    %3743 = vmatprep.subr.bf16.mxu0 0
    %3744 = vmatpush1.bf16.msra.mxu0 %v3711
    %3745 = vmatprep.subr.bf16.mxu0 0
    %3746 = vmatpush1.bf16.msra.mxu0 %v3712
    %3747 = vmatprep.subr.bf16.mxu0 0
    %3748 = vmatpush1.bf16.msra.mxu0 %v3713
    %3749 = vmatprep.subr.bf16.mxu0 0
    %3750 = vmatpush1.bf16.msra.mxu0 %v3714
    %3751 = vmatprep.subr.bf16.mxu0 0
    %3752 = vmatpush1.bf16.msra.mxu0 0
    %3753 = vmatprep.subr.bf16.mxu0 0
    %3754 = vmatpush1.bf16.msra.mxu0 0
    %3755 = vmatprep.subr.bf16.mxu0 0
    %3756 = vmatpush1.bf16.msra.mxu0 0
    %3757 = vmatprep.subr.bf16.mxu0 0
    %3758 = vmatpush1.bf16.msra.mxu0 0
    %3759 = vmatprep.subr.bf16.mxu0 0
    %3760 = vmatpush1.bf16.msra.mxu0 0
    %3761 = vmatprep.subr.bf16.mxu0 0
    %3762 = vmatpush1.bf16.msra.mxu0 0
    %3763 = vmatprep.subr.bf16.mxu0 0
    %3764 = vmatpush1.bf16.msra.mxu0 0
    %3765 = vmatprep.subr.bf16.mxu0 0
    %3766 = vmatpush1.bf16.msra.mxu0 0
    %3767 = vmatprep.subr.bf16.mxu0 0
    %3768 = vmatpush1.bf16.msra.mxu0 0
    %3769 = vmatprep.subr.bf16.mxu0 0
    %3770 = vmatpush1.bf16.msra.mxu0 0
    %3771 = vmatprep.subr.bf16.mxu0 0
    %3772 = vmatpush1.bf16.msra.mxu0 0
    %3773 = vmatprep.subr.bf16.mxu0 0
    %3774 = vmatpush1.bf16.msra.mxu0 0
    %3775 = vmatprep.mubr.bf16.mxu0 0
    %3776 = vmatmul.mubr.bf16.gmra.mrb[0].mxu0 %v3720
    %v3777 = vpop.f32.mrb[0].mxu0
    %v3778 = vadd.f32 0.0, %v3777
    %v3779 = vpop.f32.mrb[0].mxu0
    %v3780 = vpop.f32.mrb[0].mxu0
    %v3781 = vadd.f32 0.0, %v3780
    %v3782 = vpop.f32.mrb[0].mxu0
    %3783 = vmatprep.mubr.bf16.mxu0 0
    %3784 = vmatmul.mubr.bf16.gmra.mrb[0].mxu0 %v3723
    %v3785 = vpop.f32.mrb[0].mxu0
    %v3786 = vadd.f32 0.0, %v3785
    %v3787 = vpop.f32.mrb[0].mxu0
    %v3788 = vpop.f32.mrb[0].mxu0
    %v3789 = vadd.f32 0.0, %v3788
    %v3790 = vpop.f32.mrb[0].mxu0
    %3791 = vmatprep.mubr.bf16.mxu0 0
    %3792 = vmatmul.mubr.bf16.gmra.mrb[0].mxu0 %v3726
    %v3793 = vpop.f32.mrb[0].mxu0
    %v3794 = vadd.f32 0.0, %v3793
    %v3795 = vpop.f32.mrb[0].mxu0
    %v3796 = vpop.f32.mrb[0].mxu0
    %v3797 = vadd.f32 0.0, %v3796
    %v3798 = vpop.f32.mrb[0].mxu0
    %3799 = vmatprep.mubr.bf16.mxu0 0
    %3800 = vmatmul.mubr.bf16.gmra.mrb[0].mxu0 %v3729
    %v3801 = vpop.f32.mrb[0].mxu0
    %v3802 = vadd.f32 0.0, %v3801
    %v3803 = vpop.f32.mrb[0].mxu0
    %v3804 = vpop.f32.mrb[0].mxu0
    %v3805 = vadd.f32 0.0, %v3804
    %v3806 = vpop.f32.mrb[0].mxu0
    %3807 = vmatprep.mubr.bf16.mxu0 0
    %3808 = vmatmul.mubr.bf16.gmra.mrb[0].mxu0 %v3732
    %v3809 = vpop.f32.mrb[0].mxu0
    %v3810 = vadd.f32 0.0, %v3809
    %v3811 = vpop.f32.mrb[0].mxu0
    %v3812 = vpop.f32.mrb[0].mxu0
    %v3813 = vadd.f32 0.0, %v3812
    %v3814 = vpop.f32.mrb[0].mxu0
    %3815 = vmatprep.mubr.bf16.mxu0 0
    %3816 = vmatmul.mubr.bf16.gmra.mrb[0].mxu0 %v3735
    %v3817 = vpop.f32.mrb[0].mxu0
    %v3818 = vadd.f32 0.0, %v3817
    %v3819 = vpop.f32.mrb[0].mxu0
    %v3820 = vpop.f32.mrb[0].mxu0
    %v3821 = vadd.f32 0.0, %v3820
    %v3822 = vpop.f32.mrb[0].mxu0
    %3823 = vmatprep.mubr.bf16.mxu0 0
    %3824 = vmatmul.mubr.bf16.gmra.mrb[0].mxu0 %v3738
    %v3825 = vpop.f32.mrb[0].mxu0
    %v3826 = vadd.f32 0.0, %v3825
    %v3827 = vpop.f32.mrb[0].mxu0
    %v3828 = vpop.f32.mrb[0].mxu0
    %v3829 = vadd.f32 0.0, %v3828
    %v3830 = vpop.f32.mrb[0].mxu0
    %3831 = vmatprep.mubr.bf16.mxu0 0
    %3832 = vmatmul.mubr.bf16.gmra.mrb[0].mxu0 %v3741
    %v3833 = vpop.f32.mrb[0].mxu0
    %v3834 = vadd.f32 0.0, %v3833
    %v3835 = vpop.f32.mrb[0].mxu0
    %v3836 = vpop.f32.mrb[0].mxu0
    %v3837 = vadd.f32 0.0, %v3836
    %v3838 = vpop.f32.mrb[0].mxu0
    %3839 = vdwg.mxu0
    %v3840 = vadd.f32 %v3597, %v3778
    %v3841 = vadd.f32 %v3598, %v3781
    %v3842 = vadd.f32 %v3599, %v3786
    %v3843 = vadd.f32 %v3600, %v3789
    %v3844 = vadd.f32 %v3601, %v3794
    %v3845 = vadd.f32 %v3602, %v3797
    %v3846 = vadd.f32 %v3603, %v3802
    %v3847 = vadd.f32 %v3604, %v3805
    %v3848 = vadd.f32 %v3605, %v3810
    %v3849 = vadd.f32 %v3606, %v3813
    %v3850 = vadd.f32 %v3607, %v3818
    %v3851 = vadd.f32 %v3608, %v3821
    %v3852 = vadd.f32 %v3609, %v3826
    %v3853 = vadd.f32 %v3610, %v3829
    %v3854 = vadd.f32 %v3611, %v3834
    %v3855 = vadd.f32 %v3612, %v3837
    %v3856 = vrot.slane %v66, 3
    %v3857 = vrot.slane %v67, 3
    %v3858 = vsel %vm3613, %v3856, %v3857
    %v3859 = vrot.slane %v90, 3
    %v3860 = vrot.slane %v91, 3
    %v3861 = vsel %vm3613, %v3859, %v3860
    %v3864 = vpack.c.bf16 %v3622, %v3619
    %v3865 = vpack.c.bf16 %v3628, %v3625
    %v3866 = vpack.c.bf16 %v3634, %v3631
    %v3867 = vpack.c.bf16 %v3858, %v3637
    %v3868 = vpack.c.bf16 %v3646, %v3643
    %v3869 = vpack.c.bf16 %v3652, %v3649
    %v3870 = vpack.c.bf16 %v3658, %v3655
    %v3871 = vpack.c.bf16 %v3861, %v3661
    %s3872 = scalar_lea.vmem [#allocation2], 256
    %v3873 = vld [vmem:[%s3872] sm:$0xf]
    %v3874 = vld [vmem:[%s3872 + $0x4] sm:$0xf]
    %v3875 = vld [vmem:[%s3872 + $0x8] sm:$0xf]
    %v3876 = vld [vmem:[%s3872 + $0xc] sm:$0xf]
    %v3877 = vld [vmem:[%s3872 + $0x10] sm:$0xf]
    %v3878 = vld [vmem:[%s3872 + $0x14] sm:$0xf]
    %v3879 = vld [vmem:[%s3872 + $0x18] sm:$0xf]
    %v3880 = vld [vmem:[%s3872 + $0x1c] sm:$0xf]
    %v3889 = vunpack.c.l.b16 %v3873
    %v3890 = vunpack.c.l.b16 %v3874
    %v3891 = vunpack.c.l.b16 %v3875
    %v3892 = vunpack.c.l.b16 %v3876
    %v3893 = vunpack.c.l.b16 %v3877
    %v3894 = vunpack.c.l.b16 %v3878
    %v3895 = vunpack.c.l.b16 %v3879
    %v3896 = vunpack.c.l.b16 %v3880
    %v3897 = vpack.c.b16 %v3890, %v3889
    %v3898 = vpack.c.b16 %v3892, %v3891
    %v3899 = vpack.c.b16 %v3894, %v3893
    %v3900 = vpack.c.b16 %v3896, %v3895
    %v3906 = vsel %vm155, %v3864, 0
    %v3909 = vsel %vm155, %v3865, 0
    %v3912 = vsel %vm155, %v3866, 0
    %v3915 = vsel %vm155, %v3867, 0
    %v3918 = vsel %vm155, %v3868, 0
    %v3921 = vsel %vm155, %v3869, 0
    %v3924 = vsel %vm155, %v3870, 0
    %v3927 = vsel %vm155, %v3871, 0
    %3929 = vmatprep.subr.bf16.mxu0 0
    %3930 = vmatpush1.bf16.msra.mxu0 %v3897
    %3931 = vmatprep.subr.bf16.mxu0 0
    %3932 = vmatpush1.bf16.msra.mxu0 %v3898
    %3933 = vmatprep.subr.bf16.mxu0 0
    %3934 = vmatpush1.bf16.msra.mxu0 %v3899
    %3935 = vmatprep.subr.bf16.mxu0 0
    %3936 = vmatpush1.bf16.msra.mxu0 %v3900
    %3937 = vmatprep.subr.bf16.mxu0 0
    %3938 = vmatpush1.bf16.msra.mxu0 0
    %3939 = vmatprep.subr.bf16.mxu0 0
    %3940 = vmatpush1.bf16.msra.mxu0 0
    %3941 = vmatprep.subr.bf16.mxu0 0
    %3942 = vmatpush1.bf16.msra.mxu0 0
    %3943 = vmatprep.subr.bf16.mxu0 0
    %3944 = vmatpush1.bf16.msra.mxu0 0
    %3945 = vmatprep.subr.bf16.mxu0 0
    %3946 = vmatpush1.bf16.msra.mxu0 0
    %3947 = vmatprep.subr.bf16.mxu0 0
    %3948 = vmatpush1.bf16.msra.mxu0 0
    %3949 = vmatprep.subr.bf16.mxu0 0
    %3950 = vmatpush1.bf16.msra.mxu0 0
    %3951 = vmatprep.subr.bf16.mxu0 0
    %3952 = vmatpush1.bf16.msra.mxu0 0
    %3953 = vmatprep.subr.bf16.mxu0 0
    %3954 = vmatpush1.bf16.msra.mxu0 0
    %3955 = vmatprep.subr.bf16.mxu0 0
    %3956 = vmatpush1.bf16.msra.mxu0 0
    %3957 = vmatprep.subr.bf16.mxu0 0
    %3958 = vmatpush1.bf16.msra.mxu0 0
    %3959 = vmatprep.subr.bf16.mxu0 0
    %3960 = vmatpush1.bf16.msra.mxu0 0
    %3961 = vmatprep.mubr.bf16.mxu0 0
    %3962 = vmatmul.mubr.bf16.gmra.mrb[0].mxu0 %v3906
    %v3963 = vpop.f32.mrb[0].mxu0
    %v3964 = vadd.f32 0.0, %v3963
    %v3965 = vpop.f32.mrb[0].mxu0
    %v3966 = vpop.f32.mrb[0].mxu0
    %v3967 = vadd.f32 0.0, %v3966
    %v3968 = vpop.f32.mrb[0].mxu0
    %3969 = vmatprep.mubr.bf16.mxu0 0
    %3970 = vmatmul.mubr.bf16.gmra.mrb[0].mxu0 %v3909
    %v3971 = vpop.f32.mrb[0].mxu0
    %v3972 = vadd.f32 0.0, %v3971
    %v3973 = vpop.f32.mrb[0].mxu0
    %v3974 = vpop.f32.mrb[0].mxu0
    %v3975 = vadd.f32 0.0, %v3974
    %v3976 = vpop.f32.mrb[0].mxu0
    %3977 = vmatprep.mubr.bf16.mxu0 0
    %3978 = vmatmul.mubr.bf16.gmra.mrb[0].mxu0 %v3912
    %v3979 = vpop.f32.mrb[0].mxu0
    %v3980 = vadd.f32 0.0, %v3979
    %v3981 = vpop.f32.mrb[0].mxu0
    %v3982 = vpop.f32.mrb[0].mxu0
    %v3983 = vadd.f32 0.0, %v3982
    %v3984 = vpop.f32.mrb[0].mxu0
    %3985 = vmatprep.mubr.bf16.mxu0 0
    %3986 = vmatmul.mubr.bf16.gmra.mrb[0].mxu0 %v3915
    %v3987 = vpop.f32.mrb[0].mxu0
    %v3988 = vadd.f32 0.0, %v3987
    %v3989 = vpop.f32.mrb[0].mxu0
    %v3990 = vpop.f32.mrb[0].mxu0
    %v3991 = vadd.f32 0.0, %v3990
    %v3992 = vpop.f32.mrb[0].mxu0
    %3993 = vmatprep.mubr.bf16.mxu0 0
    %3994 = vmatmul.mubr.bf16.gmra.mrb[0].mxu0 %v3918
    %v3995 = vpop.f32.mrb[0].mxu0
    %v3996 = vadd.f32 0.0, %v3995
    %v3997 = vpop.f32.mrb[0].mxu0
    %v3998 = vpop.f32.mrb[0].mxu0
    %v3999 = vadd.f32 0.0, %v3998
    %v4000 = vpop.f32.mrb[0].mxu0
    %4001 = vmatprep.mubr.bf16.mxu0 0
    %4002 = vmatmul.mubr.bf16.gmra.mrb[0].mxu0 %v3921
    %v4003 = vpop.f32.mrb[0].mxu0
    %v4004 = vadd.f32 0.0, %v4003
    %v4005 = vpop.f32.mrb[0].mxu0
    %v4006 = vpop.f32.mrb[0].mxu0
    %v4007 = vadd.f32 0.0, %v4006
    %v4008 = vpop.f32.mrb[0].mxu0
    %4009 = vmatprep.mubr.bf16.mxu0 0
    %4010 = vmatmul.mubr.bf16.gmra.mrb[0].mxu0 %v3924
    %v4011 = vpop.f32.mrb[0].mxu0
    %v4012 = vadd.f32 0.0, %v4011
    %v4013 = vpop.f32.mrb[0].mxu0
    %v4014 = vpop.f32.mrb[0].mxu0
    %v4015 = vadd.f32 0.0, %v4014
    %v4016 = vpop.f32.mrb[0].mxu0
    %4017 = vmatprep.mubr.bf16.mxu0 0
    %4018 = vmatmul.mubr.bf16.gmra.mrb[0].mxu0 %v3927
    %v4019 = vpop.f32.mrb[0].mxu0
    %v4020 = vadd.f32 0.0, %v4019
    %v4021 = vpop.f32.mrb[0].mxu0
    %v4022 = vpop.f32.mrb[0].mxu0
    %v4023 = vadd.f32 0.0, %v4022
    %v4024 = vpop.f32.mrb[0].mxu0
    %4025 = vdwg.mxu0
    %v4026 = vadd.f32 %v3840, %v3964
    %v4027 = vadd.f32 %v3841, %v3967
    %v4028 = vadd.f32 %v3842, %v3972
    %v4029 = vadd.f32 %v3843, %v3975
    %v4030 = vadd.f32 %v3844, %v3980
    %v4031 = vadd.f32 %v3845, %v3983
    %v4032 = vadd.f32 %v3846, %v3988
    %v4033 = vadd.f32 %v3847, %v3991
    %v4034 = vadd.f32 %v3848, %v3996
    %v4035 = vadd.f32 %v3849, %v3999
    %v4036 = vadd.f32 %v3850, %v4004
    %v4037 = vadd.f32 %v3851, %v4007
    %v4038 = vadd.f32 %v3852, %v4012
    %v4039 = vadd.f32 %v3853, %v4015
    %v4040 = vadd.f32 %v3854, %v4020
    %v4041 = vadd.f32 %v3855, %v4023
    %s4042 = scalar_lea.vmem %s2, 64
    %v4043 = vld [vmem:[%s4042] sm:$0xf]
    %v4044 = vld [vmem:[%s4042 + $0x4] sm:$0xf]
    %v4045 = vld [vmem:[%s4042 + $0x8] sm:$0xf]
    %v4046 = vld [vmem:[%s4042 + $0xc] sm:$0xf]
    %v4047 = vld [vmem:[%s4042 + $0x10] sm:$0xf]
    %v4048 = vld [vmem:[%s4042 + $0x14] sm:$0xf]
    %v4049 = vld [vmem:[%s4042 + $0x18] sm:$0xf]
    %v4050 = vld [vmem:[%s4042 + $0x1c] sm:$0xf]
    %v4059 = vunpack.c.l.b16 %v4043
    %v4060 = vunpack.c.l.b16 %v4044
    %v4061 = vunpack.c.l.b16 %v4045
    %v4062 = vunpack.c.l.b16 %v4046
    %v4063 = vunpack.c.l.b16 %v4047
    %v4064 = vunpack.c.l.b16 %v4048
    %v4065 = vunpack.c.l.b16 %v4049
    %v4066 = vunpack.c.l.b16 %v4050
    %v4067 = vpack.c.b16 %v4060, %v4059
    %v4068 = vpack.c.b16 %v4062, %v4061
    %v4069 = vpack.c.b16 %v4064, %v4063
    %v4070 = vpack.c.b16 %v4066, %v4065
    %4075 = vmatprep.subr.bf16.mxu0 0
    %4076 = vmatpush1.bf16.msra.mxu0 %v4067
    %4077 = vmatprep.subr.bf16.mxu0 0
    %4078 = vmatpush1.bf16.msra.mxu0 %v4068
    %4079 = vmatprep.subr.bf16.mxu0 0
    %4080 = vmatpush1.bf16.msra.mxu0 %v4069
    %4081 = vmatprep.subr.bf16.mxu0 0
    %4082 = vmatpush1.bf16.msra.mxu0 %v4070
    %4083 = vmatprep.subr.bf16.mxu0 0
    %4084 = vmatpush1.bf16.msra.mxu0 0
    %4085 = vmatprep.subr.bf16.mxu0 0
    %4086 = vmatpush1.bf16.msra.mxu0 0
    %4087 = vmatprep.subr.bf16.mxu0 0
    %4088 = vmatpush1.bf16.msra.mxu0 0
    %4089 = vmatprep.subr.bf16.mxu0 0
    %4090 = vmatpush1.bf16.msra.mxu0 0
    %4091 = vmatprep.subr.bf16.mxu0 0
    %4092 = vmatpush1.bf16.msra.mxu0 0
    %4093 = vmatprep.subr.bf16.mxu0 0
    %4094 = vmatpush1.bf16.msra.mxu0 0
    %4095 = vmatprep.subr.bf16.mxu0 0
    %4096 = vmatpush1.bf16.msra.mxu0 0
    %4097 = vmatprep.subr.bf16.mxu0 0
    %4098 = vmatpush1.bf16.msra.mxu0 0
    %4099 = vmatprep.subr.bf16.mxu0 0
    %4100 = vmatpush1.bf16.msra.mxu0 0
    %4101 = vmatprep.subr.bf16.mxu0 0
    %4102 = vmatpush1.bf16.msra.mxu0 0
    %4103 = vmatprep.subr.bf16.mxu0 0
    %4104 = vmatpush1.bf16.msra.mxu0 0
    %4105 = vmatprep.subr.bf16.mxu0 0
    %4106 = vmatpush1.bf16.msra.mxu0 0
    %4107 = vmatprep.mubr.bf16.mxu0 0
    %4108 = vmatmul.mubr.bf16.gmra.mrb[0].mxu0 %v3906
    %v4109 = vpop.f32.mrb[0].mxu0
    %v4110 = vadd.f32 0.0, %v4109
    %v4111 = vpop.f32.mrb[0].mxu0
    %v4112 = vpop.f32.mrb[0].mxu0
    %v4113 = vadd.f32 0.0, %v4112
    %v4114 = vpop.f32.mrb[0].mxu0
    %4115 = vmatprep.mubr.bf16.mxu0 0
    %4116 = vmatmul.mubr.bf16.gmra.mrb[0].mxu0 %v3909
    %v4117 = vpop.f32.mrb[0].mxu0
    %v4118 = vadd.f32 0.0, %v4117
    %v4119 = vpop.f32.mrb[0].mxu0
    %v4120 = vpop.f32.mrb[0].mxu0
    %v4121 = vadd.f32 0.0, %v4120
    %v4122 = vpop.f32.mrb[0].mxu0
    %4123 = vmatprep.mubr.bf16.mxu0 0
    %4124 = vmatmul.mubr.bf16.gmra.mrb[0].mxu0 %v3912
    %v4125 = vpop.f32.mrb[0].mxu0
    %v4126 = vadd.f32 0.0, %v4125
    %v4127 = vpop.f32.mrb[0].mxu0
    %v4128 = vpop.f32.mrb[0].mxu0
    %v4129 = vadd.f32 0.0, %v4128
    %v4130 = vpop.f32.mrb[0].mxu0
    %4131 = vmatprep.mubr.bf16.mxu0 0
    %4132 = vmatmul.mubr.bf16.gmra.mrb[0].mxu0 %v3915
    %v4133 = vpop.f32.mrb[0].mxu0
    %v4134 = vadd.f32 0.0, %v4133
    %v4135 = vpop.f32.mrb[0].mxu0
    %v4136 = vpop.f32.mrb[0].mxu0
    %v4137 = vadd.f32 0.0, %v4136
    %v4138 = vpop.f32.mrb[0].mxu0
    %4139 = vmatprep.mubr.bf16.mxu0 0
    %4140 = vmatmul.mubr.bf16.gmra.mrb[0].mxu0 %v3918
    %v4141 = vpop.f32.mrb[0].mxu0
    %v4142 = vadd.f32 0.0, %v4141
    %v4143 = vpop.f32.mrb[0].mxu0
    %v4144 = vpop.f32.mrb[0].mxu0
    %v4145 = vadd.f32 0.0, %v4144
    %v4146 = vpop.f32.mrb[0].mxu0
    %4147 = vmatprep.mubr.bf16.mxu0 0
    %4148 = vmatmul.mubr.bf16.gmra.mrb[0].mxu0 %v3921
    %v4149 = vpop.f32.mrb[0].mxu0
    %v4150 = vadd.f32 0.0, %v4149
    %v4151 = vpop.f32.mrb[0].mxu0
    %v4152 = vpop.f32.mrb[0].mxu0
    %v4153 = vadd.f32 0.0, %v4152
    %v4154 = vpop.f32.mrb[0].mxu0
    %4155 = vmatprep.mubr.bf16.mxu0 0
    %4156 = vmatmul.mubr.bf16.gmra.mrb[0].mxu0 %v3924
    %v4157 = vpop.f32.mrb[0].mxu0
    %v4158 = vadd.f32 0.0, %v4157
    %v4159 = vpop.f32.mrb[0].mxu0
    %v4160 = vpop.f32.mrb[0].mxu0
    %v4161 = vadd.f32 0.0, %v4160
    %v4162 = vpop.f32.mrb[0].mxu0
    %4163 = vmatprep.mubr.bf16.mxu0 0
    %4164 = vmatmul.mubr.bf16.gmra.mrb[0].mxu0 %v3927
    %v4165 = vpop.f32.mrb[0].mxu0
    %v4166 = vadd.f32 0.0, %v4165
    %v4167 = vpop.f32.mrb[0].mxu0
    %v4168 = vpop.f32.mrb[0].mxu0
    %v4169 = vadd.f32 0.0, %v4168
    %v4170 = vpop.f32.mrb[0].mxu0
    %4171 = vdwg.mxu0
    %v4172 = vadd.f32 %v3435, %v4110
    %v4173 = vadd.f32 %v3436, %v4113
    %v4174 = vadd.f32 %v3437, %v4118
    %v4175 = vadd.f32 %v3438, %v4121
    %v4176 = vadd.f32 %v3439, %v4126
    %v4177 = vadd.f32 %v3440, %v4129
    %v4178 = vadd.f32 %v3441, %v4134
    %v4179 = vadd.f32 %v3442, %v4137
    %v4180 = vadd.f32 %v3443, %v4142
    %v4181 = vadd.f32 %v3444, %v4145
    %v4182 = vadd.f32 %v3445, %v4150
    %v4183 = vadd.f32 %v3446, %v4153
    %v4184 = vadd.f32 %v3447, %v4158
    %v4185 = vadd.f32 %v3448, %v4161
    %v4186 = vadd.f32 %v3449, %v4166
    %v4187 = vadd.f32 %v3450, %v4169
    %v4188 = vrot.slane %v68, 3
    %v4189 = vrot.slane %v69, 3
    %v4190 = vsel %vm3613, %v4188, %v4189
    %v4191 = vrot.slane %v92, 3
    %v4192 = vrot.slane %v93, 3
    %v4193 = vsel %vm3613, %v4191, %v4192
    %v4196 = vpack.c.bf16 %v4190, %v3858
    %v4197 = vpack.c.bf16 %v4193, %v3861
    %s4198 = scalar_lea.vmem [#allocation2], 416
    %v4199 = vld [vmem:[%s4198] sm:$0xf]
    %v4200 = vld [vmem:[%s4198 + $0x4] sm:$0xf]
    %v4201 = vld [vmem:[%s4198 + $0x8] sm:$0xf]
    %v4202 = vld [vmem:[%s4198 + $0xc] sm:$0xf]
    %v4203 = vld [vmem:[%s4198 + $0x10] sm:$0xf]
    %v4204 = vld [vmem:[%s4198 + $0x14] sm:$0xf]
    %v4205 = vld [vmem:[%s4198 + $0x18] sm:$0xf]
    %v4206 = vld [vmem:[%s4198 + $0x1c] sm:$0xf]
    %v4215 = vunpack.c.l.b16 %v4199
    %v4216 = vunpack.c.l.b16 %v4200
    %v4217 = vunpack.c.l.b16 %v4201
    %v4218 = vunpack.c.l.b16 %v4202
    %v4219 = vunpack.c.l.b16 %v4203
    %v4220 = vunpack.c.l.b16 %v4204
    %v4221 = vunpack.c.l.b16 %v4205
    %v4222 = vunpack.c.l.b16 %v4206
    %v4223 = vpack.c.b16 %v4216, %v4215
    %v4224 = vpack.c.b16 %v4218, %v4217
    %v4225 = vpack.c.b16 %v4220, %v4219
    %v4226 = vpack.c.b16 %v4222, %v4221
    %v4232 = vsel %vm155, %v4196, 0
    %v4235 = vsel %vm155, %v4197, 0
    %4237 = vmatprep.subr.bf16.mxu0 0
    %4238 = vmatpush1.bf16.msra.mxu0 %v4223
    %4239 = vmatprep.subr.bf16.mxu0 0
    %4240 = vmatpush1.bf16.msra.mxu0 %v4224
    %4241 = vmatprep.subr.bf16.mxu0 0
    %4242 = vmatpush1.bf16.msra.mxu0 %v4225
    %4243 = vmatprep.subr.bf16.mxu0 0
    %4244 = vmatpush1.bf16.msra.mxu0 %v4226
    %4245 = vmatprep.subr.bf16.mxu0 0
    %4246 = vmatpush1.bf16.msra.mxu0 0
    %4247 = vmatprep.subr.bf16.mxu0 0
    %4248 = vmatpush1.bf16.msra.mxu0 0
    %4249 = vmatprep.subr.bf16.mxu0 0
    %4250 = vmatpush1.bf16.msra.mxu0 0
    %4251 = vmatprep.subr.bf16.mxu0 0
    %4252 = vmatpush1.bf16.msra.mxu0 0
    %4253 = vmatprep.subr.bf16.mxu0 0
    %4254 = vmatpush1.bf16.msra.mxu0 0
    %4255 = vmatprep.subr.bf16.mxu0 0
    %4256 = vmatpush1.bf16.msra.mxu0 0
    %4257 = vmatprep.subr.bf16.mxu0 0
    %4258 = vmatpush1.bf16.msra.mxu0 0
    %4259 = vmatprep.subr.bf16.mxu0 0
    %4260 = vmatpush1.bf16.msra.mxu0 0
    %4261 = vmatprep.subr.bf16.mxu0 0
    %4262 = vmatpush1.bf16.msra.mxu0 0
    %4263 = vmatprep.subr.bf16.mxu0 0
    %4264 = vmatpush1.bf16.msra.mxu0 0
    %4265 = vmatprep.subr.bf16.mxu0 0
    %4266 = vmatpush1.bf16.msra.mxu0 0
    %4267 = vmatprep.subr.bf16.mxu0 0
    %4268 = vmatpush1.bf16.msra.mxu0 0
    %4269 = vmatprep.mubr.bf16.mxu0 0
    %4270 = vmatmul.mubr.bf16.gmra.mrb[0].mxu0 %v3723
    %v4271 = vpop.f32.mrb[0].mxu0
    %v4272 = vadd.f32 0.0, %v4271
    %v4273 = vpop.f32.mrb[0].mxu0
    %v4274 = vpop.f32.mrb[0].mxu0
    %v4275 = vadd.f32 0.0, %v4274
    %v4276 = vpop.f32.mrb[0].mxu0
    %4277 = vmatprep.mubr.bf16.mxu0 0
    %4278 = vmatmul.mubr.bf16.gmra.mrb[0].mxu0 %v3726
    %v4279 = vpop.f32.mrb[0].mxu0
    %v4280 = vadd.f32 0.0, %v4279
    %v4281 = vpop.f32.mrb[0].mxu0
    %v4282 = vpop.f32.mrb[0].mxu0
    %v4283 = vadd.f32 0.0, %v4282
    %v4284 = vpop.f32.mrb[0].mxu0
    %4285 = vmatprep.mubr.bf16.mxu0 0
    %4286 = vmatmul.mubr.bf16.gmra.mrb[0].mxu0 %v3729
    %v4287 = vpop.f32.mrb[0].mxu0
    %v4288 = vadd.f32 0.0, %v4287
    %v4289 = vpop.f32.mrb[0].mxu0
    %v4290 = vpop.f32.mrb[0].mxu0
    %v4291 = vadd.f32 0.0, %v4290
    %v4292 = vpop.f32.mrb[0].mxu0
    %4293 = vmatprep.mubr.bf16.mxu0 0
    %4294 = vmatmul.mubr.bf16.gmra.mrb[0].mxu0 %v4232
    %v4295 = vpop.f32.mrb[0].mxu0
    %v4296 = vadd.f32 0.0, %v4295
    %v4297 = vpop.f32.mrb[0].mxu0
    %v4298 = vpop.f32.mrb[0].mxu0
    %v4299 = vadd.f32 0.0, %v4298
    %v4300 = vpop.f32.mrb[0].mxu0
    %4301 = vmatprep.mubr.bf16.mxu0 0
    %4302 = vmatmul.mubr.bf16.gmra.mrb[0].mxu0 %v3735
    %v4303 = vpop.f32.mrb[0].mxu0
    %v4304 = vadd.f32 0.0, %v4303
    %v4305 = vpop.f32.mrb[0].mxu0
    %v4306 = vpop.f32.mrb[0].mxu0
    %v4307 = vadd.f32 0.0, %v4306
    %v4308 = vpop.f32.mrb[0].mxu0
    %4309 = vmatprep.mubr.bf16.mxu0 0
    %4310 = vmatmul.mubr.bf16.gmra.mrb[0].mxu0 %v3738
    %v4311 = vpop.f32.mrb[0].mxu0
    %v4312 = vadd.f32 0.0, %v4311
    %v4313 = vpop.f32.mrb[0].mxu0
    %v4314 = vpop.f32.mrb[0].mxu0
    %v4315 = vadd.f32 0.0, %v4314
    %v4316 = vpop.f32.mrb[0].mxu0
    %4317 = vmatprep.mubr.bf16.mxu0 0
    %4318 = vmatmul.mubr.bf16.gmra.mrb[0].mxu0 %v3741
    %v4319 = vpop.f32.mrb[0].mxu0
    %v4320 = vadd.f32 0.0, %v4319
    %v4321 = vpop.f32.mrb[0].mxu0
    %v4322 = vpop.f32.mrb[0].mxu0
    %v4323 = vadd.f32 0.0, %v4322
    %v4324 = vpop.f32.mrb[0].mxu0
    %4325 = vmatprep.mubr.bf16.mxu0 0
    %4326 = vmatmul.mubr.bf16.gmra.mrb[0].mxu0 %v4235
    %v4327 = vpop.f32.mrb[0].mxu0
    %v4328 = vadd.f32 0.0, %v4327
    %v4329 = vpop.f32.mrb[0].mxu0
    %v4330 = vpop.f32.mrb[0].mxu0
    %v4331 = vadd.f32 0.0, %v4330
    %v4332 = vpop.f32.mrb[0].mxu0
    %4333 = vdwg.mxu0
    %v4334 = vadd.f32 %v4026, %v4272
    %v4335 = vadd.f32 %v4027, %v4275
    %v4336 = vadd.f32 %v4028, %v4280
    %v4337 = vadd.f32 %v4029, %v4283
    %v4338 = vadd.f32 %v4030, %v4288
    %v4339 = vadd.f32 %v4031, %v4291
    %v4340 = vadd.f32 %v4032, %v4296
    %v4341 = vadd.f32 %v4033, %v4299
    %v4342 = vadd.f32 %v4034, %v4304
    %v4343 = vadd.f32 %v4035, %v4307
    %v4344 = vadd.f32 %v4036, %v4312
    %v4345 = vadd.f32 %v4037, %v4315
    %v4346 = vadd.f32 %v4038, %v4320
    %v4347 = vadd.f32 %v4039, %v4323
    %v4348 = vadd.f32 %v4040, %v4328
    %v4349 = vadd.f32 %v4041, %v4331
    %s4350 = scalar_lea.vmem %s2, 160
    %v4351 = vld [vmem:[%s4350] sm:$0xf]
    %v4352 = vld [vmem:[%s4350 + $0x4] sm:$0xf]
    %v4353 = vld [vmem:[%s4350 + $0x8] sm:$0xf]
    %v4354 = vld [vmem:[%s4350 + $0xc] sm:$0xf]
    %v4355 = vld [vmem:[%s4350 + $0x10] sm:$0xf]
    %v4356 = vld [vmem:[%s4350 + $0x14] sm:$0xf]
    %v4357 = vld [vmem:[%s4350 + $0x18] sm:$0xf]
    %v4358 = vld [vmem:[%s4350 + $0x1c] sm:$0xf]
    %v4367 = vunpack.c.l.b16 %v4351
    %v4368 = vunpack.c.l.b16 %v4352
    %v4369 = vunpack.c.l.b16 %v4353
    %v4370 = vunpack.c.l.b16 %v4354
    %v4371 = vunpack.c.l.b16 %v4355
    %v4372 = vunpack.c.l.b16 %v4356
    %v4373 = vunpack.c.l.b16 %v4357
    %v4374 = vunpack.c.l.b16 %v4358
    %v4375 = vpack.c.b16 %v4368, %v4367
    %v4376 = vpack.c.b16 %v4370, %v4369
    %v4377 = vpack.c.b16 %v4372, %v4371
    %v4378 = vpack.c.b16 %v4374, %v4373
    %4383 = vmatprep.subr.bf16.mxu0 0
    %4384 = vmatpush1.bf16.msra.mxu0 %v4375
    %4385 = vmatprep.subr.bf16.mxu0 0
    %4386 = vmatpush1.bf16.msra.mxu0 %v4376
    %4387 = vmatprep.subr.bf16.mxu0 0
    %4388 = vmatpush1.bf16.msra.mxu0 %v4377
    %4389 = vmatprep.subr.bf16.mxu0 0
    %4390 = vmatpush1.bf16.msra.mxu0 %v4378
    %4391 = vmatprep.subr.bf16.mxu0 0
    %4392 = vmatpush1.bf16.msra.mxu0 0
    %4393 = vmatprep.subr.bf16.mxu0 0
    %4394 = vmatpush1.bf16.msra.mxu0 0
    %4395 = vmatprep.subr.bf16.mxu0 0
    %4396 = vmatpush1.bf16.msra.mxu0 0
    %4397 = vmatprep.subr.bf16.mxu0 0
    %4398 = vmatpush1.bf16.msra.mxu0 0
    %4399 = vmatprep.subr.bf16.mxu0 0
    %4400 = vmatpush1.bf16.msra.mxu0 0
    %4401 = vmatprep.subr.bf16.mxu0 0
    %4402 = vmatpush1.bf16.msra.mxu0 0
    %4403 = vmatprep.subr.bf16.mxu0 0
    %4404 = vmatpush1.bf16.msra.mxu0 0
    %4405 = vmatprep.subr.bf16.mxu0 0
    %4406 = vmatpush1.bf16.msra.mxu0 0
    %4407 = vmatprep.subr.bf16.mxu0 0
    %4408 = vmatpush1.bf16.msra.mxu0 0
    %4409 = vmatprep.subr.bf16.mxu0 0
    %4410 = vmatpush1.bf16.msra.mxu0 0
    %4411 = vmatprep.subr.bf16.mxu0 0
    %4412 = vmatpush1.bf16.msra.mxu0 0
    %4413 = vmatprep.subr.bf16.mxu0 0
    %4414 = vmatpush1.bf16.msra.mxu0 0
    %4415 = vmatprep.mubr.bf16.mxu0 0
    %4416 = vmatmul.mubr.bf16.gmra.mrb[0].mxu0 %v3723
    %v4417 = vpop.f32.mrb[0].mxu0
    %v4418 = vadd.f32 0.0, %v4417
    %v4419 = vpop.f32.mrb[0].mxu0
    %v4420 = vpop.f32.mrb[0].mxu0
    %v4421 = vadd.f32 0.0, %v4420
    %v4422 = vpop.f32.mrb[0].mxu0
    %4423 = vmatprep.mubr.bf16.mxu0 0
    %4424 = vmatmul.mubr.bf16.gmra.mrb[0].mxu0 %v3726
    %v4425 = vpop.f32.mrb[0].mxu0
    %v4426 = vadd.f32 0.0, %v4425
    %v4427 = vpop.f32.mrb[0].mxu0
    %v4428 = vpop.f32.mrb[0].mxu0
    %v4429 = vadd.f32 0.0, %v4428
    %v4430 = vpop.f32.mrb[0].mxu0
    %4431 = vmatprep.mubr.bf16.mxu0 0
    %4432 = vmatmul.mubr.bf16.gmra.mrb[0].mxu0 %v3729
    %v4433 = vpop.f32.mrb[0].mxu0
    %v4434 = vadd.f32 0.0, %v4433
    %v4435 = vpop.f32.mrb[0].mxu0
    %v4436 = vpop.f32.mrb[0].mxu0
    %v4437 = vadd.f32 0.0, %v4436
    %v4438 = vpop.f32.mrb[0].mxu0
    %4439 = vmatprep.mubr.bf16.mxu0 0
    %4440 = vmatmul.mubr.bf16.gmra.mrb[0].mxu0 %v4232
    %v4441 = vpop.f32.mrb[0].mxu0
    %v4442 = vadd.f32 0.0, %v4441
    %v4443 = vpop.f32.mrb[0].mxu0
    %v4444 = vpop.f32.mrb[0].mxu0
    %v4445 = vadd.f32 0.0, %v4444
    %v4446 = vpop.f32.mrb[0].mxu0
    %4447 = vmatprep.mubr.bf16.mxu0 0
    %4448 = vmatmul.mubr.bf16.gmra.mrb[0].mxu0 %v3735
    %v4449 = vpop.f32.mrb[0].mxu0
    %v4450 = vadd.f32 0.0, %v4449
    %v4451 = vpop.f32.mrb[0].mxu0
    %v4452 = vpop.f32.mrb[0].mxu0
    %v4453 = vadd.f32 0.0, %v4452
    %v4454 = vpop.f32.mrb[0].mxu0
    %4455 = vmatprep.mubr.bf16.mxu0 0
    %4456 = vmatmul.mubr.bf16.gmra.mrb[0].mxu0 %v3738
    %v4457 = vpop.f32.mrb[0].mxu0
    %v4458 = vadd.f32 0.0, %v4457
    %v4459 = vpop.f32.mrb[0].mxu0
    %v4460 = vpop.f32.mrb[0].mxu0
    %v4461 = vadd.f32 0.0, %v4460
    %v4462 = vpop.f32.mrb[0].mxu0
    %4463 = vmatprep.mubr.bf16.mxu0 0
    %4464 = vmatmul.mubr.bf16.gmra.mrb[0].mxu0 %v3741
    %v4465 = vpop.f32.mrb[0].mxu0
    %v4466 = vadd.f32 0.0, %v4465
    %v4467 = vpop.f32.mrb[0].mxu0
    %v4468 = vpop.f32.mrb[0].mxu0
    %v4469 = vadd.f32 0.0, %v4468
    %v4470 = vpop.f32.mrb[0].mxu0
    %4471 = vmatprep.mubr.bf16.mxu0 0
    %4472 = vmatmul.mubr.bf16.gmra.mrb[0].mxu0 %v4235
    %v4473 = vpop.f32.mrb[0].mxu0
    %v4474 = vadd.f32 0.0, %v4473
    %v4475 = vpop.f32.mrb[0].mxu0
    %v4476 = vpop.f32.mrb[0].mxu0
    %v4477 = vadd.f32 0.0, %v4476
    %v4478 = vpop.f32.mrb[0].mxu0
    %4479 = vdwg.mxu0
    %v4480 = vadd.f32 %v4172, %v4418
    %v4481 = vadd.f32 %v4173, %v4421
    %v4482 = vadd.f32 %v4174, %v4426
    %v4483 = vadd.f32 %v4175, %v4429
    %v4484 = vadd.f32 %v4176, %v4434
    %v4485 = vadd.f32 %v4177, %v4437
    %v4486 = vadd.f32 %v4178, %v4442
    %v4487 = vadd.f32 %v4179, %v4445
    %v4488 = vadd.f32 %v4180, %v4450
    %v4489 = vadd.f32 %v4181, %v4453
    %v4490 = vadd.f32 %v4182, %v4458
    %v4491 = vadd.f32 %v4183, %v4461
    %v4492 = vadd.f32 %v4184, %v4466
    %v4493 = vadd.f32 %v4185, %v4469
    %v4494 = vadd.f32 %v4186, %v4474
    %v4495 = vadd.f32 %v4187, %v4477
    %v4496 = vrot.slane %v70, 3
    %v4497 = vrot.slane %v71, 3
    %v4498 = vsel %vm3613, %v4496, %v4497
    %v4499 = vrot.slane %v94, 3
    %v4500 = vrot.slane %v95, 3
    %v4501 = vsel %vm3613, %v4499, %v4500
    %v4504 = vpack.c.bf16 %v4498, %v4190
    %v4505 = vpack.c.bf16 %v4501, %v4193
    %s4506 = scalar_lea.vmem [#allocation2], 576
    %v4507 = vld [vmem:[%s4506] sm:$0xf]
    %v4508 = vld [vmem:[%s4506 + $0x4] sm:$0xf]
    %v4509 = vld [vmem:[%s4506 + $0x8] sm:$0xf]
    %v4510 = vld [vmem:[%s4506 + $0xc] sm:$0xf]
    %v4511 = vld [vmem:[%s4506 + $0x10] sm:$0xf]
    %v4512 = vld [vmem:[%s4506 + $0x14] sm:$0xf]
    %v4513 = vld [vmem:[%s4506 + $0x18] sm:$0xf]
    %v4514 = vld [vmem:[%s4506 + $0x1c] sm:$0xf]
    %v4523 = vunpack.c.l.b16 %v4507
    %v4524 = vunpack.c.l.b16 %v4508
    %v4525 = vunpack.c.l.b16 %v4509
    %v4526 = vunpack.c.l.b16 %v4510
    %v4527 = vunpack.c.l.b16 %v4511
    %v4528 = vunpack.c.l.b16 %v4512
    %v4529 = vunpack.c.l.b16 %v4513
    %v4530 = vunpack.c.l.b16 %v4514
    %v4531 = vpack.c.b16 %v4524, %v4523
    %v4532 = vpack.c.b16 %v4526, %v4525
    %v4533 = vpack.c.b16 %v4528, %v4527
    %v4534 = vpack.c.b16 %v4530, %v4529
    %v4540 = vsel %vm155, %v4504, 0
    %v4543 = vsel %vm155, %v4505, 0
    %4545 = vmatprep.subr.bf16.mxu0 0
    %4546 = vmatpush1.bf16.msra.mxu0 %v4531
    %4547 = vmatprep.subr.bf16.mxu0 0
    %4548 = vmatpush1.bf16.msra.mxu0 %v4532
    %4549 = vmatprep.subr.bf16.mxu0 0
    %4550 = vmatpush1.bf16.msra.mxu0 %v4533
    %4551 = vmatprep.subr.bf16.mxu0 0
    %4552 = vmatpush1.bf16.msra.mxu0 %v4534
    %4553 = vmatprep.subr.bf16.mxu0 0
    %4554 = vmatpush1.bf16.msra.mxu0 0
    %4555 = vmatprep.subr.bf16.mxu0 0
    %4556 = vmatpush1.bf16.msra.mxu0 0
    %4557 = vmatprep.subr.bf16.mxu0 0
    %4558 = vmatpush1.bf16.msra.mxu0 0
    %4559 = vmatprep.subr.bf16.mxu0 0
    %4560 = vmatpush1.bf16.msra.mxu0 0
    %4561 = vmatprep.subr.bf16.mxu0 0
    %4562 = vmatpush1.bf16.msra.mxu0 0
    %4563 = vmatprep.subr.bf16.mxu0 0
    %4564 = vmatpush1.bf16.msra.mxu0 0
    %4565 = vmatprep.subr.bf16.mxu0 0
    %4566 = vmatpush1.bf16.msra.mxu0 0
    %4567 = vmatprep.subr.bf16.mxu0 0
    %4568 = vmatpush1.bf16.msra.mxu0 0
    %4569 = vmatprep.subr.bf16.mxu0 0
    %4570 = vmatpush1.bf16.msra.mxu0 0
    %4571 = vmatprep.subr.bf16.mxu0 0
    %4572 = vmatpush1.bf16.msra.mxu0 0
    %4573 = vmatprep.subr.bf16.mxu0 0
    %4574 = vmatpush1.bf16.msra.mxu0 0
    %4575 = vmatprep.subr.bf16.mxu0 0
    %4576 = vmatpush1.bf16.msra.mxu0 0
    %4577 = vmatprep.mubr.bf16.mxu0 0
    %4578 = vmatmul.mubr.bf16.gmra.mrb[0].mxu0 %v3909
    %v4579 = vpop.f32.mrb[0].mxu0
    %v4580 = vadd.f32 0.0, %v4579
    %v4581 = vpop.f32.mrb[0].mxu0
    %v4582 = vpop.f32.mrb[0].mxu0
    %v4583 = vadd.f32 0.0, %v4582
    %v4584 = vpop.f32.mrb[0].mxu0
    %4585 = vmatprep.mubr.bf16.mxu0 0
    %4586 = vmatmul.mubr.bf16.gmra.mrb[0].mxu0 %v3912
    %v4587 = vpop.f32.mrb[0].mxu0
    %v4588 = vadd.f32 0.0, %v4587
    %v4589 = vpop.f32.mrb[0].mxu0
    %v4590 = vpop.f32.mrb[0].mxu0
    %v4591 = vadd.f32 0.0, %v4590
    %v4592 = vpop.f32.mrb[0].mxu0
    %4593 = vmatprep.mubr.bf16.mxu0 0
    %4594 = vmatmul.mubr.bf16.gmra.mrb[0].mxu0 %v3915
    %v4595 = vpop.f32.mrb[0].mxu0
    %v4596 = vadd.f32 0.0, %v4595
    %v4597 = vpop.f32.mrb[0].mxu0
    %v4598 = vpop.f32.mrb[0].mxu0
    %v4599 = vadd.f32 0.0, %v4598
    %v4600 = vpop.f32.mrb[0].mxu0
    %4601 = vmatprep.mubr.bf16.mxu0 0
    %4602 = vmatmul.mubr.bf16.gmra.mrb[0].mxu0 %v4540
    %v4603 = vpop.f32.mrb[0].mxu0
    %v4604 = vadd.f32 0.0, %v4603
    %v4605 = vpop.f32.mrb[0].mxu0
    %v4606 = vpop.f32.mrb[0].mxu0
    %v4607 = vadd.f32 0.0, %v4606
    %v4608 = vpop.f32.mrb[0].mxu0
    %4609 = vmatprep.mubr.bf16.mxu0 0
    %4610 = vmatmul.mubr.bf16.gmra.mrb[0].mxu0 %v3921
    %v4611 = vpop.f32.mrb[0].mxu0
    %v4612 = vadd.f32 0.0, %v4611
    %v4613 = vpop.f32.mrb[0].mxu0
    %v4614 = vpop.f32.mrb[0].mxu0
    %v4615 = vadd.f32 0.0, %v4614
    %v4616 = vpop.f32.mrb[0].mxu0
    %4617 = vmatprep.mubr.bf16.mxu0 0
    %4618 = vmatmul.mubr.bf16.gmra.mrb[0].mxu0 %v3924
    %v4619 = vpop.f32.mrb[0].mxu0
    %v4620 = vadd.f32 0.0, %v4619
    %v4621 = vpop.f32.mrb[0].mxu0
    %v4622 = vpop.f32.mrb[0].mxu0
    %v4623 = vadd.f32 0.0, %v4622
    %v4624 = vpop.f32.mrb[0].mxu0
    %4625 = vmatprep.mubr.bf16.mxu0 0
    %4626 = vmatmul.mubr.bf16.gmra.mrb[0].mxu0 %v3927
    %v4627 = vpop.f32.mrb[0].mxu0
    %v4628 = vadd.f32 0.0, %v4627
    %v4629 = vpop.f32.mrb[0].mxu0
    %v4630 = vpop.f32.mrb[0].mxu0
    %v4631 = vadd.f32 0.0, %v4630
    %v4632 = vpop.f32.mrb[0].mxu0
    %4633 = vmatprep.mubr.bf16.mxu0 0
    %4634 = vmatmul.mubr.bf16.gmra.mrb[0].mxu0 %v4543
    %v4635 = vpop.f32.mrb[0].mxu0
    %v4636 = vadd.f32 0.0, %v4635
    %v4637 = vpop.f32.mrb[0].mxu0
    %v4638 = vpop.f32.mrb[0].mxu0
    %v4639 = vadd.f32 0.0, %v4638
    %v4640 = vpop.f32.mrb[0].mxu0
    %4641 = vdwg.mxu0
    %v4642 = vadd.f32 %v4334, %v4580
    %v4643 = vadd.f32 %v4335, %v4583
    %v4644 = vadd.f32 %v4336, %v4588
    %v4645 = vadd.f32 %v4337, %v4591
    %v4646 = vadd.f32 %v4338, %v4596
    %v4647 = vadd.f32 %v4339, %v4599
    %v4648 = vadd.f32 %v4340, %v4604
    %v4649 = vadd.f32 %v4341, %v4607
    %v4650 = vadd.f32 %v4342, %v4612
    %v4651 = vadd.f32 %v4343, %v4615
    %v4652 = vadd.f32 %v4344, %v4620
    %v4653 = vadd.f32 %v4345, %v4623
    %v4654 = vadd.f32 %v4346, %v4628
    %v4655 = vadd.f32 %v4347, %v4631
    %v4656 = vadd.f32 %v4348, %v4636
    %v4657 = vadd.f32 %v4349, %v4639
    %s4658 = scalar_lea.vmem %s2, 256
    %v4659 = vld [vmem:[%s4658] sm:$0xf]
    %v4660 = vld [vmem:[%s4658 + $0x4] sm:$0xf]
    %v4661 = vld [vmem:[%s4658 + $0x8] sm:$0xf]
    %v4662 = vld [vmem:[%s4658 + $0xc] sm:$0xf]
    %v4663 = vld [vmem:[%s4658 + $0x10] sm:$0xf]
    %v4664 = vld [vmem:[%s4658 + $0x14] sm:$0xf]
    %v4665 = vld [vmem:[%s4658 + $0x18] sm:$0xf]
    %v4666 = vld [vmem:[%s4658 + $0x1c] sm:$0xf]
    %v4675 = vunpack.c.l.b16 %v4659
    %v4676 = vunpack.c.l.b16 %v4660
    %v4677 = vunpack.c.l.b16 %v4661
    %v4678 = vunpack.c.l.b16 %v4662
    %v4679 = vunpack.c.l.b16 %v4663
    %v4680 = vunpack.c.l.b16 %v4664
    %v4681 = vunpack.c.l.b16 %v4665
    %v4682 = vunpack.c.l.b16 %v4666
    %v4683 = vpack.c.b16 %v4676, %v4675
    %v4684 = vpack.c.b16 %v4678, %v4677
    %v4685 = vpack.c.b16 %v4680, %v4679
    %v4686 = vpack.c.b16 %v4682, %v4681
    %4691 = vmatprep.subr.bf16.mxu0 0
    %4692 = vmatpush1.bf16.msra.mxu0 %v4683
    %4693 = vmatprep.subr.bf16.mxu0 0
    %4694 = vmatpush1.bf16.msra.mxu0 %v4684
    %4695 = vmatprep.subr.bf16.mxu0 0
    %4696 = vmatpush1.bf16.msra.mxu0 %v4685
    %4697 = vmatprep.subr.bf16.mxu0 0
    %4698 = vmatpush1.bf16.msra.mxu0 %v4686
    %4699 = vmatprep.subr.bf16.mxu0 0
    %4700 = vmatpush1.bf16.msra.mxu0 0
    %4701 = vmatprep.subr.bf16.mxu0 0
    %4702 = vmatpush1.bf16.msra.mxu0 0
    %4703 = vmatprep.subr.bf16.mxu0 0
    %4704 = vmatpush1.bf16.msra.mxu0 0
    %4705 = vmatprep.subr.bf16.mxu0 0
    %4706 = vmatpush1.bf16.msra.mxu0 0
    %4707 = vmatprep.subr.bf16.mxu0 0
    %4708 = vmatpush1.bf16.msra.mxu0 0
    %4709 = vmatprep.subr.bf16.mxu0 0
    %4710 = vmatpush1.bf16.msra.mxu0 0
    %4711 = vmatprep.subr.bf16.mxu0 0
    %4712 = vmatpush1.bf16.msra.mxu0 0
    %4713 = vmatprep.subr.bf16.mxu0 0
    %4714 = vmatpush1.bf16.msra.mxu0 0
    %4715 = vmatprep.subr.bf16.mxu0 0
    %4716 = vmatpush1.bf16.msra.mxu0 0
    %4717 = vmatprep.subr.bf16.mxu0 0
    %4718 = vmatpush1.bf16.msra.mxu0 0
    %4719 = vmatprep.subr.bf16.mxu0 0
    %4720 = vmatpush1.bf16.msra.mxu0 0
    %4721 = vmatprep.subr.bf16.mxu0 0
    %4722 = vmatpush1.bf16.msra.mxu0 0
    %4723 = vmatprep.mubr.bf16.mxu0 0
    %4724 = vmatmul.mubr.bf16.gmra.mrb[0].mxu0 %v3909
    %v4725 = vpop.f32.mrb[0].mxu0
    %v4726 = vadd.f32 0.0, %v4725
    %v4727 = vpop.f32.mrb[0].mxu0
    %v4728 = vpop.f32.mrb[0].mxu0
    %v4729 = vadd.f32 0.0, %v4728
    %v4730 = vpop.f32.mrb[0].mxu0
    %4731 = vmatprep.mubr.bf16.mxu0 0
    %4732 = vmatmul.mubr.bf16.gmra.mrb[0].mxu0 %v3912
    %v4733 = vpop.f32.mrb[0].mxu0
    %v4734 = vadd.f32 0.0, %v4733
    %v4735 = vpop.f32.mrb[0].mxu0
    %v4736 = vpop.f32.mrb[0].mxu0
    %v4737 = vadd.f32 0.0, %v4736
    %v4738 = vpop.f32.mrb[0].mxu0
    %4739 = vmatprep.mubr.bf16.mxu0 0
    %4740 = vmatmul.mubr.bf16.gmra.mrb[0].mxu0 %v3915
    %v4741 = vpop.f32.mrb[0].mxu0
    %v4742 = vadd.f32 0.0, %v4741
    %v4743 = vpop.f32.mrb[0].mxu0
    %v4744 = vpop.f32.mrb[0].mxu0
    %v4745 = vadd.f32 0.0, %v4744
    %v4746 = vpop.f32.mrb[0].mxu0
    %4747 = vmatprep.mubr.bf16.mxu0 0
    %4748 = vmatmul.mubr.bf16.gmra.mrb[0].mxu0 %v4540
    %v4749 = vpop.f32.mrb[0].mxu0
    %v4750 = vadd.f32 0.0, %v4749
    %v4751 = vpop.f32.mrb[0].mxu0
    %v4752 = vpop.f32.mrb[0].mxu0
    %v4753 = vadd.f32 0.0, %v4752
    %v4754 = vpop.f32.mrb[0].mxu0
    %4755 = vmatprep.mubr.bf16.mxu0 0
    %4756 = vmatmul.mubr.bf16.gmra.mrb[0].mxu0 %v3921
    %v4757 = vpop.f32.mrb[0].mxu0
    %v4758 = vadd.f32 0.0, %v4757
    %v4759 = vpop.f32.mrb[0].mxu0
    %v4760 = vpop.f32.mrb[0].mxu0
    %v4761 = vadd.f32 0.0, %v4760
    %v4762 = vpop.f32.mrb[0].mxu0
    %4763 = vmatprep.mubr.bf16.mxu0 0
    %4764 = vmatmul.mubr.bf16.gmra.mrb[0].mxu0 %v3924
    %v4765 = vpop.f32.mrb[0].mxu0
    %v4766 = vadd.f32 0.0, %v4765
    %v4767 = vpop.f32.mrb[0].mxu0
    %v4768 = vpop.f32.mrb[0].mxu0
    %v4769 = vadd.f32 0.0, %v4768
    %v4770 = vpop.f32.mrb[0].mxu0
    %4771 = vmatprep.mubr.bf16.mxu0 0
    %4772 = vmatmul.mubr.bf16.gmra.mrb[0].mxu0 %v3927
    %v4773 = vpop.f32.mrb[0].mxu0
    %v4774 = vadd.f32 0.0, %v4773
    %v4775 = vpop.f32.mrb[0].mxu0
    %v4776 = vpop.f32.mrb[0].mxu0
    %v4777 = vadd.f32 0.0, %v4776
    %v4778 = vpop.f32.mrb[0].mxu0
    %4779 = vmatprep.mubr.bf16.mxu0 0
    %4780 = vmatmul.mubr.bf16.gmra.mrb[0].mxu0 %v4543
    %v4781 = vpop.f32.mrb[0].mxu0
    %v4782 = vadd.f32 0.0, %v4781
    %v4783 = vpop.f32.mrb[0].mxu0
    %v4784 = vpop.f32.mrb[0].mxu0
    %v4785 = vadd.f32 0.0, %v4784
    %v4786 = vpop.f32.mrb[0].mxu0
    %4787 = vdwg.mxu0
    %v4788 = vadd.f32 %v4480, %v4726
    %v4789 = vadd.f32 %v4481, %v4729
    %v4790 = vadd.f32 %v4482, %v4734
    %v4791 = vadd.f32 %v4483, %v4737
    %v4792 = vadd.f32 %v4484, %v4742
    %v4793 = vadd.f32 %v4485, %v4745
    %v4794 = vadd.f32 %v4486, %v4750
    %v4795 = vadd.f32 %v4487, %v4753
    %v4796 = vadd.f32 %v4488, %v4758
    %v4797 = vadd.f32 %v4489, %v4761
    %v4798 = vadd.f32 %v4490, %v4766
    %v4799 = vadd.f32 %v4491, %v4769
    %v4800 = vadd.f32 %v4492, %v4774
    %v4801 = vadd.f32 %v4493, %v4777
    %v4802 = vadd.f32 %v4494, %v4782
    %v4803 = vadd.f32 %v4495, %v4785
    %v4804 = vrot.slane %v72, 3
    %v4805 = vrot.slane %v73, 3
    %v4806 = vsel %vm3613, %v4804, %v4805
    %v4807 = vrot.slane %v96, 3
    %v4808 = vrot.slane %v97, 3
    %v4809 = vsel %vm3613, %v4807, %v4808
    %v4812 = vpack.c.bf16 %v4806, %v4498
    %v4813 = vpack.c.bf16 %v4809, %v4501
    %s4814 = scalar_lea.vmem [#allocation2], 736
    %v4815 = vld [vmem:[%s4814] sm:$0xf]
    %v4816 = vld [vmem:[%s4814 + $0x4] sm:$0xf]
    %v4817 = vld [vmem:[%s4814 + $0x8] sm:$0xf]
    %v4818 = vld [vmem:[%s4814 + $0xc] sm:$0xf]
    %v4819 = vld [vmem:[%s4814 + $0x10] sm:$0xf]
    %v4820 = vld [vmem:[%s4814 + $0x14] sm:$0xf]
    %v4821 = vld [vmem:[%s4814 + $0x18] sm:$0xf]
    %v4822 = vld [vmem:[%s4814 + $0x1c] sm:$0xf]
    %v4831 = vunpack.c.l.b16 %v4815
    %v4832 = vunpack.c.l.b16 %v4816
    %v4833 = vunpack.c.l.b16 %v4817
    %v4834 = vunpack.c.l.b16 %v4818
    %v4835 = vunpack.c.l.b16 %v4819
    %v4836 = vunpack.c.l.b16 %v4820
    %v4837 = vunpack.c.l.b16 %v4821
    %v4838 = vunpack.c.l.b16 %v4822
    %v4839 = vpack.c.b16 %v4832, %v4831
    %v4840 = vpack.c.b16 %v4834, %v4833
    %v4841 = vpack.c.b16 %v4836, %v4835
    %v4842 = vpack.c.b16 %v4838, %v4837
    %v4848 = vsel %vm155, %v4812, 0
    %v4851 = vsel %vm155, %v4813, 0
    %4853 = vmatprep.subr.bf16.mxu0 0
    %4854 = vmatpush1.bf16.msra.mxu0 %v4839
    %4855 = vmatprep.subr.bf16.mxu0 0
    %4856 = vmatpush1.bf16.msra.mxu0 %v4840
    %4857 = vmatprep.subr.bf16.mxu0 0
    %4858 = vmatpush1.bf16.msra.mxu0 %v4841
    %4859 = vmatprep.subr.bf16.mxu0 0
    %4860 = vmatpush1.bf16.msra.mxu0 %v4842
    %4861 = vmatprep.subr.bf16.mxu0 0
    %4862 = vmatpush1.bf16.msra.mxu0 0
    %4863 = vmatprep.subr.bf16.mxu0 0
    %4864 = vmatpush1.bf16.msra.mxu0 0
    %4865 = vmatprep.subr.bf16.mxu0 0
    %4866 = vmatpush1.bf16.msra.mxu0 0
    %4867 = vmatprep.subr.bf16.mxu0 0
    %4868 = vmatpush1.bf16.msra.mxu0 0
    %4869 = vmatprep.subr.bf16.mxu0 0
    %4870 = vmatpush1.bf16.msra.mxu0 0
    %4871 = vmatprep.subr.bf16.mxu0 0
    %4872 = vmatpush1.bf16.msra.mxu0 0
    %4873 = vmatprep.subr.bf16.mxu0 0
    %4874 = vmatpush1.bf16.msra.mxu0 0
    %4875 = vmatprep.subr.bf16.mxu0 0
    %4876 = vmatpush1.bf16.msra.mxu0 0
    %4877 = vmatprep.subr.bf16.mxu0 0
    %4878 = vmatpush1.bf16.msra.mxu0 0
    %4879 = vmatprep.subr.bf16.mxu0 0
    %4880 = vmatpush1.bf16.msra.mxu0 0
    %4881 = vmatprep.subr.bf16.mxu0 0
    %4882 = vmatpush1.bf16.msra.mxu0 0
    %4883 = vmatprep.subr.bf16.mxu0 0
    %4884 = vmatpush1.bf16.msra.mxu0 0
    %4885 = vmatprep.mubr.bf16.mxu0 0
    %4886 = vmatmul.mubr.bf16.gmra.mrb[0].mxu0 %v3726
    %v4887 = vpop.f32.mrb[0].mxu0
    %v4888 = vadd.f32 0.0, %v4887
    %v4889 = vpop.f32.mrb[0].mxu0
    %v4890 = vpop.f32.mrb[0].mxu0
    %v4891 = vadd.f32 0.0, %v4890
    %v4892 = vpop.f32.mrb[0].mxu0
    %4893 = vmatprep.mubr.bf16.mxu0 0
    %4894 = vmatmul.mubr.bf16.gmra.mrb[0].mxu0 %v3729
    %v4895 = vpop.f32.mrb[0].mxu0
    %v4896 = vadd.f32 0.0, %v4895
    %v4897 = vpop.f32.mrb[0].mxu0
    %v4898 = vpop.f32.mrb[0].mxu0
    %v4899 = vadd.f32 0.0, %v4898
    %v4900 = vpop.f32.mrb[0].mxu0
    %4901 = vmatprep.mubr.bf16.mxu0 0
    %4902 = vmatmul.mubr.bf16.gmra.mrb[0].mxu0 %v4232
    %v4903 = vpop.f32.mrb[0].mxu0
    %v4904 = vadd.f32 0.0, %v4903
    %v4905 = vpop.f32.mrb[0].mxu0
    %v4906 = vpop.f32.mrb[0].mxu0
    %v4907 = vadd.f32 0.0, %v4906
    %v4908 = vpop.f32.mrb[0].mxu0
    %4909 = vmatprep.mubr.bf16.mxu0 0
    %4910 = vmatmul.mubr.bf16.gmra.mrb[0].mxu0 %v4848
    %v4911 = vpop.f32.mrb[0].mxu0
    %v4912 = vadd.f32 0.0, %v4911
    %v4913 = vpop.f32.mrb[0].mxu0
    %v4914 = vpop.f32.mrb[0].mxu0
    %v4915 = vadd.f32 0.0, %v4914
    %v4916 = vpop.f32.mrb[0].mxu0
    %4917 = vmatprep.mubr.bf16.mxu0 0
    %4918 = vmatmul.mubr.bf16.gmra.mrb[0].mxu0 %v3738
    %v4919 = vpop.f32.mrb[0].mxu0
    %v4920 = vadd.f32 0.0, %v4919
    %v4921 = vpop.f32.mrb[0].mxu0
    %v4922 = vpop.f32.mrb[0].mxu0
    %v4923 = vadd.f32 0.0, %v4922
    %v4924 = vpop.f32.mrb[0].mxu0
    %4925 = vmatprep.mubr.bf16.mxu0 0
    %4926 = vmatmul.mubr.bf16.gmra.mrb[0].mxu0 %v3741
    %v4927 = vpop.f32.mrb[0].mxu0
    %v4928 = vadd.f32 0.0, %v4927
    %v4929 = vpop.f32.mrb[0].mxu0
    %v4930 = vpop.f32.mrb[0].mxu0
    %v4931 = vadd.f32 0.0, %v4930
    %v4932 = vpop.f32.mrb[0].mxu0
    %4933 = vmatprep.mubr.bf16.mxu0 0
    %4934 = vmatmul.mubr.bf16.gmra.mrb[0].mxu0 %v4235
    %v4935 = vpop.f32.mrb[0].mxu0
    %v4936 = vadd.f32 0.0, %v4935
    %v4937 = vpop.f32.mrb[0].mxu0
    %v4938 = vpop.f32.mrb[0].mxu0
    %v4939 = vadd.f32 0.0, %v4938
    %v4940 = vpop.f32.mrb[0].mxu0
    %4941 = vmatprep.mubr.bf16.mxu0 0
    %4942 = vmatmul.mubr.bf16.gmra.mrb[0].mxu0 %v4851
    %v4943 = vpop.f32.mrb[0].mxu0
    %v4944 = vadd.f32 0.0, %v4943
    %v4945 = vpop.f32.mrb[0].mxu0
    %v4946 = vpop.f32.mrb[0].mxu0
    %v4947 = vadd.f32 0.0, %v4946
    %v4948 = vpop.f32.mrb[0].mxu0
    %4949 = vdwg.mxu0
    %v4950 = vadd.f32 %v4642, %v4888
    %v4951 = vadd.f32 %v4643, %v4891
    %v4952 = vadd.f32 %v4644, %v4896
    %v4953 = vadd.f32 %v4645, %v4899
    %v4954 = vadd.f32 %v4646, %v4904
    %v4955 = vadd.f32 %v4647, %v4907
    %v4956 = vadd.f32 %v4648, %v4912
    %v4957 = vadd.f32 %v4649, %v4915
    %v4958 = vadd.f32 %v4650, %v4920
    %v4959 = vadd.f32 %v4651, %v4923
    %v4960 = vadd.f32 %v4652, %v4928
    %v4961 = vadd.f32 %v4653, %v4931
    %v4962 = vadd.f32 %v4654, %v4936
    %v4963 = vadd.f32 %v4655, %v4939
    %v4964 = vadd.f32 %v4656, %v4944
    %v4965 = vadd.f32 %v4657, %v4947
    %vm4966 = vcmask 1043456
    %v4967 = vrot.slane %v50, 4
    %v4968 = vrot.slane %v51, 4
    %v4969 = vsel %vm4966, %v4967, %v4968
    %v4970 = vrot.slane %v52, 4
    %v4971 = vrot.slane %v53, 4
    %v4972 = vsel %vm4966, %v4970, %v4971
    %v4973 = vrot.slane %v54, 4
    %v4974 = vrot.slane %v55, 4
    %v4975 = vsel %vm4966, %v4973, %v4974
    %v4976 = vrot.slane %v56, 4
    %v4977 = vrot.slane %v57, 4
    %v4978 = vsel %vm4966, %v4976, %v4977
    %v4979 = vrot.slane %v58, 4
    %v4980 = vrot.slane %v59, 4
    %v4981 = vsel %vm4966, %v4979, %v4980
    %v4982 = vrot.slane %v60, 4
    %v4983 = vrot.slane %v61, 4
    %v4984 = vsel %vm4966, %v4982, %v4983
    %v4985 = vrot.slane %v62, 4
    %v4986 = vrot.slane %v63, 4
    %v4987 = vsel %vm4966, %v4985, %v4986
    %v4988 = vrot.slane %v64, 4
    %v4989 = vrot.slane %v65, 4
    %v4990 = vsel %vm4966, %v4988, %v4989
    %v4991 = vrot.slane %v74, 4
    %v4992 = vrot.slane %v75, 4
    %v4993 = vsel %vm4966, %v4991, %v4992
    %v4994 = vrot.slane %v76, 4
    %v4995 = vrot.slane %v77, 4
    %v4996 = vsel %vm4966, %v4994, %v4995
    %v4997 = vrot.slane %v78, 4
    %v4998 = vrot.slane %v79, 4
    %v4999 = vsel %vm4966, %v4997, %v4998
    %v5000 = vrot.slane %v80, 4
    %v5001 = vrot.slane %v81, 4
    %v5002 = vsel %vm4966, %v5000, %v5001
    %v5003 = vrot.slane %v82, 4
    %v5004 = vrot.slane %v83, 4
    %v5005 = vsel %vm4966, %v5003, %v5004
    %v5006 = vrot.slane %v84, 4
    %v5007 = vrot.slane %v85, 4
    %v5008 = vsel %vm4966, %v5006, %v5007
    %v5009 = vrot.slane %v86, 4
    %v5010 = vrot.slane %v87, 4
    %v5011 = vsel %vm4966, %v5009, %v5010
    %v5012 = vrot.slane %v88, 4
    %v5013 = vrot.slane %v89, 4
    %v5014 = vsel %vm4966, %v5012, %v5013
    %v5031 = vpack.c.bf16 %v4972, %v4969
    %v5032 = vpack.c.bf16 %v4978, %v4975
    %v5033 = vpack.c.bf16 %v4984, %v4981
    %v5034 = vpack.c.bf16 %v4990, %v4987
    %v5035 = vpack.c.bf16 %v4996, %v4993
    %v5036 = vpack.c.bf16 %v5002, %v4999
    %v5037 = vpack.c.bf16 %v5008, %v5005
    %v5038 = vpack.c.bf16 %v5014, %v5011
    %s5039 = scalar_lea.vmem [#allocation2], 128
    %v5040 = vld [vmem:[%s5039] sm:$0xf]
    %v5041 = vld [vmem:[%s5039 + $0x4] sm:$0xf]
    %v5042 = vld [vmem:[%s5039 + $0x8] sm:$0xf]
    %v5043 = vld [vmem:[%s5039 + $0xc] sm:$0xf]
    %v5044 = vld [vmem:[%s5039 + $0x10] sm:$0xf]
    %v5045 = vld [vmem:[%s5039 + $0x14] sm:$0xf]
    %v5046 = vld [vmem:[%s5039 + $0x18] sm:$0xf]
    %v5047 = vld [vmem:[%s5039 + $0x1c] sm:$0xf]
    %v5056 = vunpack.c.l.b16 %v5040
    %v5057 = vunpack.c.l.b16 %v5041
    %v5058 = vunpack.c.l.b16 %v5042
    %v5059 = vunpack.c.l.b16 %v5043
    %v5060 = vunpack.c.l.b16 %v5044
    %v5061 = vunpack.c.l.b16 %v5045
    %v5062 = vunpack.c.l.b16 %v5046
    %v5063 = vunpack.c.l.b16 %v5047
    %v5064 = vpack.c.b16 %v5057, %v5056
    %v5065 = vpack.c.b16 %v5059, %v5058
    %v5066 = vpack.c.b16 %v5061, %v5060
    %v5067 = vpack.c.b16 %v5063, %v5062
    %v5073 = vsel %vm155, %v5031, 0
    %v5076 = vsel %vm155, %v5032, 0
    %v5079 = vsel %vm155, %v5033, 0
    %v5082 = vsel %vm155, %v5034, 0
    %v5085 = vsel %vm155, %v5035, 0
    %v5088 = vsel %vm155, %v5036, 0
    %v5091 = vsel %vm155, %v5037, 0
    %v5094 = vsel %vm155, %v5038, 0
    %5096 = vmatprep.subr.bf16.mxu0 0
    %5097 = vmatpush1.bf16.msra.mxu0 %v5064
    %5098 = vmatprep.subr.bf16.mxu0 0
    %5099 = vmatpush1.bf16.msra.mxu0 %v5065
    %5100 = vmatprep.subr.bf16.mxu0 0
    %5101 = vmatpush1.bf16.msra.mxu0 %v5066
    %5102 = vmatprep.subr.bf16.mxu0 0
    %5103 = vmatpush1.bf16.msra.mxu0 %v5067
    %5104 = vmatprep.subr.bf16.mxu0 0
    %5105 = vmatpush1.bf16.msra.mxu0 0
    %5106 = vmatprep.subr.bf16.mxu0 0
    %5107 = vmatpush1.bf16.msra.mxu0 0
    %5108 = vmatprep.subr.bf16.mxu0 0
    %5109 = vmatpush1.bf16.msra.mxu0 0
    %5110 = vmatprep.subr.bf16.mxu0 0
    %5111 = vmatpush1.bf16.msra.mxu0 0
    %5112 = vmatprep.subr.bf16.mxu0 0
    %5113 = vmatpush1.bf16.msra.mxu0 0
    %5114 = vmatprep.subr.bf16.mxu0 0
    %5115 = vmatpush1.bf16.msra.mxu0 0
    %5116 = vmatprep.subr.bf16.mxu0 0
    %5117 = vmatpush1.bf16.msra.mxu0 0
    %5118 = vmatprep.subr.bf16.mxu0 0
    %5119 = vmatpush1.bf16.msra.mxu0 0
    %5120 = vmatprep.subr.bf16.mxu0 0
    %5121 = vmatpush1.bf16.msra.mxu0 0
    %5122 = vmatprep.subr.bf16.mxu0 0
    %5123 = vmatpush1.bf16.msra.mxu0 0
    %5124 = vmatprep.subr.bf16.mxu0 0
    %5125 = vmatpush1.bf16.msra.mxu0 0
    %5126 = vmatprep.subr.bf16.mxu0 0
    %5127 = vmatpush1.bf16.msra.mxu0 0
    %5128 = vmatprep.mubr.bf16.mxu0 0
    %5129 = vmatmul.mubr.bf16.gmra.mrb[0].mxu0 %v5073
    %v5130 = vpop.f32.mrb[0].mxu0
    %v5131 = vadd.f32 0.0, %v5130
    %v5132 = vpop.f32.mrb[0].mxu0
    %v5133 = vpop.f32.mrb[0].mxu0
    %v5134 = vadd.f32 0.0, %v5133
    %v5135 = vpop.f32.mrb[0].mxu0
    %5136 = vmatprep.mubr.bf16.mxu0 0
    %5137 = vmatmul.mubr.bf16.gmra.mrb[0].mxu0 %v5076
    %v5138 = vpop.f32.mrb[0].mxu0
    %v5139 = vadd.f32 0.0, %v5138
    %v5140 = vpop.f32.mrb[0].mxu0
    %v5141 = vpop.f32.mrb[0].mxu0
    %v5142 = vadd.f32 0.0, %v5141
    %v5143 = vpop.f32.mrb[0].mxu0
    %5144 = vmatprep.mubr.bf16.mxu0 0
    %5145 = vmatmul.mubr.bf16.gmra.mrb[0].mxu0 %v5079
    %v5146 = vpop.f32.mrb[0].mxu0
    %v5147 = vadd.f32 0.0, %v5146
    %v5148 = vpop.f32.mrb[0].mxu0
    %v5149 = vpop.f32.mrb[0].mxu0
    %v5150 = vadd.f32 0.0, %v5149
    %v5151 = vpop.f32.mrb[0].mxu0
    %5152 = vmatprep.mubr.bf16.mxu0 0
    %5153 = vmatmul.mubr.bf16.gmra.mrb[0].mxu0 %v5082
    %v5154 = vpop.f32.mrb[0].mxu0
    %v5155 = vadd.f32 0.0, %v5154
    %v5156 = vpop.f32.mrb[0].mxu0
    %v5157 = vpop.f32.mrb[0].mxu0
    %v5158 = vadd.f32 0.0, %v5157
    %v5159 = vpop.f32.mrb[0].mxu0
    %5160 = vmatprep.mubr.bf16.mxu0 0
    %5161 = vmatmul.mubr.bf16.gmra.mrb[0].mxu0 %v5085
    %v5162 = vpop.f32.mrb[0].mxu0
    %v5163 = vadd.f32 0.0, %v5162
    %v5164 = vpop.f32.mrb[0].mxu0
    %v5165 = vpop.f32.mrb[0].mxu0
    %v5166 = vadd.f32 0.0, %v5165
    %v5167 = vpop.f32.mrb[0].mxu0
    %5168 = vmatprep.mubr.bf16.mxu0 0
    %5169 = vmatmul.mubr.bf16.gmra.mrb[0].mxu0 %v5088
    %v5170 = vpop.f32.mrb[0].mxu0
    %v5171 = vadd.f32 0.0, %v5170
    %v5172 = vpop.f32.mrb[0].mxu0
    %v5173 = vpop.f32.mrb[0].mxu0
    %v5174 = vadd.f32 0.0, %v5173
    %v5175 = vpop.f32.mrb[0].mxu0
    %5176 = vmatprep.mubr.bf16.mxu0 0
    %5177 = vmatmul.mubr.bf16.gmra.mrb[0].mxu0 %v5091
    %v5178 = vpop.f32.mrb[0].mxu0
    %v5179 = vadd.f32 0.0, %v5178
    %v5180 = vpop.f32.mrb[0].mxu0
    %v5181 = vpop.f32.mrb[0].mxu0
    %v5182 = vadd.f32 0.0, %v5181
    %v5183 = vpop.f32.mrb[0].mxu0
    %5184 = vmatprep.mubr.bf16.mxu0 0
    %5185 = vmatmul.mubr.bf16.gmra.mrb[0].mxu0 %v5094
    %v5186 = vpop.f32.mrb[0].mxu0
    %v5187 = vadd.f32 0.0, %v5186
    %v5188 = vpop.f32.mrb[0].mxu0
    %v5189 = vpop.f32.mrb[0].mxu0
    %v5190 = vadd.f32 0.0, %v5189
    %v5191 = vpop.f32.mrb[0].mxu0
    %5192 = vdwg.mxu0
    %v5193 = vadd.f32 %v4950, %v5131
    %v5194 = vadd.f32 %v4951, %v5134
    %v5195 = vadd.f32 %v4952, %v5139
    %v5196 = vadd.f32 %v4953, %v5142
    %v5197 = vadd.f32 %v4954, %v5147
    %v5198 = vadd.f32 %v4955, %v5150
    %v5199 = vadd.f32 %v4956, %v5155
    %v5200 = vadd.f32 %v4957, %v5158
    %v5201 = vadd.f32 %v4958, %v5163
    %v5202 = vadd.f32 %v4959, %v5166
    %v5203 = vadd.f32 %v4960, %v5171
    %v5204 = vadd.f32 %v4961, %v5174
    %v5205 = vadd.f32 %v4962, %v5179
    %v5206 = vadd.f32 %v4963, %v5182
    %v5207 = vadd.f32 %v4964, %v5187
    %v5208 = vadd.f32 %v4965, %v5190
    %v5209 = vrot.slane %v66, 4
    %v5210 = vrot.slane %v67, 4
    %v5211 = vsel %vm4966, %v5209, %v5210
    %v5212 = vrot.slane %v90, 4
    %v5213 = vrot.slane %v91, 4
    %v5214 = vsel %vm4966, %v5212, %v5213
    %v5217 = vpack.c.bf16 %v4975, %v4972
    %v5218 = vpack.c.bf16 %v4981, %v4978
    %v5219 = vpack.c.bf16 %v4987, %v4984
    %v5220 = vpack.c.bf16 %v5211, %v4990
    %v5221 = vpack.c.bf16 %v4999, %v4996
    %v5222 = vpack.c.bf16 %v5005, %v5002
    %v5223 = vpack.c.bf16 %v5011, %v5008
    %v5224 = vpack.c.bf16 %v5214, %v5014
    %s5225 = scalar_lea.vmem [#allocation2], 288
    %v5226 = vld [vmem:[%s5225] sm:$0xf]
    %v5227 = vld [vmem:[%s5225 + $0x4] sm:$0xf]
    %v5228 = vld [vmem:[%s5225 + $0x8] sm:$0xf]
    %v5229 = vld [vmem:[%s5225 + $0xc] sm:$0xf]
    %v5230 = vld [vmem:[%s5225 + $0x10] sm:$0xf]
    %v5231 = vld [vmem:[%s5225 + $0x14] sm:$0xf]
    %v5232 = vld [vmem:[%s5225 + $0x18] sm:$0xf]
    %v5233 = vld [vmem:[%s5225 + $0x1c] sm:$0xf]
    %v5242 = vunpack.c.l.b16 %v5226
    %v5243 = vunpack.c.l.b16 %v5227
    %v5244 = vunpack.c.l.b16 %v5228
    %v5245 = vunpack.c.l.b16 %v5229
    %v5246 = vunpack.c.l.b16 %v5230
    %v5247 = vunpack.c.l.b16 %v5231
    %v5248 = vunpack.c.l.b16 %v5232
    %v5249 = vunpack.c.l.b16 %v5233
    %v5250 = vpack.c.b16 %v5243, %v5242
    %v5251 = vpack.c.b16 %v5245, %v5244
    %v5252 = vpack.c.b16 %v5247, %v5246
    %v5253 = vpack.c.b16 %v5249, %v5248
    %v5259 = vsel %vm155, %v5217, 0
    %v5262 = vsel %vm155, %v5218, 0
    %v5265 = vsel %vm155, %v5219, 0
    %v5268 = vsel %vm155, %v5220, 0
    %v5271 = vsel %vm155, %v5221, 0
    %v5274 = vsel %vm155, %v5222, 0
    %v5277 = vsel %vm155, %v5223, 0
    %v5280 = vsel %vm155, %v5224, 0
    %5282 = vmatprep.subr.bf16.mxu0 0
    %5283 = vmatpush1.bf16.msra.mxu0 %v5250
    %5284 = vmatprep.subr.bf16.mxu0 0
    %5285 = vmatpush1.bf16.msra.mxu0 %v5251
    %5286 = vmatprep.subr.bf16.mxu0 0
    %5287 = vmatpush1.bf16.msra.mxu0 %v5252
    %5288 = vmatprep.subr.bf16.mxu0 0
    %5289 = vmatpush1.bf16.msra.mxu0 %v5253
    %5290 = vmatprep.subr.bf16.mxu0 0
    %5291 = vmatpush1.bf16.msra.mxu0 0
    %5292 = vmatprep.subr.bf16.mxu0 0
    %5293 = vmatpush1.bf16.msra.mxu0 0
    %5294 = vmatprep.subr.bf16.mxu0 0
    %5295 = vmatpush1.bf16.msra.mxu0 0
    %5296 = vmatprep.subr.bf16.mxu0 0
    %5297 = vmatpush1.bf16.msra.mxu0 0
    %5298 = vmatprep.subr.bf16.mxu0 0
    %5299 = vmatpush1.bf16.msra.mxu0 0
    %5300 = vmatprep.subr.bf16.mxu0 0
    %5301 = vmatpush1.bf16.msra.mxu0 0
    %5302 = vmatprep.subr.bf16.mxu0 0
    %5303 = vmatpush1.bf16.msra.mxu0 0
    %5304 = vmatprep.subr.bf16.mxu0 0
    %5305 = vmatpush1.bf16.msra.mxu0 0
    %5306 = vmatprep.subr.bf16.mxu0 0
    %5307 = vmatpush1.bf16.msra.mxu0 0
    %5308 = vmatprep.subr.bf16.mxu0 0
    %5309 = vmatpush1.bf16.msra.mxu0 0
    %5310 = vmatprep.subr.bf16.mxu0 0
    %5311 = vmatpush1.bf16.msra.mxu0 0
    %5312 = vmatprep.subr.bf16.mxu0 0
    %5313 = vmatpush1.bf16.msra.mxu0 0
    %5314 = vmatprep.mubr.bf16.mxu0 0
    %5315 = vmatmul.mubr.bf16.gmra.mrb[0].mxu0 %v5259
    %v5316 = vpop.f32.mrb[0].mxu0
    %v5317 = vadd.f32 0.0, %v5316
    %v5318 = vpop.f32.mrb[0].mxu0
    %v5319 = vpop.f32.mrb[0].mxu0
    %v5320 = vadd.f32 0.0, %v5319
    %v5321 = vpop.f32.mrb[0].mxu0
    %5322 = vmatprep.mubr.bf16.mxu0 0
    %5323 = vmatmul.mubr.bf16.gmra.mrb[0].mxu0 %v5262
    %v5324 = vpop.f32.mrb[0].mxu0
    %v5325 = vadd.f32 0.0, %v5324
    %v5326 = vpop.f32.mrb[0].mxu0
    %v5327 = vpop.f32.mrb[0].mxu0
    %v5328 = vadd.f32 0.0, %v5327
    %v5329 = vpop.f32.mrb[0].mxu0
    %5330 = vmatprep.mubr.bf16.mxu0 0
    %5331 = vmatmul.mubr.bf16.gmra.mrb[0].mxu0 %v5265
    %v5332 = vpop.f32.mrb[0].mxu0
    %v5333 = vadd.f32 0.0, %v5332
    %v5334 = vpop.f32.mrb[0].mxu0
    %v5335 = vpop.f32.mrb[0].mxu0
    %v5336 = vadd.f32 0.0, %v5335
    %v5337 = vpop.f32.mrb[0].mxu0
    %5338 = vmatprep.mubr.bf16.mxu0 0
    %5339 = vmatmul.mubr.bf16.gmra.mrb[0].mxu0 %v5268
    %v5340 = vpop.f32.mrb[0].mxu0
    %v5341 = vadd.f32 0.0, %v5340
    %v5342 = vpop.f32.mrb[0].mxu0
    %v5343 = vpop.f32.mrb[0].mxu0
    %v5344 = vadd.f32 0.0, %v5343
    %v5345 = vpop.f32.mrb[0].mxu0
    %5346 = vmatprep.mubr.bf16.mxu0 0
    %5347 = vmatmul.mubr.bf16.gmra.mrb[0].mxu0 %v5271
    %v5348 = vpop.f32.mrb[0].mxu0
    %v5349 = vadd.f32 0.0, %v5348
    %v5350 = vpop.f32.mrb[0].mxu0
    %v5351 = vpop.f32.mrb[0].mxu0
    %v5352 = vadd.f32 0.0, %v5351
    %v5353 = vpop.f32.mrb[0].mxu0
    %5354 = vmatprep.mubr.bf16.mxu0 0
    %5355 = vmatmul.mubr.bf16.gmra.mrb[0].mxu0 %v5274
    %v5356 = vpop.f32.mrb[0].mxu0
    %v5357 = vadd.f32 0.0, %v5356
    %v5358 = vpop.f32.mrb[0].mxu0
    %v5359 = vpop.f32.mrb[0].mxu0
    %v5360 = vadd.f32 0.0, %v5359
    %v5361 = vpop.f32.mrb[0].mxu0
    %5362 = vmatprep.mubr.bf16.mxu0 0
    %5363 = vmatmul.mubr.bf16.gmra.mrb[0].mxu0 %v5277
    %v5364 = vpop.f32.mrb[0].mxu0
    %v5365 = vadd.f32 0.0, %v5364
    %v5366 = vpop.f32.mrb[0].mxu0
    %v5367 = vpop.f32.mrb[0].mxu0
    %v5368 = vadd.f32 0.0, %v5367
    %v5369 = vpop.f32.mrb[0].mxu0
    %5370 = vmatprep.mubr.bf16.mxu0 0
    %5371 = vmatmul.mubr.bf16.gmra.mrb[0].mxu0 %v5280
    %v5372 = vpop.f32.mrb[0].mxu0
    %v5373 = vadd.f32 0.0, %v5372
    %v5374 = vpop.f32.mrb[0].mxu0
    %v5375 = vpop.f32.mrb[0].mxu0
    %v5376 = vadd.f32 0.0, %v5375
    %v5377 = vpop.f32.mrb[0].mxu0
    %5378 = vdwg.mxu0
    %v5379 = vadd.f32 %v5193, %v5317
    %v5380 = vadd.f32 %v5194, %v5320
    %v5381 = vadd.f32 %v5195, %v5325
    %v5382 = vadd.f32 %v5196, %v5328
    %v5383 = vadd.f32 %v5197, %v5333
    %v5384 = vadd.f32 %v5198, %v5336
    %v5385 = vadd.f32 %v5199, %v5341
    %v5386 = vadd.f32 %v5200, %v5344
    %v5387 = vadd.f32 %v5201, %v5349
    %v5388 = vadd.f32 %v5202, %v5352
    %v5389 = vadd.f32 %v5203, %v5357
    %v5390 = vadd.f32 %v5204, %v5360
    %v5391 = vadd.f32 %v5205, %v5365
    %v5392 = vadd.f32 %v5206, %v5368
    %v5393 = vadd.f32 %v5207, %v5373
    %v5394 = vadd.f32 %v5208, %v5376
    %v5395 = vrot.slane %v68, 4
    %v5396 = vrot.slane %v69, 4
    %v5397 = vsel %vm4966, %v5395, %v5396
    %v5398 = vrot.slane %v92, 4
    %v5399 = vrot.slane %v93, 4
    %v5400 = vsel %vm4966, %v5398, %v5399
    %v5403 = vpack.c.bf16 %v5397, %v5211
    %v5404 = vpack.c.bf16 %v5400, %v5214
    %s5405 = scalar_lea.vmem [#allocation2], 448
    %v5406 = vld [vmem:[%s5405] sm:$0xf]
    %v5407 = vld [vmem:[%s5405 + $0x4] sm:$0xf]
    %v5408 = vld [vmem:[%s5405 + $0x8] sm:$0xf]
    %v5409 = vld [vmem:[%s5405 + $0xc] sm:$0xf]
    %v5410 = vld [vmem:[%s5405 + $0x10] sm:$0xf]
    %v5411 = vld [vmem:[%s5405 + $0x14] sm:$0xf]
    %v5412 = vld [vmem:[%s5405 + $0x18] sm:$0xf]
    %v5413 = vld [vmem:[%s5405 + $0x1c] sm:$0xf]
    %v5422 = vunpack.c.l.b16 %v5406
    %v5423 = vunpack.c.l.b16 %v5407
    %v5424 = vunpack.c.l.b16 %v5408
    %v5425 = vunpack.c.l.b16 %v5409
    %v5426 = vunpack.c.l.b16 %v5410
    %v5427 = vunpack.c.l.b16 %v5411
    %v5428 = vunpack.c.l.b16 %v5412
    %v5429 = vunpack.c.l.b16 %v5413
    %v5430 = vpack.c.b16 %v5423, %v5422
    %v5431 = vpack.c.b16 %v5425, %v5424
    %v5432 = vpack.c.b16 %v5427, %v5426
    %v5433 = vpack.c.b16 %v5429, %v5428
    %v5439 = vsel %vm155, %v5403, 0
    %v5442 = vsel %vm155, %v5404, 0
    %5444 = vmatprep.subr.bf16.mxu0 0
    %5445 = vmatpush1.bf16.msra.mxu0 %v5430
    %5446 = vmatprep.subr.bf16.mxu0 0
    %5447 = vmatpush1.bf16.msra.mxu0 %v5431
    %5448 = vmatprep.subr.bf16.mxu0 0
    %5449 = vmatpush1.bf16.msra.mxu0 %v5432
    %5450 = vmatprep.subr.bf16.mxu0 0
    %5451 = vmatpush1.bf16.msra.mxu0 %v5433
    %5452 = vmatprep.subr.bf16.mxu0 0
    %5453 = vmatpush1.bf16.msra.mxu0 0
    %5454 = vmatprep.subr.bf16.mxu0 0
    %5455 = vmatpush1.bf16.msra.mxu0 0
    %5456 = vmatprep.subr.bf16.mxu0 0
    %5457 = vmatpush1.bf16.msra.mxu0 0
    %5458 = vmatprep.subr.bf16.mxu0 0
    %5459 = vmatpush1.bf16.msra.mxu0 0
    %5460 = vmatprep.subr.bf16.mxu0 0
    %5461 = vmatpush1.bf16.msra.mxu0 0
    %5462 = vmatprep.subr.bf16.mxu0 0
    %5463 = vmatpush1.bf16.msra.mxu0 0
    %5464 = vmatprep.subr.bf16.mxu0 0
    %5465 = vmatpush1.bf16.msra.mxu0 0
    %5466 = vmatprep.subr.bf16.mxu0 0
    %5467 = vmatpush1.bf16.msra.mxu0 0
    %5468 = vmatprep.subr.bf16.mxu0 0
    %5469 = vmatpush1.bf16.msra.mxu0 0
    %5470 = vmatprep.subr.bf16.mxu0 0
    %5471 = vmatpush1.bf16.msra.mxu0 0
    %5472 = vmatprep.subr.bf16.mxu0 0
    %5473 = vmatpush1.bf16.msra.mxu0 0
    %5474 = vmatprep.subr.bf16.mxu0 0
    %5475 = vmatpush1.bf16.msra.mxu0 0
    %5476 = vmatprep.mubr.bf16.mxu0 0
    %5477 = vmatmul.mubr.bf16.gmra.mrb[0].mxu0 %v5076
    %v5478 = vpop.f32.mrb[0].mxu0
    %v5479 = vadd.f32 0.0, %v5478
    %v5480 = vpop.f32.mrb[0].mxu0
    %v5481 = vpop.f32.mrb[0].mxu0
    %v5482 = vadd.f32 0.0, %v5481
    %v5483 = vpop.f32.mrb[0].mxu0
    %5484 = vmatprep.mubr.bf16.mxu0 0
    %5485 = vmatmul.mubr.bf16.gmra.mrb[0].mxu0 %v5079
    %v5486 = vpop.f32.mrb[0].mxu0
    %v5487 = vadd.f32 0.0, %v5486
    %v5488 = vpop.f32.mrb[0].mxu0
    %v5489 = vpop.f32.mrb[0].mxu0
    %v5490 = vadd.f32 0.0, %v5489
    %v5491 = vpop.f32.mrb[0].mxu0
    %5492 = vmatprep.mubr.bf16.mxu0 0
    %5493 = vmatmul.mubr.bf16.gmra.mrb[0].mxu0 %v5082
    %v5494 = vpop.f32.mrb[0].mxu0
    %v5495 = vadd.f32 0.0, %v5494
    %v5496 = vpop.f32.mrb[0].mxu0
    %v5497 = vpop.f32.mrb[0].mxu0
    %v5498 = vadd.f32 0.0, %v5497
    %v5499 = vpop.f32.mrb[0].mxu0
    %5500 = vmatprep.mubr.bf16.mxu0 0
    %5501 = vmatmul.mubr.bf16.gmra.mrb[0].mxu0 %v5439
    %v5502 = vpop.f32.mrb[0].mxu0
    %v5503 = vadd.f32 0.0, %v5502
    %v5504 = vpop.f32.mrb[0].mxu0
    %v5505 = vpop.f32.mrb[0].mxu0
    %v5506 = vadd.f32 0.0, %v5505
    %v5507 = vpop.f32.mrb[0].mxu0
    %5508 = vmatprep.mubr.bf16.mxu0 0
    %5509 = vmatmul.mubr.bf16.gmra.mrb[0].mxu0 %v5088
    %v5510 = vpop.f32.mrb[0].mxu0
    %v5511 = vadd.f32 0.0, %v5510
    %v5512 = vpop.f32.mrb[0].mxu0
    %v5513 = vpop.f32.mrb[0].mxu0
    %v5514 = vadd.f32 0.0, %v5513
    %v5515 = vpop.f32.mrb[0].mxu0
    %5516 = vmatprep.mubr.bf16.mxu0 0
    %5517 = vmatmul.mubr.bf16.gmra.mrb[0].mxu0 %v5091
    %v5518 = vpop.f32.mrb[0].mxu0
    %v5519 = vadd.f32 0.0, %v5518
    %v5520 = vpop.f32.mrb[0].mxu0
    %v5521 = vpop.f32.mrb[0].mxu0
    %v5522 = vadd.f32 0.0, %v5521
    %v5523 = vpop.f32.mrb[0].mxu0
    %5524 = vmatprep.mubr.bf16.mxu0 0
    %5525 = vmatmul.mubr.bf16.gmra.mrb[0].mxu0 %v5094
    %v5526 = vpop.f32.mrb[0].mxu0
    %v5527 = vadd.f32 0.0, %v5526
    %v5528 = vpop.f32.mrb[0].mxu0
    %v5529 = vpop.f32.mrb[0].mxu0
    %v5530 = vadd.f32 0.0, %v5529
    %v5531 = vpop.f32.mrb[0].mxu0
    %5532 = vmatprep.mubr.bf16.mxu0 0
    %5533 = vmatmul.mubr.bf16.gmra.mrb[0].mxu0 %v5442
    %v5534 = vpop.f32.mrb[0].mxu0
    %v5535 = vadd.f32 0.0, %v5534
    %v5536 = vpop.f32.mrb[0].mxu0
    %v5537 = vpop.f32.mrb[0].mxu0
    %v5538 = vadd.f32 0.0, %v5537
    %v5539 = vpop.f32.mrb[0].mxu0
    %5540 = vdwg.mxu0
    %v5541 = vadd.f32 %v5379, %v5479
    %v5542 = vadd.f32 %v5380, %v5482
    %v5543 = vadd.f32 %v5381, %v5487
    %v5544 = vadd.f32 %v5382, %v5490
    %v5545 = vadd.f32 %v5383, %v5495
    %v5546 = vadd.f32 %v5384, %v5498
    %v5547 = vadd.f32 %v5385, %v5503
    %v5548 = vadd.f32 %v5386, %v5506
    %v5549 = vadd.f32 %v5387, %v5511
    %v5550 = vadd.f32 %v5388, %v5514
    %v5551 = vadd.f32 %v5389, %v5519
    %v5552 = vadd.f32 %v5390, %v5522
    %v5553 = vadd.f32 %v5391, %v5527
    %v5554 = vadd.f32 %v5392, %v5530
    %v5555 = vadd.f32 %v5393, %v5535
    %v5556 = vadd.f32 %v5394, %v5538
    %v5557 = vrot.slane %v70, 4
    %v5558 = vrot.slane %v71, 4
    %v5559 = vsel %vm4966, %v5557, %v5558
    %v5560 = vrot.slane %v94, 4
    %v5561 = vrot.slane %v95, 4
    %v5562 = vsel %vm4966, %v5560, %v5561
    %v5565 = vpack.c.bf16 %v5559, %v5397
    %v5566 = vpack.c.bf16 %v5562, %v5400
    %s5567 = scalar_lea.vmem [#allocation2], 608
    %v5568 = vld [vmem:[%s5567] sm:$0xf]
    %v5569 = vld [vmem:[%s5567 + $0x4] sm:$0xf]
    %v5570 = vld [vmem:[%s5567 + $0x8] sm:$0xf]
    %v5571 = vld [vmem:[%s5567 + $0xc] sm:$0xf]
    %v5572 = vld [vmem:[%s5567 + $0x10] sm:$0xf]
    %v5573 = vld [vmem:[%s5567 + $0x14] sm:$0xf]
    %v5574 = vld [vmem:[%s5567 + $0x18] sm:$0xf]
    %v5575 = vld [vmem:[%s5567 + $0x1c] sm:$0xf]
    %v5584 = vunpack.c.l.b16 %v5568
    %v5585 = vunpack.c.l.b16 %v5569
    %v5586 = vunpack.c.l.b16 %v5570
    %v5587 = vunpack.c.l.b16 %v5571
    %v5588 = vunpack.c.l.b16 %v5572
    %v5589 = vunpack.c.l.b16 %v5573
    %v5590 = vunpack.c.l.b16 %v5574
    %v5591 = vunpack.c.l.b16 %v5575
    %v5592 = vpack.c.b16 %v5585, %v5584
    %v5593 = vpack.c.b16 %v5587, %v5586
    %v5594 = vpack.c.b16 %v5589, %v5588
    %v5595 = vpack.c.b16 %v5591, %v5590
    %v5601 = vsel %vm155, %v5565, 0
    %v5604 = vsel %vm155, %v5566, 0
    %5606 = vmatprep.subr.bf16.mxu0 0
    %5607 = vmatpush1.bf16.msra.mxu0 %v5592
    %5608 = vmatprep.subr.bf16.mxu0 0
    %5609 = vmatpush1.bf16.msra.mxu0 %v5593
    %5610 = vmatprep.subr.bf16.mxu0 0
    %5611 = vmatpush1.bf16.msra.mxu0 %v5594
    %5612 = vmatprep.subr.bf16.mxu0 0
    %5613 = vmatpush1.bf16.msra.mxu0 %v5595
    %5614 = vmatprep.subr.bf16.mxu0 0
    %5615 = vmatpush1.bf16.msra.mxu0 0
    %5616 = vmatprep.subr.bf16.mxu0 0
    %5617 = vmatpush1.bf16.msra.mxu0 0
    %5618 = vmatprep.subr.bf16.mxu0 0
    %5619 = vmatpush1.bf16.msra.mxu0 0
    %5620 = vmatprep.subr.bf16.mxu0 0
    %5621 = vmatpush1.bf16.msra.mxu0 0
    %5622 = vmatprep.subr.bf16.mxu0 0
    %5623 = vmatpush1.bf16.msra.mxu0 0
    %5624 = vmatprep.subr.bf16.mxu0 0
    %5625 = vmatpush1.bf16.msra.mxu0 0
    %5626 = vmatprep.subr.bf16.mxu0 0
    %5627 = vmatpush1.bf16.msra.mxu0 0
    %5628 = vmatprep.subr.bf16.mxu0 0
    %5629 = vmatpush1.bf16.msra.mxu0 0
    %5630 = vmatprep.subr.bf16.mxu0 0
    %5631 = vmatpush1.bf16.msra.mxu0 0
    %5632 = vmatprep.subr.bf16.mxu0 0
    %5633 = vmatpush1.bf16.msra.mxu0 0
    %5634 = vmatprep.subr.bf16.mxu0 0
    %5635 = vmatpush1.bf16.msra.mxu0 0
    %5636 = vmatprep.subr.bf16.mxu0 0
    %5637 = vmatpush1.bf16.msra.mxu0 0
    %5638 = vmatprep.mubr.bf16.mxu0 0
    %5639 = vmatmul.mubr.bf16.gmra.mrb[0].mxu0 %v5262
    %v5640 = vpop.f32.mrb[0].mxu0
    %v5641 = vadd.f32 0.0, %v5640
    %v5642 = vpop.f32.mrb[0].mxu0
    %v5643 = vpop.f32.mrb[0].mxu0
    %v5644 = vadd.f32 0.0, %v5643
    %v5645 = vpop.f32.mrb[0].mxu0
    %5646 = vmatprep.mubr.bf16.mxu0 0
    %5647 = vmatmul.mubr.bf16.gmra.mrb[0].mxu0 %v5265
    %v5648 = vpop.f32.mrb[0].mxu0
    %v5649 = vadd.f32 0.0, %v5648
    %v5650 = vpop.f32.mrb[0].mxu0
    %v5651 = vpop.f32.mrb[0].mxu0
    %v5652 = vadd.f32 0.0, %v5651
    %v5653 = vpop.f32.mrb[0].mxu0
    %5654 = vmatprep.mubr.bf16.mxu0 0
    %5655 = vmatmul.mubr.bf16.gmra.mrb[0].mxu0 %v5268
    %v5656 = vpop.f32.mrb[0].mxu0
    %v5657 = vadd.f32 0.0, %v5656
    %v5658 = vpop.f32.mrb[0].mxu0
    %v5659 = vpop.f32.mrb[0].mxu0
    %v5660 = vadd.f32 0.0, %v5659
    %v5661 = vpop.f32.mrb[0].mxu0
    %5662 = vmatprep.mubr.bf16.mxu0 0
    %5663 = vmatmul.mubr.bf16.gmra.mrb[0].mxu0 %v5601
    %v5664 = vpop.f32.mrb[0].mxu0
    %v5665 = vadd.f32 0.0, %v5664
    %v5666 = vpop.f32.mrb[0].mxu0
    %v5667 = vpop.f32.mrb[0].mxu0
    %v5668 = vadd.f32 0.0, %v5667
    %v5669 = vpop.f32.mrb[0].mxu0
    %5670 = vmatprep.mubr.bf16.mxu0 0
    %5671 = vmatmul.mubr.bf16.gmra.mrb[0].mxu0 %v5274
    %v5672 = vpop.f32.mrb[0].mxu0
    %v5673 = vadd.f32 0.0, %v5672
    %v5674 = vpop.f32.mrb[0].mxu0
    %v5675 = vpop.f32.mrb[0].mxu0
    %v5676 = vadd.f32 0.0, %v5675
    %v5677 = vpop.f32.mrb[0].mxu0
    %5678 = vmatprep.mubr.bf16.mxu0 0
    %5679 = vmatmul.mubr.bf16.gmra.mrb[0].mxu0 %v5277
    %v5680 = vpop.f32.mrb[0].mxu0
    %v5681 = vadd.f32 0.0, %v5680
    %v5682 = vpop.f32.mrb[0].mxu0
    %v5683 = vpop.f32.mrb[0].mxu0
    %v5684 = vadd.f32 0.0, %v5683
    %v5685 = vpop.f32.mrb[0].mxu0
    %5686 = vmatprep.mubr.bf16.mxu0 0
    %5687 = vmatmul.mubr.bf16.gmra.mrb[0].mxu0 %v5280
    %v5688 = vpop.f32.mrb[0].mxu0
    %v5689 = vadd.f32 0.0, %v5688
    %v5690 = vpop.f32.mrb[0].mxu0
    %v5691 = vpop.f32.mrb[0].mxu0
    %v5692 = vadd.f32 0.0, %v5691
    %v5693 = vpop.f32.mrb[0].mxu0
    %5694 = vmatprep.mubr.bf16.mxu0 0
    %5695 = vmatmul.mubr.bf16.gmra.mrb[0].mxu0 %v5604
    %v5696 = vpop.f32.mrb[0].mxu0
    %v5697 = vadd.f32 0.0, %v5696
    %v5698 = vpop.f32.mrb[0].mxu0
    %v5699 = vpop.f32.mrb[0].mxu0
    %v5700 = vadd.f32 0.0, %v5699
    %v5701 = vpop.f32.mrb[0].mxu0
    %5702 = vdwg.mxu0
    %v5703 = vadd.f32 %v5541, %v5641
    %v5704 = vadd.f32 %v5542, %v5644
    %v5705 = vadd.f32 %v5543, %v5649
    %v5706 = vadd.f32 %v5544, %v5652
    %v5707 = vadd.f32 %v5545, %v5657
    %v5708 = vadd.f32 %v5546, %v5660
    %v5709 = vadd.f32 %v5547, %v5665
    %v5710 = vadd.f32 %v5548, %v5668
    %v5711 = vadd.f32 %v5549, %v5673
    %v5712 = vadd.f32 %v5550, %v5676
    %v5713 = vadd.f32 %v5551, %v5681
    %v5714 = vadd.f32 %v5552, %v5684
    %v5715 = vadd.f32 %v5553, %v5689
    %v5716 = vadd.f32 %v5554, %v5692
    %v5717 = vadd.f32 %v5555, %v5697
    %v5718 = vadd.f32 %v5556, %v5700
    %v5719 = vrot.slane %v72, 4
    %v5720 = vrot.slane %v73, 4
    %v5721 = vsel %vm4966, %v5719, %v5720
    %v5722 = vrot.slane %v96, 4
    %v5723 = vrot.slane %v97, 4
    %v5724 = vsel %vm4966, %v5722, %v5723
    %v5727 = vpack.c.bf16 %v5721, %v5559
    %v5728 = vpack.c.bf16 %v5724, %v5562
    %s5729 = scalar_lea.vmem [#allocation2], 768
    %v5730 = vld [vmem:[%s5729] sm:$0xf]
    %v5731 = vld [vmem:[%s5729 + $0x4] sm:$0xf]
    %v5732 = vld [vmem:[%s5729 + $0x8] sm:$0xf]
    %v5733 = vld [vmem:[%s5729 + $0xc] sm:$0xf]
    %v5734 = vld [vmem:[%s5729 + $0x10] sm:$0xf]
    %v5735 = vld [vmem:[%s5729 + $0x14] sm:$0xf]
    %v5736 = vld [vmem:[%s5729 + $0x18] sm:$0xf]
    %v5737 = vld [vmem:[%s5729 + $0x1c] sm:$0xf]
    %v5746 = vunpack.c.l.b16 %v5730
    %v5747 = vunpack.c.l.b16 %v5731
    %v5748 = vunpack.c.l.b16 %v5732
    %v5749 = vunpack.c.l.b16 %v5733
    %v5750 = vunpack.c.l.b16 %v5734
    %v5751 = vunpack.c.l.b16 %v5735
    %v5752 = vunpack.c.l.b16 %v5736
    %v5753 = vunpack.c.l.b16 %v5737
    %v5754 = vpack.c.b16 %v5747, %v5746
    %v5755 = vpack.c.b16 %v5749, %v5748
    %v5756 = vpack.c.b16 %v5751, %v5750
    %v5757 = vpack.c.b16 %v5753, %v5752
    %v5763 = vsel %vm155, %v5727, 0
    %v5766 = vsel %vm155, %v5728, 0
    %5768 = vmatprep.subr.bf16.mxu0 0
    %5769 = vmatpush1.bf16.msra.mxu0 %v5754
    %5770 = vmatprep.subr.bf16.mxu0 0
    %5771 = vmatpush1.bf16.msra.mxu0 %v5755
    %5772 = vmatprep.subr.bf16.mxu0 0
    %5773 = vmatpush1.bf16.msra.mxu0 %v5756
    %5774 = vmatprep.subr.bf16.mxu0 0
    %5775 = vmatpush1.bf16.msra.mxu0 %v5757
    %5776 = vmatprep.subr.bf16.mxu0 0
    %5777 = vmatpush1.bf16.msra.mxu0 0
    %5778 = vmatprep.subr.bf16.mxu0 0
    %5779 = vmatpush1.bf16.msra.mxu0 0
    %5780 = vmatprep.subr.bf16.mxu0 0
    %5781 = vmatpush1.bf16.msra.mxu0 0
    %5782 = vmatprep.subr.bf16.mxu0 0
    %5783 = vmatpush1.bf16.msra.mxu0 0
    %5784 = vmatprep.subr.bf16.mxu0 0
    %5785 = vmatpush1.bf16.msra.mxu0 0
    %5786 = vmatprep.subr.bf16.mxu0 0
    %5787 = vmatpush1.bf16.msra.mxu0 0
    %5788 = vmatprep.subr.bf16.mxu0 0
    %5789 = vmatpush1.bf16.msra.mxu0 0
    %5790 = vmatprep.subr.bf16.mxu0 0
    %5791 = vmatpush1.bf16.msra.mxu0 0
    %5792 = vmatprep.subr.bf16.mxu0 0
    %5793 = vmatpush1.bf16.msra.mxu0 0
    %5794 = vmatprep.subr.bf16.mxu0 0
    %5795 = vmatpush1.bf16.msra.mxu0 0
    %5796 = vmatprep.subr.bf16.mxu0 0
    %5797 = vmatpush1.bf16.msra.mxu0 0
    %5798 = vmatprep.subr.bf16.mxu0 0
    %5799 = vmatpush1.bf16.msra.mxu0 0
    %5800 = vmatprep.mubr.bf16.mxu0 0
    %5801 = vmatmul.mubr.bf16.gmra.mrb[0].mxu0 %v5079
    %v5802 = vpop.f32.mrb[0].mxu0
    %v5803 = vadd.f32 0.0, %v5802
    %v5804 = vpop.f32.mrb[0].mxu0
    %v5805 = vpop.f32.mrb[0].mxu0
    %v5806 = vadd.f32 0.0, %v5805
    %v5807 = vpop.f32.mrb[0].mxu0
    %5808 = vmatprep.mubr.bf16.mxu0 0
    %5809 = vmatmul.mubr.bf16.gmra.mrb[0].mxu0 %v5082
    %v5810 = vpop.f32.mrb[0].mxu0
    %v5811 = vadd.f32 0.0, %v5810
    %v5812 = vpop.f32.mrb[0].mxu0
    %v5813 = vpop.f32.mrb[0].mxu0
    %v5814 = vadd.f32 0.0, %v5813
    %v5815 = vpop.f32.mrb[0].mxu0
    %5816 = vmatprep.mubr.bf16.mxu0 0
    %5817 = vmatmul.mubr.bf16.gmra.mrb[0].mxu0 %v5439
    %v5818 = vpop.f32.mrb[0].mxu0
    %v5819 = vadd.f32 0.0, %v5818
    %v5820 = vpop.f32.mrb[0].mxu0
    %v5821 = vpop.f32.mrb[0].mxu0
    %v5822 = vadd.f32 0.0, %v5821
    %v5823 = vpop.f32.mrb[0].mxu0
    %5824 = vmatprep.mubr.bf16.mxu0 0
    %5825 = vmatmul.mubr.bf16.gmra.mrb[0].mxu0 %v5763
    %v5826 = vpop.f32.mrb[0].mxu0
    %v5827 = vadd.f32 0.0, %v5826
    %v5828 = vpop.f32.mrb[0].mxu0
    %v5829 = vpop.f32.mrb[0].mxu0
    %v5830 = vadd.f32 0.0, %v5829
    %v5831 = vpop.f32.mrb[0].mxu0
    %5832 = vmatprep.mubr.bf16.mxu0 0
    %5833 = vmatmul.mubr.bf16.gmra.mrb[0].mxu0 %v5091
    %v5834 = vpop.f32.mrb[0].mxu0
    %v5835 = vadd.f32 0.0, %v5834
    %v5836 = vpop.f32.mrb[0].mxu0
    %v5837 = vpop.f32.mrb[0].mxu0
    %v5838 = vadd.f32 0.0, %v5837
    %v5839 = vpop.f32.mrb[0].mxu0
    %5840 = vmatprep.mubr.bf16.mxu0 0
    %5841 = vmatmul.mubr.bf16.gmra.mrb[0].mxu0 %v5094
    %v5842 = vpop.f32.mrb[0].mxu0
    %v5843 = vadd.f32 0.0, %v5842
    %v5844 = vpop.f32.mrb[0].mxu0
    %v5845 = vpop.f32.mrb[0].mxu0
    %v5846 = vadd.f32 0.0, %v5845
    %v5847 = vpop.f32.mrb[0].mxu0
    %5848 = vmatprep.mubr.bf16.mxu0 0
    %5849 = vmatmul.mubr.bf16.gmra.mrb[0].mxu0 %v5442
    %v5850 = vpop.f32.mrb[0].mxu0
    %v5851 = vadd.f32 0.0, %v5850
    %v5852 = vpop.f32.mrb[0].mxu0
    %v5853 = vpop.f32.mrb[0].mxu0
    %v5854 = vadd.f32 0.0, %v5853
    %v5855 = vpop.f32.mrb[0].mxu0
    %5856 = vmatprep.mubr.bf16.mxu0 0
    %5857 = vmatmul.mubr.bf16.gmra.mrb[0].mxu0 %v5766
    %v5858 = vpop.f32.mrb[0].mxu0
    %v5859 = vadd.f32 0.0, %v5858
    %v5860 = vpop.f32.mrb[0].mxu0
    %v5861 = vpop.f32.mrb[0].mxu0
    %v5862 = vadd.f32 0.0, %v5861
    %v5863 = vpop.f32.mrb[0].mxu0
    %5864 = vdwg.mxu0
    %v5865 = vadd.f32 %v5703, %v5803
    %v5866 = vadd.f32 %v5704, %v5806
    %v5867 = vadd.f32 %v5705, %v5811
    %v5868 = vadd.f32 %v5706, %v5814
    %v5869 = vadd.f32 %v5707, %v5819
    %v5870 = vadd.f32 %v5708, %v5822
    %v5871 = vadd.f32 %v5709, %v5827
    %v5872 = vadd.f32 %v5710, %v5830
    %v5873 = vadd.f32 %v5711, %v5835
    %v5874 = vadd.f32 %v5712, %v5838
    %v5875 = vadd.f32 %v5713, %v5843
    %v5876 = vadd.f32 %v5714, %v5846
    %v5877 = vadd.f32 %v5715, %v5851
    %v5878 = vadd.f32 %v5716, %v5854
    %v5879 = vadd.f32 %v5717, %v5859
    %v5880 = vadd.f32 %v5718, %v5862
    %v5881 = vld [vmem:[%s4] sm:$0x1]
    %v5883 = vlaneseq
    %v5884 = vshrl.u32 %v5883, 7
    %v5885 = vsub.s32 0, %v5884
    %v5886 = vrot.slane %v5881, %v5885
    %v5896 = vunpack.c.l.b16 %v3135
    %v5897 = vunpack.c.l.b16 %v3136
    %v5898 = vunpack.c.l.b16 %v3137
    %v5899 = vunpack.c.l.b16 %v3138
    %v5900 = vunpack.c.l.b16 %v3139
    %v5901 = vunpack.c.l.b16 %v3140
    %v5902 = vunpack.c.l.b16 %v3141
    %v5903 = vunpack.c.l.b16 %v3142
    %v5904 = vpack.c.b16 %v5897, %v5896
    %v5905 = vpack.c.b16 %v5899, %v5898
    %v5906 = vpack.c.b16 %v5901, %v5900
    %v5907 = vpack.c.b16 %v5903, %v5902
    %5912 = vmatprep.subr.bf16.mxu0 0
    %5913 = vmatpush1.bf16.msra.mxu0 %v5904
    %5914 = vmatprep.subr.bf16.mxu0 0
    %5915 = vmatpush1.bf16.msra.mxu0 %v5905
    %5916 = vmatprep.subr.bf16.mxu0 0
    %5917 = vmatpush1.bf16.msra.mxu0 %v5906
    %5918 = vmatprep.subr.bf16.mxu0 0
    %5919 = vmatpush1.bf16.msra.mxu0 %v5907
    %5920 = vmatprep.subr.bf16.mxu0 0
    %5921 = vmatpush1.bf16.msra.mxu0 0
    %5922 = vmatprep.subr.bf16.mxu0 0
    %5923 = vmatpush1.bf16.msra.mxu0 0
    %5924 = vmatprep.subr.bf16.mxu0 0
    %5925 = vmatpush1.bf16.msra.mxu0 0
    %5926 = vmatprep.subr.bf16.mxu0 0
    %5927 = vmatpush1.bf16.msra.mxu0 0
    %5928 = vmatprep.subr.bf16.mxu0 0
    %5929 = vmatpush1.bf16.msra.mxu0 0
    %5930 = vmatprep.subr.bf16.mxu0 0
    %5931 = vmatpush1.bf16.msra.mxu0 0
    %5932 = vmatprep.subr.bf16.mxu0 0
    %5933 = vmatpush1.bf16.msra.mxu0 0
    %5934 = vmatprep.subr.bf16.mxu0 0
    %5935 = vmatpush1.bf16.msra.mxu0 0
    %5936 = vmatprep.subr.bf16.mxu0 0
    %5937 = vmatpush1.bf16.msra.mxu0 0
    %5938 = vmatprep.subr.bf16.mxu0 0
    %5939 = vmatpush1.bf16.msra.mxu0 0
    %5940 = vmatprep.subr.bf16.mxu0 0
    %5941 = vmatpush1.bf16.msra.mxu0 0
    %5942 = vmatprep.subr.bf16.mxu0 0
    %5943 = vmatpush1.bf16.msra.mxu0 0
    %5944 = vmatprep.mubr.bf16.mxu0 0
    %5945 = vmatmul.mubr.bf16.gmra.mrb[0].mxu0 %v2362
    %v5946 = vpop.f32.mrb[0].mxu0
    %v5947 = vadd.f32 %v5886, %v5946
    %v5948 = vpop.f32.mrb[0].mxu0
    %v5949 = vpop.f32.mrb[0].mxu0
    %v5950 = vadd.f32 %v5886, %v5949
    %v5951 = vpop.f32.mrb[0].mxu0
    %5952 = vmatprep.mubr.bf16.mxu0 0
    %5953 = vmatmul.mubr.bf16.gmra.mrb[0].mxu0 %v2365
    %v5954 = vpop.f32.mrb[0].mxu0
    %v5955 = vadd.f32 %v5886, %v5954
    %v5956 = vpop.f32.mrb[0].mxu0
    %v5957 = vpop.f32.mrb[0].mxu0
    %v5958 = vadd.f32 %v5886, %v5957
    %v5959 = vpop.f32.mrb[0].mxu0
    %5960 = vmatprep.mubr.bf16.mxu0 0
    %5961 = vmatmul.mubr.bf16.gmra.mrb[0].mxu0 %v2368
    %v5962 = vpop.f32.mrb[0].mxu0
    %v5963 = vadd.f32 %v5886, %v5962
    %v5964 = vpop.f32.mrb[0].mxu0
    %v5965 = vpop.f32.mrb[0].mxu0
    %v5966 = vadd.f32 %v5886, %v5965
    %v5967 = vpop.f32.mrb[0].mxu0
    %5968 = vmatprep.mubr.bf16.mxu0 0
    %5969 = vmatmul.mubr.bf16.gmra.mrb[0].mxu0 %v2871
    %v5970 = vpop.f32.mrb[0].mxu0
    %v5971 = vadd.f32 %v5886, %v5970
    %v5972 = vpop.f32.mrb[0].mxu0
    %v5973 = vpop.f32.mrb[0].mxu0
    %v5974 = vadd.f32 %v5886, %v5973
    %v5975 = vpop.f32.mrb[0].mxu0
    %5976 = vmatprep.mubr.bf16.mxu0 0
    %5977 = vmatmul.mubr.bf16.gmra.mrb[0].mxu0 %v2374
    %v5978 = vpop.f32.mrb[0].mxu0
    %v5979 = vadd.f32 %v5886, %v5978
    %v5980 = vpop.f32.mrb[0].mxu0
    %v5981 = vpop.f32.mrb[0].mxu0
    %v5982 = vadd.f32 %v5886, %v5981
    %v5983 = vpop.f32.mrb[0].mxu0
    %5984 = vmatprep.mubr.bf16.mxu0 0
    %5985 = vmatmul.mubr.bf16.gmra.mrb[0].mxu0 %v2377
    %v5986 = vpop.f32.mrb[0].mxu0
    %v5987 = vadd.f32 %v5886, %v5986
    %v5988 = vpop.f32.mrb[0].mxu0
    %v5989 = vpop.f32.mrb[0].mxu0
    %v5990 = vadd.f32 %v5886, %v5989
    %v5991 = vpop.f32.mrb[0].mxu0
    %5992 = vmatprep.mubr.bf16.mxu0 0
    %5993 = vmatmul.mubr.bf16.gmra.mrb[0].mxu0 %v2380
    %v5994 = vpop.f32.mrb[0].mxu0
    %v5995 = vadd.f32 %v5886, %v5994
    %v5996 = vpop.f32.mrb[0].mxu0
    %v5997 = vpop.f32.mrb[0].mxu0
    %v5998 = vadd.f32 %v5886, %v5997
    %v5999 = vpop.f32.mrb[0].mxu0
    %6000 = vmatprep.mubr.bf16.mxu0 0
    %6001 = vmatmul.mubr.bf16.gmra.mrb[0].mxu0 %v2874
    %v6002 = vpop.f32.mrb[0].mxu0
    %v6003 = vadd.f32 %v5886, %v6002
    %v6004 = vpop.f32.mrb[0].mxu0
    %v6005 = vpop.f32.mrb[0].mxu0
    %v6006 = vadd.f32 %v5886, %v6005
    %v6007 = vpop.f32.mrb[0].mxu0
    %6008 = vdwg.mxu0
    %v6009 = vmax.f32 %v5947, 0.0
    %v6010 = vmax.f32 %v5950, 0.0
    %v6011 = vmax.f32 %v5955, 0.0
    %v6012 = vmax.f32 %v5958, 0.0
    %v6013 = vmax.f32 %v5963, 0.0
    %v6014 = vmax.f32 %v5966, 0.0
    %v6015 = vmax.f32 %v5971, 0.0
    %v6016 = vmax.f32 %v5974, 0.0
    %v6017 = vmax.f32 %v5979, 0.0
    %v6018 = vmax.f32 %v5982, 0.0
    %v6019 = vmax.f32 %v5987, 0.0
    %v6020 = vmax.f32 %v5990, 0.0
    %v6021 = vmax.f32 %v5995, 0.0
    %v6022 = vmax.f32 %v5998, 0.0
    %v6023 = vmax.f32 %v6003, 0.0
    %v6024 = vmax.f32 %v6006, 0.0
    %s6025 = scalar_lea.vmem %s4, 1
    %v6026 = vld [vmem:[%s6025] sm:$0x1]
    %v6028 = vlaneseq
    %v6029 = vshrl.u32 %v6028, 7
    %v6030 = vsub.s32 0, %v6029
    %v6031 = vrot.slane %v6026, %v6030
    %v6033 = vadd.f32 %v4788, %v6031
    %v6034 = vadd.f32 %v4789, %v6031
    %v6035 = vadd.f32 %v4790, %v6031
    %v6036 = vadd.f32 %v4791, %v6031
    %v6037 = vadd.f32 %v4792, %v6031
    %v6038 = vadd.f32 %v4793, %v6031
    %v6039 = vadd.f32 %v4794, %v6031
    %v6040 = vadd.f32 %v4795, %v6031
    %v6041 = vadd.f32 %v4796, %v6031
    %v6042 = vadd.f32 %v4797, %v6031
    %v6043 = vadd.f32 %v4798, %v6031
    %v6044 = vadd.f32 %v4799, %v6031
    %v6045 = vadd.f32 %v4800, %v6031
    %v6046 = vadd.f32 %v4801, %v6031
    %v6047 = vadd.f32 %v4802, %v6031
    %v6048 = vadd.f32 %v4803, %v6031
    %v6049 = vmax.f32 %v6033, 0.0
    %v6050 = vmax.f32 %v6034, 0.0
    %v6051 = vmax.f32 %v6035, 0.0
    %v6052 = vmax.f32 %v6036, 0.0
    %v6053 = vmax.f32 %v6037, 0.0
    %v6054 = vmax.f32 %v6038, 0.0
    %v6055 = vmax.f32 %v6039, 0.0
    %v6056 = vmax.f32 %v6040, 0.0
    %v6057 = vmax.f32 %v6041, 0.0
    %v6058 = vmax.f32 %v6042, 0.0
    %v6059 = vmax.f32 %v6043, 0.0
    %v6060 = vmax.f32 %v6044, 0.0
    %v6061 = vmax.f32 %v6045, 0.0
    %v6062 = vmax.f32 %v6046, 0.0
    %v6063 = vmax.f32 %v6047, 0.0
    %v6064 = vmax.f32 %v6048, 0.0
    %s6065 = scalar_lea.vmem %s4, 2
    %v6066 = vld [vmem:[%s6065] sm:$0x1]
    %v6068 = vlaneseq
    %v6069 = vshrl.u32 %v6068, 7
    %v6070 = vsub.s32 0, %v6069
    %v6071 = vrot.slane %v6066, %v6070
    %v6073 = vadd.f32 %v5865, %v6071
    %v6074 = vadd.f32 %v5866, %v6071
    %v6075 = vadd.f32 %v5867, %v6071
    %v6076 = vadd.f32 %v5868, %v6071
    %v6077 = vadd.f32 %v5869, %v6071
    %v6078 = vadd.f32 %v5870, %v6071
    %v6079 = vadd.f32 %v5871, %v6071
    %v6080 = vadd.f32 %v5872, %v6071
    %v6081 = vadd.f32 %v5873, %v6071
    %v6082 = vadd.f32 %v5874, %v6071
    %v6083 = vadd.f32 %v5875, %v6071
    %v6084 = vadd.f32 %v5876, %v6071
    %v6085 = vadd.f32 %v5877, %v6071
    %v6086 = vadd.f32 %v5878, %v6071
    %v6087 = vadd.f32 %v5879, %v6071
    %v6088 = vadd.f32 %v5880, %v6071
    %v6089 = vmax.f32 %v6073, 0.0
    %v6090 = vmax.f32 %v6074, 0.0
    %v6091 = vmax.f32 %v6075, 0.0
    %v6092 = vmax.f32 %v6076, 0.0
    %v6093 = vmax.f32 %v6077, 0.0
    %v6094 = vmax.f32 %v6078, 0.0
    %v6095 = vmax.f32 %v6079, 0.0
    %v6096 = vmax.f32 %v6080, 0.0
    %v6097 = vmax.f32 %v6081, 0.0
    %v6098 = vmax.f32 %v6082, 0.0
    %v6099 = vmax.f32 %v6083, 0.0
    %v6100 = vmax.f32 %v6084, 0.0
    %v6101 = vmax.f32 %v6085, 0.0
    %v6102 = vmax.f32 %v6086, 0.0
    %v6103 = vmax.f32 %v6087, 0.0
    %v6104 = vmax.f32 %v6088, 0.0
    %v6105 = vadd.f32 %v6009, %v6049
    %v6106 = vadd.f32 %v6010, %v6050
    %v6107 = vadd.f32 %v6011, %v6051
    %v6108 = vadd.f32 %v6012, %v6052
    %v6109 = vadd.f32 %v6013, %v6053
    %v6110 = vadd.f32 %v6014, %v6054
    %v6111 = vadd.f32 %v6015, %v6055
    %v6112 = vadd.f32 %v6016, %v6056
    %v6113 = vadd.f32 %v6017, %v6057
    %v6114 = vadd.f32 %v6018, %v6058
    %v6115 = vadd.f32 %v6019, %v6059
    %v6116 = vadd.f32 %v6020, %v6060
    %v6117 = vadd.f32 %v6021, %v6061
    %v6118 = vadd.f32 %v6022, %v6062
    %v6119 = vadd.f32 %v6023, %v6063
    %v6120 = vadd.f32 %v6024, %v6064
    %v6121 = vadd.f32 %v6105, %v6089
    %v6122 = vadd.f32 %v6106, %v6090
    %v6123 = vadd.f32 %v6107, %v6091
    %v6124 = vadd.f32 %v6108, %v6092
    %v6125 = vadd.f32 %v6109, %v6093
    %v6126 = vadd.f32 %v6110, %v6094
    %v6127 = vadd.f32 %v6111, %v6095
    %v6128 = vadd.f32 %v6112, %v6096
    %v6129 = vadd.f32 %v6113, %v6097
    %v6130 = vadd.f32 %v6114, %v6098
    %v6131 = vadd.f32 %v6115, %v6099
    %v6132 = vadd.f32 %v6116, %v6100
    %v6133 = vadd.f32 %v6117, %v6101
    %v6134 = vadd.f32 %v6118, %v6102
    %v6135 = vadd.f32 %v6119, %v6103
    %v6136 = vadd.f32 %v6120, %v6104
    %v6137 = vpack.c.bf16 %v6122, %v6121
    %v6138 = vpack.c.bf16 %v6124, %v6123
    %v6139 = vpack.c.bf16 %v6126, %v6125
    %v6140 = vpack.c.bf16 %v6128, %v6127
    %v6141 = vpack.c.bf16 %v6130, %v6129
    %v6142 = vpack.c.bf16 %v6132, %v6131
    %v6143 = vpack.c.bf16 %v6134, %v6133
    %v6144 = vpack.c.bf16 %v6136, %v6135
    %v6145 = vld [vmem:[%s5] sm:$0x1]
    %6146 = vmatprep.subr.bf16.mxu0 0
    %6147 = vmatpush1.bf16.msra.mxu0 %v6137
    %6148 = vmatprep.subr.bf16.mxu0 0
    %6149 = vmatpush1.bf16.msra.mxu0 %v6138
    %6150 = vmatprep.subr.bf16.mxu0 0
    %6151 = vmatpush1.bf16.msra.mxu0 %v6139
    %6152 = vmatprep.subr.bf16.mxu0 0
    %6153 = vmatpush1.bf16.msra.mxu0 %v6140
    %6154 = vmatprep.subr.bf16.mxu0 0
    %6155 = vmatpush1.bf16.msra.mxu0 %v6141
    %6156 = vmatprep.subr.bf16.mxu0 0
    %6157 = vmatpush1.bf16.msra.mxu0 %v6142
    %6158 = vmatprep.subr.bf16.mxu0 0
    %6159 = vmatpush1.bf16.msra.mxu0 %v6143
    %6160 = vmatprep.subr.bf16.mxu0 0
    %6161 = vmatpush1.bf16.msra.mxu0 %v6144
    %6162 = vmatprep.subr.bf16.mxu0 0
    %6163 = vmatpush1.bf16.msra.mxu0 0
    %6164 = vmatprep.subr.bf16.mxu0 0
    %6165 = vmatpush1.bf16.msra.mxu0 0
    %6166 = vmatprep.subr.bf16.mxu0 0
    %6167 = vmatpush1.bf16.msra.mxu0 0
    %6168 = vmatprep.subr.bf16.mxu0 0
    %6169 = vmatpush1.bf16.msra.mxu0 0
    %6170 = vmatprep.subr.bf16.mxu0 0
    %6171 = vmatpush1.bf16.msra.mxu0 0
    %6172 = vmatprep.subr.bf16.mxu0 0
    %6173 = vmatpush1.bf16.msra.mxu0 0
    %6174 = vmatprep.subr.bf16.mxu0 0
    %6175 = vmatpush1.bf16.msra.mxu0 0
    %6176 = vmatprep.subr.bf16.mxu0 0
    %6177 = vmatpush1.bf16.msra.mxu0 0
    %6178 = vmatprep.mubr.bf16.mxu0 0
    %6179 = vmatmul.mubr.bf16.gmra.mrb[0].mxu0 %v6145
    %v6180 = vpop.f32.mrb[0].mxu0
    %v6181 = vadd.f32 0.0, %v6180
    %v6182 = vpop.f32.mrb[0].mxu0
    %v6183 = vpop.f32.mrb[0].mxu0
    %v6184 = vpop.f32.mrb[0].mxu0
    %6185 = vdwg.mxu0
    %v6186 = vpack.c.bf16 %v6181, %v6181
    %v6187 = vld [vmem:[%s6] sm:$0xf]
    %v6188 = vld [vmem:[%s6 + $0x4] sm:$0xf]
    %v6189 = vld [vmem:[%s6 + $0x8] sm:$0xf]
    %v6190 = vld [vmem:[%s6 + $0xc] sm:$0xf]
    %v6191 = vld [vmem:[%s6 + $0x10] sm:$0xf]
    %v6192 = vld [vmem:[%s6 + $0x14] sm:$0xf]
    %v6193 = vld [vmem:[%s6 + $0x18] sm:$0xf]
    %v6194 = vld [vmem:[%s6 + $0x1c] sm:$0xf]
    %v6195 = vld [vmem:[%s7] sm:$0x1]
    %v6197 = vlaneseq
    %v6198 = vshrl.u32 %v6197, 7
    %v6199 = vsub.s32 0, %v6198
    %v6200 = vrot.slane %v6195, %v6199
    %v6210 = vunpack.c.l.b16 %v6187
    %v6211 = vunpack.c.l.b16 %v6188
    %v6212 = vunpack.c.l.b16 %v6189
    %v6213 = vunpack.c.l.b16 %v6190
    %v6214 = vunpack.c.l.b16 %v6191
    %v6215 = vunpack.c.l.b16 %v6192
    %v6216 = vunpack.c.l.b16 %v6193
    %v6217 = vunpack.c.l.b16 %v6194
    %v6218 = vpack.c.b16 %v6211, %v6210
    %v6219 = vpack.c.b16 %v6213, %v6212
    %v6220 = vpack.c.b16 %v6215, %v6214
    %v6221 = vpack.c.b16 %v6217, %v6216
    %v6227 = vsel %vm155, %v6186, 0
    %6229 = vmatprep.subr.bf16.mxu0 0
    %6230 = vmatpush1.bf16.msra.mxu0 %v6218
    %6231 = vmatprep.subr.bf16.mxu0 0
    %6232 = vmatpush1.bf16.msra.mxu0 %v6219
    %6233 = vmatprep.subr.bf16.mxu0 0
    %6234 = vmatpush1.bf16.msra.mxu0 %v6220
    %6235 = vmatprep.subr.bf16.mxu0 0
    %6236 = vmatpush1.bf16.msra.mxu0 %v6221
    %6237 = vmatprep.subr.bf16.mxu0 0
    %6238 = vmatpush1.bf16.msra.mxu0 0
    %6239 = vmatprep.subr.bf16.mxu0 0
    %6240 = vmatpush1.bf16.msra.mxu0 0
    %6241 = vmatprep.subr.bf16.mxu0 0
    %6242 = vmatpush1.bf16.msra.mxu0 0
    %6243 = vmatprep.subr.bf16.mxu0 0
    %6244 = vmatpush1.bf16.msra.mxu0 0
    %6245 = vmatprep.subr.bf16.mxu0 0
    %6246 = vmatpush1.bf16.msra.mxu0 0
    %6247 = vmatprep.subr.bf16.mxu0 0
    %6248 = vmatpush1.bf16.msra.mxu0 0
    %6249 = vmatprep.subr.bf16.mxu0 0
    %6250 = vmatpush1.bf16.msra.mxu0 0
    %6251 = vmatprep.subr.bf16.mxu0 0
    %6252 = vmatpush1.bf16.msra.mxu0 0
    %6253 = vmatprep.subr.bf16.mxu0 0
    %6254 = vmatpush1.bf16.msra.mxu0 0
    %6255 = vmatprep.subr.bf16.mxu0 0
    %6256 = vmatpush1.bf16.msra.mxu0 0
    %6257 = vmatprep.subr.bf16.mxu0 0
    %6258 = vmatpush1.bf16.msra.mxu0 0
    %6259 = vmatprep.subr.bf16.mxu0 0
    %6260 = vmatpush1.bf16.msra.mxu0 0
    %6261 = vmatprep.mubr.bf16.mxu0 0
    %6262 = vmatmul.mubr.bf16.gmra.mrb[0].mxu0 %v6227
    %v6263 = vpop.f32.mrb[0].mxu0
    %v6264 = vadd.f32 %v6200, %v6263
    %v6265 = vpop.f32.mrb[0].mxu0
    %v6266 = vpop.f32.mrb[0].mxu0
    %v6267 = vpop.f32.mrb[0].mxu0
    %6268 = vdwg.mxu0
    %v6269 = vpack.c.bf16 %v6264, %v6264
    %v6270 = vld [vmem:[%s8] sm:$0xf]
    %v6271 = vld [vmem:[%s8 + $0x4] sm:$0xf]
    %v6272 = vld [vmem:[%s8 + $0x8] sm:$0xf]
    %v6273 = vld [vmem:[%s8 + $0xc] sm:$0xf]
    %v6274 = vld [vmem:[%s9] sm:$0x1]
    %v6276 = vlaneseq
    %v6277 = vshrl.u32 %v6276, 7
    %v6278 = vsub.s32 0, %v6277
    %v6279 = vrot.slane %v6274, %v6278
    %v6285 = vunpack.c.l.b16 %v6270
    %v6286 = vunpack.c.l.b16 %v6271
    %v6287 = vunpack.c.l.b16 %v6272
    %v6288 = vunpack.c.l.b16 %v6273
    %v6289 = vpack.c.b16 %v6286, %v6285
    %v6290 = vpack.c.b16 %v6288, %v6287
    %vm6293 = vcmask 261120
    %v6295 = vsel %vm6293, %v6269, 0
    %6297 = vmatprep.subr.bf16.mxu0 0
    %6298 = vmatpush1.bf16.msra.mxu0 %v6289
    %6299 = vmatprep.subr.bf16.mxu0 0
    %6300 = vmatpush1.bf16.msra.mxu0 %v6290
    %6301 = vmatprep.subr.bf16.mxu0 0
    %6302 = vmatpush1.bf16.msra.mxu0 0
    %6303 = vmatprep.subr.bf16.mxu0 0
    %6304 = vmatpush1.bf16.msra.mxu0 0
    %6305 = vmatprep.subr.bf16.mxu0 0
    %6306 = vmatpush1.bf16.msra.mxu0 0
    %6307 = vmatprep.subr.bf16.mxu0 0
    %6308 = vmatpush1.bf16.msra.mxu0 0
    %6309 = vmatprep.subr.bf16.mxu0 0
    %6310 = vmatpush1.bf16.msra.mxu0 0
    %6311 = vmatprep.subr.bf16.mxu0 0
    %6312 = vmatpush1.bf16.msra.mxu0 0
    %6313 = vmatprep.subr.bf16.mxu0 0
    %6314 = vmatpush1.bf16.msra.mxu0 0
    %6315 = vmatprep.subr.bf16.mxu0 0
    %6316 = vmatpush1.bf16.msra.mxu0 0
    %6317 = vmatprep.subr.bf16.mxu0 0
    %6318 = vmatpush1.bf16.msra.mxu0 0
    %6319 = vmatprep.subr.bf16.mxu0 0
    %6320 = vmatpush1.bf16.msra.mxu0 0
    %6321 = vmatprep.subr.bf16.mxu0 0
    %6322 = vmatpush1.bf16.msra.mxu0 0
    %6323 = vmatprep.subr.bf16.mxu0 0
    %6324 = vmatpush1.bf16.msra.mxu0 0
    %6325 = vmatprep.subr.bf16.mxu0 0
    %6326 = vmatpush1.bf16.msra.mxu0 0
    %6327 = vmatprep.subr.bf16.mxu0 0
    %6328 = vmatpush1.bf16.msra.mxu0 0
    %6329 = vmatprep.mubr.bf16.mxu0 0
    %6330 = vmatmul.mubr.bf16.gmra.mrb[0].mxu0 %v6295
    %v6331 = vpop.f32.mrb[0].mxu0
    %v6332 = vadd.f32 %v6279, %v6331
    %v6333 = vpop.f32.mrb[0].mxu0
    %v6334 = vpop.f32.mrb[0].mxu0
    %v6335 = vpop.f32.mrb[0].mxu0
    %6336 = vdwg.mxu0
    %s6337 = scalar_lea.vmem %s8, 16
    %v6338 = vld [vmem:[%s6337] sm:$0xf]
    %v6339 = vld [vmem:[%s6337 + $0x4] sm:$0xf]
    %v6340 = vld [vmem:[%s6337 + $0x8] sm:$0xf]
    %v6341 = vld [vmem:[%s6337 + $0xc] sm:$0xf]
    %s6342 = scalar_lea.vmem %s9, 1
    %v6343 = vld [vmem:[%s6342] sm:$0x1]
    %v6345 = vlaneseq
    %v6346 = vshrl.u32 %v6345, 7
    %v6347 = vsub.s32 0, %v6346
    %v6348 = vrot.slane %v6343, %v6347
    %v6354 = vunpack.c.l.b16 %v6338
    %v6355 = vunpack.c.l.b16 %v6339
    %v6356 = vunpack.c.l.b16 %v6340
    %v6357 = vunpack.c.l.b16 %v6341
    %v6358 = vpack.c.b16 %v6355, %v6354
    %v6359 = vpack.c.b16 %v6357, %v6356
    %6362 = vmatprep.subr.bf16.mxu0 0
    %6363 = vmatpush1.bf16.msra.mxu0 %v6358
    %6364 = vmatprep.subr.bf16.mxu0 0
    %6365 = vmatpush1.bf16.msra.mxu0 %v6359
    %6366 = vmatprep.subr.bf16.mxu0 0
    %6367 = vmatpush1.bf16.msra.mxu0 0
    %6368 = vmatprep.subr.bf16.mxu0 0
    %6369 = vmatpush1.bf16.msra.mxu0 0
    %6370 = vmatprep.subr.bf16.mxu0 0
    %6371 = vmatpush1.bf16.msra.mxu0 0
    %6372 = vmatprep.subr.bf16.mxu0 0
    %6373 = vmatpush1.bf16.msra.mxu0 0
    %6374 = vmatprep.subr.bf16.mxu0 0
    %6375 = vmatpush1.bf16.msra.mxu0 0
    %6376 = vmatprep.subr.bf16.mxu0 0
    %6377 = vmatpush1.bf16.msra.mxu0 0
    %6378 = vmatprep.subr.bf16.mxu0 0
    %6379 = vmatpush1.bf16.msra.mxu0 0
    %6380 = vmatprep.subr.bf16.mxu0 0
    %6381 = vmatpush1.bf16.msra.mxu0 0
    %6382 = vmatprep.subr.bf16.mxu0 0
    %6383 = vmatpush1.bf16.msra.mxu0 0
    %6384 = vmatprep.subr.bf16.mxu0 0
    %6385 = vmatpush1.bf16.msra.mxu0 0
    %6386 = vmatprep.subr.bf16.mxu0 0
    %6387 = vmatpush1.bf16.msra.mxu0 0
    %6388 = vmatprep.subr.bf16.mxu0 0
    %6389 = vmatpush1.bf16.msra.mxu0 0
    %6390 = vmatprep.subr.bf16.mxu0 0
    %6391 = vmatpush1.bf16.msra.mxu0 0
    %6392 = vmatprep.subr.bf16.mxu0 0
    %6393 = vmatpush1.bf16.msra.mxu0 0
    %6394 = vmatprep.mubr.bf16.mxu0 0
    %6395 = vmatmul.mubr.bf16.gmra.mrb[0].mxu0 %v6295
    %v6396 = vpop.f32.mrb[0].mxu0
    %v6397 = vadd.f32 %v6348, %v6396
    %v6398 = vpop.f32.mrb[0].mxu0
    %v6399 = vpop.f32.mrb[0].mxu0
    %v6400 = vpop.f32.mrb[0].mxu0
    %6401 = vdwg.mxu0
    %s6402 = scalar_lea.vmem %s8, 32
    %v6403 = vld [vmem:[%s6402] sm:$0xf]
    %v6404 = vld [vmem:[%s6402 + $0x4] sm:$0xf]
    %v6405 = vld [vmem:[%s6402 + $0x8] sm:$0xf]
    %v6406 = vld [vmem:[%s6402 + $0xc] sm:$0xf]
    %s6407 = scalar_lea.vmem %s9, 2
    %v6408 = vld [vmem:[%s6407] sm:$0x1]
    %v6410 = vlaneseq
    %v6411 = vshrl.u32 %v6410, 7
    %v6412 = vsub.s32 0, %v6411
    %v6413 = vrot.slane %v6408, %v6412
    %v6419 = vunpack.c.l.b16 %v6403
    %v6420 = vunpack.c.l.b16 %v6404
    %v6421 = vunpack.c.l.b16 %v6405
    %v6422 = vunpack.c.l.b16 %v6406
    %v6423 = vpack.c.b16 %v6420, %v6419
    %v6424 = vpack.c.b16 %v6422, %v6421
    %6427 = vmatprep.subr.bf16.mxu0 0
    %6428 = vmatpush1.bf16.msra.mxu0 %v6423
    %6429 = vmatprep.subr.bf16.mxu0 0
    %6430 = vmatpush1.bf16.msra.mxu0 %v6424
    %6431 = vmatprep.subr.bf16.mxu0 0
    %6432 = vmatpush1.bf16.msra.mxu0 0
    %6433 = vmatprep.subr.bf16.mxu0 0
    %6434 = vmatpush1.bf16.msra.mxu0 0
    %6435 = vmatprep.subr.bf16.mxu0 0
    %6436 = vmatpush1.bf16.msra.mxu0 0
    %6437 = vmatprep.subr.bf16.mxu0 0
    %6438 = vmatpush1.bf16.msra.mxu0 0
    %6439 = vmatprep.subr.bf16.mxu0 0
    %6440 = vmatpush1.bf16.msra.mxu0 0
    %6441 = vmatprep.subr.bf16.mxu0 0
    %6442 = vmatpush1.bf16.msra.mxu0 0
    %6443 = vmatprep.subr.bf16.mxu0 0
    %6444 = vmatpush1.bf16.msra.mxu0 0
    %6445 = vmatprep.subr.bf16.mxu0 0
    %6446 = vmatpush1.bf16.msra.mxu0 0
    %6447 = vmatprep.subr.bf16.mxu0 0
    %6448 = vmatpush1.bf16.msra.mxu0 0
    %6449 = vmatprep.subr.bf16.mxu0 0
    %6450 = vmatpush1.bf16.msra.mxu0 0
    %6451 = vmatprep.subr.bf16.mxu0 0
    %6452 = vmatpush1.bf16.msra.mxu0 0
    %6453 = vmatprep.subr.bf16.mxu0 0
    %6454 = vmatpush1.bf16.msra.mxu0 0
    %6455 = vmatprep.subr.bf16.mxu0 0
    %6456 = vmatpush1.bf16.msra.mxu0 0
    %6457 = vmatprep.subr.bf16.mxu0 0
    %6458 = vmatpush1.bf16.msra.mxu0 0
    %6459 = vmatprep.mubr.bf16.mxu0 0
    %6460 = vmatmul.mubr.bf16.gmra.mrb[0].mxu0 %v6295
    %v6461 = vpop.f32.mrb[0].mxu0
    %v6462 = vadd.f32 %v6413, %v6461
    %v6463 = vpop.f32.mrb[0].mxu0
    %v6464 = vpop.f32.mrb[0].mxu0
    %v6465 = vpop.f32.mrb[0].mxu0
    %6466 = vdwg.mxu0
    %v6467 = vmax.f32 %v6332, %v6397
    %v6468 = vmax.f32 %v6467, %v6462
    %v6469 = vsub.f32 %v6332, %v6468
    %v6470 = vmul.f32 %v6469, 1.442695
    %v6471 = vpow.pop %v6470
    %v6472 = vsub.f32 %v6397, %v6468
    %v6473 = vmul.f32 %v6472, 1.442695
    %v6474 = vpow.pop %v6473
    %v6475 = vsub.f32 %v6462, %v6468
    %v6476 = vmul.f32 %v6475, 1.442695
    %v6477 = vpow.pop %v6476
    %v6478 = vadd.f32 %v6471, %v6474
    %v6479 = vadd.f32 %v6478, %v6477
    %v6480 = vrcp.pop %v6479
    %v6481 = vmul.f32 %v6471, %v6480
    %v6482 = vmul.f32 %v6474, %v6480
    %v6483 = vmul.f32 %v6477, %v6480
    %v6486 = vunpack.c.l.s4 1966171168
    %v6487 = vunpack.c.0.s8 %v6486
    %v6488 = vlaneseq
    %v6489 = vshrl.u32 %v6488, 7
    %v6490 = vsub.s32 %v6487, %v6489
    %v6491 = vrot.slane %v6481, %v6490
    %v6492 = vcombine.high %v6491, %v6491
    %v6494 = vunpack.c.l.s4 1966171168
    %v6495 = vunpack.c.0.s8 %v6494
    %v6496 = vlaneseq
    %v6497 = vshrl.u32 %v6496, 7
    %v6498 = vsub.s32 %v6495, %v6497
    %v6499 = vrot.slane %v6491, %v6498
    %v6501 = vunpack.c.l.s4 1966171168
    %v6502 = vunpack.c.0.s8 %v6501
    %v6503 = vlaneseq
    %v6504 = vshrl.u32 %v6503, 7
    %v6505 = vsub.s32 %v6502, %v6504
    %v6506 = vrot.slane %v6492, %v6505
    %v6507 = vlaneseq
    %v6508 = vshrl.u32 %v6507, 7
    %v6509 = vsub.s32 0, %v6508
    %v6510 = vrot.slane %v6499, %v6509
    %v6511 = vlaneseq
    %v6512 = vshrl.u32 %v6511, 7
    %v6513 = vsub.s32 0, %v6512
    %v6514 = vrot.slane %v6506, %v6513
    %v6517 = vmul.f32 %v6009, %v6510
    %v6518 = vmul.f32 %v6010, %v6510
    %v6519 = vmul.f32 %v6011, %v6510
    %v6520 = vmul.f32 %v6012, %v6510
    %v6521 = vmul.f32 %v6013, %v6510
    %v6522 = vmul.f32 %v6014, %v6510
    %v6523 = vmul.f32 %v6015, %v6510
    %v6524 = vmul.f32 %v6016, %v6510
    %v6525 = vmul.f32 %v6017, %v6514
    %v6526 = vmul.f32 %v6018, %v6514
    %v6527 = vmul.f32 %v6019, %v6514
    %v6528 = vmul.f32 %v6020, %v6514
    %v6529 = vmul.f32 %v6021, %v6514
    %v6530 = vmul.f32 %v6022, %v6514
    %v6531 = vmul.f32 %v6023, %v6514
    %v6532 = vmul.f32 %v6024, %v6514
    %v6535 = vunpack.c.l.s4 1966171168
    %v6536 = vunpack.c.0.s8 %v6535
    %v6537 = vlaneseq
    %v6538 = vshrl.u32 %v6537, 7
    %v6539 = vsub.s32 %v6536, %v6538
    %v6540 = vrot.slane %v6482, %v6539
    %v6541 = vcombine.high %v6540, %v6540
    %v6543 = vunpack.c.l.s4 1966171168
    %v6544 = vunpack.c.0.s8 %v6543
    %v6545 = vlaneseq
    %v6546 = vshrl.u32 %v6545, 7
    %v6547 = vsub.s32 %v6544, %v6546
    %v6548 = vrot.slane %v6540, %v6547
    %v6550 = vunpack.c.l.s4 1966171168
    %v6551 = vunpack.c.0.s8 %v6550
    %v6552 = vlaneseq
    %v6553 = vshrl.u32 %v6552, 7
    %v6554 = vsub.s32 %v6551, %v6553
    %v6555 = vrot.slane %v6541, %v6554
    %v6556 = vlaneseq
    %v6557 = vshrl.u32 %v6556, 7
    %v6558 = vsub.s32 0, %v6557
    %v6559 = vrot.slane %v6548, %v6558
    %v6560 = vlaneseq
    %v6561 = vshrl.u32 %v6560, 7
    %v6562 = vsub.s32 0, %v6561
    %v6563 = vrot.slane %v6555, %v6562
    %v6566 = vmul.f32 %v6049, %v6559
    %v6567 = vmul.f32 %v6050, %v6559
    %v6568 = vmul.f32 %v6051, %v6559
    %v6569 = vmul.f32 %v6052, %v6559
    %v6570 = vmul.f32 %v6053, %v6559
    %v6571 = vmul.f32 %v6054, %v6559
    %v6572 = vmul.f32 %v6055, %v6559
    %v6573 = vmul.f32 %v6056, %v6559
    %v6574 = vmul.f32 %v6057, %v6563
    %v6575 = vmul.f32 %v6058, %v6563
    %v6576 = vmul.f32 %v6059, %v6563
    %v6577 = vmul.f32 %v6060, %v6563
    %v6578 = vmul.f32 %v6061, %v6563
    %v6579 = vmul.f32 %v6062, %v6563
    %v6580 = vmul.f32 %v6063, %v6563
    %v6581 = vmul.f32 %v6064, %v6563
    %v6582 = vadd.f32 %v6517, %v6566
    %v6583 = vadd.f32 %v6518, %v6567
    %v6584 = vadd.f32 %v6519, %v6568
    %v6585 = vadd.f32 %v6520, %v6569
    %v6586 = vadd.f32 %v6521, %v6570
    %v6587 = vadd.f32 %v6522, %v6571
    %v6588 = vadd.f32 %v6523, %v6572
    %v6589 = vadd.f32 %v6524, %v6573
    %v6590 = vadd.f32 %v6525, %v6574
    %v6591 = vadd.f32 %v6526, %v6575
    %v6592 = vadd.f32 %v6527, %v6576
    %v6593 = vadd.f32 %v6528, %v6577
    %v6594 = vadd.f32 %v6529, %v6578
    %v6595 = vadd.f32 %v6530, %v6579
    %v6596 = vadd.f32 %v6531, %v6580
    %v6597 = vadd.f32 %v6532, %v6581
    %v6600 = vunpack.c.l.s4 1966171168
    %v6601 = vunpack.c.0.s8 %v6600
    %v6602 = vlaneseq
    %v6603 = vshrl.u32 %v6602, 7
    %v6604 = vsub.s32 %v6601, %v6603
    %v6605 = vrot.slane %v6483, %v6604
    %v6606 = vcombine.high %v6605, %v6605
    %v6608 = vunpack.c.l.s4 1966171168
    %v6609 = vunpack.c.0.s8 %v6608
    %v6610 = vlaneseq
    %v6611 = vshrl.u32 %v6610, 7
    %v6612 = vsub.s32 %v6609, %v6611
    %v6613 = vrot.slane %v6605, %v6612
    %v6615 = vunpack.c.l.s4 1966171168
    %v6616 = vunpack.c.0.s8 %v6615
    %v6617 = vlaneseq
    %v6618 = vshrl.u32 %v6617, 7
    %v6619 = vsub.s32 %v6616, %v6618
    %v6620 = vrot.slane %v6606, %v6619
    %v6621 = vlaneseq
    %v6622 = vshrl.u32 %v6621, 7
    %v6623 = vsub.s32 0, %v6622
    %v6624 = vrot.slane %v6613, %v6623
    %v6625 = vlaneseq
    %v6626 = vshrl.u32 %v6625, 7
    %v6627 = vsub.s32 0, %v6626
    %v6628 = vrot.slane %v6620, %v6627
    %v6631 = vmul.f32 %v6089, %v6624
    %v6632 = vmul.f32 %v6090, %v6624
    %v6633 = vmul.f32 %v6091, %v6624
    %v6634 = vmul.f32 %v6092, %v6624
    %v6635 = vmul.f32 %v6093, %v6624
    %v6636 = vmul.f32 %v6094, %v6624
    %v6637 = vmul.f32 %v6095, %v6624
    %v6638 = vmul.f32 %v6096, %v6624
    %v6639 = vmul.f32 %v6097, %v6628
    %v6640 = vmul.f32 %v6098, %v6628
    %v6641 = vmul.f32 %v6099, %v6628
    %v6642 = vmul.f32 %v6100, %v6628
    %v6643 = vmul.f32 %v6101, %v6628
    %v6644 = vmul.f32 %v6102, %v6628
    %v6645 = vmul.f32 %v6103, %v6628
    %v6646 = vmul.f32 %v6104, %v6628
    %v6647 = vadd.f32 %v6582, %v6631
    %v6648 = vadd.f32 %v6583, %v6632
    %v6649 = vadd.f32 %v6584, %v6633
    %v6650 = vadd.f32 %v6585, %v6634
    %v6651 = vadd.f32 %v6586, %v6635
    %v6652 = vadd.f32 %v6587, %v6636
    %v6653 = vadd.f32 %v6588, %v6637
    %v6654 = vadd.f32 %v6589, %v6638
    %v6655 = vadd.f32 %v6590, %v6639
    %v6656 = vadd.f32 %v6591, %v6640
    %v6657 = vadd.f32 %v6592, %v6641
    %v6658 = vadd.f32 %v6593, %v6642
    %v6659 = vadd.f32 %v6594, %v6643
    %v6660 = vadd.f32 %v6595, %v6644
    %v6661 = vadd.f32 %v6596, %v6645
    %v6662 = vadd.f32 %v6597, %v6646
    %v6663 = vpack.c.bf16 %v6648, %v6647
    %v6664 = vpack.c.bf16 %v6650, %v6649
    %v6665 = vpack.c.bf16 %v6652, %v6651
    %v6666 = vpack.c.bf16 %v6654, %v6653
    %v6667 = vpack.c.bf16 %v6656, %v6655
    %v6668 = vpack.c.bf16 %v6658, %v6657
    %v6669 = vpack.c.bf16 %v6660, %v6659
    %v6670 = vpack.c.bf16 %v6662, %v6661
    %v6679 = vunpack.c.l.b16 %v6663
    %v6680 = vunpack.c.h.b16 %v6663
    %v6681 = vunpack.c.l.b16 %v6664
    %v6682 = vunpack.c.h.b16 %v6664
    %v6683 = vunpack.c.l.b16 %v6665
    %v6684 = vunpack.c.h.b16 %v6665
    %v6685 = vunpack.c.l.b16 %v6666
    %v6686 = vunpack.c.h.b16 %v6666
    %v6687 = vunpack.c.l.b16 %v6667
    %v6688 = vunpack.c.h.b16 %v6667
    %v6689 = vunpack.c.l.b16 %v6668
    %v6690 = vunpack.c.h.b16 %v6668
    %v6691 = vunpack.c.l.b16 %v6669
    %v6692 = vunpack.c.h.b16 %v6669
    %v6693 = vunpack.c.l.b16 %v6670
    %v6694 = vunpack.c.h.b16 %v6670
    %v6695 = vpack.c.b16 %v6679, %v6679
    %v6696 = vpack.c.b16 %v6680, %v6680
    %v6697 = vpack.c.b16 %v6681, %v6681
    %v6698 = vpack.c.b16 %v6682, %v6682
    %v6699 = vpack.c.b16 %v6683, %v6683
    %v6700 = vpack.c.b16 %v6684, %v6684
    %v6701 = vpack.c.b16 %v6685, %v6685
    %v6702 = vpack.c.b16 %v6686, %v6686
    %v6703 = vpack.c.b16 %v6687, %v6687
    %v6704 = vpack.c.b16 %v6688, %v6688
    %v6705 = vpack.c.b16 %v6689, %v6689
    %v6706 = vpack.c.b16 %v6690, %v6690
    %v6707 = vpack.c.b16 %v6691, %v6691
    %v6708 = vpack.c.b16 %v6692, %v6692
    %v6709 = vpack.c.b16 %v6693, %v6693
    %v6710 = vpack.c.b16 %v6694, %v6694
    %vm6727 = vcmask 519168
    %6728 = vst.msk [vmem:[%s10] sm:$0xf] %vm6727, %v6695
    %6729 = vst.msk [vmem:[%s10 + $0x4] sm:$0xf] %vm6727, %v6696
    %6730 = vst.msk [vmem:[%s10 + $0x8] sm:$0xf] %vm6727, %v6697
    %6731 = vst.msk [vmem:[%s10 + $0xc] sm:$0xf] %vm6727, %v6698
    %6732 = vst.msk [vmem:[%s10 + $0x10] sm:$0xf] %vm6727, %v6699
    %6733 = vst.msk [vmem:[%s10 + $0x14] sm:$0xf] %vm6727, %v6700
    %6734 = vst.msk [vmem:[%s10 + $0x18] sm:$0xf] %vm6727, %v6701
    %6735 = vst.msk [vmem:[%s10 + $0x1c] sm:$0xf] %vm6727, %v6702
    %6736 = vst.msk [vmem:[%s10 + $0x20] sm:$0xf] %vm6727, %v6703
    %6737 = vst.msk [vmem:[%s10 + $0x24] sm:$0xf] %vm6727, %v6704
    %6738 = vst.msk [vmem:[%s10 + $0x28] sm:$0xf] %vm6727, %v6705
    %6739 = vst.msk [vmem:[%s10 + $0x2c] sm:$0xf] %vm6727, %v6706
    %6740 = vst.msk [vmem:[%s10 + $0x30] sm:$0xf] %vm6727, %v6707
    %6741 = vst.msk [vmem:[%s10 + $0x34] sm:$0xf] %vm6727, %v6708
    %6742 = vst.msk [vmem:[%s10 + $0x38] sm:$0xf] %vm6727, %v6709
    %6743 = vst.msk [vmem:[%s10 + $0x3c] sm:$0xf] %vm6727, %v6710
    // Predicated region
    $region46: #{sk_attention_pallas.1} parent=1 // pred_check
      _
    $region47: #{sk_attention_pallas.1} parent=1 // pred_check_branch
      %6745 = sbr.rel (0) target = $region49
    $region48: #{sk_attention_pallas.1} parent=1 // pred_region
      _
    $region49: #{sk_attention_pallas.1} parent=1 // pred_fallthru
      _
    // Predicated region
    $region50: #{sk_attention_pallas.1} parent=1 // pred_check
      _
    $region51: #{sk_attention_pallas.1} parent=1 // pred_check_branch
      %6747 = sbr.rel (0) target = $region53
    $region52: #{sk_attention_pallas.1} parent=1 // pred_region
      _
    $region53: #{sk_attention_pallas.1} parent=1 // pred_fallthru
      _
    %6748 = vsyncpa [#allocation3], 1

</llo_original>
